<compile_context>
chip_gen: v5e
topology: v5e:2x2
jax: 0.10.0
libtpu: 0.0.40
codegen_flags: <defaults>
</compile_context>

<pallas_src>
import functools

import jax
import jax.numpy as jnp
from jax.experimental import pallas as pl
from jax.experimental.pallas import tpu as pltpu

LANES = 128
H = W = 32                  # input spatial size dictated by fc1 (16*5*5 features)
HW = H * W                  # rows per image in the conv1 geometry
K = 5                       # conv kernel size
C_IN, C1, C2 = 3, 6, 16
F1, F2, F3 = 120, 84, 10
P1_H = 14                   # pooled-1 spatial size (28 / 2)
P2_H = 5                    # pooled-2 spatial size (10 / 2)
PSTRIDE1 = 16               # row stride per pooled-1 image row (14 -> 16)
PSTRIDE2 = 8                # row stride per pooled-2 image row (5 -> 8)
BLK1 = P1_H * PSTRIDE1      # 224 rows / image in the pooled-1 buffers
BLK2 = P2_H * PSTRIDE2      # 40 rows / image in the pooled-2 buffers
KTAPS1 = K * K * C_IN       # 75 packed-K lanes for conv1


def _round8(v):
    return (v + 7) // 8 * 8


# ----------------------------------------------------------------------------
# The single fused kernel
# ----------------------------------------------------------------------------
def _lenet_kernel(y_ref, xp_ref, w1_ref, b1_ref, w2_ref, b2_ref,
                  wf1_ref, bf1_ref, wf2_ref, bf2_ref, wf3_ref, bf3_ref,
                  o_ref, acc1_ref, p1b_ref, p1p_ref, acc2_ref, p2b_ref, p2p_ref,
                  *, batch):
    f32 = jnp.float32
    n1 = batch * HW                      # conv1 output rows (b, h, w)
    np1 = batch * BLK1                   # pooled-1 rows (b, ph, pw) @ stride 16
    m2 = np1 - (K - 1) * PSTRIDE1        # conv2 output rows covered
    np2 = batch * BLK2                   # pooled-2 rows (b, p2h, p2w) @ stride 8

    # ---- conv1 (+bias, ReLU): ONE matmul, 25 taps x 3 channels packed in K ---
    acc1_ref[...] = jnp.maximum(
        jnp.dot(xp_ref[...], w1_ref[...], preferred_element_type=f32)
        + b1_ref[...], 0.0)

    # ---- zero the pooled buffers once (pad rows must be finite / zero) -------
    p1b_ref[...] = jnp.zeros_like(p1b_ref)
    p2b_ref[...] = jnp.zeros_like(p2b_ref)

    # ---- maxpool 2x2/2 #1: strided sublane gathers, no selection matmul ------
    for b in range(batch):
        for ph in range(P1_H):
            s = b * HW + 2 * ph * W
            t = jnp.maximum(
                jnp.maximum(acc1_ref[pl.ds(s, P1_H, stride=2), :],
                            acc1_ref[pl.ds(s + 1, P1_H, stride=2), :]),
                jnp.maximum(acc1_ref[pl.ds(s + W, P1_H, stride=2), :],
                            acc1_ref[pl.ds(s + W + 1, P1_H, stride=2), :]))
            p1b_ref[pl.ds(b * BLK1 + ph * PSTRIDE1, P1_H), :] = t

    # ---- lane-pack conv2's kw taps: p1p[r, 6*kw + c] = p1b[r + kw, c] --------
    # (lanes >= 6 of p1b are exactly zero, so the roll wrap-around is harmless)
    pk = p1b_ref[pl.ds(0, np1), :]
    for kw in range(1, K):
        pk = pk + jnp.roll(p1b_ref[pl.ds(kw, np1), :], C1 * kw, axis=1)
    p1p_ref[...] = pk

    # ---- conv2 (+bias, ReLU): 5 matmuls (one per kernel row), value accum ----
    acc2 = jnp.dot(p1p_ref[pl.ds(0, m2), :], w2_ref[0], preferred_element_type=f32)
    for kh in range(1, K):
        acc2 = acc2 + jnp.dot(p1p_ref[pl.ds(kh * PSTRIDE1, m2), :], w2_ref[kh],
                              preferred_element_type=f32)
    acc2_ref[...] = jnp.maximum(acc2 + b2_ref[...], 0.0)

    # ---- maxpool 2x2/2 #2 with `if y > 0: x[i][y] = 0` fused into the write --
    yv = y_ref[0]
    pw_i = jax.lax.broadcasted_iota(jnp.int32, (P2_H, LANES), 0)   # p2w index
    c_i = jax.lax.broadcasted_iota(jnp.int32, (P2_H, LANES), 1)    # channel idx
    for b in range(batch):
        for ph in range(P2_H):
            s = b * BLK1 + 2 * ph * PSTRIDE1
            t = jnp.maximum(
                jnp.maximum(acc2_ref[pl.ds(s, P2_H, stride=2), :],
                            acc2_ref[pl.ds(s + 1, P2_H, stride=2), :]),
                jnp.maximum(acc2_ref[pl.ds(s + PSTRIDE1, P2_H, stride=2), :],
                            acc2_ref[pl.ds(s + PSTRIDE1 + 1, P2_H, stride=2), :]))
            flat = c_i * (P2_H * P2_H) + ph * P2_H + pw_i          # NCHW flatten
            zero = (yv > 0) & (c_i < C2) & (flat == yv)
            p2b_ref[pl.ds(b * BLK2 + ph * PSTRIDE2, P2_H), :] = jnp.where(zero, 0.0, t)

    # ---- lane-pack fc1's kw taps: p2p[r, 16*kw + c] = p2b[r + kw, c] ---------
    pk2 = p2b_ref[pl.ds(0, np2), :]
    for kw in range(1, K):
        pk2 = pk2 + jnp.roll(p2b_ref[pl.ds(kw, np2), :], C2 * kw, axis=1)
    p2p_ref[...] = pk2

    # ---- fc1 (batched over images via strided one-row-per-image LHS) ---------
    acc = jnp.dot(p2p_ref[pl.ds(0, batch, stride=BLK2), :], wf1_ref[0],
                  preferred_element_type=f32)
    for kh in range(1, K):
        acc = acc + jnp.dot(p2p_ref[pl.ds(kh * PSTRIDE2, batch, stride=BLK2), :],
                            wf1_ref[kh], preferred_element_type=f32)
    z = jnp.maximum(acc + bf1_ref[...], 0.0)
    z = jnp.maximum(jnp.dot(z, wf2_ref[...], preferred_element_type=f32)
                    + bf2_ref[...], 0.0)
    z = jnp.dot(z, wf3_ref[...], preferred_element_type=f32) + bf3_ref[...]

    # ---- padded, lane-dense output store (extra rows zero, sliced off later) -
    if o_ref.shape[0] > batch:
        o_ref[...] = jnp.zeros_like(o_ref)
    o_ref[pl.ds(0, batch), :] = z


# ----------------------------------------------------------------------------
# Host-side parameter packing (done once) and the fused forward pass
# ----------------------------------------------------------------------------
def pack_params(p):
    def padto(a, shape):
        return jnp.pad(a, [(0, s - d) for d, s in zip(a.shape, shape)]).astype(jnp.float32)

    # conv1: K-packed lane (kh*5 + kw)*3 + c  ->  output channel oc
    w1 = jnp.transpose(p["conv1_w"], (2, 3, 1, 0)).reshape(K * K * C_IN, C1)
    # conv2: per kernel row kh, packed row kw*6 + c  ->  oc
    w2 = jnp.transpose(p["conv2_w"], (2, 3, 1, 0)).reshape(K, K * C1, C2)
    # fc1 as a 5x5 valid conv: per kh, packed row kw*16 + c  ->  feature f
    wf1 = jnp.transpose(p["fc1_w"].reshape(F1, C2, K, K), (2, 3, 1, 0)).reshape(K, K * C2, F1)

    return {
        "w1": padto(w1, (LANES, LANES)),
        "b1": padto(p["conv1_b"], (LANES,))[None, :],
        "w2": padto(w2, (K, LANES, LANES)),
        "b2": padto(p["conv2_b"], (LANES,))[None, :],
        "wf1": padto(wf1, (K, LANES, LANES)),
        "bf1": padto(p["fc1_b"], (LANES,))[None, :],
        "wf2": padto(p["fc2_w"].T, (LANES, LANES)),
        "bf2": padto(p["fc2_b"], (LANES,))[None, :],
        "wf3": padto(p["fc3_w"].T, (LANES, LANES)),
        "bf3": padto(p["fc3_b"], (LANES,))[None, :],
    }


def _build_xp(x):
    """Rows = (b, h, w) row-major; lanes = 25 (kh,kw) taps x 3 channels (K-packed)."""
    batch = x.shape[0]
    n1 = batch * HW
    xr = jnp.transpose(x, (0, 2, 3, 1)).reshape(n1, C_IN).astype(jnp.float32)
    xr = jnp.pad(xr, ((0, (K - 1) * (W + 1) + 8), (0, 0)))
    taps = [xr[kh * W + kw: kh * W + kw + n1, :] for kh in range(K) for kw in range(K)]
    pad = jnp.zeros((n1, LANES - KTAPS1), jnp.float32)
    return jnp.concatenate(taps + [pad], axis=1)


def net_forward(packed, x, y):
    batch = x.shape[0]
    n1 = batch * HW
    np1 = batch * BLK1
    m2 = np1 - (K - 1) * PSTRIDE1
    np2 = batch * BLK2
    out_rows = _round8(batch)

    xp = _build_xp(x)
    kernel = functools.partial(_lenet_kernel, batch=batch)
    vmem = pl.BlockSpec(memory_space=pltpu.MemorySpace.VMEM)
    smem = pl.BlockSpec(memory_space=pltpu.MemorySpace.SMEM)
    out = pl.pallas_call(
        kernel,
        out_shape=jax.ShapeDtypeStruct((out_rows, LANES), jnp.float32),
        in_specs=[smem] + [vmem] * 11,
        out_specs=vmem,
        scratch_shapes=[
            pltpu.VMEM((n1, LANES), jnp.float32),        # conv1 activations
            pltpu.VMEM((np1 + 8, LANES), jnp.float32),   # pooled-1 (basic)
            pltpu.VMEM((np1, LANES), jnp.float32),       # pooled-1 (kw lane-packed)
            pltpu.VMEM((m2, LANES), jnp.float32),        # conv2 activations
            pltpu.VMEM((np2 + 8, LANES), jnp.float32),   # pooled-2 (basic, masked)
            pltpu.VMEM((np2, LANES), jnp.float32),       # pooled-2 (kw lane-packed)
        ],
        # ~4 MiB used at batch=2; raise (or switch to a batch grid) for large
        # batches per the review.
        compiler_params=pltpu.CompilerParams(vmem_limit_bytes=32 * 1024 * 1024),
    )(y, xp, packed["w1"], packed["b1"], packed["w2"], packed["b2"],
      packed["wf1"], packed["bf1"], packed["wf2"], packed["bf2"],
      packed["wf3"], packed["bf3"])
    return out[:batch, :F3]


# ----------------------------------------------------------------------------
# Parameters (deterministic, PyTorch-default-style uniform init, torch shapes)
# ----------------------------------------------------------------------------
def _uniform(key, shape, fan_in):
    bound = 1.0 / jnp.sqrt(jnp.float32(fan_in))
    return jax.random.uniform(key, shape, jnp.float32, -bound, bound)


def init_params(key):
    ks = jax.random.split(key, 10)
    return {
        "conv1_w": _uniform(ks[0], (C1, C_IN, K, K), C_IN * K * K),
        "conv1_b": _uniform(ks[1], (C1,), C_IN * K * K),
        "conv2_w": _uniform(ks[2], (C2, C1, K, K), C1 * K * K),
        "conv2_b": _uniform(ks[3], (C2,), C1 * K * K),
        "fc1_w": _uniform(ks[4], (F1, C2 * P2_H * P2_H), C2 * P2_H * P2_H),
        "fc1_b": _uniform(ks[5], (F1,), C2 * P2_H * P2_H),
        "fc2_w": _uniform(ks[6], (F2, F1), F1),
        "fc2_b": _uniform(ks[7], (F2,), F1),
        "fc3_w": _uniform(ks[8], (F3, F2), F2),
        "fc3_b": _uniform(ks[9], (F3,), F2),
    }


if __name__ == "__main__":
    key = jax.random.PRNGKey(0)
    pkey, xkey = jax.random.split(key)
    params = init_params(pkey)
    packed = pack_params(params)          # one-time weight permutation / padding

    x = jax.random.normal(xkey, (2, C_IN, H, W), jnp.float32)
    y = jnp.array([3], dtype=jnp.int32)   # y > 0 -> flattened feature 3 zeroed

    fwd = jax.jit(net_forward)
    out = jax.block_until_ready(fwd(packed, x, y))
    assert out.shape == (2, F3) and out.dtype == jnp.float32
    assert bool(jnp.all(jnp.isfinite(out)))
    print("KERNEL_OK")
</pallas_src>

<mosaic_0001>
module attributes {stable_mosaic.version = 11 : i64} {
  func.func @_lenet_kernel(%arg0: memref<1xi32, #tpu.memory_space<smem>>, %arg1: memref<2048x128xf32, #tpu.memory_space<vmem>>, %arg2: memref<128x128xf32, #tpu.memory_space<vmem>>, %arg3: memref<1x128xf32, #tpu.memory_space<vmem>>, %arg4: memref<5x128x128xf32, #tpu.memory_space<vmem>>, %arg5: memref<1x128xf32, #tpu.memory_space<vmem>>, %arg6: memref<5x128x128xf32, #tpu.memory_space<vmem>>, %arg7: memref<1x128xf32, #tpu.memory_space<vmem>>, %arg8: memref<128x128xf32, #tpu.memory_space<vmem>>, %arg9: memref<1x128xf32, #tpu.memory_space<vmem>>, %arg10: memref<128x128xf32, #tpu.memory_space<vmem>>, %arg11: memref<1x128xf32, #tpu.memory_space<vmem>>, %arg12: memref<8x128xf32, #tpu.memory_space<vmem>>, %arg13: memref<2048x128xf32, #tpu.memory_space<vmem>>, %arg14: memref<456x128xf32, #tpu.memory_space<vmem>>, %arg15: memref<448x128xf32, #tpu.memory_space<vmem>>, %arg16: memref<384x128xf32, #tpu.memory_space<vmem>>, %arg17: memref<88x128xf32, #tpu.memory_space<vmem>>, %arg18: memref<80x128xf32, #tpu.memory_space<vmem>>) attributes {dimension_semantics = [], scalar_prefetch = 0 : i64, scratch_operands = 6 : i64, tpu.core_type = #tpu.core_type<tc>} {
    %c0 = arith.constant 0 : index
    %c0_0 = arith.constant 0 : index
    %0 = vector.load %arg1[%c0, %c0_0] : memref<2048x128xf32, #tpu.memory_space<vmem>>, vector<2048x128xf32>
    %c0_1 = arith.constant 0 : index
    %c0_2 = arith.constant 0 : index
    %1 = vector.load %arg2[%c0_1, %c0_2] : memref<128x128xf32, #tpu.memory_space<vmem>>, vector<128x128xf32>
    %cst = arith.constant dense<0.000000e+00> : vector<2048x128xf32>
    %2 = tpu.matmul %0, %1, %cst {dimension_numbers = #tpu.dot_dimension_numbers<[1], [0], [0], [1], [0, 0, 1, 1], [], []>} : vector<2048x128xf32>, vector<128x128xf32>, vector<2048x128xf32> -> vector<2048x128xf32>
    %c0_3 = arith.constant 0 : index
    %c0_4 = arith.constant 0 : index
    %3 = vector.load %arg3[%c0_3, %c0_4] : memref<1x128xf32, #tpu.memory_space<vmem>>, vector<1x128xf32>
    %4 = vector.broadcast %3 : vector<1x128xf32> to vector<2048x128xf32>
    %5 = arith.addf %2, %4 : vector<2048x128xf32>
    %cst_5 = arith.constant 0.000000e+00 : f32
    %6 = vector.broadcast %cst_5 : f32 to vector<2048x128xf32>
    %7 = arith.maximumf %5, %6 : vector<2048x128xf32>
    %c0_6 = arith.constant 0 : index
    %c0_7 = arith.constant 0 : index
    %8 = vector.load %arg13[%c0_6, %c0_7] : memref<2048x128xf32, #tpu.memory_space<vmem>>, vector<2048x128xf32>
    tpu.vector_store %arg13[%c0_6, %c0_7], %7 {strides = array<i32>} : memref<2048x128xf32, #tpu.memory_space<vmem>>, vector<2048x128xf32>,
    %cst_8 = arith.constant 0.000000e+00 : f32
    %9 = vector.broadcast %cst_8 : f32 to vector<456x128xf32>
    %c0_9 = arith.constant 0 : index
    %c0_10 = arith.constant 0 : index
    %10 = vector.load %arg14[%c0_9, %c0_10] : memref<456x128xf32, #tpu.memory_space<vmem>>, vector<456x128xf32>
    tpu.vector_store %arg14[%c0_9, %c0_10], %9 {strides = array<i32>} : memref<456x128xf32, #tpu.memory_space<vmem>>, vector<456x128xf32>,
    %cst_11 = arith.constant 0.000000e+00 : f32
    %11 = vector.broadcast %cst_11 : f32 to vector<88x128xf32>
    %c0_12 = arith.constant 0 : index
    %c0_13 = arith.constant 0 : index
    %12 = vector.load %arg17[%c0_12, %c0_13] : memref<88x128xf32, #tpu.memory_space<vmem>>, vector<88x128xf32>
    tpu.vector_store %arg17[%c0_12, %c0_13], %11 {strides = array<i32>} : memref<88x128xf32, #tpu.memory_space<vmem>>, vector<88x128xf32>,
    %c0_14 = arith.constant 0 : index
    %c0_15 = arith.constant 0 : index
    %13 = tpu.strided_load %arg13[%c0_14, %c0_15] {strides = array<i32: 2, 1>} : memref<2048x128xf32, #tpu.memory_space<vmem>>, vector<14x128xf32>
    %c1 = arith.constant 1 : index
    %c0_16 = arith.constant 0 : index
    %14 = tpu.strided_load %arg13[%c1, %c0_16] {strides = array<i32: 2, 1>} : memref<2048x128xf32, #tpu.memory_space<vmem>>, vector<14x128xf32>
    %15 = arith.maximumf %13, %14 : vector<14x128xf32>
    %c32 = arith.constant 32 : index
    %c0_17 = arith.constant 0 : index
    %16 = tpu.strided_load %arg13[%c32, %c0_17] {strides = array<i32: 2, 1>} : memref<2048x128xf32, #tpu.memory_space<vmem>>, vector<14x128xf32>
    %c33 = arith.constant 33 : index
    %c0_18 = arith.constant 0 : index
    %17 = tpu.strided_load %arg13[%c33, %c0_18] {strides = array<i32: 2, 1>} : memref<2048x128xf32, #tpu.memory_space<vmem>>, vector<14x128xf32>
    %18 = arith.maximumf %16, %17 : vector<14x128xf32>
    %19 = arith.maximumf %15, %18 : vector<14x128xf32>
    %c0_19 = arith.constant 0 : index
    %c0_20 = arith.constant 0 : index
    %20 = vector.load %arg14[%c0_19, %c0_20] : memref<456x128xf32, #tpu.memory_space<vmem>>, vector<14x128xf32>
    tpu.vector_store %arg14[%c0_19, %c0_20], %19 {strides = array<i32>} : memref<456x128xf32, #tpu.memory_space<vmem>>, vector<14x128xf32>,
    %c64 = arith.constant 64 : index
    %c0_21 = arith.constant 0 : index
    %21 = tpu.strided_load %arg13[%c64, %c0_21] {strides = array<i32: 2, 1>} : memref<2048x128xf32, #tpu.memory_space<vmem>>, vector<14x128xf32>
    %c65 = arith.constant 65 : index
    %c0_22 = arith.constant 0 : index
    %22 = tpu.strided_load %arg13[%c65, %c0_22] {strides = array<i32: 2, 1>} : memref<2048x128xf32, #tpu.memory_space<vmem>>, vector<14x128xf32>
    %23 = arith.maximumf %21, %22 : vector<14x128xf32>
    %c96 = arith.constant 96 : index
    %c0_23 = arith.constant 0 : index
    %24 = tpu.strided_load %arg13[%c96, %c0_23] {strides = array<i32: 2, 1>} : memref<2048x128xf32, #tpu.memory_space<vmem>>, vector<14x128xf32>
    %c97 = arith.constant 97 : index
    %c0_24 = arith.constant 0 : index
    %25 = tpu.strided_load %arg13[%c97, %c0_24] {strides = array<i32: 2, 1>} : memref<2048x128xf32, #tpu.memory_space<vmem>>, vector<14x128xf32>
    %26 = arith.maximumf %24, %25 : vector<14x128xf32>
    %27 = arith.maximumf %23, %26 : vector<14x128xf32>
    %c16 = arith.constant 16 : index
    %c0_25 = arith.constant 0 : index
    %28 = vector.load %arg14[%c16, %c0_25] : memref<456x128xf32, #tpu.memory_space<vmem>>, vector<14x128xf32>
    tpu.vector_store %arg14[%c16, %c0_25], %27 {strides = array<i32>} : memref<456x128xf32, #tpu.memory_space<vmem>>, vector<14x128xf32>,
    %c128 = arith.constant 128 : index
    %c0_26 = arith.constant 0 : index
    %29 = tpu.strided_load %arg13[%c128, %c0_26] {strides = array<i32: 2, 1>} : memref<2048x128xf32, #tpu.memory_space<vmem>>, vector<14x128xf32>
    %c129 = arith.constant 129 : index
    %c0_27 = arith.constant 0 : index
    %30 = tpu.strided_load %arg13[%c129, %c0_27] {strides = array<i32: 2, 1>} : memref<2048x128xf32, #tpu.memory_space<vmem>>, vector<14x128xf32>
    %31 = arith.maximumf %29, %30 : vector<14x128xf32>
    %c160 = arith.constant 160 : index
    %c0_28 = arith.constant 0 : index
    %32 = tpu.strided_load %arg13[%c160, %c0_28] {strides = array<i32: 2, 1>} : memref<2048x128xf32, #tpu.memory_space<vmem>>, vector<14x128xf32>
    %c161 = arith.constant 161 : index
    %c0_29 = arith.constant 0 : index
    %33 = tpu.strided_load %arg13[%c161, %c0_29] {strides = array<i32: 2, 1>} : memref<2048x128xf32, #tpu.memory_space<vmem>>, vector<14x128xf32>
    %34 = arith.maximumf %32, %33 : vector<14x128xf32>
    %35 = arith.maximumf %31, %34 : vector<14x128xf32>
    %c32_30 = arith.constant 32 : index
    %c0_31 = arith.constant 0 : index
    %36 = vector.load %arg14[%c32_30, %c0_31] : memref<456x128xf32, #tpu.memory_space<vmem>>, vector<14x128xf32>
    tpu.vector_store %arg14[%c32_30, %c0_31], %35 {strides = array<i32>} : memref<456x128xf32, #tpu.memory_space<vmem>>, vector<14x128xf32>,
    %c192 = arith.constant 192 : index
    %c0_32 = arith.constant 0 : index
    %37 = tpu.strided_load %arg13[%c192, %c0_32] {strides = array<i32: 2, 1>} : memref<2048x128xf32, #tpu.memory_space<vmem>>, vector<14x128xf32>
    %c193 = arith.constant 193 : index
    %c0_33 = arith.constant 0 : index
    %38 = tpu.strided_load %arg13[%c193, %c0_33] {strides = array<i32: 2, 1>} : memref<2048x128xf32, #tpu.memory_space<vmem>>, vector<14x128xf32>
    %39 = arith.maximumf %37, %38 : vector<14x128xf32>
    %c224 = arith.constant 224 : index
    %c0_34 = arith.constant 0 : index
    %40 = tpu.strided_load %arg13[%c224, %c0_34] {strides = array<i32: 2, 1>} : memref<2048x128xf32, #tpu.memory_space<vmem>>, vector<14x128xf32>
    %c225 = arith.constant 225 : index
    %c0_35 = arith.constant 0 : index
    %41 = tpu.strided_load %arg13[%c225, %c0_35] {strides = array<i32: 2, 1>} : memref<2048x128xf32, #tpu.memory_space<vmem>>, vector<14x128xf32>
    %42 = arith.maximumf %40, %41 : vector<14x128xf32>
    %43 = arith.maximumf %39, %42 : vector<14x128xf32>
    %c48 = arith.constant 48 : index
    %c0_36 = arith.constant 0 : index
    %44 = vector.load %arg14[%c48, %c0_36] : memref<456x128xf32, #tpu.memory_space<vmem>>, vector<14x128xf32>
    tpu.vector_store %arg14[%c48, %c0_36], %43 {strides = array<i32>} : memref<456x128xf32, #tpu.memory_space<vmem>>, vector<14x128xf32>,
    %c256 = arith.constant 256 : index
    %c0_37 = arith.constant 0 : index
    %45 = tpu.strided_load %arg13[%c256, %c0_37] {strides = array<i32: 2, 1>} : memref<2048x128xf32, #tpu.memory_space<vmem>>, vector<14x128xf32>
    %c257 = arith.constant 257 : index
    %c0_38 = arith.constant 0 : index
    %46 = tpu.strided_load %arg13[%c257, %c0_38] {strides = array<i32: 2, 1>} : memref<2048x128xf32, #tpu.memory_space<vmem>>, vector<14x128xf32>
    %47 = arith.maximumf %45, %46 : vector<14x128xf32>
    %c288 = arith.constant 288 : index
    %c0_39 = arith.constant 0 : index
    %48 = tpu.strided_load %arg13[%c288, %c0_39] {strides = array<i32: 2, 1>} : memref<2048x128xf32, #tpu.memory_space<vmem>>, vector<14x128xf32>
    %c289 = arith.constant 289 : index
    %c0_40 = arith.constant 0 : index
    %49 = tpu.strided_load %arg13[%c289, %c0_40] {strides = array<i32: 2, 1>} : memref<2048x128xf32, #tpu.memory_space<vmem>>, vector<14x128xf32>
    %50 = arith.maximumf %48, %49 : vector<14x128xf32>
    %51 = arith.maximumf %47, %50 : vector<14x128xf32>
    %c64_41 = arith.constant 64 : index
    %c0_42 = arith.constant 0 : index
    %52 = vector.load %arg14[%c64_41, %c0_42] : memref<456x128xf32, #tpu.memory_space<vmem>>, vector<14x128xf32>
    tpu.vector_store %arg14[%c64_41, %c0_42], %51 {strides = array<i32>} : memref<456x128xf32, #tpu.memory_space<vmem>>, vector<14x128xf32>,
    %c320 = arith.constant 320 : index
    %c0_43 = arith.constant 0 : index
    %53 = tpu.strided_load %arg13[%c320, %c0_43] {strides = array<i32: 2, 1>} : memref<2048x128xf32, #tpu.memory_space<vmem>>, vector<14x128xf32>
    %c321 = arith.constant 321 : index
    %c0_44 = arith.constant 0 : index
    %54 = tpu.strided_load %arg13[%c321, %c0_44] {strides = array<i32: 2, 1>} : memref<2048x128xf32, #tpu.memory_space<vmem>>, vector<14x128xf32>
    %55 = arith.maximumf %53, %54 : vector<14x128xf32>
    %c352 = arith.constant 352 : index
    %c0_45 = arith.constant 0 : index
    %56 = tpu.strided_load %arg13[%c352, %c0_45] {strides = array<i32: 2, 1>} : memref<2048x128xf32, #tpu.memory_space<vmem>>, vector<14x128xf32>
    %c353 = arith.constant 353 : index
    %c0_46 = arith.constant 0 : index
    %57 = tpu.strided_load %arg13[%c353, %c0_46] {strides = array<i32: 2, 1>} : memref<2048x128xf32, #tpu.memory_space<vmem>>, vector<14x128xf32>
    %58 = arith.maximumf %56, %57 : vector<14x128xf32>
    %59 = arith.maximumf %55, %58 : vector<14x128xf32>
    %c80 = arith.constant 80 : index
    %c0_47 = arith.constant 0 : index
    %60 = vector.load %arg14[%c80, %c0_47] : memref<456x128xf32, #tpu.memory_space<vmem>>, vector<14x128xf32>
    tpu.vector_store %arg14[%c80, %c0_47], %59 {strides = array<i32>} : memref<456x128xf32, #tpu.memory_space<vmem>>, vector<14x128xf32>,
    %c384 = arith.constant 384 : index
    %c0_48 = arith.constant 0 : index
    %61 = tpu.strided_load %arg13[%c384, %c0_48] {strides = array<i32: 2, 1>} : memref<2048x128xf32, #tpu.memory_space<vmem>>, vector<14x128xf32>
    %c385 = arith.constant 385 : index
    %c0_49 = arith.constant 0 : index
    %62 = tpu.strided_load %arg13[%c385, %c0_49] {strides = array<i32: 2, 1>} : memref<2048x128xf32, #tpu.memory_space<vmem>>, vector<14x128xf32>
    %63 = arith.maximumf %61, %62 : vector<14x128xf32>
    %c416 = arith.constant 416 : index
    %c0_50 = arith.constant 0 : index
    %64 = tpu.strided_load %arg13[%c416, %c0_50] {strides = array<i32: 2, 1>} : memref<2048x128xf32, #tpu.memory_space<vmem>>, vector<14x128xf32>
    %c417 = arith.constant 417 : index
    %c0_51 = arith.constant 0 : index
    %65 = tpu.strided_load %arg13[%c417, %c0_51] {strides = array<i32: 2, 1>} : memref<2048x128xf32, #tpu.memory_space<vmem>>, vector<14x128xf32>
    %66 = arith.maximumf %64, %65 : vector<14x128xf32>
    %67 = arith.maximumf %63, %66 : vector<14x128xf32>
    %c96_52 = arith.constant 96 : index
    %c0_53 = arith.constant 0 : index
    %68 = vector.load %arg14[%c96_52, %c0_53] : memref<456x128xf32, #tpu.memory_space<vmem>>, vector<14x128xf32>
    tpu.vector_store %arg14[%c96_52, %c0_53], %67 {strides = array<i32>} : memref<456x128xf32, #tpu.memory_space<vmem>>, vector<14x128xf32>,
    %c448 = arith.constant 448 : index
    %c0_54 = arith.constant 0 : index
    %69 = tpu.strided_load %arg13[%c448, %c0_54] {strides = array<i32: 2, 1>} : memref<2048x128xf32, #tpu.memory_space<vmem>>, vector<14x128xf32>
    %c449 = arith.constant 449 : index
    %c0_55 = arith.constant 0 : index
    %70 = tpu.strided_load %arg13[%c449, %c0_55] {strides = array<i32: 2, 1>} : memref<2048x128xf32, #tpu.memory_space<vmem>>, vector<14x128xf32>
    %71 = arith.maximumf %69, %70 : vector<14x128xf32>
    %c480 = arith.constant 480 : index
    %c0_56 = arith.constant 0 : index
    %72 = tpu.strided_load %arg13[%c480, %c0_56] {strides = array<i32: 2, 1>} : memref<2048x128xf32, #tpu.memory_space<vmem>>, vector<14x128xf32>
    %c481 = arith.constant 481 : index
    %c0_57 = arith.constant 0 : index
    %73 = tpu.strided_load %arg13[%c481, %c0_57] {strides = array<i32: 2, 1>} : memref<2048x128xf32, #tpu.memory_space<vmem>>, vector<14x128xf32>
    %74 = arith.maximumf %72, %73 : vector<14x128xf32>
    %75 = arith.maximumf %71, %74 : vector<14x128xf32>
    %c112 = arith.constant 112 : index
    %c0_58 = arith.constant 0 : index
    %76 = vector.load %arg14[%c112, %c0_58] : memref<456x128xf32, #tpu.memory_space<vmem>>, vector<14x128xf32>
    tpu.vector_store %arg14[%c112, %c0_58], %75 {strides = array<i32>} : memref<456x128xf32, #tpu.memory_space<vmem>>, vector<14x128xf32>,
    %c512 = arith.constant 512 : index
    %c0_59 = arith.constant 0 : index
    %77 = tpu.strided_load %arg13[%c512, %c0_59] {strides = array<i32: 2, 1>} : memref<2048x128xf32, #tpu.memory_space<vmem>>, vector<14x128xf32>
    %c513 = arith.constant 513 : index
    %c0_60 = arith.constant 0 : index
    %78 = tpu.strided_load %arg13[%c513, %c0_60] {strides = array<i32: 2, 1>} : memref<2048x128xf32, #tpu.memory_space<vmem>>, vector<14x128xf32>
    %79 = arith.maximumf %77, %78 : vector<14x128xf32>
    %c544 = arith.constant 544 : index
    %c0_61 = arith.constant 0 : index
    %80 = tpu.strided_load %arg13[%c544, %c0_61] {strides = array<i32: 2, 1>} : memref<2048x128xf32, #tpu.memory_space<vmem>>, vector<14x128xf32>
    %c545 = arith.constant 545 : index
    %c0_62 = arith.constant 0 : index
    %81 = tpu.strided_load %arg13[%c545, %c0_62] {strides = array<i32: 2, 1>} : memref<2048x128xf32, #tpu.memory_space<vmem>>, vector<14x128xf32>
    %82 = arith.maximumf %80, %81 : vector<14x128xf32>
    %83 = arith.maximumf %79, %82 : vector<14x128xf32>
    %c128_63 = arith.constant 128 : index
    %c0_64 = arith.constant 0 : index
    %84 = vector.load %arg14[%c128_63, %c0_64] : memref<456x128xf32, #tpu.memory_space<vmem>>, vector<14x128xf32>
    tpu.vector_store %arg14[%c128_63, %c0_64], %83 {strides = array<i32>} : memref<456x128xf32, #tpu.memory_space<vmem>>, vector<14x128xf32>,
    %c576 = arith.constant 576 : index
    %c0_65 = arith.constant 0 : index
    %85 = tpu.strided_load %arg13[%c576, %c0_65] {strides = array<i32: 2, 1>} : memref<2048x128xf32, #tpu.memory_space<vmem>>, vector<14x128xf32>
    %c577 = arith.constant 577 : index
    %c0_66 = arith.constant 0 : index
    %86 = tpu.strided_load %arg13[%c577, %c0_66] {strides = array<i32: 2, 1>} : memref<2048x128xf32, #tpu.memory_space<vmem>>, vector<14x128xf32>
    %87 = arith.maximumf %85, %86 : vector<14x128xf32>
    %c608 = arith.constant 608 : index
    %c0_67 = arith.constant 0 : index
    %88 = tpu.strided_load %arg13[%c608, %c0_67] {strides = array<i32: 2, 1>} : memref<2048x128xf32, #tpu.memory_space<vmem>>, vector<14x128xf32>
    %c609 = arith.constant 609 : index
    %c0_68 = arith.constant 0 : index
    %89 = tpu.strided_load %arg13[%c609, %c0_68] {strides = array<i32: 2, 1>} : memref<2048x128xf32, #tpu.memory_space<vmem>>, vector<14x128xf32>
    %90 = arith.maximumf %88, %89 : vector<14x128xf32>
    %91 = arith.maximumf %87, %90 : vector<14x128xf32>
    %c144 = arith.constant 144 : index
    %c0_69 = arith.constant 0 : index
    %92 = vector.load %arg14[%c144, %c0_69] : memref<456x128xf32, #tpu.memory_space<vmem>>, vector<14x128xf32>
    tpu.vector_store %arg14[%c144, %c0_69], %91 {strides = array<i32>} : memref<456x128xf32, #tpu.memory_space<vmem>>, vector<14x128xf32>,
    %c640 = arith.constant 640 : index
    %c0_70 = arith.constant 0 : index
    %93 = tpu.strided_load %arg13[%c640, %c0_70] {strides = array<i32: 2, 1>} : memref<2048x128xf32, #tpu.memory_space<vmem>>, vector<14x128xf32>
    %c641 = arith.constant 641 : index
    %c0_71 = arith.constant 0 : index
    %94 = tpu.strided_load %arg13[%c641, %c0_71] {strides = array<i32: 2, 1>} : memref<2048x128xf32, #tpu.memory_space<vmem>>, vector<14x128xf32>
    %95 = arith.maximumf %93, %94 : vector<14x128xf32>
    %c672 = arith.constant 672 : index
    %c0_72 = arith.constant 0 : index
    %96 = tpu.strided_load %arg13[%c672, %c0_72] {strides = array<i32: 2, 1>} : memref<2048x128xf32, #tpu.memory_space<vmem>>, vector<14x128xf32>
    %c673 = arith.constant 673 : index
    %c0_73 = arith.constant 0 : index
    %97 = tpu.strided_load %arg13[%c673, %c0_73] {strides = array<i32: 2, 1>} : memref<2048x128xf32, #tpu.memory_space<vmem>>, vector<14x128xf32>
    %98 = arith.maximumf %96, %97 : vector<14x128xf32>
    %99 = arith.maximumf %95, %98 : vector<14x128xf32>
    %c160_74 = arith.constant 160 : index
    %c0_75 = arith.constant 0 : index
    %100 = vector.load %arg14[%c160_74, %c0_75] : memref<456x128xf32, #tpu.memory_space<vmem>>, vector<14x128xf32>
    tpu.vector_store %arg14[%c160_74, %c0_75], %99 {strides = array<i32>} : memref<456x128xf32, #tpu.memory_space<vmem>>, vector<14x128xf32>,
    %c704 = arith.constant 704 : index
    %c0_76 = arith.constant 0 : index
    %101 = tpu.strided_load %arg13[%c704, %c0_76] {strides = array<i32: 2, 1>} : memref<2048x128xf32, #tpu.memory_space<vmem>>, vector<14x128xf32>
    %c705 = arith.constant 705 : index
    %c0_77 = arith.constant 0 : index
    %102 = tpu.strided_load %arg13[%c705, %c0_77] {strides = array<i32: 2, 1>} : memref<2048x128xf32, #tpu.memory_space<vmem>>, vector<14x128xf32>
    %103 = arith.maximumf %101, %102 : vector<14x128xf32>
    %c736 = arith.constant 736 : index
    %c0_78 = arith.constant 0 : index
    %104 = tpu.strided_load %arg13[%c736, %c0_78] {strides = array<i32: 2, 1>} : memref<2048x128xf32, #tpu.memory_space<vmem>>, vector<14x128xf32>
    %c737 = arith.constant 737 : index
    %c0_79 = arith.constant 0 : index
    %105 = tpu.strided_load %arg13[%c737, %c0_79] {strides = array<i32: 2, 1>} : memref<2048x128xf32, #tpu.memory_space<vmem>>, vector<14x128xf32>
    %106 = arith.maximumf %104, %105 : vector<14x128xf32>
    %107 = arith.maximumf %103, %106 : vector<14x128xf32>
    %c176 = arith.constant 176 : index
    %c0_80 = arith.constant 0 : index
    %108 = vector.load %arg14[%c176, %c0_80] : memref<456x128xf32, #tpu.memory_space<vmem>>, vector<14x128xf32>
    tpu.vector_store %arg14[%c176, %c0_80], %107 {strides = array<i32>} : memref<456x128xf32, #tpu.memory_space<vmem>>, vector<14x128xf32>,
    %c768 = arith.constant 768 : index
    %c0_81 = arith.constant 0 : index
    %109 = tpu.strided_load %arg13[%c768, %c0_81] {strides = array<i32: 2, 1>} : memref<2048x128xf32, #tpu.memory_space<vmem>>, vector<14x128xf32>
    %c769 = arith.constant 769 : index
    %c0_82 = arith.constant 0 : index
    %110 = tpu.strided_load %arg13[%c769, %c0_82] {strides = array<i32: 2, 1>} : memref<2048x128xf32, #tpu.memory_space<vmem>>, vector<14x128xf32>
    %111 = arith.maximumf %109, %110 : vector<14x128xf32>
    %c800 = arith.constant 800 : index
    %c0_83 = arith.constant 0 : index
    %112 = tpu.strided_load %arg13[%c800, %c0_83] {strides = array<i32: 2, 1>} : memref<2048x128xf32, #tpu.memory_space<vmem>>, vector<14x128xf32>
    %c801 = arith.constant 801 : index
    %c0_84 = arith.constant 0 : index
    %113 = tpu.strided_load %arg13[%c801, %c0_84] {strides = array<i32: 2, 1>} : memref<2048x128xf32, #tpu.memory_space<vmem>>, vector<14x128xf32>
    %114 = arith.maximumf %112, %113 : vector<14x128xf32>
    %115 = arith.maximumf %111, %114 : vector<14x128xf32>
    %c192_85 = arith.constant 192 : index
    %c0_86 = arith.constant 0 : index
    %116 = vector.load %arg14[%c192_85, %c0_86] : memref<456x128xf32, #tpu.memory_space<vmem>>, vector<14x128xf32>
    tpu.vector_store %arg14[%c192_85, %c0_86], %115 {strides = array<i32>} : memref<456x128xf32, #tpu.memory_space<vmem>>, vector<14x128xf32>,
    %c832 = arith.constant 832 : index
    %c0_87 = arith.constant 0 : index
    %117 = tpu.strided_load %arg13[%c832, %c0_87] {strides = array<i32: 2, 1>} : memref<2048x128xf32, #tpu.memory_space<vmem>>, vector<14x128xf32>
    %c833 = arith.constant 833 : index
    %c0_88 = arith.constant 0 : index
    %118 = tpu.strided_load %arg13[%c833, %c0_88] {strides = array<i32: 2, 1>} : memref<2048x128xf32, #tpu.memory_space<vmem>>, vector<14x128xf32>
    %119 = arith.maximumf %117, %118 : vector<14x128xf32>
    %c864 = arith.constant 864 : index
    %c0_89 = arith.constant 0 : index
    %120 = tpu.strided_load %arg13[%c864, %c0_89] {strides = array<i32: 2, 1>} : memref<2048x128xf32, #tpu.memory_space<vmem>>, vector<14x128xf32>
    %c865 = arith.constant 865 : index
    %c0_90 = arith.constant 0 : index
    %121 = tpu.strided_load %arg13[%c865, %c0_90] {strides = array<i32: 2, 1>} : memref<2048x128xf32, #tpu.memory_space<vmem>>, vector<14x128xf32>
    %122 = arith.maximumf %120, %121 : vector<14x128xf32>
    %123 = arith.maximumf %119, %122 : vector<14x128xf32>
    %c208 = arith.constant 208 : index
    %c0_91 = arith.constant 0 : index
    %124 = vector.load %arg14[%c208, %c0_91] : memref<456x128xf32, #tpu.memory_space<vmem>>, vector<14x128xf32>
    tpu.vector_store %arg14[%c208, %c0_91], %123 {strides = array<i32>} : memref<456x128xf32, #tpu.memory_space<vmem>>, vector<14x128xf32>,
    %c1024 = arith.constant 1024 : index
    %c0_92 = arith.constant 0 : index
    %125 = tpu.strided_load %arg13[%c1024, %c0_92] {strides = array<i32: 2, 1>} : memref<2048x128xf32, #tpu.memory_space<vmem>>, vector<14x128xf32>
    %c1025 = arith.constant 1025 : index
    %c0_93 = arith.constant 0 : index
    %126 = tpu.strided_load %arg13[%c1025, %c0_93] {strides = array<i32: 2, 1>} : memref<2048x128xf32, #tpu.memory_space<vmem>>, vector<14x128xf32>
    %127 = arith.maximumf %125, %126 : vector<14x128xf32>
    %c1056 = arith.constant 1056 : index
    %c0_94 = arith.constant 0 : index
    %128 = tpu.strided_load %arg13[%c1056, %c0_94] {strides = array<i32: 2, 1>} : memref<2048x128xf32, #tpu.memory_space<vmem>>, vector<14x128xf32>
    %c1057 = arith.constant 1057 : index
    %c0_95 = arith.constant 0 : index
    %129 = tpu.strided_load %arg13[%c1057, %c0_95] {strides = array<i32: 2, 1>} : memref<2048x128xf32, #tpu.memory_space<vmem>>, vector<14x128xf32>
    %130 = arith.maximumf %128, %129 : vector<14x128xf32>
    %131 = arith.maximumf %127, %130 : vector<14x128xf32>
    %c224_96 = arith.constant 224 : index
    %c0_97 = arith.constant 0 : index
    %132 = vector.load %arg14[%c224_96, %c0_97] : memref<456x128xf32, #tpu.memory_space<vmem>>, vector<14x128xf32>
    tpu.vector_store %arg14[%c224_96, %c0_97], %131 {strides = array<i32>} : memref<456x128xf32, #tpu.memory_space<vmem>>, vector<14x128xf32>,
    %c1088 = arith.constant 1088 : index
    %c0_98 = arith.constant 0 : index
    %133 = tpu.strided_load %arg13[%c1088, %c0_98] {strides = array<i32: 2, 1>} : memref<2048x128xf32, #tpu.memory_space<vmem>>, vector<14x128xf32>
    %c1089 = arith.constant 1089 : index
    %c0_99 = arith.constant 0 : index
    %134 = tpu.strided_load %arg13[%c1089, %c0_99] {strides = array<i32: 2, 1>} : memref<2048x128xf32, #tpu.memory_space<vmem>>, vector<14x128xf32>
    %135 = arith.maximumf %133, %134 : vector<14x128xf32>
    %c1120 = arith.constant 1120 : index
    %c0_100 = arith.constant 0 : index
    %136 = tpu.strided_load %arg13[%c1120, %c0_100] {strides = array<i32: 2, 1>} : memref<2048x128xf32, #tpu.memory_space<vmem>>, vector<14x128xf32>
    %c1121 = arith.constant 1121 : index
    %c0_101 = arith.constant 0 : index
    %137 = tpu.strided_load %arg13[%c1121, %c0_101] {strides = array<i32: 2, 1>} : memref<2048x128xf32, #tpu.memory_space<vmem>>, vector<14x128xf32>
    %138 = arith.maximumf %136, %137 : vector<14x128xf32>
    %139 = arith.maximumf %135, %138 : vector<14x128xf32>
    %c240 = arith.constant 240 : index
    %c0_102 = arith.constant 0 : index
    %140 = vector.load %arg14[%c240, %c0_102] : memref<456x128xf32, #tpu.memory_space<vmem>>, vector<14x128xf32>
    tpu.vector_store %arg14[%c240, %c0_102], %139 {strides = array<i32>} : memref<456x128xf32, #tpu.memory_space<vmem>>, vector<14x128xf32>,
    %c1152 = arith.constant 1152 : index
    %c0_103 = arith.constant 0 : index
    %141 = tpu.strided_load %arg13[%c1152, %c0_103] {strides = array<i32: 2, 1>} : memref<2048x128xf32, #tpu.memory_space<vmem>>, vector<14x128xf32>
    %c1153 = arith.constant 1153 : index
    %c0_104 = arith.constant 0 : index
    %142 = tpu.strided_load %arg13[%c1153, %c0_104] {strides = array<i32: 2, 1>} : memref<2048x128xf32, #tpu.memory_space<vmem>>, vector<14x128xf32>
    %143 = arith.maximumf %141, %142 : vector<14x128xf32>
    %c1184 = arith.constant 1184 : index
    %c0_105 = arith.constant 0 : index
    %144 = tpu.strided_load %arg13[%c1184, %c0_105] {strides = array<i32: 2, 1>} : memref<2048x128xf32, #tpu.memory_space<vmem>>, vector<14x128xf32>
    %c1185 = arith.constant 1185 : index
    %c0_106 = arith.constant 0 : index
    %145 = tpu.strided_load %arg13[%c1185, %c0_106] {strides = array<i32: 2, 1>} : memref<2048x128xf32, #tpu.memory_space<vmem>>, vector<14x128xf32>
    %146 = arith.maximumf %144, %145 : vector<14x128xf32>
    %147 = arith.maximumf %143, %146 : vector<14x128xf32>
    %c256_107 = arith.constant 256 : index
    %c0_108 = arith.constant 0 : index
    %148 = vector.load %arg14[%c256_107, %c0_108] : memref<456x128xf32, #tpu.memory_space<vmem>>, vector<14x128xf32>
    tpu.vector_store %arg14[%c256_107, %c0_108], %147 {strides = array<i32>} : memref<456x128xf32, #tpu.memory_space<vmem>>, vector<14x128xf32>,
    %c1216 = arith.constant 1216 : index
    %c0_109 = arith.constant 0 : index
    %149 = tpu.strided_load %arg13[%c1216, %c0_109] {strides = array<i32: 2, 1>} : memref<2048x128xf32, #tpu.memory_space<vmem>>, vector<14x128xf32>
    %c1217 = arith.constant 1217 : index
    %c0_110 = arith.constant 0 : index
    %150 = tpu.strided_load %arg13[%c1217, %c0_110] {strides = array<i32: 2, 1>} : memref<2048x128xf32, #tpu.memory_space<vmem>>, vector<14x128xf32>
    %151 = arith.maximumf %149, %150 : vector<14x128xf32>
    %c1248 = arith.constant 1248 : index
    %c0_111 = arith.constant 0 : index
    %152 = tpu.strided_load %arg13[%c1248, %c0_111] {strides = array<i32: 2, 1>} : memref<2048x128xf32, #tpu.memory_space<vmem>>, vector<14x128xf32>
    %c1249 = arith.constant 1249 : index
    %c0_112 = arith.constant 0 : index
    %153 = tpu.strided_load %arg13[%c1249, %c0_112] {strides = array<i32: 2, 1>} : memref<2048x128xf32, #tpu.memory_space<vmem>>, vector<14x128xf32>
    %154 = arith.maximumf %152, %153 : vector<14x128xf32>
    %155 = arith.maximumf %151, %154 : vector<14x128xf32>
    %c272 = arith.constant 272 : index
    %c0_113 = arith.constant 0 : index
    %156 = vector.load %arg14[%c272, %c0_113] : memref<456x128xf32, #tpu.memory_space<vmem>>, vector<14x128xf32>
    tpu.vector_store %arg14[%c272, %c0_113], %155 {strides = array<i32>} : memref<456x128xf32, #tpu.memory_space<vmem>>, vector<14x128xf32>,
    %c1280 = arith.constant 1280 : index
    %c0_114 = arith.constant 0 : index
    %157 = tpu.strided_load %arg13[%c1280, %c0_114] {strides = array<i32: 2, 1>} : memref<2048x128xf32, #tpu.memory_space<vmem>>, vector<14x128xf32>
    %c1281 = arith.constant 1281 : index
    %c0_115 = arith.constant 0 : index
    %158 = tpu.strided_load %arg13[%c1281, %c0_115] {strides = array<i32: 2, 1>} : memref<2048x128xf32, #tpu.memory_space<vmem>>, vector<14x128xf32>
    %159 = arith.maximumf %157, %158 : vector<14x128xf32>
    %c1312 = arith.constant 1312 : index
    %c0_116 = arith.constant 0 : index
    %160 = tpu.strided_load %arg13[%c1312, %c0_116] {strides = array<i32: 2, 1>} : memref<2048x128xf32, #tpu.memory_space<vmem>>, vector<14x128xf32>
    %c1313 = arith.constant 1313 : index
    %c0_117 = arith.constant 0 : index
    %161 = tpu.strided_load %arg13[%c1313, %c0_117] {strides = array<i32: 2, 1>} : memref<2048x128xf32, #tpu.memory_space<vmem>>, vector<14x128xf32>
    %162 = arith.maximumf %160, %161 : vector<14x128xf32>
    %163 = arith.maximumf %159, %162 : vector<14x128xf32>
    %c288_118 = arith.constant 288 : index
    %c0_119 = arith.constant 0 : index
    %164 = vector.load %arg14[%c288_118, %c0_119] : memref<456x128xf32, #tpu.memory_space<vmem>>, vector<14x128xf32>
    tpu.vector_store %arg14[%c288_118, %c0_119], %163 {strides = array<i32>} : memref<456x128xf32, #tpu.memory_space<vmem>>, vector<14x128xf32>,
    %c1344 = arith.constant 1344 : index
    %c0_120 = arith.constant 0 : index
    %165 = tpu.strided_load %arg13[%c1344, %c0_120] {strides = array<i32: 2, 1>} : memref<2048x128xf32, #tpu.memory_space<vmem>>, vector<14x128xf32>
    %c1345 = arith.constant 1345 : index
    %c0_121 = arith.constant 0 : index
    %166 = tpu.strided_load %arg13[%c1345, %c0_121] {strides = array<i32: 2, 1>} : memref<2048x128xf32, #tpu.memory_space<vmem>>, vector<14x128xf32>
    %167 = arith.maximumf %165, %166 : vector<14x128xf32>
    %c1376 = arith.constant 1376 : index
    %c0_122 = arith.constant 0 : index
    %168 = tpu.strided_load %arg13[%c1376, %c0_122] {strides = array<i32: 2, 1>} : memref<2048x128xf32, #tpu.memory_space<vmem>>, vector<14x128xf32>
    %c1377 = arith.constant 1377 : index
    %c0_123 = arith.constant 0 : index
    %169 = tpu.strided_load %arg13[%c1377, %c0_123] {strides = array<i32: 2, 1>} : memref<2048x128xf32, #tpu.memory_space<vmem>>, vector<14x128xf32>
    %170 = arith.maximumf %168, %169 : vector<14x128xf32>
    %171 = arith.maximumf %167, %170 : vector<14x128xf32>
    %c304 = arith.constant 304 : index
    %c0_124 = arith.constant 0 : index
    %172 = vector.load %arg14[%c304, %c0_124] : memref<456x128xf32, #tpu.memory_space<vmem>>, vector<14x128xf32>
    tpu.vector_store %arg14[%c304, %c0_124], %171 {strides = array<i32>} : memref<456x128xf32, #tpu.memory_space<vmem>>, vector<14x128xf32>,
    %c1408 = arith.constant 1408 : index
    %c0_125 = arith.constant 0 : index
    %173 = tpu.strided_load %arg13[%c1408, %c0_125] {strides = array<i32: 2, 1>} : memref<2048x128xf32, #tpu.memory_space<vmem>>, vector<14x128xf32>
    %c1409 = arith.constant 1409 : index
    %c0_126 = arith.constant 0 : index
    %174 = tpu.strided_load %arg13[%c1409, %c0_126] {strides = array<i32: 2, 1>} : memref<2048x128xf32, #tpu.memory_space<vmem>>, vector<14x128xf32>
    %175 = arith.maximumf %173, %174 : vector<14x128xf32>
    %c1440 = arith.constant 1440 : index
    %c0_127 = arith.constant 0 : index
    %176 = tpu.strided_load %arg13[%c1440, %c0_127] {strides = array<i32: 2, 1>} : memref<2048x128xf32, #tpu.memory_space<vmem>>, vector<14x128xf32>
    %c1441 = arith.constant 1441 : index
    %c0_128 = arith.constant 0 : index
    %177 = tpu.strided_load %arg13[%c1441, %c0_128] {strides = array<i32: 2, 1>} : memref<2048x128xf32, #tpu.memory_space<vmem>>, vector<14x128xf32>
    %178 = arith.maximumf %176, %177 : vector<14x128xf32>
    %179 = arith.maximumf %175, %178 : vector<14x128xf32>
    %c320_129 = arith.constant 320 : index
    %c0_130 = arith.constant 0 : index
    %180 = vector.load %arg14[%c320_129, %c0_130] : memref<456x128xf32, #tpu.memory_space<vmem>>, vector<14x128xf32>
    tpu.vector_store %arg14[%c320_129, %c0_130], %179 {strides = array<i32>} : memref<456x128xf32, #tpu.memory_space<vmem>>, vector<14x128xf32>,
    %c1472 = arith.constant 1472 : index
    %c0_131 = arith.constant 0 : index
    %181 = tpu.strided_load %arg13[%c1472, %c0_131] {strides = array<i32: 2, 1>} : memref<2048x128xf32, #tpu.memory_space<vmem>>, vector<14x128xf32>
    %c1473 = arith.constant 1473 : index
    %c0_132 = arith.constant 0 : index
    %182 = tpu.strided_load %arg13[%c1473, %c0_132] {strides = array<i32: 2, 1>} : memref<2048x128xf32, #tpu.memory_space<vmem>>, vector<14x128xf32>
    %183 = arith.maximumf %181, %182 : vector<14x128xf32>
    %c1504 = arith.constant 1504 : index
    %c0_133 = arith.constant 0 : index
    %184 = tpu.strided_load %arg13[%c1504, %c0_133] {strides = array<i32: 2, 1>} : memref<2048x128xf32, #tpu.memory_space<vmem>>, vector<14x128xf32>
    %c1505 = arith.constant 1505 : index
    %c0_134 = arith.constant 0 : index
    %185 = tpu.strided_load %arg13[%c1505, %c0_134] {strides = array<i32: 2, 1>} : memref<2048x128xf32, #tpu.memory_space<vmem>>, vector<14x128xf32>
    %186 = arith.maximumf %184, %185 : vector<14x128xf32>
    %187 = arith.maximumf %183, %186 : vector<14x128xf32>
    %c336 = arith.constant 336 : index
    %c0_135 = arith.constant 0 : index
    %188 = vector.load %arg14[%c336, %c0_135] : memref<456x128xf32, #tpu.memory_space<vmem>>, vector<14x128xf32>
    tpu.vector_store %arg14[%c336, %c0_135], %187 {strides = array<i32>} : memref<456x128xf32, #tpu.memory_space<vmem>>, vector<14x128xf32>,
    %c1536 = arith.constant 1536 : index
    %c0_136 = arith.constant 0 : index
    %189 = tpu.strided_load %arg13[%c1536, %c0_136] {strides = array<i32: 2, 1>} : memref<2048x128xf32, #tpu.memory_space<vmem>>, vector<14x128xf32>
    %c1537 = arith.constant 1537 : index
    %c0_137 = arith.constant 0 : index
    %190 = tpu.strided_load %arg13[%c1537, %c0_137] {strides = array<i32: 2, 1>} : memref<2048x128xf32, #tpu.memory_space<vmem>>, vector<14x128xf32>
    %191 = arith.maximumf %189, %190 : vector<14x128xf32>
    %c1568 = arith.constant 1568 : index
    %c0_138 = arith.constant 0 : index
    %192 = tpu.strided_load %arg13[%c1568, %c0_138] {strides = array<i32: 2, 1>} : memref<2048x128xf32, #tpu.memory_space<vmem>>, vector<14x128xf32>
    %c1569 = arith.constant 1569 : index
    %c0_139 = arith.constant 0 : index
    %193 = tpu.strided_load %arg13[%c1569, %c0_139] {strides = array<i32: 2, 1>} : memref<2048x128xf32, #tpu.memory_space<vmem>>, vector<14x128xf32>
    %194 = arith.maximumf %192, %193 : vector<14x128xf32>
    %195 = arith.maximumf %191, %194 : vector<14x128xf32>
    %c352_140 = arith.constant 352 : index
    %c0_141 = arith.constant 0 : index
    %196 = vector.load %arg14[%c352_140, %c0_141] : memref<456x128xf32, #tpu.memory_space<vmem>>, vector<14x128xf32>
    tpu.vector_store %arg14[%c352_140, %c0_141], %195 {strides = array<i32>} : memref<456x128xf32, #tpu.memory_space<vmem>>, vector<14x128xf32>,
    %c1600 = arith.constant 1600 : index
    %c0_142 = arith.constant 0 : index
    %197 = tpu.strided_load %arg13[%c1600, %c0_142] {strides = array<i32: 2, 1>} : memref<2048x128xf32, #tpu.memory_space<vmem>>, vector<14x128xf32>
    %c1601 = arith.constant 1601 : index
    %c0_143 = arith.constant 0 : index
    %198 = tpu.strided_load %arg13[%c1601, %c0_143] {strides = array<i32: 2, 1>} : memref<2048x128xf32, #tpu.memory_space<vmem>>, vector<14x128xf32>
    %199 = arith.maximumf %197, %198 : vector<14x128xf32>
    %c1632 = arith.constant 1632 : index
    %c0_144 = arith.constant 0 : index
    %200 = tpu.strided_load %arg13[%c1632, %c0_144] {strides = array<i32: 2, 1>} : memref<2048x128xf32, #tpu.memory_space<vmem>>, vector<14x128xf32>
    %c1633 = arith.constant 1633 : index
    %c0_145 = arith.constant 0 : index
    %201 = tpu.strided_load %arg13[%c1633, %c0_145] {strides = array<i32: 2, 1>} : memref<2048x128xf32, #tpu.memory_space<vmem>>, vector<14x128xf32>
    %202 = arith.maximumf %200, %201 : vector<14x128xf32>
    %203 = arith.maximumf %199, %202 : vector<14x128xf32>
    %c368 = arith.constant 368 : index
    %c0_146 = arith.constant 0 : index
    %204 = vector.load %arg14[%c368, %c0_146] : memref<456x128xf32, #tpu.memory_space<vmem>>, vector<14x128xf32>
    tpu.vector_store %arg14[%c368, %c0_146], %203 {strides = array<i32>} : memref<456x128xf32, #tpu.memory_space<vmem>>, vector<14x128xf32>,
    %c1664 = arith.constant 1664 : index
    %c0_147 = arith.constant 0 : index
    %205 = tpu.strided_load %arg13[%c1664, %c0_147] {strides = array<i32: 2, 1>} : memref<2048x128xf32, #tpu.memory_space<vmem>>, vector<14x128xf32>
    %c1665 = arith.constant 1665 : index
    %c0_148 = arith.constant 0 : index
    %206 = tpu.strided_load %arg13[%c1665, %c0_148] {strides = array<i32: 2, 1>} : memref<2048x128xf32, #tpu.memory_space<vmem>>, vector<14x128xf32>
    %207 = arith.maximumf %205, %206 : vector<14x128xf32>
    %c1696 = arith.constant 1696 : index
    %c0_149 = arith.constant 0 : index
    %208 = tpu.strided_load %arg13[%c1696, %c0_149] {strides = array<i32: 2, 1>} : memref<2048x128xf32, #tpu.memory_space<vmem>>, vector<14x128xf32>
    %c1697 = arith.constant 1697 : index
    %c0_150 = arith.constant 0 : index
    %209 = tpu.strided_load %arg13[%c1697, %c0_150] {strides = array<i32: 2, 1>} : memref<2048x128xf32, #tpu.memory_space<vmem>>, vector<14x128xf32>
    %210 = arith.maximumf %208, %209 : vector<14x128xf32>
    %211 = arith.maximumf %207, %210 : vector<14x128xf32>
    %c384_151 = arith.constant 384 : index
    %c0_152 = arith.constant 0 : index
    %212 = vector.load %arg14[%c384_151, %c0_152] : memref<456x128xf32, #tpu.memory_space<vmem>>, vector<14x128xf32>
    tpu.vector_store %arg14[%c384_151, %c0_152], %211 {strides = array<i32>} : memref<456x128xf32, #tpu.memory_space<vmem>>, vector<14x128xf32>,
    %c1728 = arith.constant 1728 : index
    %c0_153 = arith.constant 0 : index
    %213 = tpu.strided_load %arg13[%c1728, %c0_153] {strides = array<i32: 2, 1>} : memref<2048x128xf32, #tpu.memory_space<vmem>>, vector<14x128xf32>
    %c1729 = arith.constant 1729 : index
    %c0_154 = arith.constant 0 : index
    %214 = tpu.strided_load %arg13[%c1729, %c0_154] {strides = array<i32: 2, 1>} : memref<2048x128xf32, #tpu.memory_space<vmem>>, vector<14x128xf32>
    %215 = arith.maximumf %213, %214 : vector<14x128xf32>
    %c1760 = arith.constant 1760 : index
    %c0_155 = arith.constant 0 : index
    %216 = tpu.strided_load %arg13[%c1760, %c0_155] {strides = array<i32: 2, 1>} : memref<2048x128xf32, #tpu.memory_space<vmem>>, vector<14x128xf32>
    %c1761 = arith.constant 1761 : index
    %c0_156 = arith.constant 0 : index
    %217 = tpu.strided_load %arg13[%c1761, %c0_156] {strides = array<i32: 2, 1>} : memref<2048x128xf32, #tpu.memory_space<vmem>>, vector<14x128xf32>
    %218 = arith.maximumf %216, %217 : vector<14x128xf32>
    %219 = arith.maximumf %215, %218 : vector<14x128xf32>
    %c400 = arith.constant 400 : index
    %c0_157 = arith.constant 0 : index
    %220 = vector.load %arg14[%c400, %c0_157] : memref<456x128xf32, #tpu.memory_space<vmem>>, vector<14x128xf32>
    tpu.vector_store %arg14[%c400, %c0_157], %219 {strides = array<i32>} : memref<456x128xf32, #tpu.memory_space<vmem>>, vector<14x128xf32>,
    %c1792 = arith.constant 1792 : index
    %c0_158 = arith.constant 0 : index
    %221 = tpu.strided_load %arg13[%c1792, %c0_158] {strides = array<i32: 2, 1>} : memref<2048x128xf32, #tpu.memory_space<vmem>>, vector<14x128xf32>
    %c1793 = arith.constant 1793 : index
    %c0_159 = arith.constant 0 : index
    %222 = tpu.strided_load %arg13[%c1793, %c0_159] {strides = array<i32: 2, 1>} : memref<2048x128xf32, #tpu.memory_space<vmem>>, vector<14x128xf32>
    %223 = arith.maximumf %221, %222 : vector<14x128xf32>
    %c1824 = arith.constant 1824 : index
    %c0_160 = arith.constant 0 : index
    %224 = tpu.strided_load %arg13[%c1824, %c0_160] {strides = array<i32: 2, 1>} : memref<2048x128xf32, #tpu.memory_space<vmem>>, vector<14x128xf32>
    %c1825 = arith.constant 1825 : index
    %c0_161 = arith.constant 0 : index
    %225 = tpu.strided_load %arg13[%c1825, %c0_161] {strides = array<i32: 2, 1>} : memref<2048x128xf32, #tpu.memory_space<vmem>>, vector<14x128xf32>
    %226 = arith.maximumf %224, %225 : vector<14x128xf32>
    %227 = arith.maximumf %223, %226 : vector<14x128xf32>
    %c416_162 = arith.constant 416 : index
    %c0_163 = arith.constant 0 : index
    %228 = vector.load %arg14[%c416_162, %c0_163] : memref<456x128xf32, #tpu.memory_space<vmem>>, vector<14x128xf32>
    tpu.vector_store %arg14[%c416_162, %c0_163], %227 {strides = array<i32>} : memref<456x128xf32, #tpu.memory_space<vmem>>, vector<14x128xf32>,
    %c1856 = arith.constant 1856 : index
    %c0_164 = arith.constant 0 : index
    %229 = tpu.strided_load %arg13[%c1856, %c0_164] {strides = array<i32: 2, 1>} : memref<2048x128xf32, #tpu.memory_space<vmem>>, vector<14x128xf32>
    %c1857 = arith.constant 1857 : index
    %c0_165 = arith.constant 0 : index
    %230 = tpu.strided_load %arg13[%c1857, %c0_165] {strides = array<i32: 2, 1>} : memref<2048x128xf32, #tpu.memory_space<vmem>>, vector<14x128xf32>
    %231 = arith.maximumf %229, %230 : vector<14x128xf32>
    %c1888 = arith.constant 1888 : index
    %c0_166 = arith.constant 0 : index
    %232 = tpu.strided_load %arg13[%c1888, %c0_166] {strides = array<i32: 2, 1>} : memref<2048x128xf32, #tpu.memory_space<vmem>>, vector<14x128xf32>
    %c1889 = arith.constant 1889 : index
    %c0_167 = arith.constant 0 : index
    %233 = tpu.strided_load %arg13[%c1889, %c0_167] {strides = array<i32: 2, 1>} : memref<2048x128xf32, #tpu.memory_space<vmem>>, vector<14x128xf32>
    %234 = arith.maximumf %232, %233 : vector<14x128xf32>
    %235 = arith.maximumf %231, %234 : vector<14x128xf32>
    %c432 = arith.constant 432 : index
    %c0_168 = arith.constant 0 : index
    %236 = vector.load %arg14[%c432, %c0_168] : memref<456x128xf32, #tpu.memory_space<vmem>>, vector<14x128xf32>
    tpu.vector_store %arg14[%c432, %c0_168], %235 {strides = array<i32>} : memref<456x128xf32, #tpu.memory_space<vmem>>, vector<14x128xf32>,
    %c0_169 = arith.constant 0 : index
    %c0_170 = arith.constant 0 : index
    %237 = vector.load %arg14[%c0_169, %c0_170] : memref<456x128xf32, #tpu.memory_space<vmem>>, vector<448x128xf32>
    %c1_171 = arith.constant 1 : index
    %c0_172 = arith.constant 0 : index
    %238 = vector.load %arg14[%c1_171, %c0_172] : memref<456x128xf32, #tpu.memory_space<vmem>>, vector<448x128xf32>
    %239 = vector.extract_strided_slice %238 {offsets = [0, 122], sizes = [448, 6], strides = [1, 1]} : vector<448x128xf32> to vector<448x6xf32>
    %240 = vector.extract_strided_slice %238 {offsets = [0, 0], sizes = [448, 122], strides = [1, 1]} : vector<448x128xf32> to vector<448x122xf32>
    %241 = tpu.concatenate %239, %240 in 1 : vector<448x6xf32>, vector<448x122xf32> -> vector<448x128xf32>
    %242 = arith.addf %237, %241 : vector<448x128xf32>
    %c2 = arith.constant 2 : index
    %c0_173 = arith.constant 0 : index
    %243 = vector.load %arg14[%c2, %c0_173] : memref<456x128xf32, #tpu.memory_space<vmem>>, vector<448x128xf32>
    %244 = vector.extract_strided_slice %243 {offsets = [0, 116], sizes = [448, 12], strides = [1, 1]} : vector<448x128xf32> to vector<448x12xf32>
    %245 = vector.extract_strided_slice %243 {offsets = [0, 0], sizes = [448, 116], strides = [1, 1]} : vector<448x128xf32> to vector<448x116xf32>
    %246 = tpu.concatenate %244, %245 in 1 : vector<448x12xf32>, vector<448x116xf32> -> vector<448x128xf32>
    %247 = arith.addf %242, %246 : vector<448x128xf32>
    %c3 = arith.constant 3 : index
    %c0_174 = arith.constant 0 : index
    %248 = vector.load %arg14[%c3, %c0_174] : memref<456x128xf32, #tpu.memory_space<vmem>>, vector<448x128xf32>
    %249 = vector.extract_strided_slice %248 {offsets = [0, 110], sizes = [448, 18], strides = [1, 1]} : vector<448x128xf32> to vector<448x18xf32>
    %250 = vector.extract_strided_slice %248 {offsets = [0, 0], sizes = [448, 110], strides = [1, 1]} : vector<448x128xf32> to vector<448x110xf32>
    %251 = tpu.concatenate %249, %250 in 1 : vector<448x18xf32>, vector<448x110xf32> -> vector<448x128xf32>
    %252 = arith.addf %247, %251 : vector<448x128xf32>
    %c4 = arith.constant 4 : index
    %c0_175 = arith.constant 0 : index
    %253 = vector.load %arg14[%c4, %c0_175] : memref<456x128xf32, #tpu.memory_space<vmem>>, vector<448x128xf32>
    %254 = vector.extract_strided_slice %253 {offsets = [0, 104], sizes = [448, 24], strides = [1, 1]} : vector<448x128xf32> to vector<448x24xf32>
    %255 = vector.extract_strided_slice %253 {offsets = [0, 0], sizes = [448, 104], strides = [1, 1]} : vector<448x128xf32> to vector<448x104xf32>
    %256 = tpu.concatenate %254, %255 in 1 : vector<448x24xf32>, vector<448x104xf32> -> vector<448x128xf32>
    %257 = arith.addf %252, %256 : vector<448x128xf32>
    %c0_176 = arith.constant 0 : index
    %c0_177 = arith.constant 0 : index
    %258 = vector.load %arg15[%c0_176, %c0_177] : memref<448x128xf32, #tpu.memory_space<vmem>>, vector<448x128xf32>
    tpu.vector_store %arg15[%c0_176, %c0_177], %257 {strides = array<i32>} : memref<448x128xf32, #tpu.memory_space<vmem>>, vector<448x128xf32>,
    %c0_178 = arith.constant 0 : index
    %c0_179 = arith.constant 0 : index
    %259 = vector.load %arg15[%c0_178, %c0_179] : memref<448x128xf32, #tpu.memory_space<vmem>>, vector<384x128xf32>
    %c0_180 = arith.constant 0 : index
    %c0_181 = arith.constant 0 : index
    %c0_182 = arith.constant 0 : index
    %260 = vector.load %arg4[%c0_180, %c0_181, %c0_182] : memref<5x128x128xf32, #tpu.memory_space<vmem>>, vector<1x128x128xf32>
    %261 = vector.shape_cast %260 : vector<1x128x128xf32> to vector<128x128xf32>
    %cst_183 = arith.constant dense<0.000000e+00> : vector<384x128xf32>
    %262 = tpu.matmul %259, %261, %cst_183 {dimension_numbers = #tpu.dot_dimension_numbers<[1], [0], [0], [1], [0, 0, 1, 1], [], []>} : vector<384x128xf32>, vector<128x128xf32>, vector<384x128xf32> -> vector<384x128xf32>
    %c16_184 = arith.constant 16 : index
    %c0_185 = arith.constant 0 : index
    %263 = vector.load %arg15[%c16_184, %c0_185] : memref<448x128xf32, #tpu.memory_space<vmem>>, vector<384x128xf32>
    %c1_186 = arith.constant 1 : index
    %c0_187 = arith.constant 0 : index
    %c0_188 = arith.constant 0 : index
    %264 = vector.load %arg4[%c1_186, %c0_187, %c0_188] : memref<5x128x128xf32, #tpu.memory_space<vmem>>, vector<1x128x128xf32>
    %265 = vector.shape_cast %264 : vector<1x128x128xf32> to vector<128x128xf32>
    %cst_189 = arith.constant dense<0.000000e+00> : vector<384x128xf32>
    %266 = tpu.matmul %263, %265, %cst_189 {dimension_numbers = #tpu.dot_dimension_numbers<[1], [0], [0], [1], [0, 0, 1, 1], [], []>} : vector<384x128xf32>, vector<128x128xf32>, vector<384x128xf32> -> vector<384x128xf32>
    %267 = arith.addf %262, %266 : vector<384x128xf32>
    %c32_190 = arith.constant 32 : index
    %c0_191 = arith.constant 0 : index
    %268 = vector.load %arg15[%c32_190, %c0_191] : memref<448x128xf32, #tpu.memory_space<vmem>>, vector<384x128xf32>
    %c2_192 = arith.constant 2 : index
    %c0_193 = arith.constant 0 : index
    %c0_194 = arith.constant 0 : index
    %269 = vector.load %arg4[%c2_192, %c0_193, %c0_194] : memref<5x128x128xf32, #tpu.memory_space<vmem>>, vector<1x128x128xf32>
    %270 = vector.shape_cast %269 : vector<1x128x128xf32> to vector<128x128xf32>
    %cst_195 = arith.constant dense<0.000000e+00> : vector<384x128xf32>
    %271 = tpu.matmul %268, %270, %cst_195 {dimension_numbers = #tpu.dot_dimension_numbers<[1], [0], [0], [1], [0, 0, 1, 1], [], []>} : vector<384x128xf32>, vector<128x128xf32>, vector<384x128xf32> -> vector<384x128xf32>
    %272 = arith.addf %267, %271 : vector<384x128xf32>
    %c48_196 = arith.constant 48 : index
    %c0_197 = arith.constant 0 : index
    %273 = vector.load %arg15[%c48_196, %c0_197] : memref<448x128xf32, #tpu.memory_space<vmem>>, vector<384x128xf32>
    %c3_198 = arith.constant 3 : index
    %c0_199 = arith.constant 0 : index
    %c0_200 = arith.constant 0 : index
    %274 = vector.load %arg4[%c3_198, %c0_199, %c0_200] : memref<5x128x128xf32, #tpu.memory_space<vmem>>, vector<1x128x128xf32>
    %275 = vector.shape_cast %274 : vector<1x128x128xf32> to vector<128x128xf32>
    %cst_201 = arith.constant dense<0.000000e+00> : vector<384x128xf32>
    %276 = tpu.matmul %273, %275, %cst_201 {dimension_numbers = #tpu.dot_dimension_numbers<[1], [0], [0], [1], [0, 0, 1, 1], [], []>} : vector<384x128xf32>, vector<128x128xf32>, vector<384x128xf32> -> vector<384x128xf32>
    %277 = arith.addf %272, %276 : vector<384x128xf32>
    %c64_202 = arith.constant 64 : index
    %c0_203 = arith.constant 0 : index
    %278 = vector.load %arg15[%c64_202, %c0_203] : memref<448x128xf32, #tpu.memory_space<vmem>>, vector<384x128xf32>
    %c4_204 = arith.constant 4 : index
    %c0_205 = arith.constant 0 : index
    %c0_206 = arith.constant 0 : index
    %279 = vector.load %arg4[%c4_204, %c0_205, %c0_206] : memref<5x128x128xf32, #tpu.memory_space<vmem>>, vector<1x128x128xf32>
    %280 = vector.shape_cast %279 : vector<1x128x128xf32> to vector<128x128xf32>
    %cst_207 = arith.constant dense<0.000000e+00> : vector<384x128xf32>
    %281 = tpu.matmul %278, %280, %cst_207 {dimension_numbers = #tpu.dot_dimension_numbers<[1], [0], [0], [1], [0, 0, 1, 1], [], []>} : vector<384x128xf32>, vector<128x128xf32>, vector<384x128xf32> -> vector<384x128xf32>
    %282 = arith.addf %277, %281 : vector<384x128xf32>
    %c0_208 = arith.constant 0 : index
    %c0_209 = arith.constant 0 : index
    %283 = vector.load %arg5[%c0_208, %c0_209] : memref<1x128xf32, #tpu.memory_space<vmem>>, vector<1x128xf32>
    %284 = vector.broadcast %283 : vector<1x128xf32> to vector<384x128xf32>
    %285 = arith.addf %282, %284 : vector<384x128xf32>
    %cst_210 = arith.constant 0.000000e+00 : f32
    %286 = vector.broadcast %cst_210 : f32 to vector<384x128xf32>
    %287 = arith.maximumf %285, %286 : vector<384x128xf32>
    %c0_211 = arith.constant 0 : index
    %c0_212 = arith.constant 0 : index
    %288 = vector.load %arg16[%c0_211, %c0_212] : memref<384x128xf32, #tpu.memory_space<vmem>>, vector<384x128xf32>
    tpu.vector_store %arg16[%c0_211, %c0_212], %287 {strides = array<i32>} : memref<384x128xf32, #tpu.memory_space<vmem>>, vector<384x128xf32>,
    %c0_213 = arith.constant 0 : index
    %289 = memref.load %arg0[%c0_213] : memref<1xi32, #tpu.memory_space<smem>>
    %290 = tpu.iota {dimensions = array<i32: 0>} : vector<5x128xi32>
    %291 = tpu.iota {dimensions = array<i32: 1>} : vector<5x128xi32>
    %c0_214 = arith.constant 0 : index
    %c0_215 = arith.constant 0 : index
    %292 = tpu.strided_load %arg16[%c0_214, %c0_215] {strides = array<i32: 2, 1>} : memref<384x128xf32, #tpu.memory_space<vmem>>, vector<5x128xf32>
    %c1_216 = arith.constant 1 : index
    %c0_217 = arith.constant 0 : index
    %293 = tpu.strided_load %arg16[%c1_216, %c0_217] {strides = array<i32: 2, 1>} : memref<384x128xf32, #tpu.memory_space<vmem>>, vector<5x128xf32>
    %294 = arith.maximumf %292, %293 : vector<5x128xf32>
    %c16_218 = arith.constant 16 : index
    %c0_219 = arith.constant 0 : index
    %295 = tpu.strided_load %arg16[%c16_218, %c0_219] {strides = array<i32: 2, 1>} : memref<384x128xf32, #tpu.memory_space<vmem>>, vector<5x128xf32>
    %c17 = arith.constant 17 : index
    %c0_220 = arith.constant 0 : index
    %296 = tpu.strided_load %arg16[%c17, %c0_220] {strides = array<i32: 2, 1>} : memref<384x128xf32, #tpu.memory_space<vmem>>, vector<5x128xf32>
    %297 = arith.maximumf %295, %296 : vector<5x128xf32>
    %298 = arith.maximumf %294, %297 : vector<5x128xf32>
    %c25_i32 = arith.constant 25 : i32
    %299 = vector.broadcast %c25_i32 : i32 to vector<5x128xi32>
    %300 = arith.muli %291, %299 : vector<5x128xi32>
    %c0_i32 = arith.constant 0 : i32
    %301 = vector.broadcast %c0_i32 : i32 to vector<5x128xi32>
    %302 = arith.addi %300, %301 : vector<5x128xi32>
    %303 = arith.addi %302, %290 : vector<5x128xi32>
    %c0_i32_221 = arith.constant 0 : i32
    %304 = arith.cmpi sgt, %289, %c0_i32_221 : i32
    %c16_i32 = arith.constant 16 : i32
    %305 = vector.broadcast %c16_i32 : i32 to vector<5x128xi32>
    %306 = arith.cmpi slt, %291, %305 : vector<5x128xi32>
    %307 = vector.broadcast %304 : i1 to vector<5x128xi1>
    %308 = arith.andi %307, %306 : vector<5x128xi1>
    %309 = vector.broadcast %289 : i32 to vector<5x128xi32>
    %310 = arith.cmpi eq, %303, %309 : vector<5x128xi32>
    %311 = arith.andi %308, %310 : vector<5x128xi1>
    %cst_222 = arith.constant 0.000000e+00 : f32
    %312 = vector.broadcast %cst_222 : f32 to vector<5x128xf32>
    %313 = arith.select %311, %312, %298 : vector<5x128xi1>, vector<5x128xf32>
    %c0_223 = arith.constant 0 : index
    %c0_224 = arith.constant 0 : index
    %314 = vector.load %arg17[%c0_223, %c0_224] : memref<88x128xf32, #tpu.memory_space<vmem>>, vector<5x128xf32>
    tpu.vector_store %arg17[%c0_223, %c0_224], %313 {strides = array<i32>} : memref<88x128xf32, #tpu.memory_space<vmem>>, vector<5x128xf32>,
    %c32_225 = arith.constant 32 : index
    %c0_226 = arith.constant 0 : index
    %315 = tpu.strided_load %arg16[%c32_225, %c0_226] {strides = array<i32: 2, 1>} : memref<384x128xf32, #tpu.memory_space<vmem>>, vector<5x128xf32>
    %c33_227 = arith.constant 33 : index
    %c0_228 = arith.constant 0 : index
    %316 = tpu.strided_load %arg16[%c33_227, %c0_228] {strides = array<i32: 2, 1>} : memref<384x128xf32, #tpu.memory_space<vmem>>, vector<5x128xf32>
    %317 = arith.maximumf %315, %316 : vector<5x128xf32>
    %c48_229 = arith.constant 48 : index
    %c0_230 = arith.constant 0 : index
    %318 = tpu.strided_load %arg16[%c48_229, %c0_230] {strides = array<i32: 2, 1>} : memref<384x128xf32, #tpu.memory_space<vmem>>, vector<5x128xf32>
    %c49 = arith.constant 49 : index
    %c0_231 = arith.constant 0 : index
    %319 = tpu.strided_load %arg16[%c49, %c0_231] {strides = array<i32: 2, 1>} : memref<384x128xf32, #tpu.memory_space<vmem>>, vector<5x128xf32>
    %320 = arith.maximumf %318, %319 : vector<5x128xf32>
    %321 = arith.maximumf %317, %320 : vector<5x128xf32>
    %c25_i32_232 = arith.constant 25 : i32
    %322 = vector.broadcast %c25_i32_232 : i32 to vector<5x128xi32>
    %323 = arith.muli %291, %322 : vector<5x128xi32>
    %c5_i32 = arith.constant 5 : i32
    %324 = vector.broadcast %c5_i32 : i32 to vector<5x128xi32>
    %325 = arith.addi %323, %324 : vector<5x128xi32>
    %326 = arith.addi %325, %290 : vector<5x128xi32>
    %c0_i32_233 = arith.constant 0 : i32
    %327 = arith.cmpi sgt, %289, %c0_i32_233 : i32
    %c16_i32_234 = arith.constant 16 : i32
    %328 = vector.broadcast %c16_i32_234 : i32 to vector<5x128xi32>
    %329 = arith.cmpi slt, %291, %328 : vector<5x128xi32>
    %330 = vector.broadcast %327 : i1 to vector<5x128xi1>
    %331 = arith.andi %330, %329 : vector<5x128xi1>
    %332 = vector.broadcast %289 : i32 to vector<5x128xi32>
    %333 = arith.cmpi eq, %326, %332 : vector<5x128xi32>
    %334 = arith.andi %331, %333 : vector<5x128xi1>
    %cst_235 = arith.constant 0.000000e+00 : f32
    %335 = vector.broadcast %cst_235 : f32 to vector<5x128xf32>
    %336 = arith.select %334, %335, %321 : vector<5x128xi1>, vector<5x128xf32>
    %c8 = arith.constant 8 : index
    %c0_236 = arith.constant 0 : index
    %337 = vector.load %arg17[%c8, %c0_236] : memref<88x128xf32, #tpu.memory_space<vmem>>, vector<5x128xf32>
    tpu.vector_store %arg17[%c8, %c0_236], %336 {strides = array<i32>} : memref<88x128xf32, #tpu.memory_space<vmem>>, vector<5x128xf32>,
    %c64_237 = arith.constant 64 : index
    %c0_238 = arith.constant 0 : index
    %338 = tpu.strided_load %arg16[%c64_237, %c0_238] {strides = array<i32: 2, 1>} : memref<384x128xf32, #tpu.memory_space<vmem>>, vector<5x128xf32>
    %c65_239 = arith.constant 65 : index
    %c0_240 = arith.constant 0 : index
    %339 = tpu.strided_load %arg16[%c65_239, %c0_240] {strides = array<i32: 2, 1>} : memref<384x128xf32, #tpu.memory_space<vmem>>, vector<5x128xf32>
    %340 = arith.maximumf %338, %339 : vector<5x128xf32>
    %c80_241 = arith.constant 80 : index
    %c0_242 = arith.constant 0 : index
    %341 = tpu.strided_load %arg16[%c80_241, %c0_242] {strides = array<i32: 2, 1>} : memref<384x128xf32, #tpu.memory_space<vmem>>, vector<5x128xf32>
    %c81 = arith.constant 81 : index
    %c0_243 = arith.constant 0 : index
    %342 = tpu.strided_load %arg16[%c81, %c0_243] {strides = array<i32: 2, 1>} : memref<384x128xf32, #tpu.memory_space<vmem>>, vector<5x128xf32>
    %343 = arith.maximumf %341, %342 : vector<5x128xf32>
    %344 = arith.maximumf %340, %343 : vector<5x128xf32>
    %c25_i32_244 = arith.constant 25 : i32
    %345 = vector.broadcast %c25_i32_244 : i32 to vector<5x128xi32>
    %346 = arith.muli %291, %345 : vector<5x128xi32>
    %c10_i32 = arith.constant 10 : i32
    %347 = vector.broadcast %c10_i32 : i32 to vector<5x128xi32>
    %348 = arith.addi %346, %347 : vector<5x128xi32>
    %349 = arith.addi %348, %290 : vector<5x128xi32>
    %c0_i32_245 = arith.constant 0 : i32
    %350 = arith.cmpi sgt, %289, %c0_i32_245 : i32
    %c16_i32_246 = arith.constant 16 : i32
    %351 = vector.broadcast %c16_i32_246 : i32 to vector<5x128xi32>
    %352 = arith.cmpi slt, %291, %351 : vector<5x128xi32>
    %353 = vector.broadcast %350 : i1 to vector<5x128xi1>
    %354 = arith.andi %353, %352 : vector<5x128xi1>
    %355 = vector.broadcast %289 : i32 to vector<5x128xi32>
    %356 = arith.cmpi eq, %349, %355 : vector<5x128xi32>
    %357 = arith.andi %354, %356 : vector<5x128xi1>
    %cst_247 = arith.constant 0.000000e+00 : f32
    %358 = vector.broadcast %cst_247 : f32 to vector<5x128xf32>
    %359 = arith.select %357, %358, %344 : vector<5x128xi1>, vector<5x128xf32>
    %c16_248 = arith.constant 16 : index
    %c0_249 = arith.constant 0 : index
    %360 = vector.load %arg17[%c16_248, %c0_249] : memref<88x128xf32, #tpu.memory_space<vmem>>, vector<5x128xf32>
    tpu.vector_store %arg17[%c16_248, %c0_249], %359 {strides = array<i32>} : memref<88x128xf32, #tpu.memory_space<vmem>>, vector<5x128xf32>,
    %c96_250 = arith.constant 96 : index
    %c0_251 = arith.constant 0 : index
    %361 = tpu.strided_load %arg16[%c96_250, %c0_251] {strides = array<i32: 2, 1>} : memref<384x128xf32, #tpu.memory_space<vmem>>, vector<5x128xf32>
    %c97_252 = arith.constant 97 : index
    %c0_253 = arith.constant 0 : index
    %362 = tpu.strided_load %arg16[%c97_252, %c0_253] {strides = array<i32: 2, 1>} : memref<384x128xf32, #tpu.memory_space<vmem>>, vector<5x128xf32>
    %363 = arith.maximumf %361, %362 : vector<5x128xf32>
    %c112_254 = arith.constant 112 : index
    %c0_255 = arith.constant 0 : index
    %364 = tpu.strided_load %arg16[%c112_254, %c0_255] {strides = array<i32: 2, 1>} : memref<384x128xf32, #tpu.memory_space<vmem>>, vector<5x128xf32>
    %c113 = arith.constant 113 : index
    %c0_256 = arith.constant 0 : index
    %365 = tpu.strided_load %arg16[%c113, %c0_256] {strides = array<i32: 2, 1>} : memref<384x128xf32, #tpu.memory_space<vmem>>, vector<5x128xf32>
    %366 = arith.maximumf %364, %365 : vector<5x128xf32>
    %367 = arith.maximumf %363, %366 : vector<5x128xf32>
    %c25_i32_257 = arith.constant 25 : i32
    %368 = vector.broadcast %c25_i32_257 : i32 to vector<5x128xi32>
    %369 = arith.muli %291, %368 : vector<5x128xi32>
    %c15_i32 = arith.constant 15 : i32
    %370 = vector.broadcast %c15_i32 : i32 to vector<5x128xi32>
    %371 = arith.addi %369, %370 : vector<5x128xi32>
    %372 = arith.addi %371, %290 : vector<5x128xi32>
    %c0_i32_258 = arith.constant 0 : i32
    %373 = arith.cmpi sgt, %289, %c0_i32_258 : i32
    %c16_i32_259 = arith.constant 16 : i32
    %374 = vector.broadcast %c16_i32_259 : i32 to vector<5x128xi32>
    %375 = arith.cmpi slt, %291, %374 : vector<5x128xi32>
    %376 = vector.broadcast %373 : i1 to vector<5x128xi1>
    %377 = arith.andi %376, %375 : vector<5x128xi1>
    %378 = vector.broadcast %289 : i32 to vector<5x128xi32>
    %379 = arith.cmpi eq, %372, %378 : vector<5x128xi32>
    %380 = arith.andi %377, %379 : vector<5x128xi1>
    %cst_260 = arith.constant 0.000000e+00 : f32
    %381 = vector.broadcast %cst_260 : f32 to vector<5x128xf32>
    %382 = arith.select %380, %381, %367 : vector<5x128xi1>, vector<5x128xf32>
    %c24 = arith.constant 24 : index
    %c0_261 = arith.constant 0 : index
    %383 = vector.load %arg17[%c24, %c0_261] : memref<88x128xf32, #tpu.memory_space<vmem>>, vector<5x128xf32>
    tpu.vector_store %arg17[%c24, %c0_261], %382 {strides = array<i32>} : memref<88x128xf32, #tpu.memory_space<vmem>>, vector<5x128xf32>,
    %c128_262 = arith.constant 128 : index
    %c0_263 = arith.constant 0 : index
    %384 = tpu.strided_load %arg16[%c128_262, %c0_263] {strides = array<i32: 2, 1>} : memref<384x128xf32, #tpu.memory_space<vmem>>, vector<5x128xf32>
    %c129_264 = arith.constant 129 : index
    %c0_265 = arith.constant 0 : index
    %385 = tpu.strided_load %arg16[%c129_264, %c0_265] {strides = array<i32: 2, 1>} : memref<384x128xf32, #tpu.memory_space<vmem>>, vector<5x128xf32>
    %386 = arith.maximumf %384, %385 : vector<5x128xf32>
    %c144_266 = arith.constant 144 : index
    %c0_267 = arith.constant 0 : index
    %387 = tpu.strided_load %arg16[%c144_266, %c0_267] {strides = array<i32: 2, 1>} : memref<384x128xf32, #tpu.memory_space<vmem>>, vector<5x128xf32>
    %c145 = arith.constant 145 : index
    %c0_268 = arith.constant 0 : index
    %388 = tpu.strided_load %arg16[%c145, %c0_268] {strides = array<i32: 2, 1>} : memref<384x128xf32, #tpu.memory_space<vmem>>, vector<5x128xf32>
    %389 = arith.maximumf %387, %388 : vector<5x128xf32>
    %390 = arith.maximumf %386, %389 : vector<5x128xf32>
    %c25_i32_269 = arith.constant 25 : i32
    %391 = vector.broadcast %c25_i32_269 : i32 to vector<5x128xi32>
    %392 = arith.muli %291, %391 : vector<5x128xi32>
    %c20_i32 = arith.constant 20 : i32
    %393 = vector.broadcast %c20_i32 : i32 to vector<5x128xi32>
    %394 = arith.addi %392, %393 : vector<5x128xi32>
    %395 = arith.addi %394, %290 : vector<5x128xi32>
    %c0_i32_270 = arith.constant 0 : i32
    %396 = arith.cmpi sgt, %289, %c0_i32_270 : i32
    %c16_i32_271 = arith.constant 16 : i32
    %397 = vector.broadcast %c16_i32_271 : i32 to vector<5x128xi32>
    %398 = arith.cmpi slt, %291, %397 : vector<5x128xi32>
    %399 = vector.broadcast %396 : i1 to vector<5x128xi1>
    %400 = arith.andi %399, %398 : vector<5x128xi1>
    %401 = vector.broadcast %289 : i32 to vector<5x128xi32>
    %402 = arith.cmpi eq, %395, %401 : vector<5x128xi32>
    %403 = arith.andi %400, %402 : vector<5x128xi1>
    %cst_272 = arith.constant 0.000000e+00 : f32
    %404 = vector.broadcast %cst_272 : f32 to vector<5x128xf32>
    %405 = arith.select %403, %404, %390 : vector<5x128xi1>, vector<5x128xf32>
    %c32_273 = arith.constant 32 : index
    %c0_274 = arith.constant 0 : index
    %406 = vector.load %arg17[%c32_273, %c0_274] : memref<88x128xf32, #tpu.memory_space<vmem>>, vector<5x128xf32>
    tpu.vector_store %arg17[%c32_273, %c0_274], %405 {strides = array<i32>} : memref<88x128xf32, #tpu.memory_space<vmem>>, vector<5x128xf32>,
    %c224_275 = arith.constant 224 : index
    %c0_276 = arith.constant 0 : index
    %407 = tpu.strided_load %arg16[%c224_275, %c0_276] {strides = array<i32: 2, 1>} : memref<384x128xf32, #tpu.memory_space<vmem>>, vector<5x128xf32>
    %c225_277 = arith.constant 225 : index
    %c0_278 = arith.constant 0 : index
    %408 = tpu.strided_load %arg16[%c225_277, %c0_278] {strides = array<i32: 2, 1>} : memref<384x128xf32, #tpu.memory_space<vmem>>, vector<5x128xf32>
    %409 = arith.maximumf %407, %408 : vector<5x128xf32>
    %c240_279 = arith.constant 240 : index
    %c0_280 = arith.constant 0 : index
    %410 = tpu.strided_load %arg16[%c240_279, %c0_280] {strides = array<i32: 2, 1>} : memref<384x128xf32, #tpu.memory_space<vmem>>, vector<5x128xf32>
    %c241 = arith.constant 241 : index
    %c0_281 = arith.constant 0 : index
    %411 = tpu.strided_load %arg16[%c241, %c0_281] {strides = array<i32: 2, 1>} : memref<384x128xf32, #tpu.memory_space<vmem>>, vector<5x128xf32>
    %412 = arith.maximumf %410, %411 : vector<5x128xf32>
    %413 = arith.maximumf %409, %412 : vector<5x128xf32>
    %c25_i32_282 = arith.constant 25 : i32
    %414 = vector.broadcast %c25_i32_282 : i32 to vector<5x128xi32>
    %415 = arith.muli %291, %414 : vector<5x128xi32>
    %c0_i32_283 = arith.constant 0 : i32
    %416 = vector.broadcast %c0_i32_283 : i32 to vector<5x128xi32>
    %417 = arith.addi %415, %416 : vector<5x128xi32>
    %418 = arith.addi %417, %290 : vector<5x128xi32>
    %c0_i32_284 = arith.constant 0 : i32
    %419 = arith.cmpi sgt, %289, %c0_i32_284 : i32
    %c16_i32_285 = arith.constant 16 : i32
    %420 = vector.broadcast %c16_i32_285 : i32 to vector<5x128xi32>
    %421 = arith.cmpi slt, %291, %420 : vector<5x128xi32>
    %422 = vector.broadcast %419 : i1 to vector<5x128xi1>
    %423 = arith.andi %422, %421 : vector<5x128xi1>
    %424 = vector.broadcast %289 : i32 to vector<5x128xi32>
    %425 = arith.cmpi eq, %418, %424 : vector<5x128xi32>
    %426 = arith.andi %423, %425 : vector<5x128xi1>
    %cst_286 = arith.constant 0.000000e+00 : f32
    %427 = vector.broadcast %cst_286 : f32 to vector<5x128xf32>
    %428 = arith.select %426, %427, %413 : vector<5x128xi1>, vector<5x128xf32>
    %c40 = arith.constant 40 : index
    %c0_287 = arith.constant 0 : index
    %429 = vector.load %arg17[%c40, %c0_287] : memref<88x128xf32, #tpu.memory_space<vmem>>, vector<5x128xf32>
    tpu.vector_store %arg17[%c40, %c0_287], %428 {strides = array<i32>} : memref<88x128xf32, #tpu.memory_space<vmem>>, vector<5x128xf32>,
    %c256_288 = arith.constant 256 : index
    %c0_289 = arith.constant 0 : index
    %430 = tpu.strided_load %arg16[%c256_288, %c0_289] {strides = array<i32: 2, 1>} : memref<384x128xf32, #tpu.memory_space<vmem>>, vector<5x128xf32>
    %c257_290 = arith.constant 257 : index
    %c0_291 = arith.constant 0 : index
    %431 = tpu.strided_load %arg16[%c257_290, %c0_291] {strides = array<i32: 2, 1>} : memref<384x128xf32, #tpu.memory_space<vmem>>, vector<5x128xf32>
    %432 = arith.maximumf %430, %431 : vector<5x128xf32>
    %c272_292 = arith.constant 272 : index
    %c0_293 = arith.constant 0 : index
    %433 = tpu.strided_load %arg16[%c272_292, %c0_293] {strides = array<i32: 2, 1>} : memref<384x128xf32, #tpu.memory_space<vmem>>, vector<5x128xf32>
    %c273 = arith.constant 273 : index
    %c0_294 = arith.constant 0 : index
    %434 = tpu.strided_load %arg16[%c273, %c0_294] {strides = array<i32: 2, 1>} : memref<384x128xf32, #tpu.memory_space<vmem>>, vector<5x128xf32>
    %435 = arith.maximumf %433, %434 : vector<5x128xf32>
    %436 = arith.maximumf %432, %435 : vector<5x128xf32>
    %c25_i32_295 = arith.constant 25 : i32
    %437 = vector.broadcast %c25_i32_295 : i32 to vector<5x128xi32>
    %438 = arith.muli %291, %437 : vector<5x128xi32>
    %c5_i32_296 = arith.constant 5 : i32
    %439 = vector.broadcast %c5_i32_296 : i32 to vector<5x128xi32>
    %440 = arith.addi %438, %439 : vector<5x128xi32>
    %441 = arith.addi %440, %290 : vector<5x128xi32>
    %c0_i32_297 = arith.constant 0 : i32
    %442 = arith.cmpi sgt, %289, %c0_i32_297 : i32
    %c16_i32_298 = arith.constant 16 : i32
    %443 = vector.broadcast %c16_i32_298 : i32 to vector<5x128xi32>
    %444 = arith.cmpi slt, %291, %443 : vector<5x128xi32>
    %445 = vector.broadcast %442 : i1 to vector<5x128xi1>
    %446 = arith.andi %445, %444 : vector<5x128xi1>
    %447 = vector.broadcast %289 : i32 to vector<5x128xi32>
    %448 = arith.cmpi eq, %441, %447 : vector<5x128xi32>
    %449 = arith.andi %446, %448 : vector<5x128xi1>
    %cst_299 = arith.constant 0.000000e+00 : f32
    %450 = vector.broadcast %cst_299 : f32 to vector<5x128xf32>
    %451 = arith.select %449, %450, %436 : vector<5x128xi1>, vector<5x128xf32>
    %c48_300 = arith.constant 48 : index
    %c0_301 = arith.constant 0 : index
    %452 = vector.load %arg17[%c48_300, %c0_301] : memref<88x128xf32, #tpu.memory_space<vmem>>, vector<5x128xf32>
    tpu.vector_store %arg17[%c48_300, %c0_301], %451 {strides = array<i32>} : memref<88x128xf32, #tpu.memory_space<vmem>>, vector<5x128xf32>,
    %c288_302 = arith.constant 288 : index
    %c0_303 = arith.constant 0 : index
    %453 = tpu.strided_load %arg16[%c288_302, %c0_303] {strides = array<i32: 2, 1>} : memref<384x128xf32, #tpu.memory_space<vmem>>, vector<5x128xf32>
    %c289_304 = arith.constant 289 : index
    %c0_305 = arith.constant 0 : index
    %454 = tpu.strided_load %arg16[%c289_304, %c0_305] {strides = array<i32: 2, 1>} : memref<384x128xf32, #tpu.memory_space<vmem>>, vector<5x128xf32>
    %455 = arith.maximumf %453, %454 : vector<5x128xf32>
    %c304_306 = arith.constant 304 : index
    %c0_307 = arith.constant 0 : index
    %456 = tpu.strided_load %arg16[%c304_306, %c0_307] {strides = array<i32: 2, 1>} : memref<384x128xf32, #tpu.memory_space<vmem>>, vector<5x128xf32>
    %c305 = arith.constant 305 : index
    %c0_308 = arith.constant 0 : index
    %457 = tpu.strided_load %arg16[%c305, %c0_308] {strides = array<i32: 2, 1>} : memref<384x128xf32, #tpu.memory_space<vmem>>, vector<5x128xf32>
    %458 = arith.maximumf %456, %457 : vector<5x128xf32>
    %459 = arith.maximumf %455, %458 : vector<5x128xf32>
    %c25_i32_309 = arith.constant 25 : i32
    %460 = vector.broadcast %c25_i32_309 : i32 to vector<5x128xi32>
    %461 = arith.muli %291, %460 : vector<5x128xi32>
    %c10_i32_310 = arith.constant 10 : i32
    %462 = vector.broadcast %c10_i32_310 : i32 to vector<5x128xi32>
    %463 = arith.addi %461, %462 : vector<5x128xi32>
    %464 = arith.addi %463, %290 : vector<5x128xi32>
    %c0_i32_311 = arith.constant 0 : i32
    %465 = arith.cmpi sgt, %289, %c0_i32_311 : i32
    %c16_i32_312 = arith.constant 16 : i32
    %466 = vector.broadcast %c16_i32_312 : i32 to vector<5x128xi32>
    %467 = arith.cmpi slt, %291, %466 : vector<5x128xi32>
    %468 = vector.broadcast %465 : i1 to vector<5x128xi1>
    %469 = arith.andi %468, %467 : vector<5x128xi1>
    %470 = vector.broadcast %289 : i32 to vector<5x128xi32>
    %471 = arith.cmpi eq, %464, %470 : vector<5x128xi32>
    %472 = arith.andi %469, %471 : vector<5x128xi1>
    %cst_313 = arith.constant 0.000000e+00 : f32
    %473 = vector.broadcast %cst_313 : f32 to vector<5x128xf32>
    %474 = arith.select %472, %473, %459 : vector<5x128xi1>, vector<5x128xf32>
    %c56 = arith.constant 56 : index
    %c0_314 = arith.constant 0 : index
    %475 = vector.load %arg17[%c56, %c0_314] : memref<88x128xf32, #tpu.memory_space<vmem>>, vector<5x128xf32>
    tpu.vector_store %arg17[%c56, %c0_314], %474 {strides = array<i32>} : memref<88x128xf32, #tpu.memory_space<vmem>>, vector<5x128xf32>,
    %c320_315 = arith.constant 320 : index
    %c0_316 = arith.constant 0 : index
    %476 = tpu.strided_load %arg16[%c320_315, %c0_316] {strides = array<i32: 2, 1>} : memref<384x128xf32, #tpu.memory_space<vmem>>, vector<5x128xf32>
    %c321_317 = arith.constant 321 : index
    %c0_318 = arith.constant 0 : index
    %477 = tpu.strided_load %arg16[%c321_317, %c0_318] {strides = array<i32: 2, 1>} : memref<384x128xf32, #tpu.memory_space<vmem>>, vector<5x128xf32>
    %478 = arith.maximumf %476, %477 : vector<5x128xf32>
    %c336_319 = arith.constant 336 : index
    %c0_320 = arith.constant 0 : index
    %479 = tpu.strided_load %arg16[%c336_319, %c0_320] {strides = array<i32: 2, 1>} : memref<384x128xf32, #tpu.memory_space<vmem>>, vector<5x128xf32>
    %c337 = arith.constant 337 : index
    %c0_321 = arith.constant 0 : index
    %480 = tpu.strided_load %arg16[%c337, %c0_321] {strides = array<i32: 2, 1>} : memref<384x128xf32, #tpu.memory_space<vmem>>, vector<5x128xf32>
    %481 = arith.maximumf %479, %480 : vector<5x128xf32>
    %482 = arith.maximumf %478, %481 : vector<5x128xf32>
    %c25_i32_322 = arith.constant 25 : i32
    %483 = vector.broadcast %c25_i32_322 : i32 to vector<5x128xi32>
    %484 = arith.muli %291, %483 : vector<5x128xi32>
    %c15_i32_323 = arith.constant 15 : i32
    %485 = vector.broadcast %c15_i32_323 : i32 to vector<5x128xi32>
    %486 = arith.addi %484, %485 : vector<5x128xi32>
    %487 = arith.addi %486, %290 : vector<5x128xi32>
    %c0_i32_324 = arith.constant 0 : i32
    %488 = arith.cmpi sgt, %289, %c0_i32_324 : i32
    %c16_i32_325 = arith.constant 16 : i32
    %489 = vector.broadcast %c16_i32_325 : i32 to vector<5x128xi32>
    %490 = arith.cmpi slt, %291, %489 : vector<5x128xi32>
    %491 = vector.broadcast %488 : i1 to vector<5x128xi1>
    %492 = arith.andi %491, %490 : vector<5x128xi1>
    %493 = vector.broadcast %289 : i32 to vector<5x128xi32>
    %494 = arith.cmpi eq, %487, %493 : vector<5x128xi32>
    %495 = arith.andi %492, %494 : vector<5x128xi1>
    %cst_326 = arith.constant 0.000000e+00 : f32
    %496 = vector.broadcast %cst_326 : f32 to vector<5x128xf32>
    %497 = arith.select %495, %496, %482 : vector<5x128xi1>, vector<5x128xf32>
    %c64_327 = arith.constant 64 : index
    %c0_328 = arith.constant 0 : index
    %498 = vector.load %arg17[%c64_327, %c0_328] : memref<88x128xf32, #tpu.memory_space<vmem>>, vector<5x128xf32>
    tpu.vector_store %arg17[%c64_327, %c0_328], %497 {strides = array<i32>} : memref<88x128xf32, #tpu.memory_space<vmem>>, vector<5x128xf32>,
    %c352_329 = arith.constant 352 : index
    %c0_330 = arith.constant 0 : index
    %499 = tpu.strided_load %arg16[%c352_329, %c0_330] {strides = array<i32: 2, 1>} : memref<384x128xf32, #tpu.memory_space<vmem>>, vector<5x128xf32>
    %c353_331 = arith.constant 353 : index
    %c0_332 = arith.constant 0 : index
    %500 = tpu.strided_load %arg16[%c353_331, %c0_332] {strides = array<i32: 2, 1>} : memref<384x128xf32, #tpu.memory_space<vmem>>, vector<5x128xf32>
    %501 = arith.maximumf %499, %500 : vector<5x128xf32>
    %c368_333 = arith.constant 368 : index
    %c0_334 = arith.constant 0 : index
    %502 = tpu.strided_load %arg16[%c368_333, %c0_334] {strides = array<i32: 2, 1>} : memref<384x128xf32, #tpu.memory_space<vmem>>, vector<5x128xf32>
    %c369 = arith.constant 369 : index
    %c0_335 = arith.constant 0 : index
    %503 = tpu.strided_load %arg16[%c369, %c0_335] {strides = array<i32: 2, 1>} : memref<384x128xf32, #tpu.memory_space<vmem>>, vector<5x128xf32>
    %504 = arith.maximumf %502, %503 : vector<5x128xf32>
    %505 = arith.maximumf %501, %504 : vector<5x128xf32>
    %c25_i32_336 = arith.constant 25 : i32
    %506 = vector.broadcast %c25_i32_336 : i32 to vector<5x128xi32>
    %507 = arith.muli %291, %506 : vector<5x128xi32>
    %c20_i32_337 = arith.constant 20 : i32
    %508 = vector.broadcast %c20_i32_337 : i32 to vector<5x128xi32>
    %509 = arith.addi %507, %508 : vector<5x128xi32>
    %510 = arith.addi %509, %290 : vector<5x128xi32>
    %c0_i32_338 = arith.constant 0 : i32
    %511 = arith.cmpi sgt, %289, %c0_i32_338 : i32
    %c16_i32_339 = arith.constant 16 : i32
    %512 = vector.broadcast %c16_i32_339 : i32 to vector<5x128xi32>
    %513 = arith.cmpi slt, %291, %512 : vector<5x128xi32>
    %514 = vector.broadcast %511 : i1 to vector<5x128xi1>
    %515 = arith.andi %514, %513 : vector<5x128xi1>
    %516 = vector.broadcast %289 : i32 to vector<5x128xi32>
    %517 = arith.cmpi eq, %510, %516 : vector<5x128xi32>
    %518 = arith.andi %515, %517 : vector<5x128xi1>
    %cst_340 = arith.constant 0.000000e+00 : f32
    %519 = vector.broadcast %cst_340 : f32 to vector<5x128xf32>
    %520 = arith.select %518, %519, %505 : vector<5x128xi1>, vector<5x128xf32>
    %c72 = arith.constant 72 : index
    %c0_341 = arith.constant 0 : index
    %521 = vector.load %arg17[%c72, %c0_341] : memref<88x128xf32, #tpu.memory_space<vmem>>, vector<5x128xf32>
    tpu.vector_store %arg17[%c72, %c0_341], %520 {strides = array<i32>} : memref<88x128xf32, #tpu.memory_space<vmem>>, vector<5x128xf32>,
    %c0_342 = arith.constant 0 : index
    %c0_343 = arith.constant 0 : index
    %522 = vector.load %arg17[%c0_342, %c0_343] : memref<88x128xf32, #tpu.memory_space<vmem>>, vector<80x128xf32>
    %c1_344 = arith.constant 1 : index
    %c0_345 = arith.constant 0 : index
    %523 = vector.load %arg17[%c1_344, %c0_345] : memref<88x128xf32, #tpu.memory_space<vmem>>, vector<80x128xf32>
    %524 = vector.extract_strided_slice %523 {offsets = [0, 112], sizes = [80, 16], strides = [1, 1]} : vector<80x128xf32> to vector<80x16xf32>
    %525 = vector.extract_strided_slice %523 {offsets = [0, 0], sizes = [80, 112], strides = [1, 1]} : vector<80x128xf32> to vector<80x112xf32>
    %526 = tpu.concatenate %524, %525 in 1 : vector<80x16xf32>, vector<80x112xf32> -> vector<80x128xf32>
    %527 = arith.addf %522, %526 : vector<80x128xf32>
    %c2_346 = arith.constant 2 : index
    %c0_347 = arith.constant 0 : index
    %528 = vector.load %arg17[%c2_346, %c0_347] : memref<88x128xf32, #tpu.memory_space<vmem>>, vector<80x128xf32>
    %529 = vector.extract_strided_slice %528 {offsets = [0, 96], sizes = [80, 32], strides = [1, 1]} : vector<80x128xf32> to vector<80x32xf32>
    %530 = vector.extract_strided_slice %528 {offsets = [0, 0], sizes = [80, 96], strides = [1, 1]} : vector<80x128xf32> to vector<80x96xf32>
    %531 = tpu.concatenate %529, %530 in 1 : vector<80x32xf32>, vector<80x96xf32> -> vector<80x128xf32>
    %532 = arith.addf %527, %531 : vector<80x128xf32>
    %c3_348 = arith.constant 3 : index
    %c0_349 = arith.constant 0 : index
    %533 = vector.load %arg17[%c3_348, %c0_349] : memref<88x128xf32, #tpu.memory_space<vmem>>, vector<80x128xf32>
    %534 = vector.extract_strided_slice %533 {offsets = [0, 80], sizes = [80, 48], strides = [1, 1]} : vector<80x128xf32> to vector<80x48xf32>
    %535 = vector.extract_strided_slice %533 {offsets = [0, 0], sizes = [80, 80], strides = [1, 1]} : vector<80x128xf32> to vector<80x80xf32>
    %536 = tpu.concatenate %534, %535 in 1 : vector<80x48xf32>, vector<80x80xf32> -> vector<80x128xf32>
    %537 = arith.addf %532, %536 : vector<80x128xf32>
    %c4_350 = arith.constant 4 : index
    %c0_351 = arith.constant 0 : index
    %538 = vector.load %arg17[%c4_350, %c0_351] : memref<88x128xf32, #tpu.memory_space<vmem>>, vector<80x128xf32>
    %539 = vector.extract_strided_slice %538 {offsets = [0, 64], sizes = [80, 64], strides = [1, 1]} : vector<80x128xf32> to vector<80x64xf32>
    %540 = vector.extract_strided_slice %538 {offsets = [0, 0], sizes = [80, 64], strides = [1, 1]} : vector<80x128xf32> to vector<80x64xf32>
    %541 = tpu.concatenate %539, %540 in 1 : vector<80x64xf32>, vector<80x64xf32> -> vector<80x128xf32>
    %542 = arith.addf %537, %541 : vector<80x128xf32>
    %c0_352 = arith.constant 0 : index
    %c0_353 = arith.constant 0 : index
    %543 = vector.load %arg18[%c0_352, %c0_353] : memref<80x128xf32, #tpu.memory_space<vmem>>, vector<80x128xf32>
    tpu.vector_store %arg18[%c0_352, %c0_353], %542 {strides = array<i32>} : memref<80x128xf32, #tpu.memory_space<vmem>>, vector<80x128xf32>,
    %c0_354 = arith.constant 0 : index
    %c0_355 = arith.constant 0 : index
    %544 = tpu.strided_load %arg18[%c0_354, %c0_355] {strides = array<i32: 40, 1>} : memref<80x128xf32, #tpu.memory_space<vmem>>, vector<2x128xf32>
    %c0_356 = arith.constant 0 : index
    %c0_357 = arith.constant 0 : index
    %c0_358 = arith.constant 0 : index
    %545 = vector.load %arg6[%c0_356, %c0_357, %c0_358] : memref<5x128x128xf32, #tpu.memory_space<vmem>>, vector<1x128x128xf32>
    %546 = vector.shape_cast %545 : vector<1x128x128xf32> to vector<128x128xf32>
    %cst_359 = arith.constant dense<0.000000e+00> : vector<2x128xf32>
    %547 = tpu.matmul %544, %546, %cst_359 {dimension_numbers = #tpu.dot_dimension_numbers<[1], [0], [0], [1], [0, 0, 1, 1], [], []>} : vector<2x128xf32>, vector<128x128xf32>, vector<2x128xf32> -> vector<2x128xf32>
    %c8_360 = arith.constant 8 : index
    %c0_361 = arith.constant 0 : index
    %548 = tpu.strided_load %arg18[%c8_360, %c0_361] {strides = array<i32: 40, 1>} : memref<80x128xf32, #tpu.memory_space<vmem>>, vector<2x128xf32>
    %c1_362 = arith.constant 1 : index
    %c0_363 = arith.constant 0 : index
    %c0_364 = arith.constant 0 : index
    %549 = vector.load %arg6[%c1_362, %c0_363, %c0_364] : memref<5x128x128xf32, #tpu.memory_space<vmem>>, vector<1x128x128xf32>
    %550 = vector.shape_cast %549 : vector<1x128x128xf32> to vector<128x128xf32>
    %cst_365 = arith.constant dense<0.000000e+00> : vector<2x128xf32>
    %551 = tpu.matmul %548, %550, %cst_365 {dimension_numbers = #tpu.dot_dimension_numbers<[1], [0], [0], [1], [0, 0, 1, 1], [], []>} : vector<2x128xf32>, vector<128x128xf32>, vector<2x128xf32> -> vector<2x128xf32>
    %552 = arith.addf %547, %551 : vector<2x128xf32>
    %c16_366 = arith.constant 16 : index
    %c0_367 = arith.constant 0 : index
    %553 = tpu.strided_load %arg18[%c16_366, %c0_367] {strides = array<i32: 40, 1>} : memref<80x128xf32, #tpu.memory_space<vmem>>, vector<2x128xf32>
    %c2_368 = arith.constant 2 : index
    %c0_369 = arith.constant 0 : index
    %c0_370 = arith.constant 0 : index
    %554 = vector.load %arg6[%c2_368, %c0_369, %c0_370] : memref<5x128x128xf32, #tpu.memory_space<vmem>>, vector<1x128x128xf32>
    %555 = vector.shape_cast %554 : vector<1x128x128xf32> to vector<128x128xf32>
    %cst_371 = arith.constant dense<0.000000e+00> : vector<2x128xf32>
    %556 = tpu.matmul %553, %555, %cst_371 {dimension_numbers = #tpu.dot_dimension_numbers<[1], [0], [0], [1], [0, 0, 1, 1], [], []>} : vector<2x128xf32>, vector<128x128xf32>, vector<2x128xf32> -> vector<2x128xf32>
    %557 = arith.addf %552, %556 : vector<2x128xf32>
    %c24_372 = arith.constant 24 : index
    %c0_373 = arith.constant 0 : index
    %558 = tpu.strided_load %arg18[%c24_372, %c0_373] {strides = array<i32: 40, 1>} : memref<80x128xf32, #tpu.memory_space<vmem>>, vector<2x128xf32>
    %c3_374 = arith.constant 3 : index
    %c0_375 = arith.constant 0 : index
    %c0_376 = arith.constant 0 : index
    %559 = vector.load %arg6[%c3_374, %c0_375, %c0_376] : memref<5x128x128xf32, #tpu.memory_space<vmem>>, vector<1x128x128xf32>
    %560 = vector.shape_cast %559 : vector<1x128x128xf32> to vector<128x128xf32>
    %cst_377 = arith.constant dense<0.000000e+00> : vector<2x128xf32>
    %561 = tpu.matmul %558, %560, %cst_377 {dimension_numbers = #tpu.dot_dimension_numbers<[1], [0], [0], [1], [0, 0, 1, 1], [], []>} : vector<2x128xf32>, vector<128x128xf32>, vector<2x128xf32> -> vector<2x128xf32>
    %562 = arith.addf %557, %561 : vector<2x128xf32>
    %c32_378 = arith.constant 32 : index
    %c0_379 = arith.constant 0 : index
    %563 = tpu.strided_load %arg18[%c32_378, %c0_379] {strides = array<i32: 40, 1>} : memref<80x128xf32, #tpu.memory_space<vmem>>, vector<2x128xf32>
    %c4_380 = arith.constant 4 : index
    %c0_381 = arith.constant 0 : index
    %c0_382 = arith.constant 0 : index
    %564 = vector.load %arg6[%c4_380, %c0_381, %c0_382] : memref<5x128x128xf32, #tpu.memory_space<vmem>>, vector<1x128x128xf32>
    %565 = vector.shape_cast %564 : vector<1x128x128xf32> to vector<128x128xf32>
    %cst_383 = arith.constant dense<0.000000e+00> : vector<2x128xf32>
    %566 = tpu.matmul %563, %565, %cst_383 {dimension_numbers = #tpu.dot_dimension_numbers<[1], [0], [0], [1], [0, 0, 1, 1], [], []>} : vector<2x128xf32>, vector<128x128xf32>, vector<2x128xf32> -> vector<2x128xf32>
    %567 = arith.addf %562, %566 : vector<2x128xf32>
    %c0_384 = arith.constant 0 : index
    %c0_385 = arith.constant 0 : index
    %568 = vector.load %arg7[%c0_384, %c0_385] : memref<1x128xf32, #tpu.memory_space<vmem>>, vector<1x128xf32>
    %569 = vector.broadcast %568 : vector<1x128xf32> to vector<2x128xf32>
    %570 = arith.addf %567, %569 : vector<2x128xf32>
    %cst_386 = arith.constant 0.000000e+00 : f32
    %571 = vector.broadcast %cst_386 : f32 to vector<2x128xf32>
    %572 = arith.maximumf %570, %571 : vector<2x128xf32>
    %c0_387 = arith.constant 0 : index
    %c0_388 = arith.constant 0 : index
    %573 = vector.load %arg8[%c0_387, %c0_388] : memref<128x128xf32, #tpu.memory_space<vmem>>, vector<128x128xf32>
    %cst_389 = arith.constant dense<0.000000e+00> : vector<2x128xf32>
    %574 = tpu.matmul %572, %573, %cst_389 {dimension_numbers = #tpu.dot_dimension_numbers<[1], [0], [0], [1], [0, 0, 1, 1], [], []>} : vector<2x128xf32>, vector<128x128xf32>, vector<2x128xf32> -> vector<2x128xf32>
    %c0_390 = arith.constant 0 : index
    %c0_391 = arith.constant 0 : index
    %575 = vector.load %arg9[%c0_390, %c0_391] : memref<1x128xf32, #tpu.memory_space<vmem>>, vector<1x128xf32>
    %576 = vector.broadcast %575 : vector<1x128xf32> to vector<2x128xf32>
    %577 = arith.addf %574, %576 : vector<2x128xf32>
    %cst_392 = arith.constant 0.000000e+00 : f32
    %578 = vector.broadcast %cst_392 : f32 to vector<2x128xf32>
    %579 = arith.maximumf %577, %578 : vector<2x128xf32>
    %c0_393 = arith.constant 0 : index
    %c0_394 = arith.constant 0 : index
    %580 = vector.load %arg10[%c0_393, %c0_394] : memref<128x128xf32, #tpu.memory_space<vmem>>, vector<128x128xf32>
    %cst_395 = arith.constant dense<0.000000e+00> : vector<2x128xf32>
    %581 = tpu.matmul %579, %580, %cst_395 {dimension_numbers = #tpu.dot_dimension_numbers<[1], [0], [0], [1], [0, 0, 1, 1], [], []>} : vector<2x128xf32>, vector<128x128xf32>, vector<2x128xf32> -> vector<2x128xf32>
    %c0_396 = arith.constant 0 : index
    %c0_397 = arith.constant 0 : index
    %582 = vector.load %arg11[%c0_396, %c0_397] : memref<1x128xf32, #tpu.memory_space<vmem>>, vector<1x128xf32>
    %583 = vector.broadcast %582 : vector<1x128xf32> to vector<2x128xf32>
    %584 = arith.addf %581, %583 : vector<2x128xf32>
    %cst_398 = arith.constant 0.000000e+00 : f32
    %585 = vector.broadcast %cst_398 : f32 to vector<8x128xf32>
    %c0_399 = arith.constant 0 : index
    %c0_400 = arith.constant 0 : index
    %586 = vector.load %arg12[%c0_399, %c0_400] : memref<8x128xf32, #tpu.memory_space<vmem>>, vector<8x128xf32>
    tpu.vector_store %arg12[%c0_399, %c0_400], %585 {strides = array<i32>} : memref<8x128xf32, #tpu.memory_space<vmem>>, vector<8x128xf32>,
    %c0_401 = arith.constant 0 : index
    %c0_402 = arith.constant 0 : index
    %587 = vector.load %arg12[%c0_401, %c0_402] : memref<8x128xf32, #tpu.memory_space<vmem>>, vector<2x128xf32>
    tpu.vector_store %arg12[%c0_401, %c0_402], %584 {strides = array<i32>} : memref<8x128xf32, #tpu.memory_space<vmem>>, vector<2x128xf32>,
    return
  }
}

</mosaic_0001>

<llo_original>
// kernel: net_forward.1
$region0: #{net_forward.1}
  #allocation0 [shape = 'u32[]', space=smem, size = 0x4, offset = 0x4, fixed_abs, tag = 'smem constant byte address 0x4 - core index']
  #allocation1 [shape = 'u32[72,128]{1,0:T(1,128)}', space=vmem, size = 0x9000, scoped, tag = 'internal scratch']
  #allocation2 [shape = 'f32[2048,128]{1,0:T(8,128)}', space=vmem, size = 0x100000, scoped, tag = 'scratch operand']
  #allocation3 [shape = 'f32[456,128]{1,0:T(8,128)}', space=vmem, size = 0x39000, scoped, tag = 'scratch operand']
  #allocation4 [shape = 'f32[448,128]{1,0:T(8,128)}', space=vmem, size = 0x38000, scoped, tag = 'scratch operand']
  #allocation5 [shape = 'f32[384,128]{1,0:T(8,128)}', space=vmem, size = 0x30000, scoped, tag = 'scratch operand']
  #allocation6 [shape = 'f32[88,128]{1,0:T(8,128)}', space=vmem, size = 0xb000, scoped, tag = 'scratch operand']
  #allocation7 [shape = 'f32[80,128]{1,0:T(8,128)}', space=vmem, size = 0xa000, scoped, tag = 'scratch operand']
  #allocation8 [shape = 's32[1]{0:T(128)S(6)}', space=smem, size = 0x200, scoped, tag = 'scoped memory for net_forward.1']
  %s0 = inlined_call_operand.<no memory space> [shape: s32[1], index: 0, kind: input, shape index: {}]
  %s1 = inlined_call_operand.vmem [shape: f32[2048,128], index: 1, kind: input, shape index: {}]
  %s2 = inlined_call_operand.vmem [shape: f32[128,128], index: 2, kind: input, shape index: {}]
  %s3 = inlined_call_operand.vmem [shape: f32[1,128], index: 3, kind: input, shape index: {}]
  %s4 = inlined_call_operand.vmem [shape: f32[5,128,128], index: 4, kind: input, shape index: {}]
  %s5 = inlined_call_operand.vmem [shape: f32[1,128], index: 5, kind: input, shape index: {}]
  %s6 = inlined_call_operand.vmem [shape: f32[5,128,128], index: 6, kind: input, shape index: {}]
  %s7 = inlined_call_operand.vmem [shape: f32[1,128], index: 7, kind: input, shape index: {}]
  %s8 = inlined_call_operand.vmem [shape: f32[128,128], index: 8, kind: input, shape index: {}]
  %s9 = inlined_call_operand.vmem [shape: f32[1,128], index: 9, kind: input, shape index: {}]
  %s10 = inlined_call_operand.vmem [shape: f32[128,128], index: 10, kind: input, shape index: {}]
  %s11 = inlined_call_operand.vmem [shape: f32[1,128], index: 11, kind: input, shape index: {}]
  %s12 = inlined_call_operand.vmem [shape: f32[8,128], index: 12, kind: output, shape index: {}]
  %s13 = sld [smem:[#allocation0]]
  $region58: #{net_forward.1} parent=0
    _
  %s15 = ssub.s32 1, %s13
  %s16 = scalar_select 0, %s15, %s13
  %17 = sst [smem:[#allocation8]] %s0
  // Predicated region
  $region2: #{net_forward.1} parent=0 // pred_check
    _
  $region3: #{net_forward.1} parent=0 // pred_check_branch
    %19 = sbr.rel (0) target = $region5
  $region4: #{net_forward.1} parent=0 // pred_region
    _
  $region5: #{net_forward.1} parent=0 // pred_fallthru
    _
  // Predicated region
  $region6: #{net_forward.1} parent=0 // pred_check
    _
  $region7: #{net_forward.1} parent=0 // pred_check_branch
    %21 = sbr.rel (0) target = $region9
  $region8: #{net_forward.1} parent=0 // pred_region
    _
  $region9: #{net_forward.1} parent=0 // pred_fallthru
    _
  // Predicated region
  $region10: #{net_forward.1} parent=0 // pred_check
    _
  $region11: #{net_forward.1} parent=0 // pred_check_branch
    %23 = sbr.rel (0) target = $region13
  $region12: #{net_forward.1} parent=0 // pred_region
    _
  $region13: #{net_forward.1} parent=0 // pred_fallthru
    _
  // Predicated region
  $region14: #{net_forward.1} parent=0 // pred_check
    _
  $region15: #{net_forward.1} parent=0 // pred_check_branch
    %25 = sbr.rel (0) target = $region17
  $region16: #{net_forward.1} parent=0 // pred_region
    _
  $region17: #{net_forward.1} parent=0 // pred_fallthru
    _
  // Predicated region
  $region18: #{net_forward.1} parent=0 // pred_check
    _
  $region19: #{net_forward.1} parent=0 // pred_check_branch
    %27 = sbr.rel (0) target = $region21
  $region20: #{net_forward.1} parent=0 // pred_region
    _
  $region21: #{net_forward.1} parent=0 // pred_fallthru
    _
  // Predicated region
  $region22: #{net_forward.1} parent=0 // pred_check
    _
  $region23: #{net_forward.1} parent=0 // pred_check_branch
    %29 = sbr.rel (0) target = $region25
  $region24: #{net_forward.1} parent=0 // pred_region
    _
  $region25: #{net_forward.1} parent=0 // pred_fallthru
    _
  // Predicated region
  $region26: #{net_forward.1} parent=0 // pred_check
    _
  $region27: #{net_forward.1} parent=0 // pred_check_branch
    %31 = sbr.rel (0) target = $region29
  $region28: #{net_forward.1} parent=0 // pred_region
    _
  $region29: #{net_forward.1} parent=0 // pred_fallthru
    _
  // Predicated region
  $region30: #{net_forward.1} parent=0 // pred_check
    _
  $region31: #{net_forward.1} parent=0 // pred_check_branch
    %33 = sbr.rel (0) target = $region33
  $region32: #{net_forward.1} parent=0 // pred_region
    _
  $region33: #{net_forward.1} parent=0 // pred_fallthru
    _
  // Predicated region
  $region34: #{net_forward.1} parent=0 // pred_check
    _
  $region35: #{net_forward.1} parent=0 // pred_check_branch
    %35 = sbr.rel (0) target = $region37
  $region36: #{net_forward.1} parent=0 // pred_region
    _
  $region37: #{net_forward.1} parent=0 // pred_fallthru
    _
  // Predicated region
  $region38: #{net_forward.1} parent=0 // pred_check
    _
  $region39: #{net_forward.1} parent=0 // pred_check_branch
    %37 = sbr.rel (0) target = $region41
  $region40: #{net_forward.1} parent=0 // pred_region
    _
  $region41: #{net_forward.1} parent=0 // pred_fallthru
    _
  // Predicated region
  $region42: #{net_forward.1} parent=0 // pred_check
    _
  $region43: #{net_forward.1} parent=0 // pred_check_branch
    %39 = sbr.rel (0) target = $region45
  $region44: #{net_forward.1} parent=0 // pred_region
    _
  $region45: #{net_forward.1} parent=0 // pred_fallthru
    _
  // Predicated region
  $region46: #{net_forward.1} parent=0 // pred_check
    _
  $region47: #{net_forward.1} parent=0 // pred_check_branch
    %41 = sbr.rel (0) target = $region49
  $region48: #{net_forward.1} parent=0 // pred_region
    _
  $region49: #{net_forward.1} parent=0 // pred_fallthru
    _
  %v42 = vld [vmem:[%s1] sm:$0xff]
  %v43 = vld [vmem:[%s1 + $0x8] sm:$0xff]
  %v44 = vld [vmem:[%s1 + $0x10] sm:$0xff]
  %v45 = vld [vmem:[%s1 + $0x18] sm:$0xff]
  %v46 = vld [vmem:[%s1 + $0x20] sm:$0xff]
  %v47 = vld [vmem:[%s1 + $0x28] sm:$0xff]
  %v48 = vld [vmem:[%s1 + $0x30] sm:$0xff]
  %v49 = vld [vmem:[%s1 + $0x38] sm:$0xff]
  %v50 = vld [vmem:[%s1 + $0x40] sm:$0xff]
  %v51 = vld [vmem:[%s1 + $0x48] sm:$0xff]
  %v52 = vld [vmem:[%s1 + $0x50] sm:$0xff]
  %v53 = vld [vmem:[%s1 + $0x58] sm:$0xff]
  %v54 = vld [vmem:[%s1 + $0x60] sm:$0xff]
  %v55 = vld [vmem:[%s1 + $0x68] sm:$0xff]
  %v56 = vld [vmem:[%s1 + $0x70] sm:$0xff]
  %v57 = vld [vmem:[%s1 + $0x78] sm:$0xff]
  %v58 = vld [vmem:[%s1 + $0x80] sm:$0xff]
  %v59 = vld [vmem:[%s1 + $0x88] sm:$0xff]
  %v60 = vld [vmem:[%s1 + $0x90] sm:$0xff]
  %v61 = vld [vmem:[%s1 + $0x98] sm:$0xff]
  %v62 = vld [vmem:[%s1 + $0xa0] sm:$0xff]
  %v63 = vld [vmem:[%s1 + $0xa8] sm:$0xff]
  %v64 = vld [vmem:[%s1 + $0xb0] sm:$0xff]
  %v65 = vld [vmem:[%s1 + $0xb8] sm:$0xff]
  %v66 = vld [vmem:[%s1 + $0xc0] sm:$0xff]
  %v67 = vld [vmem:[%s1 + $0xc8] sm:$0xff]
  %v68 = vld [vmem:[%s1 + $0xd0] sm:$0xff]
  %v69 = vld [vmem:[%s1 + $0xd8] sm:$0xff]
  %v70 = vld [vmem:[%s1 + $0xe0] sm:$0xff]
  %v71 = vld [vmem:[%s1 + $0xe8] sm:$0xff]
  %v72 = vld [vmem:[%s1 + $0xf0] sm:$0xff]
  %v73 = vld [vmem:[%s1 + $0xf8] sm:$0xff]
  %v74 = vld [vmem:[%s1 + $0x100] sm:$0xff]
  %v75 = vld [vmem:[%s1 + $0x108] sm:$0xff]
  %v76 = vld [vmem:[%s1 + $0x110] sm:$0xff]
  %v77 = vld [vmem:[%s1 + $0x118] sm:$0xff]
  %v78 = vld [vmem:[%s1 + $0x120] sm:$0xff]
  %v79 = vld [vmem:[%s1 + $0x128] sm:$0xff]
  %v80 = vld [vmem:[%s1 + $0x130] sm:$0xff]
  %v81 = vld [vmem:[%s1 + $0x138] sm:$0xff]
  %v82 = vld [vmem:[%s1 + $0x140] sm:$0xff]
  %v83 = vld [vmem:[%s1 + $0x148] sm:$0xff]
  %v84 = vld [vmem:[%s1 + $0x150] sm:$0xff]
  %v85 = vld [vmem:[%s1 + $0x158] sm:$0xff]
  %v86 = vld [vmem:[%s1 + $0x160] sm:$0xff]
  %v87 = vld [vmem:[%s1 + $0x168] sm:$0xff]
  %v88 = vld [vmem:[%s1 + $0x170] sm:$0xff]
  %v89 = vld [vmem:[%s1 + $0x178] sm:$0xff]
  %v90 = vld [vmem:[%s1 + $0x180] sm:$0xff]
  %v91 = vld [vmem:[%s1 + $0x188] sm:$0xff]
  %v92 = vld [vmem:[%s1 + $0x190] sm:$0xff]
  %v93 = vld [vmem:[%s1 + $0x198] sm:$0xff]
  %v94 = vld [vmem:[%s1 + $0x1a0] sm:$0xff]
  %v95 = vld [vmem:[%s1 + $0x1a8] sm:$0xff]
  %v96 = vld [vmem:[%s1 + $0x1b0] sm:$0xff]
  %v97 = vld [vmem:[%s1 + $0x1b8] sm:$0xff]
  %v98 = vld [vmem:[%s1 + $0x1c0] sm:$0xff]
  %v99 = vld [vmem:[%s1 + $0x1c8] sm:$0xff]
  %v100 = vld [vmem:[%s1 + $0x1d0] sm:$0xff]
  %v101 = vld [vmem:[%s1 + $0x1d8] sm:$0xff]
  %v102 = vld [vmem:[%s1 + $0x1e0] sm:$0xff]
  %v103 = vld [vmem:[%s1 + $0x1e8] sm:$0xff]
  %v104 = vld [vmem:[%s1 + $0x1f0] sm:$0xff]
  %v105 = vld [vmem:[%s1 + $0x1f8] sm:$0xff]
  %v106 = vld [vmem:[%s1 + $0x200] sm:$0xff]
  %v107 = vld [vmem:[%s1 + $0x208] sm:$0xff]
  %v108 = vld [vmem:[%s1 + $0x210] sm:$0xff]
  %v109 = vld [vmem:[%s1 + $0x218] sm:$0xff]
  %v110 = vld [vmem:[%s1 + $0x220] sm:$0xff]
  %v111 = vld [vmem:[%s1 + $0x228] sm:$0xff]
  %v112 = vld [vmem:[%s1 + $0x230] sm:$0xff]
  %v113 = vld [vmem:[%s1 + $0x238] sm:$0xff]
  %v114 = vld [vmem:[%s1 + $0x240] sm:$0xff]
  %v115 = vld [vmem:[%s1 + $0x248] sm:$0xff]
  %v116 = vld [vmem:[%s1 + $0x250] sm:$0xff]
  %v117 = vld [vmem:[%s1 + $0x258] sm:$0xff]
  %v118 = vld [vmem:[%s1 + $0x260] sm:$0xff]
  %v119 = vld [vmem:[%s1 + $0x268] sm:$0xff]
  %v120 = vld [vmem:[%s1 + $0x270] sm:$0xff]
  %v121 = vld [vmem:[%s1 + $0x278] sm:$0xff]
  %v122 = vld [vmem:[%s1 + $0x280] sm:$0xff]
  %v123 = vld [vmem:[%s1 + $0x288] sm:$0xff]
  %v124 = vld [vmem:[%s1 + $0x290] sm:$0xff]
  %v125 = vld [vmem:[%s1 + $0x298] sm:$0xff]
  %v126 = vld [vmem:[%s1 + $0x2a0] sm:$0xff]
  %v127 = vld [vmem:[%s1 + $0x2a8] sm:$0xff]
  %v128 = vld [vmem:[%s1 + $0x2b0] sm:$0xff]
  %v129 = vld [vmem:[%s1 + $0x2b8] sm:$0xff]
  %v130 = vld [vmem:[%s1 + $0x2c0] sm:$0xff]
  %v131 = vld [vmem:[%s1 + $0x2c8] sm:$0xff]
  %v132 = vld [vmem:[%s1 + $0x2d0] sm:$0xff]
  %v133 = vld [vmem:[%s1 + $0x2d8] sm:$0xff]
  %v134 = vld [vmem:[%s1 + $0x2e0] sm:$0xff]
  %v135 = vld [vmem:[%s1 + $0x2e8] sm:$0xff]
  %v136 = vld [vmem:[%s1 + $0x2f0] sm:$0xff]
  %v137 = vld [vmem:[%s1 + $0x2f8] sm:$0xff]
  %v138 = vld [vmem:[%s1 + $0x300] sm:$0xff]
  %v139 = vld [vmem:[%s1 + $0x308] sm:$0xff]
  %v140 = vld [vmem:[%s1 + $0x310] sm:$0xff]
  %v141 = vld [vmem:[%s1 + $0x318] sm:$0xff]
  %v142 = vld [vmem:[%s1 + $0x320] sm:$0xff]
  %v143 = vld [vmem:[%s1 + $0x328] sm:$0xff]
  %v144 = vld [vmem:[%s1 + $0x330] sm:$0xff]
  %v145 = vld [vmem:[%s1 + $0x338] sm:$0xff]
  %v146 = vld [vmem:[%s1 + $0x340] sm:$0xff]
  %v147 = vld [vmem:[%s1 + $0x348] sm:$0xff]
  %v148 = vld [vmem:[%s1 + $0x350] sm:$0xff]
  %v149 = vld [vmem:[%s1 + $0x358] sm:$0xff]
  %v150 = vld [vmem:[%s1 + $0x360] sm:$0xff]
  %v151 = vld [vmem:[%s1 + $0x368] sm:$0xff]
  %v152 = vld [vmem:[%s1 + $0x370] sm:$0xff]
  %v153 = vld [vmem:[%s1 + $0x378] sm:$0xff]
  %v154 = vld [vmem:[%s1 + $0x380] sm:$0xff]
  %v155 = vld [vmem:[%s1 + $0x388] sm:$0xff]
  %v156 = vld [vmem:[%s1 + $0x390] sm:$0xff]
  %v157 = vld [vmem:[%s1 + $0x398] sm:$0xff]
  %v158 = vld [vmem:[%s1 + $0x3a0] sm:$0xff]
  %v159 = vld [vmem:[%s1 + $0x3a8] sm:$0xff]
  %v160 = vld [vmem:[%s1 + $0x3b0] sm:$0xff]
  %v161 = vld [vmem:[%s1 + $0x3b8] sm:$0xff]
  %v162 = vld [vmem:[%s1 + $0x3c0] sm:$0xff]
  %v163 = vld [vmem:[%s1 + $0x3c8] sm:$0xff]
  %v164 = vld [vmem:[%s1 + $0x3d0] sm:$0xff]
  %v165 = vld [vmem:[%s1 + $0x3d8] sm:$0xff]
  %v166 = vld [vmem:[%s1 + $0x3e0] sm:$0xff]
  %v167 = vld [vmem:[%s1 + $0x3e8] sm:$0xff]
  %v168 = vld [vmem:[%s1 + $0x3f0] sm:$0xff]
  %v169 = vld [vmem:[%s1 + $0x3f8] sm:$0xff]
  %v170 = vld [vmem:[%s1 + $0x400] sm:$0xff]
  %v171 = vld [vmem:[%s1 + $0x408] sm:$0xff]
  %v172 = vld [vmem:[%s1 + $0x410] sm:$0xff]
  %v173 = vld [vmem:[%s1 + $0x418] sm:$0xff]
  %v174 = vld [vmem:[%s1 + $0x420] sm:$0xff]
  %v175 = vld [vmem:[%s1 + $0x428] sm:$0xff]
  %v176 = vld [vmem:[%s1 + $0x430] sm:$0xff]
  %v177 = vld [vmem:[%s1 + $0x438] sm:$0xff]
  %v178 = vld [vmem:[%s1 + $0x440] sm:$0xff]
  %v179 = vld [vmem:[%s1 + $0x448] sm:$0xff]
  %v180 = vld [vmem:[%s1 + $0x450] sm:$0xff]
  %v181 = vld [vmem:[%s1 + $0x458] sm:$0xff]
  %v182 = vld [vmem:[%s1 + $0x460] sm:$0xff]
  %v183 = vld [vmem:[%s1 + $0x468] sm:$0xff]
  %v184 = vld [vmem:[%s1 + $0x470] sm:$0xff]
  %v185 = vld [vmem:[%s1 + $0x478] sm:$0xff]
  %v186 = vld [vmem:[%s1 + $0x480] sm:$0xff]
  %v187 = vld [vmem:[%s1 + $0x488] sm:$0xff]
  %v188 = vld [vmem:[%s1 + $0x490] sm:$0xff]
  %v189 = vld [vmem:[%s1 + $0x498] sm:$0xff]
  %v190 = vld [vmem:[%s1 + $0x4a0] sm:$0xff]
  %v191 = vld [vmem:[%s1 + $0x4a8] sm:$0xff]
  %v192 = vld [vmem:[%s1 + $0x4b0] sm:$0xff]
  %v193 = vld [vmem:[%s1 + $0x4b8] sm:$0xff]
  %v194 = vld [vmem:[%s1 + $0x4c0] sm:$0xff]
  %v195 = vld [vmem:[%s1 + $0x4c8] sm:$0xff]
  %v196 = vld [vmem:[%s1 + $0x4d0] sm:$0xff]
  %v197 = vld [vmem:[%s1 + $0x4d8] sm:$0xff]
  %v198 = vld [vmem:[%s1 + $0x4e0] sm:$0xff]
  %v199 = vld [vmem:[%s1 + $0x4e8] sm:$0xff]
  %v200 = vld [vmem:[%s1 + $0x4f0] sm:$0xff]
  %v201 = vld [vmem:[%s1 + $0x4f8] sm:$0xff]
  %v202 = vld [vmem:[%s1 + $0x500] sm:$0xff]
  %v203 = vld [vmem:[%s1 + $0x508] sm:$0xff]
  %v204 = vld [vmem:[%s1 + $0x510] sm:$0xff]
  %v205 = vld [vmem:[%s1 + $0x518] sm:$0xff]
  %v206 = vld [vmem:[%s1 + $0x520] sm:$0xff]
  %v207 = vld [vmem:[%s1 + $0x528] sm:$0xff]
  %v208 = vld [vmem:[%s1 + $0x530] sm:$0xff]
  %v209 = vld [vmem:[%s1 + $0x538] sm:$0xff]
  %v210 = vld [vmem:[%s1 + $0x540] sm:$0xff]
  %v211 = vld [vmem:[%s1 + $0x548] sm:$0xff]
  %v212 = vld [vmem:[%s1 + $0x550] sm:$0xff]
  %v213 = vld [vmem:[%s1 + $0x558] sm:$0xff]
  %v214 = vld [vmem:[%s1 + $0x560] sm:$0xff]
  %v215 = vld [vmem:[%s1 + $0x568] sm:$0xff]
  %v216 = vld [vmem:[%s1 + $0x570] sm:$0xff]
  %v217 = vld [vmem:[%s1 + $0x578] sm:$0xff]
  %v218 = vld [vmem:[%s1 + $0x580] sm:$0xff]
  %v219 = vld [vmem:[%s1 + $0x588] sm:$0xff]
  %v220 = vld [vmem:[%s1 + $0x590] sm:$0xff]
  %v221 = vld [vmem:[%s1 + $0x598] sm:$0xff]
  %v222 = vld [vmem:[%s1 + $0x5a0] sm:$0xff]
  %v223 = vld [vmem:[%s1 + $0x5a8] sm:$0xff]
  %v224 = vld [vmem:[%s1 + $0x5b0] sm:$0xff]
  %v225 = vld [vmem:[%s1 + $0x5b8] sm:$0xff]
  %v226 = vld [vmem:[%s1 + $0x5c0] sm:$0xff]
  %v227 = vld [vmem:[%s1 + $0x5c8] sm:$0xff]
  %v228 = vld [vmem:[%s1 + $0x5d0] sm:$0xff]
  %v229 = vld [vmem:[%s1 + $0x5d8] sm:$0xff]
  %v230 = vld [vmem:[%s1 + $0x5e0] sm:$0xff]
  %v231 = vld [vmem:[%s1 + $0x5e8] sm:$0xff]
  %v232 = vld [vmem:[%s1 + $0x5f0] sm:$0xff]
  %v233 = vld [vmem:[%s1 + $0x5f8] sm:$0xff]
  %v234 = vld [vmem:[%s1 + $0x600] sm:$0xff]
  %v235 = vld [vmem:[%s1 + $0x608] sm:$0xff]
  %v236 = vld [vmem:[%s1 + $0x610] sm:$0xff]
  %v237 = vld [vmem:[%s1 + $0x618] sm:$0xff]
  %v238 = vld [vmem:[%s1 + $0x620] sm:$0xff]
  %v239 = vld [vmem:[%s1 + $0x628] sm:$0xff]
  %v240 = vld [vmem:[%s1 + $0x630] sm:$0xff]
  %v241 = vld [vmem:[%s1 + $0x638] sm:$0xff]
  %v242 = vld [vmem:[%s1 + $0x640] sm:$0xff]
  %v243 = vld [vmem:[%s1 + $0x648] sm:$0xff]
  %v244 = vld [vmem:[%s1 + $0x650] sm:$0xff]
  %v245 = vld [vmem:[%s1 + $0x658] sm:$0xff]
  %v246 = vld [vmem:[%s1 + $0x660] sm:$0xff]
  %v247 = vld [vmem:[%s1 + $0x668] sm:$0xff]
  %v248 = vld [vmem:[%s1 + $0x670] sm:$0xff]
  %v249 = vld [vmem:[%s1 + $0x678] sm:$0xff]
  %v250 = vld [vmem:[%s1 + $0x680] sm:$0xff]
  %v251 = vld [vmem:[%s1 + $0x688] sm:$0xff]
  %v252 = vld [vmem:[%s1 + $0x690] sm:$0xff]
  %v253 = vld [vmem:[%s1 + $0x698] sm:$0xff]
  %v254 = vld [vmem:[%s1 + $0x6a0] sm:$0xff]
  %v255 = vld [vmem:[%s1 + $0x6a8] sm:$0xff]
  %v256 = vld [vmem:[%s1 + $0x6b0] sm:$0xff]
  %v257 = vld [vmem:[%s1 + $0x6b8] sm:$0xff]
  %v258 = vld [vmem:[%s1 + $0x6c0] sm:$0xff]
  %v259 = vld [vmem:[%s1 + $0x6c8] sm:$0xff]
  %v260 = vld [vmem:[%s1 + $0x6d0] sm:$0xff]
  %v261 = vld [vmem:[%s1 + $0x6d8] sm:$0xff]
  %v262 = vld [vmem:[%s1 + $0x6e0] sm:$0xff]
  %v263 = vld [vmem:[%s1 + $0x6e8] sm:$0xff]
  %v264 = vld [vmem:[%s1 + $0x6f0] sm:$0xff]
  %v265 = vld [vmem:[%s1 + $0x6f8] sm:$0xff]
  %v266 = vld [vmem:[%s1 + $0x700] sm:$0xff]
  %v267 = vld [vmem:[%s1 + $0x708] sm:$0xff]
  %v268 = vld [vmem:[%s1 + $0x710] sm:$0xff]
  %v269 = vld [vmem:[%s1 + $0x718] sm:$0xff]
  %v270 = vld [vmem:[%s1 + $0x720] sm:$0xff]
  %v271 = vld [vmem:[%s1 + $0x728] sm:$0xff]
  %v272 = vld [vmem:[%s1 + $0x730] sm:$0xff]
  %v273 = vld [vmem:[%s1 + $0x738] sm:$0xff]
  %v274 = vld [vmem:[%s1 + $0x740] sm:$0xff]
  %v275 = vld [vmem:[%s1 + $0x748] sm:$0xff]
  %v276 = vld [vmem:[%s1 + $0x750] sm:$0xff]
  %v277 = vld [vmem:[%s1 + $0x758] sm:$0xff]
  %v278 = vld [vmem:[%s1 + $0x760] sm:$0xff]
  %v279 = vld [vmem:[%s1 + $0x768] sm:$0xff]
  %v280 = vld [vmem:[%s1 + $0x770] sm:$0xff]
  %v281 = vld [vmem:[%s1 + $0x778] sm:$0xff]
  %v282 = vld [vmem:[%s1 + $0x780] sm:$0xff]
  %v283 = vld [vmem:[%s1 + $0x788] sm:$0xff]
  %v284 = vld [vmem:[%s1 + $0x790] sm:$0xff]
  %v285 = vld [vmem:[%s1 + $0x798] sm:$0xff]
  %v286 = vld [vmem:[%s1 + $0x7a0] sm:$0xff]
  %v287 = vld [vmem:[%s1 + $0x7a8] sm:$0xff]
  %v288 = vld [vmem:[%s1 + $0x7b0] sm:$0xff]
  %v289 = vld [vmem:[%s1 + $0x7b8] sm:$0xff]
  %v290 = vld [vmem:[%s1 + $0x7c0] sm:$0xff]
  %v291 = vld [vmem:[%s1 + $0x7c8] sm:$0xff]
  %v292 = vld [vmem:[%s1 + $0x7d0] sm:$0xff]
  %v293 = vld [vmem:[%s1 + $0x7d8] sm:$0xff]
  %v294 = vld [vmem:[%s1 + $0x7e0] sm:$0xff]
  %v295 = vld [vmem:[%s1 + $0x7e8] sm:$0xff]
  %v296 = vld [vmem:[%s1 + $0x7f0] sm:$0xff]
  %v297 = vld [vmem:[%s1 + $0x7f8] sm:$0xff]
  %v298 = vld [vmem:[%s2] sm:$0xff]
  %v299 = vld [vmem:[%s2 + $0x8] sm:$0xff]
  %v300 = vld [vmem:[%s2 + $0x10] sm:$0xff]
  %v301 = vld [vmem:[%s2 + $0x18] sm:$0xff]
  %v302 = vld [vmem:[%s2 + $0x20] sm:$0xff]
  %v303 = vld [vmem:[%s2 + $0x28] sm:$0xff]
  %v304 = vld [vmem:[%s2 + $0x30] sm:$0xff]
  %v305 = vld [vmem:[%s2 + $0x38] sm:$0xff]
  %v306 = vld [vmem:[%s2 + $0x40] sm:$0xff]
  %v307 = vld [vmem:[%s2 + $0x48] sm:$0xff]
  %v308 = vld [vmem:[%s2 + $0x50] sm:$0xff]
  %v309 = vld [vmem:[%s2 + $0x58] sm:$0xff]
  %v310 = vld [vmem:[%s2 + $0x60] sm:$0xff]
  %v311 = vld [vmem:[%s2 + $0x68] sm:$0xff]
  %v312 = vld [vmem:[%s2 + $0x70] sm:$0xff]
  %v313 = vld [vmem:[%s2 + $0x78] sm:$0xff]
  %v314 = vld [vmem:[%s3] sm:$0x1]
  %v316 = vperm.slane %v314, 0
  %318 = vmatpush.msra.mxu0 %v313
  %319 = vmatpush.msra.mxu0 %v312
  %320 = vmatpush.msra.mxu0 %v311
  %321 = vmatpush.msra.mxu0 %v310
  %322 = vmatpush.msra.mxu0 %v309
  %323 = vmatpush.msra.mxu0 %v308
  %324 = vmatpush.msra.mxu0 %v307
  %325 = vmatpush.msra.mxu0 %v306
  %326 = vmatpush.msra.mxu0 %v305
  %327 = vmatpush.msra.mxu0 %v304
  %328 = vmatpush.msra.mxu0 %v303
  %329 = vmatpush.msra.mxu0 %v302
  %330 = vmatpush.msra.mxu0 %v301
  %331 = vmatpush.msra.mxu0 %v300
  %332 = vmatpush.msra.mxu0 %v299
  %333 = vmatpush.msra.mxu0 %v298
  %334 = vmatmul.f32.gmra.mxu0 %v42
  %v335 = vpop.f32.mrf.mxu0
  %v336 = vadd.f32 %v316, %v335
  %337 = vmatmul.f32.gmra.mxu0 %v43
  %v338 = vpop.f32.mrf.mxu0
  %v339 = vadd.f32 %v316, %v338
  %340 = vmatmul.f32.gmra.mxu0 %v44
  %v341 = vpop.f32.mrf.mxu0
  %v342 = vadd.f32 %v316, %v341
  %343 = vmatmul.f32.gmra.mxu0 %v45
  %v344 = vpop.f32.mrf.mxu0
  %v345 = vadd.f32 %v316, %v344
  %346 = vmatmul.f32.gmra.mxu0 %v46
  %v347 = vpop.f32.mrf.mxu0
  %v348 = vadd.f32 %v316, %v347
  %349 = vmatmul.f32.gmra.mxu0 %v47
  %v350 = vpop.f32.mrf.mxu0
  %v351 = vadd.f32 %v316, %v350
  %352 = vmatmul.f32.gmra.mxu0 %v48
  %v353 = vpop.f32.mrf.mxu0
  %v354 = vadd.f32 %v316, %v353
  %355 = vmatmul.f32.gmra.mxu0 %v49
  %v356 = vpop.f32.mrf.mxu0
  %v357 = vadd.f32 %v316, %v356
  %358 = vmatmul.f32.gmra.mxu0 %v50
  %v359 = vpop.f32.mrf.mxu0
  %v360 = vadd.f32 %v316, %v359
  %361 = vmatmul.f32.gmra.mxu0 %v51
  %v362 = vpop.f32.mrf.mxu0
  %v363 = vadd.f32 %v316, %v362
  %364 = vmatmul.f32.gmra.mxu0 %v52
  %v365 = vpop.f32.mrf.mxu0
  %v366 = vadd.f32 %v316, %v365
  %367 = vmatmul.f32.gmra.mxu0 %v53
  %v368 = vpop.f32.mrf.mxu0
  %v369 = vadd.f32 %v316, %v368
  %370 = vmatmul.f32.gmra.mxu0 %v54
  %v371 = vpop.f32.mrf.mxu0
  %v372 = vadd.f32 %v316, %v371
  %373 = vmatmul.f32.gmra.mxu0 %v55
  %v374 = vpop.f32.mrf.mxu0
  %v375 = vadd.f32 %v316, %v374
  %376 = vmatmul.f32.gmra.mxu0 %v56
  %v377 = vpop.f32.mrf.mxu0
  %v378 = vadd.f32 %v316, %v377
  %379 = vmatmul.f32.gmra.mxu0 %v57
  %v380 = vpop.f32.mrf.mxu0
  %v381 = vadd.f32 %v316, %v380
  %382 = vmatmul.f32.gmra.mxu0 %v58
  %v383 = vpop.f32.mrf.mxu0
  %v384 = vadd.f32 %v316, %v383
  %385 = vmatmul.f32.gmra.mxu0 %v59
  %v386 = vpop.f32.mrf.mxu0
  %v387 = vadd.f32 %v316, %v386
  %388 = vmatmul.f32.gmra.mxu0 %v60
  %v389 = vpop.f32.mrf.mxu0
  %v390 = vadd.f32 %v316, %v389
  %391 = vmatmul.f32.gmra.mxu0 %v61
  %v392 = vpop.f32.mrf.mxu0
  %v393 = vadd.f32 %v316, %v392
  %394 = vmatmul.f32.gmra.mxu0 %v62
  %v395 = vpop.f32.mrf.mxu0
  %v396 = vadd.f32 %v316, %v395
  %397 = vmatmul.f32.gmra.mxu0 %v63
  %v398 = vpop.f32.mrf.mxu0
  %v399 = vadd.f32 %v316, %v398
  %400 = vmatmul.f32.gmra.mxu0 %v64
  %v401 = vpop.f32.mrf.mxu0
  %v402 = vadd.f32 %v316, %v401
  %403 = vmatmul.f32.gmra.mxu0 %v65
  %v404 = vpop.f32.mrf.mxu0
  %v405 = vadd.f32 %v316, %v404
  %406 = vmatmul.f32.gmra.mxu0 %v66
  %v407 = vpop.f32.mrf.mxu0
  %v408 = vadd.f32 %v316, %v407
  %409 = vmatmul.f32.gmra.mxu0 %v67
  %v410 = vpop.f32.mrf.mxu0
  %v411 = vadd.f32 %v316, %v410
  %412 = vmatmul.f32.gmra.mxu0 %v68
  %v413 = vpop.f32.mrf.mxu0
  %v414 = vadd.f32 %v316, %v413
  %415 = vmatmul.f32.gmra.mxu0 %v69
  %v416 = vpop.f32.mrf.mxu0
  %v417 = vadd.f32 %v316, %v416
  %418 = vmatmul.f32.gmra.mxu0 %v70
  %v419 = vpop.f32.mrf.mxu0
  %v420 = vadd.f32 %v316, %v419
  %421 = vmatmul.f32.gmra.mxu0 %v71
  %v422 = vpop.f32.mrf.mxu0
  %v423 = vadd.f32 %v316, %v422
  %424 = vmatmul.f32.gmra.mxu0 %v72
  %v425 = vpop.f32.mrf.mxu0
  %v426 = vadd.f32 %v316, %v425
  %427 = vmatmul.f32.gmra.mxu0 %v73
  %v428 = vpop.f32.mrf.mxu0
  %v429 = vadd.f32 %v316, %v428
  %430 = vmatmul.f32.gmra.mxu0 %v74
  %v431 = vpop.f32.mrf.mxu0
  %v432 = vadd.f32 %v316, %v431
  %433 = vmatmul.f32.gmra.mxu0 %v75
  %v434 = vpop.f32.mrf.mxu0
  %v435 = vadd.f32 %v316, %v434
  %436 = vmatmul.f32.gmra.mxu0 %v76
  %v437 = vpop.f32.mrf.mxu0
  %v438 = vadd.f32 %v316, %v437
  %439 = vmatmul.f32.gmra.mxu0 %v77
  %v440 = vpop.f32.mrf.mxu0
  %v441 = vadd.f32 %v316, %v440
  %442 = vmatmul.f32.gmra.mxu0 %v78
  %v443 = vpop.f32.mrf.mxu0
  %v444 = vadd.f32 %v316, %v443
  %445 = vmatmul.f32.gmra.mxu0 %v79
  %v446 = vpop.f32.mrf.mxu0
  %v447 = vadd.f32 %v316, %v446
  %448 = vmatmul.f32.gmra.mxu0 %v80
  %v449 = vpop.f32.mrf.mxu0
  %v450 = vadd.f32 %v316, %v449
  %451 = vmatmul.f32.gmra.mxu0 %v81
  %v452 = vpop.f32.mrf.mxu0
  %v453 = vadd.f32 %v316, %v452
  %454 = vmatmul.f32.gmra.mxu0 %v82
  %v455 = vpop.f32.mrf.mxu0
  %v456 = vadd.f32 %v316, %v455
  %457 = vmatmul.f32.gmra.mxu0 %v83
  %v458 = vpop.f32.mrf.mxu0
  %v459 = vadd.f32 %v316, %v458
  %460 = vmatmul.f32.gmra.mxu0 %v84
  %v461 = vpop.f32.mrf.mxu0
  %v462 = vadd.f32 %v316, %v461
  %463 = vmatmul.f32.gmra.mxu0 %v85
  %v464 = vpop.f32.mrf.mxu0
  %v465 = vadd.f32 %v316, %v464
  %466 = vmatmul.f32.gmra.mxu0 %v86
  %v467 = vpop.f32.mrf.mxu0
  %v468 = vadd.f32 %v316, %v467
  %469 = vmatmul.f32.gmra.mxu0 %v87
  %v470 = vpop.f32.mrf.mxu0
  %v471 = vadd.f32 %v316, %v470
  %472 = vmatmul.f32.gmra.mxu0 %v88
  %v473 = vpop.f32.mrf.mxu0
  %v474 = vadd.f32 %v316, %v473
  %475 = vmatmul.f32.gmra.mxu0 %v89
  %v476 = vpop.f32.mrf.mxu0
  %v477 = vadd.f32 %v316, %v476
  %478 = vmatmul.f32.gmra.mxu0 %v90
  %v479 = vpop.f32.mrf.mxu0
  %v480 = vadd.f32 %v316, %v479
  %481 = vmatmul.f32.gmra.mxu0 %v91
  %v482 = vpop.f32.mrf.mxu0
  %v483 = vadd.f32 %v316, %v482
  %484 = vmatmul.f32.gmra.mxu0 %v92
  %v485 = vpop.f32.mrf.mxu0
  %v486 = vadd.f32 %v316, %v485
  %487 = vmatmul.f32.gmra.mxu0 %v93
  %v488 = vpop.f32.mrf.mxu0
  %v489 = vadd.f32 %v316, %v488
  %490 = vmatmul.f32.gmra.mxu0 %v94
  %v491 = vpop.f32.mrf.mxu0
  %v492 = vadd.f32 %v316, %v491
  %493 = vmatmul.f32.gmra.mxu0 %v95
  %v494 = vpop.f32.mrf.mxu0
  %v495 = vadd.f32 %v316, %v494
  %496 = vmatmul.f32.gmra.mxu0 %v96
  %v497 = vpop.f32.mrf.mxu0
  %v498 = vadd.f32 %v316, %v497
  %499 = vmatmul.f32.gmra.mxu0 %v97
  %v500 = vpop.f32.mrf.mxu0
  %v501 = vadd.f32 %v316, %v500
  %502 = vmatmul.f32.gmra.mxu0 %v98
  %v503 = vpop.f32.mrf.mxu0
  %v504 = vadd.f32 %v316, %v503
  %505 = vmatmul.f32.gmra.mxu0 %v99
  %v506 = vpop.f32.mrf.mxu0
  %v507 = vadd.f32 %v316, %v506
  %508 = vmatmul.f32.gmra.mxu0 %v100
  %v509 = vpop.f32.mrf.mxu0
  %v510 = vadd.f32 %v316, %v509
  %511 = vmatmul.f32.gmra.mxu0 %v101
  %v512 = vpop.f32.mrf.mxu0
  %v513 = vadd.f32 %v316, %v512
  %514 = vmatmul.f32.gmra.mxu0 %v102
  %v515 = vpop.f32.mrf.mxu0
  %v516 = vadd.f32 %v316, %v515
  %517 = vmatmul.f32.gmra.mxu0 %v103
  %v518 = vpop.f32.mrf.mxu0
  %v519 = vadd.f32 %v316, %v518
  %520 = vmatmul.f32.gmra.mxu0 %v104
  %v521 = vpop.f32.mrf.mxu0
  %v522 = vadd.f32 %v316, %v521
  %523 = vmatmul.f32.gmra.mxu0 %v105
  %v524 = vpop.f32.mrf.mxu0
  %v525 = vadd.f32 %v316, %v524
  %526 = vmatmul.f32.gmra.mxu0 %v106
  %v527 = vpop.f32.mrf.mxu0
  %v528 = vadd.f32 %v316, %v527
  %529 = vmatmul.f32.gmra.mxu0 %v107
  %v530 = vpop.f32.mrf.mxu0
  %v531 = vadd.f32 %v316, %v530
  %532 = vmatmul.f32.gmra.mxu0 %v108
  %v533 = vpop.f32.mrf.mxu0
  %v534 = vadd.f32 %v316, %v533
  %535 = vmatmul.f32.gmra.mxu0 %v109
  %v536 = vpop.f32.mrf.mxu0
  %v537 = vadd.f32 %v316, %v536
  %538 = vmatmul.f32.gmra.mxu0 %v110
  %v539 = vpop.f32.mrf.mxu0
  %v540 = vadd.f32 %v316, %v539
  %541 = vmatmul.f32.gmra.mxu0 %v111
  %v542 = vpop.f32.mrf.mxu0
  %v543 = vadd.f32 %v316, %v542
  %544 = vmatmul.f32.gmra.mxu0 %v112
  %v545 = vpop.f32.mrf.mxu0
  %v546 = vadd.f32 %v316, %v545
  %547 = vmatmul.f32.gmra.mxu0 %v113
  %v548 = vpop.f32.mrf.mxu0
  %v549 = vadd.f32 %v316, %v548
  %550 = vmatmul.f32.gmra.mxu0 %v114
  %v551 = vpop.f32.mrf.mxu0
  %v552 = vadd.f32 %v316, %v551
  %553 = vmatmul.f32.gmra.mxu0 %v115
  %v554 = vpop.f32.mrf.mxu0
  %v555 = vadd.f32 %v316, %v554
  %556 = vmatmul.f32.gmra.mxu0 %v116
  %v557 = vpop.f32.mrf.mxu0
  %v558 = vadd.f32 %v316, %v557
  %559 = vmatmul.f32.gmra.mxu0 %v117
  %v560 = vpop.f32.mrf.mxu0
  %v561 = vadd.f32 %v316, %v560
  %562 = vmatmul.f32.gmra.mxu0 %v118
  %v563 = vpop.f32.mrf.mxu0
  %v564 = vadd.f32 %v316, %v563
  %565 = vmatmul.f32.gmra.mxu0 %v119
  %v566 = vpop.f32.mrf.mxu0
  %v567 = vadd.f32 %v316, %v566
  %568 = vmatmul.f32.gmra.mxu0 %v120
  %v569 = vpop.f32.mrf.mxu0
  %v570 = vadd.f32 %v316, %v569
  %571 = vmatmul.f32.gmra.mxu0 %v121
  %v572 = vpop.f32.mrf.mxu0
  %v573 = vadd.f32 %v316, %v572
  %574 = vmatmul.f32.gmra.mxu0 %v122
  %v575 = vpop.f32.mrf.mxu0
  %v576 = vadd.f32 %v316, %v575
  %577 = vmatmul.f32.gmra.mxu0 %v123
  %v578 = vpop.f32.mrf.mxu0
  %v579 = vadd.f32 %v316, %v578
  %580 = vmatmul.f32.gmra.mxu0 %v124
  %v581 = vpop.f32.mrf.mxu0
  %v582 = vadd.f32 %v316, %v581
  %583 = vmatmul.f32.gmra.mxu0 %v125
  %v584 = vpop.f32.mrf.mxu0
  %v585 = vadd.f32 %v316, %v584
  %586 = vmatmul.f32.gmra.mxu0 %v126
  %v587 = vpop.f32.mrf.mxu0
  %v588 = vadd.f32 %v316, %v587
  %589 = vmatmul.f32.gmra.mxu0 %v127
  %v590 = vpop.f32.mrf.mxu0
  %v591 = vadd.f32 %v316, %v590
  %592 = vmatmul.f32.gmra.mxu0 %v128
  %v593 = vpop.f32.mrf.mxu0
  %v594 = vadd.f32 %v316, %v593
  %595 = vmatmul.f32.gmra.mxu0 %v129
  %v596 = vpop.f32.mrf.mxu0
  %v597 = vadd.f32 %v316, %v596
  %598 = vmatmul.f32.gmra.mxu0 %v130
  %v599 = vpop.f32.mrf.mxu0
  %v600 = vadd.f32 %v316, %v599
  %601 = vmatmul.f32.gmra.mxu0 %v131
  %v602 = vpop.f32.mrf.mxu0
  %v603 = vadd.f32 %v316, %v602
  %604 = vmatmul.f32.gmra.mxu0 %v132
  %v605 = vpop.f32.mrf.mxu0
  %v606 = vadd.f32 %v316, %v605
  %607 = vmatmul.f32.gmra.mxu0 %v133
  %v608 = vpop.f32.mrf.mxu0
  %v609 = vadd.f32 %v316, %v608
  %610 = vmatmul.f32.gmra.mxu0 %v134
  %v611 = vpop.f32.mrf.mxu0
  %v612 = vadd.f32 %v316, %v611
  %613 = vmatmul.f32.gmra.mxu0 %v135
  %v614 = vpop.f32.mrf.mxu0
  %v615 = vadd.f32 %v316, %v614
  %616 = vmatmul.f32.gmra.mxu0 %v136
  %v617 = vpop.f32.mrf.mxu0
  %v618 = vadd.f32 %v316, %v617
  %619 = vmatmul.f32.gmra.mxu0 %v137
  %v620 = vpop.f32.mrf.mxu0
  %v621 = vadd.f32 %v316, %v620
  %622 = vmatmul.f32.gmra.mxu0 %v138
  %v623 = vpop.f32.mrf.mxu0
  %v624 = vadd.f32 %v316, %v623
  %625 = vmatmul.f32.gmra.mxu0 %v139
  %v626 = vpop.f32.mrf.mxu0
  %v627 = vadd.f32 %v316, %v626
  %628 = vmatmul.f32.gmra.mxu0 %v140
  %v629 = vpop.f32.mrf.mxu0
  %v630 = vadd.f32 %v316, %v629
  %631 = vmatmul.f32.gmra.mxu0 %v141
  %v632 = vpop.f32.mrf.mxu0
  %v633 = vadd.f32 %v316, %v632
  %634 = vmatmul.f32.gmra.mxu0 %v142
  %v635 = vpop.f32.mrf.mxu0
  %v636 = vadd.f32 %v316, %v635
  %637 = vmatmul.f32.gmra.mxu0 %v143
  %v638 = vpop.f32.mrf.mxu0
  %v639 = vadd.f32 %v316, %v638
  %640 = vmatmul.f32.gmra.mxu0 %v144
  %v641 = vpop.f32.mrf.mxu0
  %v642 = vadd.f32 %v316, %v641
  %643 = vmatmul.f32.gmra.mxu0 %v145
  %v644 = vpop.f32.mrf.mxu0
  %v645 = vadd.f32 %v316, %v644
  %646 = vmatmul.f32.gmra.mxu0 %v146
  %v647 = vpop.f32.mrf.mxu0
  %v648 = vadd.f32 %v316, %v647
  %649 = vmatmul.f32.gmra.mxu0 %v147
  %v650 = vpop.f32.mrf.mxu0
  %v651 = vadd.f32 %v316, %v650
  %652 = vmatmul.f32.gmra.mxu0 %v148
  %v653 = vpop.f32.mrf.mxu0
  %v654 = vadd.f32 %v316, %v653
  %655 = vmatmul.f32.gmra.mxu0 %v149
  %v656 = vpop.f32.mrf.mxu0
  %v657 = vadd.f32 %v316, %v656
  %658 = vmatmul.f32.gmra.mxu0 %v150
  %v659 = vpop.f32.mrf.mxu0
  %v660 = vadd.f32 %v316, %v659
  %661 = vmatmul.f32.gmra.mxu0 %v151
  %v662 = vpop.f32.mrf.mxu0
  %v663 = vadd.f32 %v316, %v662
  %664 = vmatmul.f32.gmra.mxu0 %v152
  %v665 = vpop.f32.mrf.mxu0
  %v666 = vadd.f32 %v316, %v665
  %667 = vmatmul.f32.gmra.mxu0 %v153
  %v668 = vpop.f32.mrf.mxu0
  %v669 = vadd.f32 %v316, %v668
  %670 = vmatmul.f32.gmra.mxu0 %v154
  %v671 = vpop.f32.mrf.mxu0
  %v672 = vadd.f32 %v316, %v671
  %673 = vmatmul.f32.gmra.mxu0 %v155
  %v674 = vpop.f32.mrf.mxu0
  %v675 = vadd.f32 %v316, %v674
  %676 = vmatmul.f32.gmra.mxu0 %v156
  %v677 = vpop.f32.mrf.mxu0
  %v678 = vadd.f32 %v316, %v677
  %679 = vmatmul.f32.gmra.mxu0 %v157
  %v680 = vpop.f32.mrf.mxu0
  %v681 = vadd.f32 %v316, %v680
  %682 = vmatmul.f32.gmra.mxu0 %v158
  %v683 = vpop.f32.mrf.mxu0
  %v684 = vadd.f32 %v316, %v683
  %685 = vmatmul.f32.gmra.mxu0 %v159
  %v686 = vpop.f32.mrf.mxu0
  %v687 = vadd.f32 %v316, %v686
  %688 = vmatmul.f32.gmra.mxu0 %v160
  %v689 = vpop.f32.mrf.mxu0
  %v690 = vadd.f32 %v316, %v689
  %691 = vmatmul.f32.gmra.mxu0 %v161
  %v692 = vpop.f32.mrf.mxu0
  %v693 = vadd.f32 %v316, %v692
  %694 = vmatmul.f32.gmra.mxu0 %v162
  %v695 = vpop.f32.mrf.mxu0
  %v696 = vadd.f32 %v316, %v695
  %697 = vmatmul.f32.gmra.mxu0 %v163
  %v698 = vpop.f32.mrf.mxu0
  %v699 = vadd.f32 %v316, %v698
  %700 = vmatmul.f32.gmra.mxu0 %v164
  %v701 = vpop.f32.mrf.mxu0
  %v702 = vadd.f32 %v316, %v701
  %703 = vmatmul.f32.gmra.mxu0 %v165
  %v704 = vpop.f32.mrf.mxu0
  %v705 = vadd.f32 %v316, %v704
  %706 = vmatmul.f32.gmra.mxu0 %v166
  %v707 = vpop.f32.mrf.mxu0
  %v708 = vadd.f32 %v316, %v707
  %709 = vmatmul.f32.gmra.mxu0 %v167
  %v710 = vpop.f32.mrf.mxu0
  %v711 = vadd.f32 %v316, %v710
  %712 = vmatmul.f32.gmra.mxu0 %v168
  %v713 = vpop.f32.mrf.mxu0
  %v714 = vadd.f32 %v316, %v713
  %715 = vmatmul.f32.gmra.mxu0 %v169
  %v716 = vpop.f32.mrf.mxu0
  %v717 = vadd.f32 %v316, %v716
  %718 = vmatmul.f32.gmra.mxu0 %v170
  %v719 = vpop.f32.mrf.mxu0
  %v720 = vadd.f32 %v316, %v719
  %721 = vmatmul.f32.gmra.mxu0 %v171
  %v722 = vpop.f32.mrf.mxu0
  %v723 = vadd.f32 %v316, %v722
  %724 = vmatmul.f32.gmra.mxu0 %v172
  %v725 = vpop.f32.mrf.mxu0
  %v726 = vadd.f32 %v316, %v725
  %727 = vmatmul.f32.gmra.mxu0 %v173
  %v728 = vpop.f32.mrf.mxu0
  %v729 = vadd.f32 %v316, %v728
  %730 = vmatmul.f32.gmra.mxu0 %v174
  %v731 = vpop.f32.mrf.mxu0
  %v732 = vadd.f32 %v316, %v731
  %733 = vmatmul.f32.gmra.mxu0 %v175
  %v734 = vpop.f32.mrf.mxu0
  %v735 = vadd.f32 %v316, %v734
  %736 = vmatmul.f32.gmra.mxu0 %v176
  %v737 = vpop.f32.mrf.mxu0
  %v738 = vadd.f32 %v316, %v737
  %739 = vmatmul.f32.gmra.mxu0 %v177
  %v740 = vpop.f32.mrf.mxu0
  %v741 = vadd.f32 %v316, %v740
  %742 = vmatmul.f32.gmra.mxu0 %v178
  %v743 = vpop.f32.mrf.mxu0
  %v744 = vadd.f32 %v316, %v743
  %745 = vmatmul.f32.gmra.mxu0 %v179
  %v746 = vpop.f32.mrf.mxu0
  %v747 = vadd.f32 %v316, %v746
  %748 = vmatmul.f32.gmra.mxu0 %v180
  %v749 = vpop.f32.mrf.mxu0
  %v750 = vadd.f32 %v316, %v749
  %751 = vmatmul.f32.gmra.mxu0 %v181
  %v752 = vpop.f32.mrf.mxu0
  %v753 = vadd.f32 %v316, %v752
  %754 = vmatmul.f32.gmra.mxu0 %v182
  %v755 = vpop.f32.mrf.mxu0
  %v756 = vadd.f32 %v316, %v755
  %757 = vmatmul.f32.gmra.mxu0 %v183
  %v758 = vpop.f32.mrf.mxu0
  %v759 = vadd.f32 %v316, %v758
  %760 = vmatmul.f32.gmra.mxu0 %v184
  %v761 = vpop.f32.mrf.mxu0
  %v762 = vadd.f32 %v316, %v761
  %763 = vmatmul.f32.gmra.mxu0 %v185
  %v764 = vpop.f32.mrf.mxu0
  %v765 = vadd.f32 %v316, %v764
  %766 = vmatmul.f32.gmra.mxu0 %v186
  %v767 = vpop.f32.mrf.mxu0
  %v768 = vadd.f32 %v316, %v767
  %769 = vmatmul.f32.gmra.mxu0 %v187
  %v770 = vpop.f32.mrf.mxu0
  %v771 = vadd.f32 %v316, %v770
  %772 = vmatmul.f32.gmra.mxu0 %v188
  %v773 = vpop.f32.mrf.mxu0
  %v774 = vadd.f32 %v316, %v773
  %775 = vmatmul.f32.gmra.mxu0 %v189
  %v776 = vpop.f32.mrf.mxu0
  %v777 = vadd.f32 %v316, %v776
  %778 = vmatmul.f32.gmra.mxu0 %v190
  %v779 = vpop.f32.mrf.mxu0
  %v780 = vadd.f32 %v316, %v779
  %781 = vmatmul.f32.gmra.mxu0 %v191
  %v782 = vpop.f32.mrf.mxu0
  %v783 = vadd.f32 %v316, %v782
  %784 = vmatmul.f32.gmra.mxu0 %v192
  %v785 = vpop.f32.mrf.mxu0
  %v786 = vadd.f32 %v316, %v785
  %787 = vmatmul.f32.gmra.mxu0 %v193
  %v788 = vpop.f32.mrf.mxu0
  %v789 = vadd.f32 %v316, %v788
  %790 = vmatmul.f32.gmra.mxu0 %v194
  %v791 = vpop.f32.mrf.mxu0
  %v792 = vadd.f32 %v316, %v791
  %793 = vmatmul.f32.gmra.mxu0 %v195
  %v794 = vpop.f32.mrf.mxu0
  %v795 = vadd.f32 %v316, %v794
  %796 = vmatmul.f32.gmra.mxu0 %v196
  %v797 = vpop.f32.mrf.mxu0
  %v798 = vadd.f32 %v316, %v797
  %799 = vmatmul.f32.gmra.mxu0 %v197
  %v800 = vpop.f32.mrf.mxu0
  %v801 = vadd.f32 %v316, %v800
  %802 = vmatmul.f32.gmra.mxu0 %v198
  %v803 = vpop.f32.mrf.mxu0
  %v804 = vadd.f32 %v316, %v803
  %805 = vmatmul.f32.gmra.mxu0 %v199
  %v806 = vpop.f32.mrf.mxu0
  %v807 = vadd.f32 %v316, %v806
  %808 = vmatmul.f32.gmra.mxu0 %v200
  %v809 = vpop.f32.mrf.mxu0
  %v810 = vadd.f32 %v316, %v809
  %811 = vmatmul.f32.gmra.mxu0 %v201
  %v812 = vpop.f32.mrf.mxu0
  %v813 = vadd.f32 %v316, %v812
  %814 = vmatmul.f32.gmra.mxu0 %v202
  %v815 = vpop.f32.mrf.mxu0
  %v816 = vadd.f32 %v316, %v815
  %817 = vmatmul.f32.gmra.mxu0 %v203
  %v818 = vpop.f32.mrf.mxu0
  %v819 = vadd.f32 %v316, %v818
  %820 = vmatmul.f32.gmra.mxu0 %v204
  %v821 = vpop.f32.mrf.mxu0
  %v822 = vadd.f32 %v316, %v821
  %823 = vmatmul.f32.gmra.mxu0 %v205
  %v824 = vpop.f32.mrf.mxu0
  %v825 = vadd.f32 %v316, %v824
  %826 = vmatmul.f32.gmra.mxu0 %v206
  %v827 = vpop.f32.mrf.mxu0
  %v828 = vadd.f32 %v316, %v827
  %829 = vmatmul.f32.gmra.mxu0 %v207
  %v830 = vpop.f32.mrf.mxu0
  %v831 = vadd.f32 %v316, %v830
  %832 = vmatmul.f32.gmra.mxu0 %v208
  %v833 = vpop.f32.mrf.mxu0
  %v834 = vadd.f32 %v316, %v833
  %835 = vmatmul.f32.gmra.mxu0 %v209
  %v836 = vpop.f32.mrf.mxu0
  %v837 = vadd.f32 %v316, %v836
  %838 = vmatmul.f32.gmra.mxu0 %v210
  %v839 = vpop.f32.mrf.mxu0
  %v840 = vadd.f32 %v316, %v839
  %841 = vmatmul.f32.gmra.mxu0 %v211
  %v842 = vpop.f32.mrf.mxu0
  %v843 = vadd.f32 %v316, %v842
  %844 = vmatmul.f32.gmra.mxu0 %v212
  %v845 = vpop.f32.mrf.mxu0
  %v846 = vadd.f32 %v316, %v845
  %847 = vmatmul.f32.gmra.mxu0 %v213
  %v848 = vpop.f32.mrf.mxu0
  %v849 = vadd.f32 %v316, %v848
  %850 = vmatmul.f32.gmra.mxu0 %v214
  %v851 = vpop.f32.mrf.mxu0
  %v852 = vadd.f32 %v316, %v851
  %853 = vmatmul.f32.gmra.mxu0 %v215
  %v854 = vpop.f32.mrf.mxu0
  %v855 = vadd.f32 %v316, %v854
  %856 = vmatmul.f32.gmra.mxu0 %v216
  %v857 = vpop.f32.mrf.mxu0
  %v858 = vadd.f32 %v316, %v857
  %859 = vmatmul.f32.gmra.mxu0 %v217
  %v860 = vpop.f32.mrf.mxu0
  %v861 = vadd.f32 %v316, %v860
  %862 = vmatmul.f32.gmra.mxu0 %v218
  %v863 = vpop.f32.mrf.mxu0
  %v864 = vadd.f32 %v316, %v863
  %865 = vmatmul.f32.gmra.mxu0 %v219
  %v866 = vpop.f32.mrf.mxu0
  %v867 = vadd.f32 %v316, %v866
  %868 = vmatmul.f32.gmra.mxu0 %v220
  %v869 = vpop.f32.mrf.mxu0
  %v870 = vadd.f32 %v316, %v869
  %871 = vmatmul.f32.gmra.mxu0 %v221
  %v872 = vpop.f32.mrf.mxu0
  %v873 = vadd.f32 %v316, %v872
  %874 = vmatmul.f32.gmra.mxu0 %v222
  %v875 = vpop.f32.mrf.mxu0
  %v876 = vadd.f32 %v316, %v875
  %877 = vmatmul.f32.gmra.mxu0 %v223
  %v878 = vpop.f32.mrf.mxu0
  %v879 = vadd.f32 %v316, %v878
  %880 = vmatmul.f32.gmra.mxu0 %v224
  %v881 = vpop.f32.mrf.mxu0
  %v882 = vadd.f32 %v316, %v881
  %883 = vmatmul.f32.gmra.mxu0 %v225
  %v884 = vpop.f32.mrf.mxu0
  %v885 = vadd.f32 %v316, %v884
  %886 = vmatmul.f32.gmra.mxu0 %v226
  %v887 = vpop.f32.mrf.mxu0
  %v888 = vadd.f32 %v316, %v887
  %889 = vmatmul.f32.gmra.mxu0 %v227
  %v890 = vpop.f32.mrf.mxu0
  %v891 = vadd.f32 %v316, %v890
  %892 = vmatmul.f32.gmra.mxu0 %v228
  %v893 = vpop.f32.mrf.mxu0
  %v894 = vadd.f32 %v316, %v893
  %895 = vmatmul.f32.gmra.mxu0 %v229
  %v896 = vpop.f32.mrf.mxu0
  %v897 = vadd.f32 %v316, %v896
  %898 = vmatmul.f32.gmra.mxu0 %v230
  %v899 = vpop.f32.mrf.mxu0
  %v900 = vadd.f32 %v316, %v899
  %901 = vmatmul.f32.gmra.mxu0 %v231
  %v902 = vpop.f32.mrf.mxu0
  %v903 = vadd.f32 %v316, %v902
  %904 = vmatmul.f32.gmra.mxu0 %v232
  %v905 = vpop.f32.mrf.mxu0
  %v906 = vadd.f32 %v316, %v905
  %907 = vmatmul.f32.gmra.mxu0 %v233
  %v908 = vpop.f32.mrf.mxu0
  %v909 = vadd.f32 %v316, %v908
  %910 = vmatmul.f32.gmra.mxu0 %v234
  %v911 = vpop.f32.mrf.mxu0
  %v912 = vadd.f32 %v316, %v911
  %913 = vmatmul.f32.gmra.mxu0 %v235
  %v914 = vpop.f32.mrf.mxu0
  %v915 = vadd.f32 %v316, %v914
  %916 = vmatmul.f32.gmra.mxu0 %v236
  %v917 = vpop.f32.mrf.mxu0
  %v918 = vadd.f32 %v316, %v917
  %919 = vmatmul.f32.gmra.mxu0 %v237
  %v920 = vpop.f32.mrf.mxu0
  %v921 = vadd.f32 %v316, %v920
  %922 = vmatmul.f32.gmra.mxu0 %v238
  %v923 = vpop.f32.mrf.mxu0
  %v924 = vadd.f32 %v316, %v923
  %925 = vmatmul.f32.gmra.mxu0 %v239
  %v926 = vpop.f32.mrf.mxu0
  %v927 = vadd.f32 %v316, %v926
  %928 = vmatmul.f32.gmra.mxu0 %v240
  %v929 = vpop.f32.mrf.mxu0
  %v930 = vadd.f32 %v316, %v929
  %931 = vmatmul.f32.gmra.mxu0 %v241
  %v932 = vpop.f32.mrf.mxu0
  %v933 = vadd.f32 %v316, %v932
  %934 = vmatmul.f32.gmra.mxu0 %v242
  %v935 = vpop.f32.mrf.mxu0
  %v936 = vadd.f32 %v316, %v935
  %937 = vmatmul.f32.gmra.mxu0 %v243
  %v938 = vpop.f32.mrf.mxu0
  %v939 = vadd.f32 %v316, %v938
  %940 = vmatmul.f32.gmra.mxu0 %v244
  %v941 = vpop.f32.mrf.mxu0
  %v942 = vadd.f32 %v316, %v941
  %943 = vmatmul.f32.gmra.mxu0 %v245
  %v944 = vpop.f32.mrf.mxu0
  %v945 = vadd.f32 %v316, %v944
  %946 = vmatmul.f32.gmra.mxu0 %v246
  %v947 = vpop.f32.mrf.mxu0
  %v948 = vadd.f32 %v316, %v947
  %949 = vmatmul.f32.gmra.mxu0 %v247
  %v950 = vpop.f32.mrf.mxu0
  %v951 = vadd.f32 %v316, %v950
  %952 = vmatmul.f32.gmra.mxu0 %v248
  %v953 = vpop.f32.mrf.mxu0
  %v954 = vadd.f32 %v316, %v953
  %955 = vmatmul.f32.gmra.mxu0 %v249
  %v956 = vpop.f32.mrf.mxu0
  %v957 = vadd.f32 %v316, %v956
  %958 = vmatmul.f32.gmra.mxu0 %v250
  %v959 = vpop.f32.mrf.mxu0
  %v960 = vadd.f32 %v316, %v959
  %961 = vmatmul.f32.gmra.mxu0 %v251
  %v962 = vpop.f32.mrf.mxu0
  %v963 = vadd.f32 %v316, %v962
  %964 = vmatmul.f32.gmra.mxu0 %v252
  %v965 = vpop.f32.mrf.mxu0
  %v966 = vadd.f32 %v316, %v965
  %967 = vmatmul.f32.gmra.mxu0 %v253
  %v968 = vpop.f32.mrf.mxu0
  %v969 = vadd.f32 %v316, %v968
  %970 = vmatmul.f32.gmra.mxu0 %v254
  %v971 = vpop.f32.mrf.mxu0
  %v972 = vadd.f32 %v316, %v971
  %973 = vmatmul.f32.gmra.mxu0 %v255
  %v974 = vpop.f32.mrf.mxu0
  %v975 = vadd.f32 %v316, %v974
  %976 = vmatmul.f32.gmra.mxu0 %v256
  %v977 = vpop.f32.mrf.mxu0
  %v978 = vadd.f32 %v316, %v977
  %979 = vmatmul.f32.gmra.mxu0 %v257
  %v980 = vpop.f32.mrf.mxu0
  %v981 = vadd.f32 %v316, %v980
  %982 = vmatmul.f32.gmra.mxu0 %v258
  %v983 = vpop.f32.mrf.mxu0
  %v984 = vadd.f32 %v316, %v983
  %985 = vmatmul.f32.gmra.mxu0 %v259
  %v986 = vpop.f32.mrf.mxu0
  %v987 = vadd.f32 %v316, %v986
  %988 = vmatmul.f32.gmra.mxu0 %v260
  %v989 = vpop.f32.mrf.mxu0
  %v990 = vadd.f32 %v316, %v989
  %991 = vmatmul.f32.gmra.mxu0 %v261
  %v992 = vpop.f32.mrf.mxu0
  %v993 = vadd.f32 %v316, %v992
  %994 = vmatmul.f32.gmra.mxu0 %v262
  %v995 = vpop.f32.mrf.mxu0
  %v996 = vadd.f32 %v316, %v995
  %997 = vmatmul.f32.gmra.mxu0 %v263
  %v998 = vpop.f32.mrf.mxu0
  %v999 = vadd.f32 %v316, %v998
  %1000 = vmatmul.f32.gmra.mxu0 %v264
  %v1001 = vpop.f32.mrf.mxu0
  %v1002 = vadd.f32 %v316, %v1001
  %1003 = vmatmul.f32.gmra.mxu0 %v265
  %v1004 = vpop.f32.mrf.mxu0
  %v1005 = vadd.f32 %v316, %v1004
  %1006 = vmatmul.f32.gmra.mxu0 %v266
  %v1007 = vpop.f32.mrf.mxu0
  %v1008 = vadd.f32 %v316, %v1007
  %1009 = vmatmul.f32.gmra.mxu0 %v267
  %v1010 = vpop.f32.mrf.mxu0
  %v1011 = vadd.f32 %v316, %v1010
  %1012 = vmatmul.f32.gmra.mxu0 %v268
  %v1013 = vpop.f32.mrf.mxu0
  %v1014 = vadd.f32 %v316, %v1013
  %1015 = vmatmul.f32.gmra.mxu0 %v269
  %v1016 = vpop.f32.mrf.mxu0
  %v1017 = vadd.f32 %v316, %v1016
  %1018 = vmatmul.f32.gmra.mxu0 %v270
  %v1019 = vpop.f32.mrf.mxu0
  %v1020 = vadd.f32 %v316, %v1019
  %1021 = vmatmul.f32.gmra.mxu0 %v271
  %v1022 = vpop.f32.mrf.mxu0
  %v1023 = vadd.f32 %v316, %v1022
  %1024 = vmatmul.f32.gmra.mxu0 %v272
  %v1025 = vpop.f32.mrf.mxu0
  %v1026 = vadd.f32 %v316, %v1025
  %1027 = vmatmul.f32.gmra.mxu0 %v273
  %v1028 = vpop.f32.mrf.mxu0
  %v1029 = vadd.f32 %v316, %v1028
  %1030 = vmatmul.f32.gmra.mxu0 %v274
  %v1031 = vpop.f32.mrf.mxu0
  %v1032 = vadd.f32 %v316, %v1031
  %1033 = vmatmul.f32.gmra.mxu0 %v275
  %v1034 = vpop.f32.mrf.mxu0
  %v1035 = vadd.f32 %v316, %v1034
  %1036 = vmatmul.f32.gmra.mxu0 %v276
  %v1037 = vpop.f32.mrf.mxu0
  %v1038 = vadd.f32 %v316, %v1037
  %1039 = vmatmul.f32.gmra.mxu0 %v277
  %v1040 = vpop.f32.mrf.mxu0
  %v1041 = vadd.f32 %v316, %v1040
  %1042 = vmatmul.f32.gmra.mxu0 %v278
  %v1043 = vpop.f32.mrf.mxu0
  %v1044 = vadd.f32 %v316, %v1043
  %1045 = vmatmul.f32.gmra.mxu0 %v279
  %v1046 = vpop.f32.mrf.mxu0
  %v1047 = vadd.f32 %v316, %v1046
  %1048 = vmatmul.f32.gmra.mxu0 %v280
  %v1049 = vpop.f32.mrf.mxu0
  %v1050 = vadd.f32 %v316, %v1049
  %1051 = vmatmul.f32.gmra.mxu0 %v281
  %v1052 = vpop.f32.mrf.mxu0
  %v1053 = vadd.f32 %v316, %v1052
  %1054 = vmatmul.f32.gmra.mxu0 %v282
  %v1055 = vpop.f32.mrf.mxu0
  %v1056 = vadd.f32 %v316, %v1055
  %1057 = vmatmul.f32.gmra.mxu0 %v283
  %v1058 = vpop.f32.mrf.mxu0
  %v1059 = vadd.f32 %v316, %v1058
  %1060 = vmatmul.f32.gmra.mxu0 %v284
  %v1061 = vpop.f32.mrf.mxu0
  %v1062 = vadd.f32 %v316, %v1061
  %1063 = vmatmul.f32.gmra.mxu0 %v285
  %v1064 = vpop.f32.mrf.mxu0
  %v1065 = vadd.f32 %v316, %v1064
  %1066 = vmatmul.f32.gmra.mxu0 %v286
  %v1067 = vpop.f32.mrf.mxu0
  %v1068 = vadd.f32 %v316, %v1067
  %1069 = vmatmul.f32.gmra.mxu0 %v287
  %v1070 = vpop.f32.mrf.mxu0
  %v1071 = vadd.f32 %v316, %v1070
  %1072 = vmatmul.f32.gmra.mxu0 %v288
  %v1073 = vpop.f32.mrf.mxu0
  %v1074 = vadd.f32 %v316, %v1073
  %1075 = vmatmul.f32.gmra.mxu0 %v289
  %v1076 = vpop.f32.mrf.mxu0
  %v1077 = vadd.f32 %v316, %v1076
  %1078 = vmatmul.f32.gmra.mxu0 %v290
  %v1079 = vpop.f32.mrf.mxu0
  %v1080 = vadd.f32 %v316, %v1079
  %1081 = vmatmul.f32.gmra.mxu0 %v291
  %v1082 = vpop.f32.mrf.mxu0
  %v1083 = vadd.f32 %v316, %v1082
  %1084 = vmatmul.f32.gmra.mxu0 %v292
  %v1085 = vpop.f32.mrf.mxu0
  %v1086 = vadd.f32 %v316, %v1085
  %1087 = vmatmul.f32.gmra.mxu0 %v293
  %v1088 = vpop.f32.mrf.mxu0
  %v1089 = vadd.f32 %v316, %v1088
  %1090 = vmatmul.f32.gmra.mxu0 %v294
  %v1091 = vpop.f32.mrf.mxu0
  %v1092 = vadd.f32 %v316, %v1091
  %1093 = vmatmul.f32.gmra.mxu0 %v295
  %v1094 = vpop.f32.mrf.mxu0
  %v1095 = vadd.f32 %v316, %v1094
  %1096 = vmatmul.f32.gmra.mxu0 %v296
  %v1097 = vpop.f32.mrf.mxu0
  %v1098 = vadd.f32 %v316, %v1097
  %1099 = vmatmul.f32.gmra.mxu0 %v297
  %v1100 = vpop.f32.mrf.mxu0
  %v1101 = vadd.f32 %v316, %v1100
  %1102 = vdwg.mxu0
  %v1103 = vmax.f32 %v336, 0.0
  %v1104 = vmax.f32 %v339, 0.0
  %v1105 = vmax.f32 %v342, 0.0
  %v1106 = vmax.f32 %v345, 0.0
  %v1107 = vmax.f32 %v348, 0.0
  %v1108 = vmax.f32 %v351, 0.0
  %v1109 = vmax.f32 %v354, 0.0
  %v1110 = vmax.f32 %v357, 0.0
  %v1111 = vmax.f32 %v360, 0.0
  %v1112 = vmax.f32 %v363, 0.0
  %v1113 = vmax.f32 %v366, 0.0
  %v1114 = vmax.f32 %v369, 0.0
  %v1115 = vmax.f32 %v372, 0.0
  %v1116 = vmax.f32 %v375, 0.0
  %v1117 = vmax.f32 %v378, 0.0
  %v1118 = vmax.f32 %v381, 0.0
  %v1119 = vmax.f32 %v384, 0.0
  %v1120 = vmax.f32 %v387, 0.0
  %v1121 = vmax.f32 %v390, 0.0
  %v1122 = vmax.f32 %v393, 0.0
  %v1123 = vmax.f32 %v396, 0.0
  %v1124 = vmax.f32 %v399, 0.0
  %v1125 = vmax.f32 %v402, 0.0
  %v1126 = vmax.f32 %v405, 0.0
  %v1127 = vmax.f32 %v408, 0.0
  %v1128 = vmax.f32 %v411, 0.0
  %v1129 = vmax.f32 %v414, 0.0
  %v1130 = vmax.f32 %v417, 0.0
  %v1131 = vmax.f32 %v420, 0.0
  %v1132 = vmax.f32 %v423, 0.0
  %v1133 = vmax.f32 %v426, 0.0
  %v1134 = vmax.f32 %v429, 0.0
  %v1135 = vmax.f32 %v432, 0.0
  %v1136 = vmax.f32 %v435, 0.0
  %v1137 = vmax.f32 %v438, 0.0
  %v1138 = vmax.f32 %v441, 0.0
  %v1139 = vmax.f32 %v444, 0.0
  %v1140 = vmax.f32 %v447, 0.0
  %v1141 = vmax.f32 %v450, 0.0
  %v1142 = vmax.f32 %v453, 0.0
  %v1143 = vmax.f32 %v456, 0.0
  %v1144 = vmax.f32 %v459, 0.0
  %v1145 = vmax.f32 %v462, 0.0
  %v1146 = vmax.f32 %v465, 0.0
  %v1147 = vmax.f32 %v468, 0.0
  %v1148 = vmax.f32 %v471, 0.0
  %v1149 = vmax.f32 %v474, 0.0
  %v1150 = vmax.f32 %v477, 0.0
  %v1151 = vmax.f32 %v480, 0.0
  %v1152 = vmax.f32 %v483, 0.0
  %v1153 = vmax.f32 %v486, 0.0
  %v1154 = vmax.f32 %v489, 0.0
  %v1155 = vmax.f32 %v492, 0.0
  %v1156 = vmax.f32 %v495, 0.0
  %v1157 = vmax.f32 %v498, 0.0
  %v1158 = vmax.f32 %v501, 0.0
  %v1159 = vmax.f32 %v504, 0.0
  %v1160 = vmax.f32 %v507, 0.0
  %v1161 = vmax.f32 %v510, 0.0
  %v1162 = vmax.f32 %v513, 0.0
  %v1163 = vmax.f32 %v516, 0.0
  %v1164 = vmax.f32 %v519, 0.0
  %v1165 = vmax.f32 %v522, 0.0
  %v1166 = vmax.f32 %v525, 0.0
  %v1167 = vmax.f32 %v528, 0.0
  %v1168 = vmax.f32 %v531, 0.0
  %v1169 = vmax.f32 %v534, 0.0
  %v1170 = vmax.f32 %v537, 0.0
  %v1171 = vmax.f32 %v540, 0.0
  %v1172 = vmax.f32 %v543, 0.0
  %v1173 = vmax.f32 %v546, 0.0
  %v1174 = vmax.f32 %v549, 0.0
  %v1175 = vmax.f32 %v552, 0.0
  %v1176 = vmax.f32 %v555, 0.0
  %v1177 = vmax.f32 %v558, 0.0
  %v1178 = vmax.f32 %v561, 0.0
  %v1179 = vmax.f32 %v564, 0.0
  %v1180 = vmax.f32 %v567, 0.0
  %v1181 = vmax.f32 %v570, 0.0
  %v1182 = vmax.f32 %v573, 0.0
  %v1183 = vmax.f32 %v576, 0.0
  %v1184 = vmax.f32 %v579, 0.0
  %v1185 = vmax.f32 %v582, 0.0
  %v1186 = vmax.f32 %v585, 0.0
  %v1187 = vmax.f32 %v588, 0.0
  %v1188 = vmax.f32 %v591, 0.0
  %v1189 = vmax.f32 %v594, 0.0
  %v1190 = vmax.f32 %v597, 0.0
  %v1191 = vmax.f32 %v600, 0.0
  %v1192 = vmax.f32 %v603, 0.0
  %v1193 = vmax.f32 %v606, 0.0
  %v1194 = vmax.f32 %v609, 0.0
  %v1195 = vmax.f32 %v612, 0.0
  %v1196 = vmax.f32 %v615, 0.0
  %v1197 = vmax.f32 %v618, 0.0
  %v1198 = vmax.f32 %v621, 0.0
  %v1199 = vmax.f32 %v624, 0.0
  %v1200 = vmax.f32 %v627, 0.0
  %v1201 = vmax.f32 %v630, 0.0
  %v1202 = vmax.f32 %v633, 0.0
  %v1203 = vmax.f32 %v636, 0.0
  %v1204 = vmax.f32 %v639, 0.0
  %v1205 = vmax.f32 %v642, 0.0
  %v1206 = vmax.f32 %v645, 0.0
  %v1207 = vmax.f32 %v648, 0.0
  %v1208 = vmax.f32 %v651, 0.0
  %v1209 = vmax.f32 %v654, 0.0
  %v1210 = vmax.f32 %v657, 0.0
  %v1211 = vmax.f32 %v660, 0.0
  %v1212 = vmax.f32 %v663, 0.0
  %v1213 = vmax.f32 %v666, 0.0
  %v1214 = vmax.f32 %v669, 0.0
  %v1215 = vmax.f32 %v672, 0.0
  %v1216 = vmax.f32 %v675, 0.0
  %v1217 = vmax.f32 %v678, 0.0
  %v1218 = vmax.f32 %v681, 0.0
  %v1219 = vmax.f32 %v684, 0.0
  %v1220 = vmax.f32 %v687, 0.0
  %v1221 = vmax.f32 %v690, 0.0
  %v1222 = vmax.f32 %v693, 0.0
  %v1223 = vmax.f32 %v696, 0.0
  %v1224 = vmax.f32 %v699, 0.0
  %v1225 = vmax.f32 %v702, 0.0
  %v1226 = vmax.f32 %v705, 0.0
  %v1227 = vmax.f32 %v708, 0.0
  %v1228 = vmax.f32 %v711, 0.0
  %v1229 = vmax.f32 %v714, 0.0
  %v1230 = vmax.f32 %v717, 0.0
  %v1231 = vmax.f32 %v720, 0.0
  %v1232 = vmax.f32 %v723, 0.0
  %v1233 = vmax.f32 %v726, 0.0
  %v1234 = vmax.f32 %v729, 0.0
  %v1235 = vmax.f32 %v732, 0.0
  %v1236 = vmax.f32 %v735, 0.0
  %v1237 = vmax.f32 %v738, 0.0
  %v1238 = vmax.f32 %v741, 0.0
  %v1239 = vmax.f32 %v744, 0.0
  %v1240 = vmax.f32 %v747, 0.0
  %v1241 = vmax.f32 %v750, 0.0
  %v1242 = vmax.f32 %v753, 0.0
  %v1243 = vmax.f32 %v756, 0.0
  %v1244 = vmax.f32 %v759, 0.0
  %v1245 = vmax.f32 %v762, 0.0
  %v1246 = vmax.f32 %v765, 0.0
  %v1247 = vmax.f32 %v768, 0.0
  %v1248 = vmax.f32 %v771, 0.0
  %v1249 = vmax.f32 %v774, 0.0
  %v1250 = vmax.f32 %v777, 0.0
  %v1251 = vmax.f32 %v780, 0.0
  %v1252 = vmax.f32 %v783, 0.0
  %v1253 = vmax.f32 %v786, 0.0
  %v1254 = vmax.f32 %v789, 0.0
  %v1255 = vmax.f32 %v792, 0.0
  %v1256 = vmax.f32 %v795, 0.0
  %v1257 = vmax.f32 %v798, 0.0
  %v1258 = vmax.f32 %v801, 0.0
  %v1259 = vmax.f32 %v804, 0.0
  %v1260 = vmax.f32 %v807, 0.0
  %v1261 = vmax.f32 %v810, 0.0
  %v1262 = vmax.f32 %v813, 0.0
  %v1263 = vmax.f32 %v816, 0.0
  %v1264 = vmax.f32 %v819, 0.0
  %v1265 = vmax.f32 %v822, 0.0
  %v1266 = vmax.f32 %v825, 0.0
  %v1267 = vmax.f32 %v828, 0.0
  %v1268 = vmax.f32 %v831, 0.0
  %v1269 = vmax.f32 %v834, 0.0
  %v1270 = vmax.f32 %v837, 0.0
  %v1271 = vmax.f32 %v840, 0.0
  %v1272 = vmax.f32 %v843, 0.0
  %v1273 = vmax.f32 %v846, 0.0
  %v1274 = vmax.f32 %v849, 0.0
  %v1275 = vmax.f32 %v852, 0.0
  %v1276 = vmax.f32 %v855, 0.0
  %v1277 = vmax.f32 %v858, 0.0
  %v1278 = vmax.f32 %v861, 0.0
  %v1279 = vmax.f32 %v864, 0.0
  %v1280 = vmax.f32 %v867, 0.0
  %v1281 = vmax.f32 %v870, 0.0
  %v1282 = vmax.f32 %v873, 0.0
  %v1283 = vmax.f32 %v876, 0.0
  %v1284 = vmax.f32 %v879, 0.0
  %v1285 = vmax.f32 %v882, 0.0
  %v1286 = vmax.f32 %v885, 0.0
  %v1287 = vmax.f32 %v888, 0.0
  %v1288 = vmax.f32 %v891, 0.0
  %v1289 = vmax.f32 %v894, 0.0
  %v1290 = vmax.f32 %v897, 0.0
  %v1291 = vmax.f32 %v900, 0.0
  %v1292 = vmax.f32 %v903, 0.0
  %v1293 = vmax.f32 %v906, 0.0
  %v1294 = vmax.f32 %v909, 0.0
  %v1295 = vmax.f32 %v912, 0.0
  %v1296 = vmax.f32 %v915, 0.0
  %v1297 = vmax.f32 %v918, 0.0
  %v1298 = vmax.f32 %v921, 0.0
  %v1299 = vmax.f32 %v924, 0.0
  %v1300 = vmax.f32 %v927, 0.0
  %v1301 = vmax.f32 %v930, 0.0
  %v1302 = vmax.f32 %v933, 0.0
  %v1303 = vmax.f32 %v936, 0.0
  %v1304 = vmax.f32 %v939, 0.0
  %v1305 = vmax.f32 %v942, 0.0
  %v1306 = vmax.f32 %v945, 0.0
  %v1307 = vmax.f32 %v948, 0.0
  %v1308 = vmax.f32 %v951, 0.0
  %v1309 = vmax.f32 %v954, 0.0
  %v1310 = vmax.f32 %v957, 0.0
  %v1311 = vmax.f32 %v960, 0.0
  %v1312 = vmax.f32 %v963, 0.0
  %v1313 = vmax.f32 %v966, 0.0
  %v1314 = vmax.f32 %v969, 0.0
  %v1315 = vmax.f32 %v972, 0.0
  %v1316 = vmax.f32 %v975, 0.0
  %v1317 = vmax.f32 %v978, 0.0
  %v1318 = vmax.f32 %v981, 0.0
  %v1319 = vmax.f32 %v984, 0.0
  %v1320 = vmax.f32 %v987, 0.0
  %v1321 = vmax.f32 %v990, 0.0
  %v1322 = vmax.f32 %v993, 0.0
  %v1323 = vmax.f32 %v996, 0.0
  %v1324 = vmax.f32 %v999, 0.0
  %v1325 = vmax.f32 %v1002, 0.0
  %v1326 = vmax.f32 %v1005, 0.0
  %v1327 = vmax.f32 %v1008, 0.0
  %v1328 = vmax.f32 %v1011, 0.0
  %v1329 = vmax.f32 %v1014, 0.0
  %v1330 = vmax.f32 %v1017, 0.0
  %v1331 = vmax.f32 %v1020, 0.0
  %v1332 = vmax.f32 %v1023, 0.0
  %v1333 = vmax.f32 %v1026, 0.0
  %v1334 = vmax.f32 %v1029, 0.0
  %v1335 = vmax.f32 %v1032, 0.0
  %v1336 = vmax.f32 %v1035, 0.0
  %v1337 = vmax.f32 %v1038, 0.0
  %v1338 = vmax.f32 %v1041, 0.0
  %v1339 = vmax.f32 %v1044, 0.0
  %v1340 = vmax.f32 %v1047, 0.0
  %v1341 = vmax.f32 %v1050, 0.0
  %v1342 = vmax.f32 %v1053, 0.0
  %v1343 = vmax.f32 %v1056, 0.0
  %v1344 = vmax.f32 %v1059, 0.0
  %v1345 = vmax.f32 %v1062, 0.0
  %v1346 = vmax.f32 %v1065, 0.0
  %v1347 = vmax.f32 %v1068, 0.0
  %v1348 = vmax.f32 %v1071, 0.0
  %v1349 = vmax.f32 %v1074, 0.0
  %v1350 = vmax.f32 %v1077, 0.0
  %v1351 = vmax.f32 %v1080, 0.0
  %v1352 = vmax.f32 %v1083, 0.0
  %v1353 = vmax.f32 %v1086, 0.0
  %v1354 = vmax.f32 %v1089, 0.0
  %v1355 = vmax.f32 %v1092, 0.0
  %v1356 = vmax.f32 %v1095, 0.0
  %v1357 = vmax.f32 %v1098, 0.0
  %v1358 = vmax.f32 %v1101, 0.0
  %1359 = vst [vmem:[#allocation2] sm:$0xff] %v1103
  %1360 = vst [vmem:[#allocation2 + $0x8] sm:$0xff] %v1104
  %1361 = vst [vmem:[#allocation2 + $0x10] sm:$0xff] %v1105
  %1362 = vst [vmem:[#allocation2 + $0x18] sm:$0xff] %v1106
  %1363 = vst [vmem:[#allocation2 + $0x20] sm:$0xff] %v1107
  %1364 = vst [vmem:[#allocation2 + $0x28] sm:$0xff] %v1108
  %1365 = vst [vmem:[#allocation2 + $0x30] sm:$0xff] %v1109
  %1366 = vst [vmem:[#allocation2 + $0x38] sm:$0xff] %v1110
  %1367 = vst [vmem:[#allocation2 + $0x40] sm:$0xff] %v1111
  %1368 = vst [vmem:[#allocation2 + $0x48] sm:$0xff] %v1112
  %1369 = vst [vmem:[#allocation2 + $0x50] sm:$0xff] %v1113
  %1370 = vst [vmem:[#allocation2 + $0x58] sm:$0xff] %v1114
  %1371 = vst [vmem:[#allocation2 + $0x60] sm:$0xff] %v1115
  %1372 = vst [vmem:[#allocation2 + $0x68] sm:$0xff] %v1116
  %1373 = vst [vmem:[#allocation2 + $0x70] sm:$0xff] %v1117
  %1374 = vst [vmem:[#allocation2 + $0x78] sm:$0xff] %v1118
  %1375 = vst [vmem:[#allocation2 + $0x80] sm:$0xff] %v1119
  %1376 = vst [vmem:[#allocation2 + $0x88] sm:$0xff] %v1120
  %1377 = vst [vmem:[#allocation2 + $0x90] sm:$0xff] %v1121
  %1378 = vst [vmem:[#allocation2 + $0x98] sm:$0xff] %v1122
  %1379 = vst [vmem:[#allocation2 + $0xa0] sm:$0xff] %v1123
  %1380 = vst [vmem:[#allocation2 + $0xa8] sm:$0xff] %v1124
  %1381 = vst [vmem:[#allocation2 + $0xb0] sm:$0xff] %v1125
  %1382 = vst [vmem:[#allocation2 + $0xb8] sm:$0xff] %v1126
  %1383 = vst [vmem:[#allocation2 + $0xc0] sm:$0xff] %v1127
  %1384 = vst [vmem:[#allocation2 + $0xc8] sm:$0xff] %v1128
  %1385 = vst [vmem:[#allocation2 + $0xd0] sm:$0xff] %v1129
  %1386 = vst [vmem:[#allocation2 + $0xd8] sm:$0xff] %v1130
  %1387 = vst [vmem:[#allocation2 + $0xe0] sm:$0xff] %v1131
  %1388 = vst [vmem:[#allocation2 + $0xe8] sm:$0xff] %v1132
  %1389 = vst [vmem:[#allocation2 + $0xf0] sm:$0xff] %v1133
  %1390 = vst [vmem:[#allocation2 + $0xf8] sm:$0xff] %v1134
  %1391 = vst [vmem:[#allocation2 + $0x100] sm:$0xff] %v1135
  %1392 = vst [vmem:[#allocation2 + $0x108] sm:$0xff] %v1136
  %1393 = vst [vmem:[#allocation2 + $0x110] sm:$0xff] %v1137
  %1394 = vst [vmem:[#allocation2 + $0x118] sm:$0xff] %v1138
  %1395 = vst [vmem:[#allocation2 + $0x120] sm:$0xff] %v1139
  %1396 = vst [vmem:[#allocation2 + $0x128] sm:$0xff] %v1140
  %1397 = vst [vmem:[#allocation2 + $0x130] sm:$0xff] %v1141
  %1398 = vst [vmem:[#allocation2 + $0x138] sm:$0xff] %v1142
  %1399 = vst [vmem:[#allocation2 + $0x140] sm:$0xff] %v1143
  %1400 = vst [vmem:[#allocation2 + $0x148] sm:$0xff] %v1144
  %1401 = vst [vmem:[#allocation2 + $0x150] sm:$0xff] %v1145
  %1402 = vst [vmem:[#allocation2 + $0x158] sm:$0xff] %v1146
  %1403 = vst [vmem:[#allocation2 + $0x160] sm:$0xff] %v1147
  %1404 = vst [vmem:[#allocation2 + $0x168] sm:$0xff] %v1148
  %1405 = vst [vmem:[#allocation2 + $0x170] sm:$0xff] %v1149
  %1406 = vst [vmem:[#allocation2 + $0x178] sm:$0xff] %v1150
  %1407 = vst [vmem:[#allocation2 + $0x180] sm:$0xff] %v1151
  %1408 = vst [vmem:[#allocation2 + $0x188] sm:$0xff] %v1152
  %1409 = vst [vmem:[#allocation2 + $0x190] sm:$0xff] %v1153
  %1410 = vst [vmem:[#allocation2 + $0x198] sm:$0xff] %v1154
  %1411 = vst [vmem:[#allocation2 + $0x1a0] sm:$0xff] %v1155
  %1412 = vst [vmem:[#allocation2 + $0x1a8] sm:$0xff] %v1156
  %1413 = vst [vmem:[#allocation2 + $0x1b0] sm:$0xff] %v1157
  %1414 = vst [vmem:[#allocation2 + $0x1b8] sm:$0xff] %v1158
  %1415 = vst [vmem:[#allocation2 + $0x1c0] sm:$0xff] %v1159
  %1416 = vst [vmem:[#allocation2 + $0x1c8] sm:$0xff] %v1160
  %1417 = vst [vmem:[#allocation2 + $0x1d0] sm:$0xff] %v1161
  %1418 = vst [vmem:[#allocation2 + $0x1d8] sm:$0xff] %v1162
  %1419 = vst [vmem:[#allocation2 + $0x1e0] sm:$0xff] %v1163
  %1420 = vst [vmem:[#allocation2 + $0x1e8] sm:$0xff] %v1164
  %1421 = vst [vmem:[#allocation2 + $0x1f0] sm:$0xff] %v1165
  %1422 = vst [vmem:[#allocation2 + $0x1f8] sm:$0xff] %v1166
  %1423 = vst [vmem:[#allocation2 + $0x200] sm:$0xff] %v1167
  %1424 = vst [vmem:[#allocation2 + $0x208] sm:$0xff] %v1168
  %1425 = vst [vmem:[#allocation2 + $0x210] sm:$0xff] %v1169
  %1426 = vst [vmem:[#allocation2 + $0x218] sm:$0xff] %v1170
  %1427 = vst [vmem:[#allocation2 + $0x220] sm:$0xff] %v1171
  %1428 = vst [vmem:[#allocation2 + $0x228] sm:$0xff] %v1172
  %1429 = vst [vmem:[#allocation2 + $0x230] sm:$0xff] %v1173
  %1430 = vst [vmem:[#allocation2 + $0x238] sm:$0xff] %v1174
  %1431 = vst [vmem:[#allocation2 + $0x240] sm:$0xff] %v1175
  %1432 = vst [vmem:[#allocation2 + $0x248] sm:$0xff] %v1176
  %1433 = vst [vmem:[#allocation2 + $0x250] sm:$0xff] %v1177
  %1434 = vst [vmem:[#allocation2 + $0x258] sm:$0xff] %v1178
  %1435 = vst [vmem:[#allocation2 + $0x260] sm:$0xff] %v1179
  %1436 = vst [vmem:[#allocation2 + $0x268] sm:$0xff] %v1180
  %1437 = vst [vmem:[#allocation2 + $0x270] sm:$0xff] %v1181
  %1438 = vst [vmem:[#allocation2 + $0x278] sm:$0xff] %v1182
  %1439 = vst [vmem:[#allocation2 + $0x280] sm:$0xff] %v1183
  %1440 = vst [vmem:[#allocation2 + $0x288] sm:$0xff] %v1184
  %1441 = vst [vmem:[#allocation2 + $0x290] sm:$0xff] %v1185
  %1442 = vst [vmem:[#allocation2 + $0x298] sm:$0xff] %v1186
  %1443 = vst [vmem:[#allocation2 + $0x2a0] sm:$0xff] %v1187
  %1444 = vst [vmem:[#allocation2 + $0x2a8] sm:$0xff] %v1188
  %1445 = vst [vmem:[#allocation2 + $0x2b0] sm:$0xff] %v1189
  %1446 = vst [vmem:[#allocation2 + $0x2b8] sm:$0xff] %v1190
  %1447 = vst [vmem:[#allocation2 + $0x2c0] sm:$0xff] %v1191
  %1448 = vst [vmem:[#allocation2 + $0x2c8] sm:$0xff] %v1192
  %1449 = vst [vmem:[#allocation2 + $0x2d0] sm:$0xff] %v1193
  %1450 = vst [vmem:[#allocation2 + $0x2d8] sm:$0xff] %v1194
  %1451 = vst [vmem:[#allocation2 + $0x2e0] sm:$0xff] %v1195
  %1452 = vst [vmem:[#allocation2 + $0x2e8] sm:$0xff] %v1196
  %1453 = vst [vmem:[#allocation2 + $0x2f0] sm:$0xff] %v1197
  %1454 = vst [vmem:[#allocation2 + $0x2f8] sm:$0xff] %v1198
  %1455 = vst [vmem:[#allocation2 + $0x300] sm:$0xff] %v1199
  %1456 = vst [vmem:[#allocation2 + $0x308] sm:$0xff] %v1200
  %1457 = vst [vmem:[#allocation2 + $0x310] sm:$0xff] %v1201
  %1458 = vst [vmem:[#allocation2 + $0x318] sm:$0xff] %v1202
  %1459 = vst [vmem:[#allocation2 + $0x320] sm:$0xff] %v1203
  %1460 = vst [vmem:[#allocation2 + $0x328] sm:$0xff] %v1204
  %1461 = vst [vmem:[#allocation2 + $0x330] sm:$0xff] %v1205
  %1462 = vst [vmem:[#allocation2 + $0x338] sm:$0xff] %v1206
  %1463 = vst [vmem:[#allocation2 + $0x340] sm:$0xff] %v1207
  %1464 = vst [vmem:[#allocation2 + $0x348] sm:$0xff] %v1208
  %1465 = vst [vmem:[#allocation2 + $0x350] sm:$0xff] %v1209
  %1466 = vst [vmem:[#allocation2 + $0x358] sm:$0xff] %v1210
  %1467 = vst [vmem:[#allocation2 + $0x360] sm:$0xff] %v1211
  %1468 = vst [vmem:[#allocation2 + $0x368] sm:$0xff] %v1212
  %1469 = vst [vmem:[#allocation2 + $0x370] sm:$0xff] %v1213
  %1470 = vst [vmem:[#allocation2 + $0x378] sm:$0xff] %v1214
  %1471 = vst [vmem:[#allocation2 + $0x380] sm:$0xff] %v1215
  %1472 = vst [vmem:[#allocation2 + $0x388] sm:$0xff] %v1216
  %1473 = vst [vmem:[#allocation2 + $0x390] sm:$0xff] %v1217
  %1474 = vst [vmem:[#allocation2 + $0x398] sm:$0xff] %v1218
  %1475 = vst [vmem:[#allocation2 + $0x3a0] sm:$0xff] %v1219
  %1476 = vst [vmem:[#allocation2 + $0x3a8] sm:$0xff] %v1220
  %1477 = vst [vmem:[#allocation2 + $0x3b0] sm:$0xff] %v1221
  %1478 = vst [vmem:[#allocation2 + $0x3b8] sm:$0xff] %v1222
  %1479 = vst [vmem:[#allocation2 + $0x3c0] sm:$0xff] %v1223
  %1480 = vst [vmem:[#allocation2 + $0x3c8] sm:$0xff] %v1224
  %1481 = vst [vmem:[#allocation2 + $0x3d0] sm:$0xff] %v1225
  %1482 = vst [vmem:[#allocation2 + $0x3d8] sm:$0xff] %v1226
  %1483 = vst [vmem:[#allocation2 + $0x3e0] sm:$0xff] %v1227
  %1484 = vst [vmem:[#allocation2 + $0x3e8] sm:$0xff] %v1228
  %1485 = vst [vmem:[#allocation2 + $0x3f0] sm:$0xff] %v1229
  %1486 = vst [vmem:[#allocation2 + $0x3f8] sm:$0xff] %v1230
  %1487 = vst [vmem:[#allocation2 + $0x400] sm:$0xff] %v1231
  %1488 = vst [vmem:[#allocation2 + $0x408] sm:$0xff] %v1232
  %1489 = vst [vmem:[#allocation2 + $0x410] sm:$0xff] %v1233
  %1490 = vst [vmem:[#allocation2 + $0x418] sm:$0xff] %v1234
  %1491 = vst [vmem:[#allocation2 + $0x420] sm:$0xff] %v1235
  %1492 = vst [vmem:[#allocation2 + $0x428] sm:$0xff] %v1236
  %1493 = vst [vmem:[#allocation2 + $0x430] sm:$0xff] %v1237
  %1494 = vst [vmem:[#allocation2 + $0x438] sm:$0xff] %v1238
  %1495 = vst [vmem:[#allocation2 + $0x440] sm:$0xff] %v1239
  %1496 = vst [vmem:[#allocation2 + $0x448] sm:$0xff] %v1240
  %1497 = vst [vmem:[#allocation2 + $0x450] sm:$0xff] %v1241
  %1498 = vst [vmem:[#allocation2 + $0x458] sm:$0xff] %v1242
  %1499 = vst [vmem:[#allocation2 + $0x460] sm:$0xff] %v1243
  %1500 = vst [vmem:[#allocation2 + $0x468] sm:$0xff] %v1244
  %1501 = vst [vmem:[#allocation2 + $0x470] sm:$0xff] %v1245
  %1502 = vst [vmem:[#allocation2 + $0x478] sm:$0xff] %v1246
  %1503 = vst [vmem:[#allocation2 + $0x480] sm:$0xff] %v1247
  %1504 = vst [vmem:[#allocation2 + $0x488] sm:$0xff] %v1248
  %1505 = vst [vmem:[#allocation2 + $0x490] sm:$0xff] %v1249
  %1506 = vst [vmem:[#allocation2 + $0x498] sm:$0xff] %v1250
  %1507 = vst [vmem:[#allocation2 + $0x4a0] sm:$0xff] %v1251
  %1508 = vst [vmem:[#allocation2 + $0x4a8] sm:$0xff] %v1252
  %1509 = vst [vmem:[#allocation2 + $0x4b0] sm:$0xff] %v1253
  %1510 = vst [vmem:[#allocation2 + $0x4b8] sm:$0xff] %v1254
  %1511 = vst [vmem:[#allocation2 + $0x4c0] sm:$0xff] %v1255
  %1512 = vst [vmem:[#allocation2 + $0x4c8] sm:$0xff] %v1256
  %1513 = vst [vmem:[#allocation2 + $0x4d0] sm:$0xff] %v1257
  %1514 = vst [vmem:[#allocation2 + $0x4d8] sm:$0xff] %v1258
  %1515 = vst [vmem:[#allocation2 + $0x4e0] sm:$0xff] %v1259
  %1516 = vst [vmem:[#allocation2 + $0x4e8] sm:$0xff] %v1260
  %1517 = vst [vmem:[#allocation2 + $0x4f0] sm:$0xff] %v1261
  %1518 = vst [vmem:[#allocation2 + $0x4f8] sm:$0xff] %v1262
  %1519 = vst [vmem:[#allocation2 + $0x500] sm:$0xff] %v1263
  %1520 = vst [vmem:[#allocation2 + $0x508] sm:$0xff] %v1264
  %1521 = vst [vmem:[#allocation2 + $0x510] sm:$0xff] %v1265
  %1522 = vst [vmem:[#allocation2 + $0x518] sm:$0xff] %v1266
  %1523 = vst [vmem:[#allocation2 + $0x520] sm:$0xff] %v1267
  %1524 = vst [vmem:[#allocation2 + $0x528] sm:$0xff] %v1268
  %1525 = vst [vmem:[#allocation2 + $0x530] sm:$0xff] %v1269
  %1526 = vst [vmem:[#allocation2 + $0x538] sm:$0xff] %v1270
  %1527 = vst [vmem:[#allocation2 + $0x540] sm:$0xff] %v1271
  %1528 = vst [vmem:[#allocation2 + $0x548] sm:$0xff] %v1272
  %1529 = vst [vmem:[#allocation2 + $0x550] sm:$0xff] %v1273
  %1530 = vst [vmem:[#allocation2 + $0x558] sm:$0xff] %v1274
  %1531 = vst [vmem:[#allocation2 + $0x560] sm:$0xff] %v1275
  %1532 = vst [vmem:[#allocation2 + $0x568] sm:$0xff] %v1276
  %1533 = vst [vmem:[#allocation2 + $0x570] sm:$0xff] %v1277
  %1534 = vst [vmem:[#allocation2 + $0x578] sm:$0xff] %v1278
  %1535 = vst [vmem:[#allocation2 + $0x580] sm:$0xff] %v1279
  %1536 = vst [vmem:[#allocation2 + $0x588] sm:$0xff] %v1280
  %1537 = vst [vmem:[#allocation2 + $0x590] sm:$0xff] %v1281
  %1538 = vst [vmem:[#allocation2 + $0x598] sm:$0xff] %v1282
  %1539 = vst [vmem:[#allocation2 + $0x5a0] sm:$0xff] %v1283
  %1540 = vst [vmem:[#allocation2 + $0x5a8] sm:$0xff] %v1284
  %1541 = vst [vmem:[#allocation2 + $0x5b0] sm:$0xff] %v1285
  %1542 = vst [vmem:[#allocation2 + $0x5b8] sm:$0xff] %v1286
  %1543 = vst [vmem:[#allocation2 + $0x5c0] sm:$0xff] %v1287
  %1544 = vst [vmem:[#allocation2 + $0x5c8] sm:$0xff] %v1288
  %1545 = vst [vmem:[#allocation2 + $0x5d0] sm:$0xff] %v1289
  %1546 = vst [vmem:[#allocation2 + $0x5d8] sm:$0xff] %v1290
  %1547 = vst [vmem:[#allocation2 + $0x5e0] sm:$0xff] %v1291
  %1548 = vst [vmem:[#allocation2 + $0x5e8] sm:$0xff] %v1292
  %1549 = vst [vmem:[#allocation2 + $0x5f0] sm:$0xff] %v1293
  %1550 = vst [vmem:[#allocation2 + $0x5f8] sm:$0xff] %v1294
  %1551 = vst [vmem:[#allocation2 + $0x600] sm:$0xff] %v1295
  %1552 = vst [vmem:[#allocation2 + $0x608] sm:$0xff] %v1296
  %1553 = vst [vmem:[#allocation2 + $0x610] sm:$0xff] %v1297
  %1554 = vst [vmem:[#allocation2 + $0x618] sm:$0xff] %v1298
  %1555 = vst [vmem:[#allocation2 + $0x620] sm:$0xff] %v1299
  %1556 = vst [vmem:[#allocation2 + $0x628] sm:$0xff] %v1300
  %1557 = vst [vmem:[#allocation2 + $0x630] sm:$0xff] %v1301
  %1558 = vst [vmem:[#allocation2 + $0x638] sm:$0xff] %v1302
  %1559 = vst [vmem:[#allocation2 + $0x640] sm:$0xff] %v1303
  %1560 = vst [vmem:[#allocation2 + $0x648] sm:$0xff] %v1304
  %1561 = vst [vmem:[#allocation2 + $0x650] sm:$0xff] %v1305
  %1562 = vst [vmem:[#allocation2 + $0x658] sm:$0xff] %v1306
  %1563 = vst [vmem:[#allocation2 + $0x660] sm:$0xff] %v1307
  %1564 = vst [vmem:[#allocation2 + $0x668] sm:$0xff] %v1308
  %1565 = vst [vmem:[#allocation2 + $0x670] sm:$0xff] %v1309
  %1566 = vst [vmem:[#allocation2 + $0x678] sm:$0xff] %v1310
  %1567 = vst [vmem:[#allocation2 + $0x680] sm:$0xff] %v1311
  %1568 = vst [vmem:[#allocation2 + $0x688] sm:$0xff] %v1312
  %1569 = vst [vmem:[#allocation2 + $0x690] sm:$0xff] %v1313
  %1570 = vst [vmem:[#allocation2 + $0x698] sm:$0xff] %v1314
  %1571 = vst [vmem:[#allocation2 + $0x6a0] sm:$0xff] %v1315
  %1572 = vst [vmem:[#allocation2 + $0x6a8] sm:$0xff] %v1316
  %1573 = vst [vmem:[#allocation2 + $0x6b0] sm:$0xff] %v1317
  %1574 = vst [vmem:[#allocation2 + $0x6b8] sm:$0xff] %v1318
  %1575 = vst [vmem:[#allocation2 + $0x6c0] sm:$0xff] %v1319
  %1576 = vst [vmem:[#allocation2 + $0x6c8] sm:$0xff] %v1320
  %1577 = vst [vmem:[#allocation2 + $0x6d0] sm:$0xff] %v1321
  %1578 = vst [vmem:[#allocation2 + $0x6d8] sm:$0xff] %v1322
  %1579 = vst [vmem:[#allocation2 + $0x6e0] sm:$0xff] %v1323
  %1580 = vst [vmem:[#allocation2 + $0x6e8] sm:$0xff] %v1324
  %1581 = vst [vmem:[#allocation2 + $0x6f0] sm:$0xff] %v1325
  %1582 = vst [vmem:[#allocation2 + $0x6f8] sm:$0xff] %v1326
  %1583 = vst [vmem:[#allocation2 + $0x700] sm:$0xff] %v1327
  %1584 = vst [vmem:[#allocation2 + $0x708] sm:$0xff] %v1328
  %1585 = vst [vmem:[#allocation2 + $0x710] sm:$0xff] %v1329
  %1586 = vst [vmem:[#allocation2 + $0x718] sm:$0xff] %v1330
  %1587 = vst [vmem:[#allocation2 + $0x720] sm:$0xff] %v1331
  %1588 = vst [vmem:[#allocation2 + $0x728] sm:$0xff] %v1332
  %1589 = vst [vmem:[#allocation2 + $0x730] sm:$0xff] %v1333
  %1590 = vst [vmem:[#allocation2 + $0x738] sm:$0xff] %v1334
  %1591 = vst [vmem:[#allocation2 + $0x740] sm:$0xff] %v1335
  %1592 = vst [vmem:[#allocation2 + $0x748] sm:$0xff] %v1336
  %1593 = vst [vmem:[#allocation2 + $0x750] sm:$0xff] %v1337
  %1594 = vst [vmem:[#allocation2 + $0x758] sm:$0xff] %v1338
  %1595 = vst [vmem:[#allocation2 + $0x760] sm:$0xff] %v1339
  %1596 = vst [vmem:[#allocation2 + $0x768] sm:$0xff] %v1340
  %1597 = vst [vmem:[#allocation2 + $0x770] sm:$0xff] %v1341
  %1598 = vst [vmem:[#allocation2 + $0x778] sm:$0xff] %v1342
  %1599 = vst [vmem:[#allocation2 + $0x780] sm:$0xff] %v1343
  %1600 = vst [vmem:[#allocation2 + $0x788] sm:$0xff] %v1344
  %1601 = vst [vmem:[#allocation2 + $0x790] sm:$0xff] %v1345
  %1602 = vst [vmem:[#allocation2 + $0x798] sm:$0xff] %v1346
  %1603 = vst [vmem:[#allocation2 + $0x7a0] sm:$0xff] %v1347
  %1604 = vst [vmem:[#allocation2 + $0x7a8] sm:$0xff] %v1348
  %1605 = vst [vmem:[#allocation2 + $0x7b0] sm:$0xff] %v1349
  %1606 = vst [vmem:[#allocation2 + $0x7b8] sm:$0xff] %v1350
  %1607 = vst [vmem:[#allocation2 + $0x7c0] sm:$0xff] %v1351
  %1608 = vst [vmem:[#allocation2 + $0x7c8] sm:$0xff] %v1352
  %1609 = vst [vmem:[#allocation2 + $0x7d0] sm:$0xff] %v1353
  %1610 = vst [vmem:[#allocation2 + $0x7d8] sm:$0xff] %v1354
  %1611 = vst [vmem:[#allocation2 + $0x7e0] sm:$0xff] %v1355
  %1612 = vst [vmem:[#allocation2 + $0x7e8] sm:$0xff] %v1356
  %1613 = vst [vmem:[#allocation2 + $0x7f0] sm:$0xff] %v1357
  %1614 = vst [vmem:[#allocation2 + $0x7f8] sm:$0xff] %v1358
  %1615 = vst [vmem:[#allocation3] sm:$0xff] 0.0
  %1616 = vst [vmem:[#allocation3 + $0x8] sm:$0xff] 0.0
  %1617 = vst [vmem:[#allocation3 + $0x10] sm:$0xff] 0.0
  %1618 = vst [vmem:[#allocation3 + $0x18] sm:$0xff] 0.0
  %1619 = vst [vmem:[#allocation3 + $0x20] sm:$0xff] 0.0
  %1620 = vst [vmem:[#allocation3 + $0x28] sm:$0xff] 0.0
  %1621 = vst [vmem:[#allocation3 + $0x30] sm:$0xff] 0.0
  %1622 = vst [vmem:[#allocation3 + $0x38] sm:$0xff] 0.0
  %1623 = vst [vmem:[#allocation3 + $0x40] sm:$0xff] 0.0
  %1624 = vst [vmem:[#allocation3 + $0x48] sm:$0xff] 0.0
  %1625 = vst [vmem:[#allocation3 + $0x50] sm:$0xff] 0.0
  %1626 = vst [vmem:[#allocation3 + $0x58] sm:$0xff] 0.0
  %1627 = vst [vmem:[#allocation3 + $0x60] sm:$0xff] 0.0
  %1628 = vst [vmem:[#allocation3 + $0x68] sm:$0xff] 0.0
  %1629 = vst [vmem:[#allocation3 + $0x70] sm:$0xff] 0.0
  %1630 = vst [vmem:[#allocation3 + $0x78] sm:$0xff] 0.0
  %1631 = vst [vmem:[#allocation3 + $0x80] sm:$0xff] 0.0
  %1632 = vst [vmem:[#allocation3 + $0x88] sm:$0xff] 0.0
  %1633 = vst [vmem:[#allocation3 + $0x90] sm:$0xff] 0.0
  %1634 = vst [vmem:[#allocation3 + $0x98] sm:$0xff] 0.0
  %1635 = vst [vmem:[#allocation3 + $0xa0] sm:$0xff] 0.0
  %1636 = vst [vmem:[#allocation3 + $0xa8] sm:$0xff] 0.0
  %1637 = vst [vmem:[#allocation3 + $0xb0] sm:$0xff] 0.0
  %1638 = vst [vmem:[#allocation3 + $0xb8] sm:$0xff] 0.0
  %1639 = vst [vmem:[#allocation3 + $0xc0] sm:$0xff] 0.0
  %1640 = vst [vmem:[#allocation3 + $0xc8] sm:$0xff] 0.0
  %1641 = vst [vmem:[#allocation3 + $0xd0] sm:$0xff] 0.0
  %1642 = vst [vmem:[#allocation3 + $0xd8] sm:$0xff] 0.0
  %1643 = vst [vmem:[#allocation3 + $0xe0] sm:$0xff] 0.0
  %1644 = vst [vmem:[#allocation3 + $0xe8] sm:$0xff] 0.0
  %1645 = vst [vmem:[#allocation3 + $0xf0] sm:$0xff] 0.0
  %1646 = vst [vmem:[#allocation3 + $0xf8] sm:$0xff] 0.0
  %1647 = vst [vmem:[#allocation3 + $0x100] sm:$0xff] 0.0
  %1648 = vst [vmem:[#allocation3 + $0x108] sm:$0xff] 0.0
  %1649 = vst [vmem:[#allocation3 + $0x110] sm:$0xff] 0.0
  %1650 = vst [vmem:[#allocation3 + $0x118] sm:$0xff] 0.0
  %1651 = vst [vmem:[#allocation3 + $0x120] sm:$0xff] 0.0
  %1652 = vst [vmem:[#allocation3 + $0x128] sm:$0xff] 0.0
  %1653 = vst [vmem:[#allocation3 + $0x130] sm:$0xff] 0.0
  %1654 = vst [vmem:[#allocation3 + $0x138] sm:$0xff] 0.0
  %1655 = vst [vmem:[#allocation3 + $0x140] sm:$0xff] 0.0
  %1656 = vst [vmem:[#allocation3 + $0x148] sm:$0xff] 0.0
  %1657 = vst [vmem:[#allocation3 + $0x150] sm:$0xff] 0.0
  %1658 = vst [vmem:[#allocation3 + $0x158] sm:$0xff] 0.0
  %1659 = vst [vmem:[#allocation3 + $0x160] sm:$0xff] 0.0
  %1660 = vst [vmem:[#allocation3 + $0x168] sm:$0xff] 0.0
  %1661 = vst [vmem:[#allocation3 + $0x170] sm:$0xff] 0.0
  %1662 = vst [vmem:[#allocation3 + $0x178] sm:$0xff] 0.0
  %1663 = vst [vmem:[#allocation3 + $0x180] sm:$0xff] 0.0
  %1664 = vst [vmem:[#allocation3 + $0x188] sm:$0xff] 0.0
  %1665 = vst [vmem:[#allocation3 + $0x190] sm:$0xff] 0.0
  %1666 = vst [vmem:[#allocation3 + $0x198] sm:$0xff] 0.0
  %1667 = vst [vmem:[#allocation3 + $0x1a0] sm:$0xff] 0.0
  %1668 = vst [vmem:[#allocation3 + $0x1a8] sm:$0xff] 0.0
  %1669 = vst [vmem:[#allocation3 + $0x1b0] sm:$0xff] 0.0
  %1670 = vst [vmem:[#allocation3 + $0x1b8] sm:$0xff] 0.0
  %1671 = vst [vmem:[#allocation3 + $0x1c0] sm:$0xff] 0.0
  %1672 = vst [vmem:[#allocation6] sm:$0xff] 0.0
  %1673 = vst [vmem:[#allocation6 + $0x8] sm:$0xff] 0.0
  %1674 = vst [vmem:[#allocation6 + $0x10] sm:$0xff] 0.0
  %1675 = vst [vmem:[#allocation6 + $0x18] sm:$0xff] 0.0
  %1676 = vst [vmem:[#allocation6 + $0x20] sm:$0xff] 0.0
  %1677 = vst [vmem:[#allocation6 + $0x28] sm:$0xff] 0.0
  %1678 = vst [vmem:[#allocation6 + $0x30] sm:$0xff] 0.0
  %1679 = vst [vmem:[#allocation6 + $0x38] sm:$0xff] 0.0
  %1680 = vst [vmem:[#allocation6 + $0x40] sm:$0xff] 0.0
  %1681 = vst [vmem:[#allocation6 + $0x48] sm:$0xff] 0.0
  %1682 = vst [vmem:[#allocation6 + $0x50] sm:$0xff] 0.0
  %v1683 = vld [vmem:[#allocation2] ss:$2 sm:$0xff]
  %s1684 = scalar_lea.vmem [#allocation2], 16
  %v1685 = vld [vmem:[%s1684] ss:$2 sm:$0x3f]
  %s1686 = scalar_lea.vmem [#allocation2], 1
  %v1687 = vld [vmem:[%s1686] ss:$2 sm:$0xff]
  %s1688 = scalar_lea.vmem [#allocation2], 17
  %v1689 = vld [vmem:[%s1688] ss:$2 sm:$0x3f]
  %v1690 = vmax.f32 %v1683, %v1687
  %v1691 = vmax.f32 %v1685, %v1689
  %s1692 = scalar_lea.vmem [#allocation2], 32
  %v1693 = vld [vmem:[%s1692] ss:$2 sm:$0xff]
  %s1694 = scalar_lea.vmem [#allocation2], 48
  %v1695 = vld [vmem:[%s1694] ss:$2 sm:$0x3f]
  %s1696 = scalar_lea.vmem [#allocation2], 33
  %v1697 = vld [vmem:[%s1696] ss:$2 sm:$0xff]
  %s1698 = scalar_lea.vmem [#allocation2], 49
  %v1699 = vld [vmem:[%s1698] ss:$2 sm:$0x3f]
  %v1700 = vmax.f32 %v1693, %v1697
  %v1701 = vmax.f32 %v1695, %v1699
  %v1702 = vmax.f32 %v1690, %v1700
  %v1703 = vmax.f32 %v1691, %v1701
  %1704 = vst [vmem:[#allocation3] sm:$0xff] %v1702
  %1705 = vst [vmem:[#allocation3 + $0x8] sm:$0x3f] %v1703
  %s1706 = scalar_lea.vmem [#allocation2], 64
  %v1707 = vld [vmem:[%s1706] ss:$2 sm:$0xff]
  %s1708 = scalar_lea.vmem [#allocation2], 80
  %v1709 = vld [vmem:[%s1708] ss:$2 sm:$0x3f]
  %s1710 = scalar_lea.vmem [#allocation2], 65
  %v1711 = vld [vmem:[%s1710] ss:$2 sm:$0xff]
  %s1712 = scalar_lea.vmem [#allocation2], 81
  %v1713 = vld [vmem:[%s1712] ss:$2 sm:$0x3f]
  %v1714 = vmax.f32 %v1707, %v1711
  %v1715 = vmax.f32 %v1709, %v1713
  %s1716 = scalar_lea.vmem [#allocation2], 96
  %v1717 = vld [vmem:[%s1716] ss:$2 sm:$0xff]
  %s1718 = scalar_lea.vmem [#allocation2], 112
  %v1719 = vld [vmem:[%s1718] ss:$2 sm:$0x3f]
  %s1720 = scalar_lea.vmem [#allocation2], 97
  %v1721 = vld [vmem:[%s1720] ss:$2 sm:$0xff]
  %s1722 = scalar_lea.vmem [#allocation2], 113
  %v1723 = vld [vmem:[%s1722] ss:$2 sm:$0x3f]
  %v1724 = vmax.f32 %v1717, %v1721
  %v1725 = vmax.f32 %v1719, %v1723
  %v1726 = vmax.f32 %v1714, %v1724
  %v1727 = vmax.f32 %v1715, %v1725
  %1728 = vst [vmem:[#allocation3 + $0x10] sm:$0xff] %v1726
  %1729 = vst [vmem:[#allocation3 + $0x18] sm:$0x3f] %v1727
  %s1730 = scalar_lea.vmem [#allocation2], 128
  %v1731 = vld [vmem:[%s1730] ss:$2 sm:$0xff]
  %s1732 = scalar_lea.vmem [#allocation2], 144
  %v1733 = vld [vmem:[%s1732] ss:$2 sm:$0x3f]
  %s1734 = scalar_lea.vmem [#allocation2], 129
  %v1735 = vld [vmem:[%s1734] ss:$2 sm:$0xff]
  %s1736 = scalar_lea.vmem [#allocation2], 145
  %v1737 = vld [vmem:[%s1736] ss:$2 sm:$0x3f]
  %v1738 = vmax.f32 %v1731, %v1735
  %v1739 = vmax.f32 %v1733, %v1737
  %s1740 = scalar_lea.vmem [#allocation2], 160
  %v1741 = vld [vmem:[%s1740] ss:$2 sm:$0xff]
  %s1742 = scalar_lea.vmem [#allocation2], 176
  %v1743 = vld [vmem:[%s1742] ss:$2 sm:$0x3f]
  %s1744 = scalar_lea.vmem [#allocation2], 161
  %v1745 = vld [vmem:[%s1744] ss:$2 sm:$0xff]
  %s1746 = scalar_lea.vmem [#allocation2], 177
  %v1747 = vld [vmem:[%s1746] ss:$2 sm:$0x3f]
  %v1748 = vmax.f32 %v1741, %v1745
  %v1749 = vmax.f32 %v1743, %v1747
  %v1750 = vmax.f32 %v1738, %v1748
  %v1751 = vmax.f32 %v1739, %v1749
  %1752 = vst [vmem:[#allocation3 + $0x20] sm:$0xff] %v1750
  %1753 = vst [vmem:[#allocation3 + $0x28] sm:$0x3f] %v1751
  %s1754 = scalar_lea.vmem [#allocation2], 192
  %v1755 = vld [vmem:[%s1754] ss:$2 sm:$0xff]
  %s1756 = scalar_lea.vmem [#allocation2], 208
  %v1757 = vld [vmem:[%s1756] ss:$2 sm:$0x3f]
  %s1758 = scalar_lea.vmem [#allocation2], 193
  %v1759 = vld [vmem:[%s1758] ss:$2 sm:$0xff]
  %s1760 = scalar_lea.vmem [#allocation2], 209
  %v1761 = vld [vmem:[%s1760] ss:$2 sm:$0x3f]
  %v1762 = vmax.f32 %v1755, %v1759
  %v1763 = vmax.f32 %v1757, %v1761
  %s1764 = scalar_lea.vmem [#allocation2], 224
  %v1765 = vld [vmem:[%s1764] ss:$2 sm:$0xff]
  %s1766 = scalar_lea.vmem [#allocation2], 240
  %v1767 = vld [vmem:[%s1766] ss:$2 sm:$0x3f]
  %s1768 = scalar_lea.vmem [#allocation2], 225
  %v1769 = vld [vmem:[%s1768] ss:$2 sm:$0xff]
  %s1770 = scalar_lea.vmem [#allocation2], 241
  %v1771 = vld [vmem:[%s1770] ss:$2 sm:$0x3f]
  %v1772 = vmax.f32 %v1765, %v1769
  %v1773 = vmax.f32 %v1767, %v1771
  %v1774 = vmax.f32 %v1762, %v1772
  %v1775 = vmax.f32 %v1763, %v1773
  %1776 = vst [vmem:[#allocation3 + $0x30] sm:$0xff] %v1774
  %1777 = vst [vmem:[#allocation3 + $0x38] sm:$0x3f] %v1775
  %s1778 = scalar_lea.vmem [#allocation2], 256
  %v1779 = vld [vmem:[%s1778] ss:$2 sm:$0xff]
  %s1780 = scalar_lea.vmem [#allocation2], 272
  %v1781 = vld [vmem:[%s1780] ss:$2 sm:$0x3f]
  %s1782 = scalar_lea.vmem [#allocation2], 257
  %v1783 = vld [vmem:[%s1782] ss:$2 sm:$0xff]
  %s1784 = scalar_lea.vmem [#allocation2], 273
  %v1785 = vld [vmem:[%s1784] ss:$2 sm:$0x3f]
  %v1786 = vmax.f32 %v1779, %v1783
  %v1787 = vmax.f32 %v1781, %v1785
  %s1788 = scalar_lea.vmem [#allocation2], 288
  %v1789 = vld [vmem:[%s1788] ss:$2 sm:$0xff]
  %s1790 = scalar_lea.vmem [#allocation2], 304
  %v1791 = vld [vmem:[%s1790] ss:$2 sm:$0x3f]
  %s1792 = scalar_lea.vmem [#allocation2], 289
  %v1793 = vld [vmem:[%s1792] ss:$2 sm:$0xff]
  %s1794 = scalar_lea.vmem [#allocation2], 305
  %v1795 = vld [vmem:[%s1794] ss:$2 sm:$0x3f]
  %v1796 = vmax.f32 %v1789, %v1793
  %v1797 = vmax.f32 %v1791, %v1795
  %v1798 = vmax.f32 %v1786, %v1796
  %v1799 = vmax.f32 %v1787, %v1797
  %1800 = vst [vmem:[#allocation3 + $0x40] sm:$0xff] %v1798
  %1801 = vst [vmem:[#allocation3 + $0x48] sm:$0x3f] %v1799
  %s1802 = scalar_lea.vmem [#allocation2], 320
  %v1803 = vld [vmem:[%s1802] ss:$2 sm:$0xff]
  %s1804 = scalar_lea.vmem [#allocation2], 336
  %v1805 = vld [vmem:[%s1804] ss:$2 sm:$0x3f]
  %s1806 = scalar_lea.vmem [#allocation2], 321
  %v1807 = vld [vmem:[%s1806] ss:$2 sm:$0xff]
  %s1808 = scalar_lea.vmem [#allocation2], 337
  %v1809 = vld [vmem:[%s1808] ss:$2 sm:$0x3f]
  %v1810 = vmax.f32 %v1803, %v1807
  %v1811 = vmax.f32 %v1805, %v1809
  %s1812 = scalar_lea.vmem [#allocation2], 352
  %v1813 = vld [vmem:[%s1812] ss:$2 sm:$0xff]
  %s1814 = scalar_lea.vmem [#allocation2], 368
  %v1815 = vld [vmem:[%s1814] ss:$2 sm:$0x3f]
  %s1816 = scalar_lea.vmem [#allocation2], 353
  %v1817 = vld [vmem:[%s1816] ss:$2 sm:$0xff]
  %s1818 = scalar_lea.vmem [#allocation2], 369
  %v1819 = vld [vmem:[%s1818] ss:$2 sm:$0x3f]
  %v1820 = vmax.f32 %v1813, %v1817
  %v1821 = vmax.f32 %v1815, %v1819
  %v1822 = vmax.f32 %v1810, %v1820
  %v1823 = vmax.f32 %v1811, %v1821
  %1824 = vst [vmem:[#allocation3 + $0x50] sm:$0xff] %v1822
  %1825 = vst [vmem:[#allocation3 + $0x58] sm:$0x3f] %v1823
  %s1826 = scalar_lea.vmem [#allocation2], 384
  %v1827 = vld [vmem:[%s1826] ss:$2 sm:$0xff]
  %s1828 = scalar_lea.vmem [#allocation2], 400
  %v1829 = vld [vmem:[%s1828] ss:$2 sm:$0x3f]
  %s1830 = scalar_lea.vmem [#allocation2], 385
  %v1831 = vld [vmem:[%s1830] ss:$2 sm:$0xff]
  %s1832 = scalar_lea.vmem [#allocation2], 401
  %v1833 = vld [vmem:[%s1832] ss:$2 sm:$0x3f]
  %v1834 = vmax.f32 %v1827, %v1831
  %v1835 = vmax.f32 %v1829, %v1833
  %s1836 = scalar_lea.vmem [#allocation2], 416
  %v1837 = vld [vmem:[%s1836] ss:$2 sm:$0xff]
  %s1838 = scalar_lea.vmem [#allocation2], 432
  %v1839 = vld [vmem:[%s1838] ss:$2 sm:$0x3f]
  %s1840 = scalar_lea.vmem [#allocation2], 417
  %v1841 = vld [vmem:[%s1840] ss:$2 sm:$0xff]
  %s1842 = scalar_lea.vmem [#allocation2], 433
  %v1843 = vld [vmem:[%s1842] ss:$2 sm:$0x3f]
  %v1844 = vmax.f32 %v1837, %v1841
  %v1845 = vmax.f32 %v1839, %v1843
  %v1846 = vmax.f32 %v1834, %v1844
  %v1847 = vmax.f32 %v1835, %v1845
  %1848 = vst [vmem:[#allocation3 + $0x60] sm:$0xff] %v1846
  %1849 = vst [vmem:[#allocation3 + $0x68] sm:$0x3f] %v1847
  %s1850 = scalar_lea.vmem [#allocation2], 448
  %v1851 = vld [vmem:[%s1850] ss:$2 sm:$0xff]
  %s1852 = scalar_lea.vmem [#allocation2], 464
  %v1853 = vld [vmem:[%s1852] ss:$2 sm:$0x3f]
  %s1854 = scalar_lea.vmem [#allocation2], 449
  %v1855 = vld [vmem:[%s1854] ss:$2 sm:$0xff]
  %s1856 = scalar_lea.vmem [#allocation2], 465
  %v1857 = vld [vmem:[%s1856] ss:$2 sm:$0x3f]
  %v1858 = vmax.f32 %v1851, %v1855
  %v1859 = vmax.f32 %v1853, %v1857
  %s1860 = scalar_lea.vmem [#allocation2], 480
  %v1861 = vld [vmem:[%s1860] ss:$2 sm:$0xff]
  %s1862 = scalar_lea.vmem [#allocation2], 496
  %v1863 = vld [vmem:[%s1862] ss:$2 sm:$0x3f]
  %s1864 = scalar_lea.vmem [#allocation2], 481
  %v1865 = vld [vmem:[%s1864] ss:$2 sm:$0xff]
  %s1866 = scalar_lea.vmem [#allocation2], 497
  %v1867 = vld [vmem:[%s1866] ss:$2 sm:$0x3f]
  %v1868 = vmax.f32 %v1861, %v1865
  %v1869 = vmax.f32 %v1863, %v1867
  %v1870 = vmax.f32 %v1858, %v1868
  %v1871 = vmax.f32 %v1859, %v1869
  %1872 = vst [vmem:[#allocation3 + $0x70] sm:$0xff] %v1870
  %1873 = vst [vmem:[#allocation3 + $0x78] sm:$0x3f] %v1871
  %s1874 = scalar_lea.vmem [#allocation2], 512
  %v1875 = vld [vmem:[%s1874] ss:$2 sm:$0xff]
  %s1876 = scalar_lea.vmem [#allocation2], 528
  %v1877 = vld [vmem:[%s1876] ss:$2 sm:$0x3f]
  %s1878 = scalar_lea.vmem [#allocation2], 513
  %v1879 = vld [vmem:[%s1878] ss:$2 sm:$0xff]
  %s1880 = scalar_lea.vmem [#allocation2], 529
  %v1881 = vld [vmem:[%s1880] ss:$2 sm:$0x3f]
  %v1882 = vmax.f32 %v1875, %v1879
  %v1883 = vmax.f32 %v1877, %v1881
  %s1884 = scalar_lea.vmem [#allocation2], 544
  %v1885 = vld [vmem:[%s1884] ss:$2 sm:$0xff]
  %s1886 = scalar_lea.vmem [#allocation2], 560
  %v1887 = vld [vmem:[%s1886] ss:$2 sm:$0x3f]
  %s1888 = scalar_lea.vmem [#allocation2], 545
  %v1889 = vld [vmem:[%s1888] ss:$2 sm:$0xff]
  %s1890 = scalar_lea.vmem [#allocation2], 561
  %v1891 = vld [vmem:[%s1890] ss:$2 sm:$0x3f]
  %v1892 = vmax.f32 %v1885, %v1889
  %v1893 = vmax.f32 %v1887, %v1891
  %v1894 = vmax.f32 %v1882, %v1892
  %v1895 = vmax.f32 %v1883, %v1893
  %1896 = vst [vmem:[#allocation3 + $0x80] sm:$0xff] %v1894
  %1897 = vst [vmem:[#allocation3 + $0x88] sm:$0x3f] %v1895
  %s1898 = scalar_lea.vmem [#allocation2], 576
  %v1899 = vld [vmem:[%s1898] ss:$2 sm:$0xff]
  %s1900 = scalar_lea.vmem [#allocation2], 592
  %v1901 = vld [vmem:[%s1900] ss:$2 sm:$0x3f]
  %s1902 = scalar_lea.vmem [#allocation2], 577
  %v1903 = vld [vmem:[%s1902] ss:$2 sm:$0xff]
  %s1904 = scalar_lea.vmem [#allocation2], 593
  %v1905 = vld [vmem:[%s1904] ss:$2 sm:$0x3f]
  %v1906 = vmax.f32 %v1899, %v1903
  %v1907 = vmax.f32 %v1901, %v1905
  %s1908 = scalar_lea.vmem [#allocation2], 608
  %v1909 = vld [vmem:[%s1908] ss:$2 sm:$0xff]
  %s1910 = scalar_lea.vmem [#allocation2], 624
  %v1911 = vld [vmem:[%s1910] ss:$2 sm:$0x3f]
  %s1912 = scalar_lea.vmem [#allocation2], 609
  %v1913 = vld [vmem:[%s1912] ss:$2 sm:$0xff]
  %s1914 = scalar_lea.vmem [#allocation2], 625
  %v1915 = vld [vmem:[%s1914] ss:$2 sm:$0x3f]
  %v1916 = vmax.f32 %v1909, %v1913
  %v1917 = vmax.f32 %v1911, %v1915
  %v1918 = vmax.f32 %v1906, %v1916
  %v1919 = vmax.f32 %v1907, %v1917
  %1920 = vst [vmem:[#allocation3 + $0x90] sm:$0xff] %v1918
  %1921 = vst [vmem:[#allocation3 + $0x98] sm:$0x3f] %v1919
  %s1922 = scalar_lea.vmem [#allocation2], 640
  %v1923 = vld [vmem:[%s1922] ss:$2 sm:$0xff]
  %s1924 = scalar_lea.vmem [#allocation2], 656
  %v1925 = vld [vmem:[%s1924] ss:$2 sm:$0x3f]
  %s1926 = scalar_lea.vmem [#allocation2], 641
  %v1927 = vld [vmem:[%s1926] ss:$2 sm:$0xff]
  %s1928 = scalar_lea.vmem [#allocation2], 657
  %v1929 = vld [vmem:[%s1928] ss:$2 sm:$0x3f]
  %v1930 = vmax.f32 %v1923, %v1927
  %v1931 = vmax.f32 %v1925, %v1929
  %s1932 = scalar_lea.vmem [#allocation2], 672
  %v1933 = vld [vmem:[%s1932] ss:$2 sm:$0xff]
  %s1934 = scalar_lea.vmem [#allocation2], 688
  %v1935 = vld [vmem:[%s1934] ss:$2 sm:$0x3f]
  %s1936 = scalar_lea.vmem [#allocation2], 673
  %v1937 = vld [vmem:[%s1936] ss:$2 sm:$0xff]
  %s1938 = scalar_lea.vmem [#allocation2], 689
  %v1939 = vld [vmem:[%s1938] ss:$2 sm:$0x3f]
  %v1940 = vmax.f32 %v1933, %v1937
  %v1941 = vmax.f32 %v1935, %v1939
  %v1942 = vmax.f32 %v1930, %v1940
  %v1943 = vmax.f32 %v1931, %v1941
  %1944 = vst [vmem:[#allocation3 + $0xa0] sm:$0xff] %v1942
  %1945 = vst [vmem:[#allocation3 + $0xa8] sm:$0x3f] %v1943
  %s1946 = scalar_lea.vmem [#allocation2], 704
  %v1947 = vld [vmem:[%s1946] ss:$2 sm:$0xff]
  %s1948 = scalar_lea.vmem [#allocation2], 720
  %v1949 = vld [vmem:[%s1948] ss:$2 sm:$0x3f]
  %s1950 = scalar_lea.vmem [#allocation2], 705
  %v1951 = vld [vmem:[%s1950] ss:$2 sm:$0xff]
  %s1952 = scalar_lea.vmem [#allocation2], 721
  %v1953 = vld [vmem:[%s1952] ss:$2 sm:$0x3f]
  %v1954 = vmax.f32 %v1947, %v1951
  %v1955 = vmax.f32 %v1949, %v1953
  %s1956 = scalar_lea.vmem [#allocation2], 736
  %v1957 = vld [vmem:[%s1956] ss:$2 sm:$0xff]
  %s1958 = scalar_lea.vmem [#allocation2], 752
  %v1959 = vld [vmem:[%s1958] ss:$2 sm:$0x3f]
  %s1960 = scalar_lea.vmem [#allocation2], 737
  %v1961 = vld [vmem:[%s1960] ss:$2 sm:$0xff]
  %s1962 = scalar_lea.vmem [#allocation2], 753
  %v1963 = vld [vmem:[%s1962] ss:$2 sm:$0x3f]
  %v1964 = vmax.f32 %v1957, %v1961
  %v1965 = vmax.f32 %v1959, %v1963
  %v1966 = vmax.f32 %v1954, %v1964
  %v1967 = vmax.f32 %v1955, %v1965
  %1968 = vst [vmem:[#allocation3 + $0xb0] sm:$0xff] %v1966
  %1969 = vst [vmem:[#allocation3 + $0xb8] sm:$0x3f] %v1967
  %s1970 = scalar_lea.vmem [#allocation2], 768
  %v1971 = vld [vmem:[%s1970] ss:$2 sm:$0xff]
  %s1972 = scalar_lea.vmem [#allocation2], 784
  %v1973 = vld [vmem:[%s1972] ss:$2 sm:$0x3f]
  %s1974 = scalar_lea.vmem [#allocation2], 769
  %v1975 = vld [vmem:[%s1974] ss:$2 sm:$0xff]
  %s1976 = scalar_lea.vmem [#allocation2], 785
  %v1977 = vld [vmem:[%s1976] ss:$2 sm:$0x3f]
  %v1978 = vmax.f32 %v1971, %v1975
  %v1979 = vmax.f32 %v1973, %v1977
  %s1980 = scalar_lea.vmem [#allocation2], 800
  %v1981 = vld [vmem:[%s1980] ss:$2 sm:$0xff]
  %s1982 = scalar_lea.vmem [#allocation2], 816
  %v1983 = vld [vmem:[%s1982] ss:$2 sm:$0x3f]
  %s1984 = scalar_lea.vmem [#allocation2], 801
  %v1985 = vld [vmem:[%s1984] ss:$2 sm:$0xff]
  %s1986 = scalar_lea.vmem [#allocation2], 817
  %v1987 = vld [vmem:[%s1986] ss:$2 sm:$0x3f]
  %v1988 = vmax.f32 %v1981, %v1985
  %v1989 = vmax.f32 %v1983, %v1987
  %v1990 = vmax.f32 %v1978, %v1988
  %v1991 = vmax.f32 %v1979, %v1989
  %1992 = vst [vmem:[#allocation3 + $0xc0] sm:$0xff] %v1990
  %1993 = vst [vmem:[#allocation3 + $0xc8] sm:$0x3f] %v1991
  %s1994 = scalar_lea.vmem [#allocation2], 832
  %v1995 = vld [vmem:[%s1994] ss:$2 sm:$0xff]
  %s1996 = scalar_lea.vmem [#allocation2], 848
  %v1997 = vld [vmem:[%s1996] ss:$2 sm:$0x3f]
  %s1998 = scalar_lea.vmem [#allocation2], 833
  %v1999 = vld [vmem:[%s1998] ss:$2 sm:$0xff]
  %s2000 = scalar_lea.vmem [#allocation2], 849
  %v2001 = vld [vmem:[%s2000] ss:$2 sm:$0x3f]
  %v2002 = vmax.f32 %v1995, %v1999
  %v2003 = vmax.f32 %v1997, %v2001
  %s2004 = scalar_lea.vmem [#allocation2], 864
  %v2005 = vld [vmem:[%s2004] ss:$2 sm:$0xff]
  %s2006 = scalar_lea.vmem [#allocation2], 880
  %v2007 = vld [vmem:[%s2006] ss:$2 sm:$0x3f]
  %s2008 = scalar_lea.vmem [#allocation2], 865
  %v2009 = vld [vmem:[%s2008] ss:$2 sm:$0xff]
  %s2010 = scalar_lea.vmem [#allocation2], 881
  %v2011 = vld [vmem:[%s2010] ss:$2 sm:$0x3f]
  %v2012 = vmax.f32 %v2005, %v2009
  %v2013 = vmax.f32 %v2007, %v2011
  %v2014 = vmax.f32 %v2002, %v2012
  %v2015 = vmax.f32 %v2003, %v2013
  %2016 = vst [vmem:[#allocation3 + $0xd0] sm:$0xff] %v2014
  %2017 = vst [vmem:[#allocation3 + $0xd8] sm:$0x3f] %v2015
  %s2018 = scalar_lea.vmem [#allocation2], 1024
  %v2019 = vld [vmem:[%s2018] ss:$2 sm:$0xff]
  %s2020 = scalar_lea.vmem [#allocation2], 1040
  %v2021 = vld [vmem:[%s2020] ss:$2 sm:$0x3f]
  %s2022 = scalar_lea.vmem [#allocation2], 1025
  %v2023 = vld [vmem:[%s2022] ss:$2 sm:$0xff]
  %s2024 = scalar_lea.vmem [#allocation2], 1041
  %v2025 = vld [vmem:[%s2024] ss:$2 sm:$0x3f]
  %v2026 = vmax.f32 %v2019, %v2023
  %v2027 = vmax.f32 %v2021, %v2025
  %s2028 = scalar_lea.vmem [#allocation2], 1056
  %v2029 = vld [vmem:[%s2028] ss:$2 sm:$0xff]
  %s2030 = scalar_lea.vmem [#allocation2], 1072
  %v2031 = vld [vmem:[%s2030] ss:$2 sm:$0x3f]
  %s2032 = scalar_lea.vmem [#allocation2], 1057
  %v2033 = vld [vmem:[%s2032] ss:$2 sm:$0xff]
  %s2034 = scalar_lea.vmem [#allocation2], 1073
  %v2035 = vld [vmem:[%s2034] ss:$2 sm:$0x3f]
  %v2036 = vmax.f32 %v2029, %v2033
  %v2037 = vmax.f32 %v2031, %v2035
  %v2038 = vmax.f32 %v2026, %v2036
  %v2039 = vmax.f32 %v2027, %v2037
  %2040 = vst [vmem:[#allocation3 + $0xe0] sm:$0xff] %v2038
  %2041 = vst [vmem:[#allocation3 + $0xe8] sm:$0x3f] %v2039
  %s2042 = scalar_lea.vmem [#allocation2], 1088
  %v2043 = vld [vmem:[%s2042] ss:$2 sm:$0xff]
  %s2044 = scalar_lea.vmem [#allocation2], 1104
  %v2045 = vld [vmem:[%s2044] ss:$2 sm:$0x3f]
  %s2046 = scalar_lea.vmem [#allocation2], 1089
  %v2047 = vld [vmem:[%s2046] ss:$2 sm:$0xff]
  %s2048 = scalar_lea.vmem [#allocation2], 1105
  %v2049 = vld [vmem:[%s2048] ss:$2 sm:$0x3f]
  %v2050 = vmax.f32 %v2043, %v2047
  %v2051 = vmax.f32 %v2045, %v2049
  %s2052 = scalar_lea.vmem [#allocation2], 1120
  %v2053 = vld [vmem:[%s2052] ss:$2 sm:$0xff]
  %s2054 = scalar_lea.vmem [#allocation2], 1136
  %v2055 = vld [vmem:[%s2054] ss:$2 sm:$0x3f]
  %s2056 = scalar_lea.vmem [#allocation2], 1121
  %v2057 = vld [vmem:[%s2056] ss:$2 sm:$0xff]
  %s2058 = scalar_lea.vmem [#allocation2], 1137
  %v2059 = vld [vmem:[%s2058] ss:$2 sm:$0x3f]
  %v2060 = vmax.f32 %v2053, %v2057
  %v2061 = vmax.f32 %v2055, %v2059
  %v2062 = vmax.f32 %v2050, %v2060
  %v2063 = vmax.f32 %v2051, %v2061
  %2064 = vst [vmem:[#allocation3 + $0xf0] sm:$0xff] %v2062
  %2065 = vst [vmem:[#allocation3 + $0xf8] sm:$0x3f] %v2063
  %s2066 = scalar_lea.vmem [#allocation2], 1152
  %v2067 = vld [vmem:[%s2066] ss:$2 sm:$0xff]
  %s2068 = scalar_lea.vmem [#allocation2], 1168
  %v2069 = vld [vmem:[%s2068] ss:$2 sm:$0x3f]
  %s2070 = scalar_lea.vmem [#allocation2], 1153
  %v2071 = vld [vmem:[%s2070] ss:$2 sm:$0xff]
  %s2072 = scalar_lea.vmem [#allocation2], 1169
  %v2073 = vld [vmem:[%s2072] ss:$2 sm:$0x3f]
  %v2074 = vmax.f32 %v2067, %v2071
  %v2075 = vmax.f32 %v2069, %v2073
  %s2076 = scalar_lea.vmem [#allocation2], 1184
  %v2077 = vld [vmem:[%s2076] ss:$2 sm:$0xff]
  %s2078 = scalar_lea.vmem [#allocation2], 1200
  %v2079 = vld [vmem:[%s2078] ss:$2 sm:$0x3f]
  %s2080 = scalar_lea.vmem [#allocation2], 1185
  %v2081 = vld [vmem:[%s2080] ss:$2 sm:$0xff]
  %s2082 = scalar_lea.vmem [#allocation2], 1201
  %v2083 = vld [vmem:[%s2082] ss:$2 sm:$0x3f]
  %v2084 = vmax.f32 %v2077, %v2081
  %v2085 = vmax.f32 %v2079, %v2083
  %v2086 = vmax.f32 %v2074, %v2084
  %v2087 = vmax.f32 %v2075, %v2085
  %2088 = vst [vmem:[#allocation3 + $0x100] sm:$0xff] %v2086
  %2089 = vst [vmem:[#allocation3 + $0x108] sm:$0x3f] %v2087
  %s2090 = scalar_lea.vmem [#allocation2], 1216
  %v2091 = vld [vmem:[%s2090] ss:$2 sm:$0xff]
  %s2092 = scalar_lea.vmem [#allocation2], 1232
  %v2093 = vld [vmem:[%s2092] ss:$2 sm:$0x3f]
  %s2094 = scalar_lea.vmem [#allocation2], 1217
  %v2095 = vld [vmem:[%s2094] ss:$2 sm:$0xff]
  %s2096 = scalar_lea.vmem [#allocation2], 1233
  %v2097 = vld [vmem:[%s2096] ss:$2 sm:$0x3f]
  %v2098 = vmax.f32 %v2091, %v2095
  %v2099 = vmax.f32 %v2093, %v2097
  %s2100 = scalar_lea.vmem [#allocation2], 1248
  %v2101 = vld [vmem:[%s2100] ss:$2 sm:$0xff]
  %s2102 = scalar_lea.vmem [#allocation2], 1264
  %v2103 = vld [vmem:[%s2102] ss:$2 sm:$0x3f]
  %s2104 = scalar_lea.vmem [#allocation2], 1249
  %v2105 = vld [vmem:[%s2104] ss:$2 sm:$0xff]
  %s2106 = scalar_lea.vmem [#allocation2], 1265
  %v2107 = vld [vmem:[%s2106] ss:$2 sm:$0x3f]
  %v2108 = vmax.f32 %v2101, %v2105
  %v2109 = vmax.f32 %v2103, %v2107
  %v2110 = vmax.f32 %v2098, %v2108
  %v2111 = vmax.f32 %v2099, %v2109
  %2112 = vst [vmem:[#allocation3 + $0x110] sm:$0xff] %v2110
  %2113 = vst [vmem:[#allocation3 + $0x118] sm:$0x3f] %v2111
  %s2114 = scalar_lea.vmem [#allocation2], 1280
  %v2115 = vld [vmem:[%s2114] ss:$2 sm:$0xff]
  %s2116 = scalar_lea.vmem [#allocation2], 1296
  %v2117 = vld [vmem:[%s2116] ss:$2 sm:$0x3f]
  %s2118 = scalar_lea.vmem [#allocation2], 1281
  %v2119 = vld [vmem:[%s2118] ss:$2 sm:$0xff]
  %s2120 = scalar_lea.vmem [#allocation2], 1297
  %v2121 = vld [vmem:[%s2120] ss:$2 sm:$0x3f]
  %v2122 = vmax.f32 %v2115, %v2119
  %v2123 = vmax.f32 %v2117, %v2121
  %s2124 = scalar_lea.vmem [#allocation2], 1312
  %v2125 = vld [vmem:[%s2124] ss:$2 sm:$0xff]
  %s2126 = scalar_lea.vmem [#allocation2], 1328
  %v2127 = vld [vmem:[%s2126] ss:$2 sm:$0x3f]
  %s2128 = scalar_lea.vmem [#allocation2], 1313
  %v2129 = vld [vmem:[%s2128] ss:$2 sm:$0xff]
  %s2130 = scalar_lea.vmem [#allocation2], 1329
  %v2131 = vld [vmem:[%s2130] ss:$2 sm:$0x3f]
  %v2132 = vmax.f32 %v2125, %v2129
  %v2133 = vmax.f32 %v2127, %v2131
  %v2134 = vmax.f32 %v2122, %v2132
  %v2135 = vmax.f32 %v2123, %v2133
  %2136 = vst [vmem:[#allocation3 + $0x120] sm:$0xff] %v2134
  %2137 = vst [vmem:[#allocation3 + $0x128] sm:$0x3f] %v2135
  %s2138 = scalar_lea.vmem [#allocation2], 1344
  %v2139 = vld [vmem:[%s2138] ss:$2 sm:$0xff]
  %s2140 = scalar_lea.vmem [#allocation2], 1360
  %v2141 = vld [vmem:[%s2140] ss:$2 sm:$0x3f]
  %s2142 = scalar_lea.vmem [#allocation2], 1345
  %v2143 = vld [vmem:[%s2142] ss:$2 sm:$0xff]
  %s2144 = scalar_lea.vmem [#allocation2], 1361
  %v2145 = vld [vmem:[%s2144] ss:$2 sm:$0x3f]
  %v2146 = vmax.f32 %v2139, %v2143
  %v2147 = vmax.f32 %v2141, %v2145
  %s2148 = scalar_lea.vmem [#allocation2], 1376
  %v2149 = vld [vmem:[%s2148] ss:$2 sm:$0xff]
  %s2150 = scalar_lea.vmem [#allocation2], 1392
  %v2151 = vld [vmem:[%s2150] ss:$2 sm:$0x3f]
  %s2152 = scalar_lea.vmem [#allocation2], 1377
  %v2153 = vld [vmem:[%s2152] ss:$2 sm:$0xff]
  %s2154 = scalar_lea.vmem [#allocation2], 1393
  %v2155 = vld [vmem:[%s2154] ss:$2 sm:$0x3f]
  %v2156 = vmax.f32 %v2149, %v2153
  %v2157 = vmax.f32 %v2151, %v2155
  %v2158 = vmax.f32 %v2146, %v2156
  %v2159 = vmax.f32 %v2147, %v2157
  %2160 = vst [vmem:[#allocation3 + $0x130] sm:$0xff] %v2158
  %2161 = vst [vmem:[#allocation3 + $0x138] sm:$0x3f] %v2159
  %s2162 = scalar_lea.vmem [#allocation2], 1408
  %v2163 = vld [vmem:[%s2162] ss:$2 sm:$0xff]
  %s2164 = scalar_lea.vmem [#allocation2], 1424
  %v2165 = vld [vmem:[%s2164] ss:$2 sm:$0x3f]
  %s2166 = scalar_lea.vmem [#allocation2], 1409
  %v2167 = vld [vmem:[%s2166] ss:$2 sm:$0xff]
  %s2168 = scalar_lea.vmem [#allocation2], 1425
  %v2169 = vld [vmem:[%s2168] ss:$2 sm:$0x3f]
  %v2170 = vmax.f32 %v2163, %v2167
  %v2171 = vmax.f32 %v2165, %v2169
  %s2172 = scalar_lea.vmem [#allocation2], 1440
  %v2173 = vld [vmem:[%s2172] ss:$2 sm:$0xff]
  %s2174 = scalar_lea.vmem [#allocation2], 1456
  %v2175 = vld [vmem:[%s2174] ss:$2 sm:$0x3f]
  %s2176 = scalar_lea.vmem [#allocation2], 1441
  %v2177 = vld [vmem:[%s2176] ss:$2 sm:$0xff]
  %s2178 = scalar_lea.vmem [#allocation2], 1457
  %v2179 = vld [vmem:[%s2178] ss:$2 sm:$0x3f]
  %v2180 = vmax.f32 %v2173, %v2177
  %v2181 = vmax.f32 %v2175, %v2179
  %v2182 = vmax.f32 %v2170, %v2180
  %v2183 = vmax.f32 %v2171, %v2181
  %2184 = vst [vmem:[#allocation3 + $0x140] sm:$0xff] %v2182
  %2185 = vst [vmem:[#allocation3 + $0x148] sm:$0x3f] %v2183
  %s2186 = scalar_lea.vmem [#allocation2], 1472
  %v2187 = vld [vmem:[%s2186] ss:$2 sm:$0xff]
  %s2188 = scalar_lea.vmem [#allocation2], 1488
  %v2189 = vld [vmem:[%s2188] ss:$2 sm:$0x3f]
  %s2190 = scalar_lea.vmem [#allocation2], 1473
  %v2191 = vld [vmem:[%s2190] ss:$2 sm:$0xff]
  %s2192 = scalar_lea.vmem [#allocation2], 1489
  %v2193 = vld [vmem:[%s2192] ss:$2 sm:$0x3f]
  %v2194 = vmax.f32 %v2187, %v2191
  %v2195 = vmax.f32 %v2189, %v2193
  %s2196 = scalar_lea.vmem [#allocation2], 1504
  %v2197 = vld [vmem:[%s2196] ss:$2 sm:$0xff]
  %s2198 = scalar_lea.vmem [#allocation2], 1520
  %v2199 = vld [vmem:[%s2198] ss:$2 sm:$0x3f]
  %s2200 = scalar_lea.vmem [#allocation2], 1505
  %v2201 = vld [vmem:[%s2200] ss:$2 sm:$0xff]
  %s2202 = scalar_lea.vmem [#allocation2], 1521
  %v2203 = vld [vmem:[%s2202] ss:$2 sm:$0x3f]
  %v2204 = vmax.f32 %v2197, %v2201
  %v2205 = vmax.f32 %v2199, %v2203
  %v2206 = vmax.f32 %v2194, %v2204
  %v2207 = vmax.f32 %v2195, %v2205
  %2208 = vst [vmem:[#allocation3 + $0x150] sm:$0xff] %v2206
  %2209 = vst [vmem:[#allocation3 + $0x158] sm:$0x3f] %v2207
  %s2210 = scalar_lea.vmem [#allocation2], 1536
  %v2211 = vld [vmem:[%s2210] ss:$2 sm:$0xff]
  %s2212 = scalar_lea.vmem [#allocation2], 1552
  %v2213 = vld [vmem:[%s2212] ss:$2 sm:$0x3f]
  %s2214 = scalar_lea.vmem [#allocation2], 1537
  %v2215 = vld [vmem:[%s2214] ss:$2 sm:$0xff]
  %s2216 = scalar_lea.vmem [#allocation2], 1553
  %v2217 = vld [vmem:[%s2216] ss:$2 sm:$0x3f]
  %v2218 = vmax.f32 %v2211, %v2215
  %v2219 = vmax.f32 %v2213, %v2217
  %s2220 = scalar_lea.vmem [#allocation2], 1568
  %v2221 = vld [vmem:[%s2220] ss:$2 sm:$0xff]
  %s2222 = scalar_lea.vmem [#allocation2], 1584
  %v2223 = vld [vmem:[%s2222] ss:$2 sm:$0x3f]
  %s2224 = scalar_lea.vmem [#allocation2], 1569
  %v2225 = vld [vmem:[%s2224] ss:$2 sm:$0xff]
  %s2226 = scalar_lea.vmem [#allocation2], 1585
  %v2227 = vld [vmem:[%s2226] ss:$2 sm:$0x3f]
  %v2228 = vmax.f32 %v2221, %v2225
  %v2229 = vmax.f32 %v2223, %v2227
  %v2230 = vmax.f32 %v2218, %v2228
  %v2231 = vmax.f32 %v2219, %v2229
  %2232 = vst [vmem:[#allocation3 + $0x160] sm:$0xff] %v2230
  %2233 = vst [vmem:[#allocation3 + $0x168] sm:$0x3f] %v2231
  %s2234 = scalar_lea.vmem [#allocation2], 1600
  %v2235 = vld [vmem:[%s2234] ss:$2 sm:$0xff]
  %s2236 = scalar_lea.vmem [#allocation2], 1616
  %v2237 = vld [vmem:[%s2236] ss:$2 sm:$0x3f]
  %s2238 = scalar_lea.vmem [#allocation2], 1601
  %v2239 = vld [vmem:[%s2238] ss:$2 sm:$0xff]
  %s2240 = scalar_lea.vmem [#allocation2], 1617
  %v2241 = vld [vmem:[%s2240] ss:$2 sm:$0x3f]
  %v2242 = vmax.f32 %v2235, %v2239
  %v2243 = vmax.f32 %v2237, %v2241
  %s2244 = scalar_lea.vmem [#allocation2], 1632
  %v2245 = vld [vmem:[%s2244] ss:$2 sm:$0xff]
  %s2246 = scalar_lea.vmem [#allocation2], 1648
  %v2247 = vld [vmem:[%s2246] ss:$2 sm:$0x3f]
  %s2248 = scalar_lea.vmem [#allocation2], 1633
  %v2249 = vld [vmem:[%s2248] ss:$2 sm:$0xff]
  %s2250 = scalar_lea.vmem [#allocation2], 1649
  %v2251 = vld [vmem:[%s2250] ss:$2 sm:$0x3f]
  %v2252 = vmax.f32 %v2245, %v2249
  %v2253 = vmax.f32 %v2247, %v2251
  %v2254 = vmax.f32 %v2242, %v2252
  %v2255 = vmax.f32 %v2243, %v2253
  %2256 = vst [vmem:[#allocation3 + $0x170] sm:$0xff] %v2254
  %2257 = vst [vmem:[#allocation3 + $0x178] sm:$0x3f] %v2255
  %s2258 = scalar_lea.vmem [#allocation2], 1664
  %v2259 = vld [vmem:[%s2258] ss:$2 sm:$0xff]
  %s2260 = scalar_lea.vmem [#allocation2], 1680
  %v2261 = vld [vmem:[%s2260] ss:$2 sm:$0x3f]
  %s2262 = scalar_lea.vmem [#allocation2], 1665
  %v2263 = vld [vmem:[%s2262] ss:$2 sm:$0xff]
  %s2264 = scalar_lea.vmem [#allocation2], 1681
  %v2265 = vld [vmem:[%s2264] ss:$2 sm:$0x3f]
  %v2266 = vmax.f32 %v2259, %v2263
  %v2267 = vmax.f32 %v2261, %v2265
  %s2268 = scalar_lea.vmem [#allocation2], 1696
  %v2269 = vld [vmem:[%s2268] ss:$2 sm:$0xff]
  %s2270 = scalar_lea.vmem [#allocation2], 1712
  %v2271 = vld [vmem:[%s2270] ss:$2 sm:$0x3f]
  %s2272 = scalar_lea.vmem [#allocation2], 1697
  %v2273 = vld [vmem:[%s2272] ss:$2 sm:$0xff]
  %s2274 = scalar_lea.vmem [#allocation2], 1713
  %v2275 = vld [vmem:[%s2274] ss:$2 sm:$0x3f]
  %v2276 = vmax.f32 %v2269, %v2273
  %v2277 = vmax.f32 %v2271, %v2275
  %v2278 = vmax.f32 %v2266, %v2276
  %v2279 = vmax.f32 %v2267, %v2277
  %2280 = vst [vmem:[#allocation3 + $0x180] sm:$0xff] %v2278
  %2281 = vst [vmem:[#allocation3 + $0x188] sm:$0x3f] %v2279
  %s2282 = scalar_lea.vmem [#allocation2], 1728
  %v2283 = vld [vmem:[%s2282] ss:$2 sm:$0xff]
  %s2284 = scalar_lea.vmem [#allocation2], 1744
  %v2285 = vld [vmem:[%s2284] ss:$2 sm:$0x3f]
  %s2286 = scalar_lea.vmem [#allocation2], 1729
  %v2287 = vld [vmem:[%s2286] ss:$2 sm:$0xff]
  %s2288 = scalar_lea.vmem [#allocation2], 1745
  %v2289 = vld [vmem:[%s2288] ss:$2 sm:$0x3f]
  %v2290 = vmax.f32 %v2283, %v2287
  %v2291 = vmax.f32 %v2285, %v2289
  %s2292 = scalar_lea.vmem [#allocation2], 1760
  %v2293 = vld [vmem:[%s2292] ss:$2 sm:$0xff]
  %s2294 = scalar_lea.vmem [#allocation2], 1776
  %v2295 = vld [vmem:[%s2294] ss:$2 sm:$0x3f]
  %s2296 = scalar_lea.vmem [#allocation2], 1761
  %v2297 = vld [vmem:[%s2296] ss:$2 sm:$0xff]
  %s2298 = scalar_lea.vmem [#allocation2], 1777
  %v2299 = vld [vmem:[%s2298] ss:$2 sm:$0x3f]
  %v2300 = vmax.f32 %v2293, %v2297
  %v2301 = vmax.f32 %v2295, %v2299
  %v2302 = vmax.f32 %v2290, %v2300
  %v2303 = vmax.f32 %v2291, %v2301
  %2304 = vst [vmem:[#allocation3 + $0x190] sm:$0xff] %v2302
  %2305 = vst [vmem:[#allocation3 + $0x198] sm:$0x3f] %v2303
  %s2306 = scalar_lea.vmem [#allocation2], 1792
  %v2307 = vld [vmem:[%s2306] ss:$2 sm:$0xff]
  %s2308 = scalar_lea.vmem [#allocation2], 1808
  %v2309 = vld [vmem:[%s2308] ss:$2 sm:$0x3f]
  %s2310 = scalar_lea.vmem [#allocation2], 1793
  %v2311 = vld [vmem:[%s2310] ss:$2 sm:$0xff]
  %s2312 = scalar_lea.vmem [#allocation2], 1809
  %v2313 = vld [vmem:[%s2312] ss:$2 sm:$0x3f]
  %v2314 = vmax.f32 %v2307, %v2311
  %v2315 = vmax.f32 %v2309, %v2313
  %s2316 = scalar_lea.vmem [#allocation2], 1824
  %v2317 = vld [vmem:[%s2316] ss:$2 sm:$0xff]
  %s2318 = scalar_lea.vmem [#allocation2], 1840
  %v2319 = vld [vmem:[%s2318] ss:$2 sm:$0x3f]
  %s2320 = scalar_lea.vmem [#allocation2], 1825
  %v2321 = vld [vmem:[%s2320] ss:$2 sm:$0xff]
  %s2322 = scalar_lea.vmem [#allocation2], 1841
  %v2323 = vld [vmem:[%s2322] ss:$2 sm:$0x3f]
  %v2324 = vmax.f32 %v2317, %v2321
  %v2325 = vmax.f32 %v2319, %v2323
  %v2326 = vmax.f32 %v2314, %v2324
  %v2327 = vmax.f32 %v2315, %v2325
  %2328 = vst [vmem:[#allocation3 + $0x1a0] sm:$0xff] %v2326
  %2329 = vst [vmem:[#allocation3 + $0x1a8] sm:$0x3f] %v2327
  %s2330 = scalar_lea.vmem [#allocation2], 1856
  %v2331 = vld [vmem:[%s2330] ss:$2 sm:$0xff]
  %s2332 = scalar_lea.vmem [#allocation2], 1872
  %v2333 = vld [vmem:[%s2332] ss:$2 sm:$0x3f]
  %s2334 = scalar_lea.vmem [#allocation2], 1857
  %v2335 = vld [vmem:[%s2334] ss:$2 sm:$0xff]
  %s2336 = scalar_lea.vmem [#allocation2], 1873
  %v2337 = vld [vmem:[%s2336] ss:$2 sm:$0x3f]
  %v2338 = vmax.f32 %v2331, %v2335
  %v2339 = vmax.f32 %v2333, %v2337
  %s2340 = scalar_lea.vmem [#allocation2], 1888
  %v2341 = vld [vmem:[%s2340] ss:$2 sm:$0xff]
  %s2342 = scalar_lea.vmem [#allocation2], 1904
  %v2343 = vld [vmem:[%s2342] ss:$2 sm:$0x3f]
  %s2344 = scalar_lea.vmem [#allocation2], 1889
  %v2345 = vld [vmem:[%s2344] ss:$2 sm:$0xff]
  %s2346 = scalar_lea.vmem [#allocation2], 1905
  %v2347 = vld [vmem:[%s2346] ss:$2 sm:$0x3f]
  %v2348 = vmax.f32 %v2341, %v2345
  %v2349 = vmax.f32 %v2343, %v2347
  %v2350 = vmax.f32 %v2338, %v2348
  %v2351 = vmax.f32 %v2339, %v2349
  %2352 = vst [vmem:[#allocation3 + $0x1b0] sm:$0xff] %v2350
  %2353 = vst [vmem:[#allocation3 + $0x1b8] sm:$0x3f] %v2351
  %v2354 = vld [vmem:[#allocation3] sm:$0xff]
  %v2355 = vld [vmem:[#allocation3 + $0x8] sm:$0xff]
  %v2356 = vld [vmem:[#allocation3 + $0x10] sm:$0xff]
  %v2357 = vld [vmem:[#allocation3 + $0x18] sm:$0xff]
  %v2358 = vld [vmem:[#allocation3 + $0x20] sm:$0xff]
  %v2359 = vld [vmem:[#allocation3 + $0x28] sm:$0xff]
  %v2360 = vld [vmem:[#allocation3 + $0x30] sm:$0xff]
  %v2361 = vld [vmem:[#allocation3 + $0x38] sm:$0xff]
  %v2362 = vld [vmem:[#allocation3 + $0x40] sm:$0xff]
  %v2363 = vld [vmem:[#allocation3 + $0x48] sm:$0xff]
  %v2364 = vld [vmem:[#allocation3 + $0x50] sm:$0xff]
  %v2365 = vld [vmem:[#allocation3 + $0x58] sm:$0xff]
  %v2366 = vld [vmem:[#allocation3 + $0x60] sm:$0xff]
  %v2367 = vld [vmem:[#allocation3 + $0x68] sm:$0xff]
  %v2368 = vld [vmem:[#allocation3 + $0x70] sm:$0xff]
  %v2369 = vld [vmem:[#allocation3 + $0x78] sm:$0xff]
  %v2370 = vld [vmem:[#allocation3 + $0x80] sm:$0xff]
  %v2371 = vld [vmem:[#allocation3 + $0x88] sm:$0xff]
  %v2372 = vld [vmem:[#allocation3 + $0x90] sm:$0xff]
  %v2373 = vld [vmem:[#allocation3 + $0x98] sm:$0xff]
  %v2374 = vld [vmem:[#allocation3 + $0xa0] sm:$0xff]
  %v2375 = vld [vmem:[#allocation3 + $0xa8] sm:$0xff]
  %v2376 = vld [vmem:[#allocation3 + $0xb0] sm:$0xff]
  %v2377 = vld [vmem:[#allocation3 + $0xb8] sm:$0xff]
  %v2378 = vld [vmem:[#allocation3 + $0xc0] sm:$0xff]
  %v2379 = vld [vmem:[#allocation3 + $0xc8] sm:$0xff]
  %v2380 = vld [vmem:[#allocation3 + $0xd0] sm:$0xff]
  %v2381 = vld [vmem:[#allocation3 + $0xd8] sm:$0xff]
  %v2382 = vld [vmem:[#allocation3 + $0xe0] sm:$0xff]
  %v2383 = vld [vmem:[#allocation3 + $0xe8] sm:$0xff]
  %v2384 = vld [vmem:[#allocation3 + $0xf0] sm:$0xff]
  %v2385 = vld [vmem:[#allocation3 + $0xf8] sm:$0xff]
  %v2386 = vld [vmem:[#allocation3 + $0x100] sm:$0xff]
  %v2387 = vld [vmem:[#allocation3 + $0x108] sm:$0xff]
  %v2388 = vld [vmem:[#allocation3 + $0x110] sm:$0xff]
  %v2389 = vld [vmem:[#allocation3 + $0x118] sm:$0xff]
  %v2390 = vld [vmem:[#allocation3 + $0x120] sm:$0xff]
  %v2391 = vld [vmem:[#allocation3 + $0x128] sm:$0xff]
  %v2392 = vld [vmem:[#allocation3 + $0x130] sm:$0xff]
  %v2393 = vld [vmem:[#allocation3 + $0x138] sm:$0xff]
  %v2394 = vld [vmem:[#allocation3 + $0x140] sm:$0xff]
  %v2395 = vld [vmem:[#allocation3 + $0x148] sm:$0xff]
  %v2396 = vld [vmem:[#allocation3 + $0x150] sm:$0xff]
  %v2397 = vld [vmem:[#allocation3 + $0x158] sm:$0xff]
  %v2398 = vld [vmem:[#allocation3 + $0x160] sm:$0xff]
  %v2399 = vld [vmem:[#allocation3 + $0x168] sm:$0xff]
  %v2400 = vld [vmem:[#allocation3 + $0x170] sm:$0xff]
  %v2401 = vld [vmem:[#allocation3 + $0x178] sm:$0xff]
  %v2402 = vld [vmem:[#allocation3 + $0x180] sm:$0xff]
  %v2403 = vld [vmem:[#allocation3 + $0x188] sm:$0xff]
  %v2404 = vld [vmem:[#allocation3 + $0x190] sm:$0xff]
  %v2405 = vld [vmem:[#allocation3 + $0x198] sm:$0xff]
  %v2406 = vld [vmem:[#allocation3 + $0x1a0] sm:$0xff]
  %v2407 = vld [vmem:[#allocation3 + $0x1a8] sm:$0xff]
  %v2408 = vld [vmem:[#allocation3 + $0x1b0] sm:$0xff]
  %v2409 = vld [vmem:[#allocation3 + $0x1b8] sm:$0xff]
  %v2410 = vld [vmem:[#allocation3 + $0x1] sm:$0xff]
  %v2411 = vld [vmem:[#allocation3 + $0x9] sm:$0xff]
  %v2412 = vld [vmem:[#allocation3 + $0x11] sm:$0xff]
  %v2413 = vld [vmem:[#allocation3 + $0x19] sm:$0xff]
  %v2414 = vld [vmem:[#allocation3 + $0x21] sm:$0xff]
  %v2415 = vld [vmem:[#allocation3 + $0x29] sm:$0xff]
  %v2416 = vld [vmem:[#allocation3 + $0x31] sm:$0xff]
  %v2417 = vld [vmem:[#allocation3 + $0x39] sm:$0xff]
  %v2418 = vld [vmem:[#allocation3 + $0x41] sm:$0xff]
  %v2419 = vld [vmem:[#allocation3 + $0x49] sm:$0xff]
  %v2420 = vld [vmem:[#allocation3 + $0x51] sm:$0xff]
  %v2421 = vld [vmem:[#allocation3 + $0x59] sm:$0xff]
  %v2422 = vld [vmem:[#allocation3 + $0x61] sm:$0xff]
  %v2423 = vld [vmem:[#allocation3 + $0x69] sm:$0xff]
  %v2424 = vld [vmem:[#allocation3 + $0x71] sm:$0xff]
  %v2425 = vld [vmem:[#allocation3 + $0x79] sm:$0xff]
  %v2426 = vld [vmem:[#allocation3 + $0x81] sm:$0xff]
  %v2427 = vld [vmem:[#allocation3 + $0x89] sm:$0xff]
  %v2428 = vld [vmem:[#allocation3 + $0x91] sm:$0xff]
  %v2429 = vld [vmem:[#allocation3 + $0x99] sm:$0xff]
  %v2430 = vld [vmem:[#allocation3 + $0xa1] sm:$0xff]
  %v2431 = vld [vmem:[#allocation3 + $0xa9] sm:$0xff]
  %v2432 = vld [vmem:[#allocation3 + $0xb1] sm:$0xff]
  %v2433 = vld [vmem:[#allocation3 + $0xb9] sm:$0xff]
  %v2434 = vld [vmem:[#allocation3 + $0xc1] sm:$0xff]
  %v2435 = vld [vmem:[#allocation3 + $0xc9] sm:$0xff]
  %v2436 = vld [vmem:[#allocation3 + $0xd1] sm:$0xff]
  %v2437 = vld [vmem:[#allocation3 + $0xd9] sm:$0xff]
  %v2438 = vld [vmem:[#allocation3 + $0xe1] sm:$0xff]
  %v2439 = vld [vmem:[#allocation3 + $0xe9] sm:$0xff]
  %v2440 = vld [vmem:[#allocation3 + $0xf1] sm:$0xff]
  %v2441 = vld [vmem:[#allocation3 + $0xf9] sm:$0xff]
  %v2442 = vld [vmem:[#allocation3 + $0x101] sm:$0xff]
  %v2443 = vld [vmem:[#allocation3 + $0x109] sm:$0xff]
  %v2444 = vld [vmem:[#allocation3 + $0x111] sm:$0xff]
  %v2445 = vld [vmem:[#allocation3 + $0x119] sm:$0xff]
  %v2446 = vld [vmem:[#allocation3 + $0x121] sm:$0xff]
  %v2447 = vld [vmem:[#allocation3 + $0x129] sm:$0xff]
  %v2448 = vld [vmem:[#allocation3 + $0x131] sm:$0xff]
  %v2449 = vld [vmem:[#allocation3 + $0x139] sm:$0xff]
  %v2450 = vld [vmem:[#allocation3 + $0x141] sm:$0xff]
  %v2451 = vld [vmem:[#allocation3 + $0x149] sm:$0xff]
  %v2452 = vld [vmem:[#allocation3 + $0x151] sm:$0xff]
  %v2453 = vld [vmem:[#allocation3 + $0x159] sm:$0xff]
  %v2454 = vld [vmem:[#allocation3 + $0x161] sm:$0xff]
  %v2455 = vld [vmem:[#allocation3 + $0x169] sm:$0xff]
  %v2456 = vld [vmem:[#allocation3 + $0x171] sm:$0xff]
  %v2457 = vld [vmem:[#allocation3 + $0x179] sm:$0xff]
  %v2458 = vld [vmem:[#allocation3 + $0x181] sm:$0xff]
  %v2459 = vld [vmem:[#allocation3 + $0x189] sm:$0xff]
  %v2460 = vld [vmem:[#allocation3 + $0x191] sm:$0xff]
  %v2461 = vld [vmem:[#allocation3 + $0x199] sm:$0xff]
  %v2462 = vld [vmem:[#allocation3 + $0x1a1] sm:$0xff]
  %v2463 = vld [vmem:[#allocation3 + $0x1a9] sm:$0xff]
  %v2464 = vld [vmem:[#allocation3 + $0x1b1] sm:$0xff]
  %v2465 = vld [vmem:[#allocation3 + $0x1b9] sm:$0xff]
  %2522 = vrot.lane.b32.xlu0 %v2410, 6
  %v2523 = vpop.permute.xlu0 %2522
  %2524 = vrot.lane.b32.xlu0 %v2411, 6
  %v2525 = vpop.permute.xlu0 %2524
  %2526 = vrot.lane.b32.xlu0 %v2412, 6
  %v2527 = vpop.permute.xlu0 %2526
  %2528 = vrot.lane.b32.xlu0 %v2413, 6
  %v2529 = vpop.permute.xlu0 %2528
  %2530 = vrot.lane.b32.xlu0 %v2414, 6
  %v2531 = vpop.permute.xlu0 %2530
  %2532 = vrot.lane.b32.xlu0 %v2415, 6
  %v2533 = vpop.permute.xlu0 %2532
  %2534 = vrot.lane.b32.xlu0 %v2416, 6
  %v2535 = vpop.permute.xlu0 %2534
  %2536 = vrot.lane.b32.xlu0 %v2417, 6
  %v2537 = vpop.permute.xlu0 %2536
  %2538 = vrot.lane.b32.xlu0 %v2418, 6
  %v2539 = vpop.permute.xlu0 %2538
  %2540 = vrot.lane.b32.xlu0 %v2419, 6
  %v2541 = vpop.permute.xlu0 %2540
  %2542 = vrot.lane.b32.xlu0 %v2420, 6
  %v2543 = vpop.permute.xlu0 %2542
  %2544 = vrot.lane.b32.xlu0 %v2421, 6
  %v2545 = vpop.permute.xlu0 %2544
  %2546 = vrot.lane.b32.xlu0 %v2422, 6
  %v2547 = vpop.permute.xlu0 %2546
  %2548 = vrot.lane.b32.xlu0 %v2423, 6
  %v2549 = vpop.permute.xlu0 %2548
  %2550 = vrot.lane.b32.xlu0 %v2424, 6
  %v2551 = vpop.permute.xlu0 %2550
  %2552 = vrot.lane.b32.xlu0 %v2425, 6
  %v2553 = vpop.permute.xlu0 %2552
  %2554 = vrot.lane.b32.xlu0 %v2426, 6
  %v2555 = vpop.permute.xlu0 %2554
  %2556 = vrot.lane.b32.xlu0 %v2427, 6
  %v2557 = vpop.permute.xlu0 %2556
  %2558 = vrot.lane.b32.xlu0 %v2428, 6
  %v2559 = vpop.permute.xlu0 %2558
  %2560 = vrot.lane.b32.xlu0 %v2429, 6
  %v2561 = vpop.permute.xlu0 %2560
  %2562 = vrot.lane.b32.xlu0 %v2430, 6
  %v2563 = vpop.permute.xlu0 %2562
  %2564 = vrot.lane.b32.xlu0 %v2431, 6
  %v2565 = vpop.permute.xlu0 %2564
  %2566 = vrot.lane.b32.xlu0 %v2432, 6
  %v2567 = vpop.permute.xlu0 %2566
  %2568 = vrot.lane.b32.xlu0 %v2433, 6
  %v2569 = vpop.permute.xlu0 %2568
  %2570 = vrot.lane.b32.xlu0 %v2434, 6
  %v2571 = vpop.permute.xlu0 %2570
  %2572 = vrot.lane.b32.xlu0 %v2435, 6
  %v2573 = vpop.permute.xlu0 %2572
  %2574 = vrot.lane.b32.xlu0 %v2436, 6
  %v2575 = vpop.permute.xlu0 %2574
  %2576 = vrot.lane.b32.xlu0 %v2437, 6
  %v2577 = vpop.permute.xlu0 %2576
  %2578 = vrot.lane.b32.xlu0 %v2438, 6
  %v2579 = vpop.permute.xlu0 %2578
  %2580 = vrot.lane.b32.xlu0 %v2439, 6
  %v2581 = vpop.permute.xlu0 %2580
  %2582 = vrot.lane.b32.xlu0 %v2440, 6
  %v2583 = vpop.permute.xlu0 %2582
  %2584 = vrot.lane.b32.xlu0 %v2441, 6
  %v2585 = vpop.permute.xlu0 %2584
  %2586 = vrot.lane.b32.xlu0 %v2442, 6
  %v2587 = vpop.permute.xlu0 %2586
  %2588 = vrot.lane.b32.xlu0 %v2443, 6
  %v2589 = vpop.permute.xlu0 %2588
  %2590 = vrot.lane.b32.xlu0 %v2444, 6
  %v2591 = vpop.permute.xlu0 %2590
  %2592 = vrot.lane.b32.xlu0 %v2445, 6
  %v2593 = vpop.permute.xlu0 %2592
  %2594 = vrot.lane.b32.xlu0 %v2446, 6
  %v2595 = vpop.permute.xlu0 %2594
  %2596 = vrot.lane.b32.xlu0 %v2447, 6
  %v2597 = vpop.permute.xlu0 %2596
  %2598 = vrot.lane.b32.xlu0 %v2448, 6
  %v2599 = vpop.permute.xlu0 %2598
  %2600 = vrot.lane.b32.xlu0 %v2449, 6
  %v2601 = vpop.permute.xlu0 %2600
  %2602 = vrot.lane.b32.xlu0 %v2450, 6
  %v2603 = vpop.permute.xlu0 %2602
  %2604 = vrot.lane.b32.xlu0 %v2451, 6
  %v2605 = vpop.permute.xlu0 %2604
  %2606 = vrot.lane.b32.xlu0 %v2452, 6
  %v2607 = vpop.permute.xlu0 %2606
  %2608 = vrot.lane.b32.xlu0 %v2453, 6
  %v2609 = vpop.permute.xlu0 %2608
  %2610 = vrot.lane.b32.xlu0 %v2454, 6
  %v2611 = vpop.permute.xlu0 %2610
  %2612 = vrot.lane.b32.xlu0 %v2455, 6
  %v2613 = vpop.permute.xlu0 %2612
  %2614 = vrot.lane.b32.xlu0 %v2456, 6
  %v2615 = vpop.permute.xlu0 %2614
  %2616 = vrot.lane.b32.xlu0 %v2457, 6
  %v2617 = vpop.permute.xlu0 %2616
  %2618 = vrot.lane.b32.xlu0 %v2458, 6
  %v2619 = vpop.permute.xlu0 %2618
  %2620 = vrot.lane.b32.xlu0 %v2459, 6
  %v2621 = vpop.permute.xlu0 %2620
  %2622 = vrot.lane.b32.xlu0 %v2460, 6
  %v2623 = vpop.permute.xlu0 %2622
  %2624 = vrot.lane.b32.xlu0 %v2461, 6
  %v2625 = vpop.permute.xlu0 %2624
  %2626 = vrot.lane.b32.xlu0 %v2462, 6
  %v2627 = vpop.permute.xlu0 %2626
  %2628 = vrot.lane.b32.xlu0 %v2463, 6
  %v2629 = vpop.permute.xlu0 %2628
  %2630 = vrot.lane.b32.xlu0 %v2464, 6
  %v2631 = vpop.permute.xlu0 %2630
  %2632 = vrot.lane.b32.xlu0 %v2465, 6
  %v2633 = vpop.permute.xlu0 %2632
  %v2690 = vadd.f32 %v2354, %v2523
  %v2691 = vadd.f32 %v2355, %v2525
  %v2692 = vadd.f32 %v2356, %v2527
  %v2693 = vadd.f32 %v2357, %v2529
  %v2694 = vadd.f32 %v2358, %v2531
  %v2695 = vadd.f32 %v2359, %v2533
  %v2696 = vadd.f32 %v2360, %v2535
  %v2697 = vadd.f32 %v2361, %v2537
  %v2698 = vadd.f32 %v2362, %v2539
  %v2699 = vadd.f32 %v2363, %v2541
  %v2700 = vadd.f32 %v2364, %v2543
  %v2701 = vadd.f32 %v2365, %v2545
  %v2702 = vadd.f32 %v2366, %v2547
  %v2703 = vadd.f32 %v2367, %v2549
  %v2704 = vadd.f32 %v2368, %v2551
  %v2705 = vadd.f32 %v2369, %v2553
  %v2706 = vadd.f32 %v2370, %v2555
  %v2707 = vadd.f32 %v2371, %v2557
  %v2708 = vadd.f32 %v2372, %v2559
  %v2709 = vadd.f32 %v2373, %v2561
  %v2710 = vadd.f32 %v2374, %v2563
  %v2711 = vadd.f32 %v2375, %v2565
  %v2712 = vadd.f32 %v2376, %v2567
  %v2713 = vadd.f32 %v2377, %v2569
  %v2714 = vadd.f32 %v2378, %v2571
  %v2715 = vadd.f32 %v2379, %v2573
  %v2716 = vadd.f32 %v2380, %v2575
  %v2717 = vadd.f32 %v2381, %v2577
  %v2718 = vadd.f32 %v2382, %v2579
  %v2719 = vadd.f32 %v2383, %v2581
  %v2720 = vadd.f32 %v2384, %v2583
  %v2721 = vadd.f32 %v2385, %v2585
  %v2722 = vadd.f32 %v2386, %v2587
  %v2723 = vadd.f32 %v2387, %v2589
  %v2724 = vadd.f32 %v2388, %v2591
  %v2725 = vadd.f32 %v2389, %v2593
  %v2726 = vadd.f32 %v2390, %v2595
  %v2727 = vadd.f32 %v2391, %v2597
  %v2728 = vadd.f32 %v2392, %v2599
  %v2729 = vadd.f32 %v2393, %v2601
  %v2730 = vadd.f32 %v2394, %v2603
  %v2731 = vadd.f32 %v2395, %v2605
  %v2732 = vadd.f32 %v2396, %v2607
  %v2733 = vadd.f32 %v2397, %v2609
  %v2734 = vadd.f32 %v2398, %v2611
  %v2735 = vadd.f32 %v2399, %v2613
  %v2736 = vadd.f32 %v2400, %v2615
  %v2737 = vadd.f32 %v2401, %v2617
  %v2738 = vadd.f32 %v2402, %v2619
  %v2739 = vadd.f32 %v2403, %v2621
  %v2740 = vadd.f32 %v2404, %v2623
  %v2741 = vadd.f32 %v2405, %v2625
  %v2742 = vadd.f32 %v2406, %v2627
  %v2743 = vadd.f32 %v2407, %v2629
  %v2744 = vadd.f32 %v2408, %v2631
  %v2745 = vadd.f32 %v2409, %v2633
  %v2746 = vld [vmem:[#allocation3 + $0x2] sm:$0xff]
  %v2747 = vld [vmem:[#allocation3 + $0xa] sm:$0xff]
  %v2748 = vld [vmem:[#allocation3 + $0x12] sm:$0xff]
  %v2749 = vld [vmem:[#allocation3 + $0x1a] sm:$0xff]
  %v2750 = vld [vmem:[#allocation3 + $0x22] sm:$0xff]
  %v2751 = vld [vmem:[#allocation3 + $0x2a] sm:$0xff]
  %v2752 = vld [vmem:[#allocation3 + $0x32] sm:$0xff]
  %v2753 = vld [vmem:[#allocation3 + $0x3a] sm:$0xff]
  %v2754 = vld [vmem:[#allocation3 + $0x42] sm:$0xff]
  %v2755 = vld [vmem:[#allocation3 + $0x4a] sm:$0xff]
  %v2756 = vld [vmem:[#allocation3 + $0x52] sm:$0xff]
  %v2757 = vld [vmem:[#allocation3 + $0x5a] sm:$0xff]
  %v2758 = vld [vmem:[#allocation3 + $0x62] sm:$0xff]
  %v2759 = vld [vmem:[#allocation3 + $0x6a] sm:$0xff]
  %v2760 = vld [vmem:[#allocation3 + $0x72] sm:$0xff]
  %v2761 = vld [vmem:[#allocation3 + $0x7a] sm:$0xff]
  %v2762 = vld [vmem:[#allocation3 + $0x82] sm:$0xff]
  %v2763 = vld [vmem:[#allocation3 + $0x8a] sm:$0xff]
  %v2764 = vld [vmem:[#allocation3 + $0x92] sm:$0xff]
  %v2765 = vld [vmem:[#allocation3 + $0x9a] sm:$0xff]
  %v2766 = vld [vmem:[#allocation3 + $0xa2] sm:$0xff]
  %v2767 = vld [vmem:[#allocation3 + $0xaa] sm:$0xff]
  %v2768 = vld [vmem:[#allocation3 + $0xb2] sm:$0xff]
  %v2769 = vld [vmem:[#allocation3 + $0xba] sm:$0xff]
  %v2770 = vld [vmem:[#allocation3 + $0xc2] sm:$0xff]
  %v2771 = vld [vmem:[#allocation3 + $0xca] sm:$0xff]
  %v2772 = vld [vmem:[#allocation3 + $0xd2] sm:$0xff]
  %v2773 = vld [vmem:[#allocation3 + $0xda] sm:$0xff]
  %v2774 = vld [vmem:[#allocation3 + $0xe2] sm:$0xff]
  %v2775 = vld [vmem:[#allocation3 + $0xea] sm:$0xff]
  %v2776 = vld [vmem:[#allocation3 + $0xf2] sm:$0xff]
  %v2777 = vld [vmem:[#allocation3 + $0xfa] sm:$0xff]
  %v2778 = vld [vmem:[#allocation3 + $0x102] sm:$0xff]
  %v2779 = vld [vmem:[#allocation3 + $0x10a] sm:$0xff]
  %v2780 = vld [vmem:[#allocation3 + $0x112] sm:$0xff]
  %v2781 = vld [vmem:[#allocation3 + $0x11a] sm:$0xff]
  %v2782 = vld [vmem:[#allocation3 + $0x122] sm:$0xff]
  %v2783 = vld [vmem:[#allocation3 + $0x12a] sm:$0xff]
  %v2784 = vld [vmem:[#allocation3 + $0x132] sm:$0xff]
  %v2785 = vld [vmem:[#allocation3 + $0x13a] sm:$0xff]
  %v2786 = vld [vmem:[#allocation3 + $0x142] sm:$0xff]
  %v2787 = vld [vmem:[#allocation3 + $0x14a] sm:$0xff]
  %v2788 = vld [vmem:[#allocation3 + $0x152] sm:$0xff]
  %v2789 = vld [vmem:[#allocation3 + $0x15a] sm:$0xff]
  %v2790 = vld [vmem:[#allocation3 + $0x162] sm:$0xff]
  %v2791 = vld [vmem:[#allocation3 + $0x16a] sm:$0xff]
  %v2792 = vld [vmem:[#allocation3 + $0x172] sm:$0xff]
  %v2793 = vld [vmem:[#allocation3 + $0x17a] sm:$0xff]
  %v2794 = vld [vmem:[#allocation3 + $0x182] sm:$0xff]
  %v2795 = vld [vmem:[#allocation3 + $0x18a] sm:$0xff]
  %v2796 = vld [vmem:[#allocation3 + $0x192] sm:$0xff]
  %v2797 = vld [vmem:[#allocation3 + $0x19a] sm:$0xff]
  %v2798 = vld [vmem:[#allocation3 + $0x1a2] sm:$0xff]
  %v2799 = vld [vmem:[#allocation3 + $0x1aa] sm:$0xff]
  %v2800 = vld [vmem:[#allocation3 + $0x1b2] sm:$0xff]
  %v2801 = vld [vmem:[#allocation3 + $0x1ba] sm:$0xff]
  %2858 = vrot.lane.b32.xlu0 %v2746, 12
  %v2859 = vpop.permute.xlu0 %2858
  %2860 = vrot.lane.b32.xlu0 %v2747, 12
  %v2861 = vpop.permute.xlu0 %2860
  %2862 = vrot.lane.b32.xlu0 %v2748, 12
  %v2863 = vpop.permute.xlu0 %2862
  %2864 = vrot.lane.b32.xlu0 %v2749, 12
  %v2865 = vpop.permute.xlu0 %2864
  %2866 = vrot.lane.b32.xlu0 %v2750, 12
  %v2867 = vpop.permute.xlu0 %2866
  %2868 = vrot.lane.b32.xlu0 %v2751, 12
  %v2869 = vpop.permute.xlu0 %2868
  %2870 = vrot.lane.b32.xlu0 %v2752, 12
  %v2871 = vpop.permute.xlu0 %2870
  %2872 = vrot.lane.b32.xlu0 %v2753, 12
  %v2873 = vpop.permute.xlu0 %2872
  %2874 = vrot.lane.b32.xlu0 %v2754, 12
  %v2875 = vpop.permute.xlu0 %2874
  %2876 = vrot.lane.b32.xlu0 %v2755, 12
  %v2877 = vpop.permute.xlu0 %2876
  %2878 = vrot.lane.b32.xlu0 %v2756, 12
  %v2879 = vpop.permute.xlu0 %2878
  %2880 = vrot.lane.b32.xlu0 %v2757, 12
  %v2881 = vpop.permute.xlu0 %2880
  %2882 = vrot.lane.b32.xlu0 %v2758, 12
  %v2883 = vpop.permute.xlu0 %2882
  %2884 = vrot.lane.b32.xlu0 %v2759, 12
  %v2885 = vpop.permute.xlu0 %2884
  %2886 = vrot.lane.b32.xlu0 %v2760, 12
  %v2887 = vpop.permute.xlu0 %2886
  %2888 = vrot.lane.b32.xlu0 %v2761, 12
  %v2889 = vpop.permute.xlu0 %2888
  %2890 = vrot.lane.b32.xlu0 %v2762, 12
  %v2891 = vpop.permute.xlu0 %2890
  %2892 = vrot.lane.b32.xlu0 %v2763, 12
  %v2893 = vpop.permute.xlu0 %2892
  %2894 = vrot.lane.b32.xlu0 %v2764, 12
  %v2895 = vpop.permute.xlu0 %2894
  %2896 = vrot.lane.b32.xlu0 %v2765, 12
  %v2897 = vpop.permute.xlu0 %2896
  %2898 = vrot.lane.b32.xlu0 %v2766, 12
  %v2899 = vpop.permute.xlu0 %2898
  %2900 = vrot.lane.b32.xlu0 %v2767, 12
  %v2901 = vpop.permute.xlu0 %2900
  %2902 = vrot.lane.b32.xlu0 %v2768, 12
  %v2903 = vpop.permute.xlu0 %2902
  %2904 = vrot.lane.b32.xlu0 %v2769, 12
  %v2905 = vpop.permute.xlu0 %2904
  %2906 = vrot.lane.b32.xlu0 %v2770, 12
  %v2907 = vpop.permute.xlu0 %2906
  %2908 = vrot.lane.b32.xlu0 %v2771, 12
  %v2909 = vpop.permute.xlu0 %2908
  %2910 = vrot.lane.b32.xlu0 %v2772, 12
  %v2911 = vpop.permute.xlu0 %2910
  %2912 = vrot.lane.b32.xlu0 %v2773, 12
  %v2913 = vpop.permute.xlu0 %2912
  %2914 = vrot.lane.b32.xlu0 %v2774, 12
  %v2915 = vpop.permute.xlu0 %2914
  %2916 = vrot.lane.b32.xlu0 %v2775, 12
  %v2917 = vpop.permute.xlu0 %2916
  %2918 = vrot.lane.b32.xlu0 %v2776, 12
  %v2919 = vpop.permute.xlu0 %2918
  %2920 = vrot.lane.b32.xlu0 %v2777, 12
  %v2921 = vpop.permute.xlu0 %2920
  %2922 = vrot.lane.b32.xlu0 %v2778, 12
  %v2923 = vpop.permute.xlu0 %2922
  %2924 = vrot.lane.b32.xlu0 %v2779, 12
  %v2925 = vpop.permute.xlu0 %2924
  %2926 = vrot.lane.b32.xlu0 %v2780, 12
  %v2927 = vpop.permute.xlu0 %2926
  %2928 = vrot.lane.b32.xlu0 %v2781, 12
  %v2929 = vpop.permute.xlu0 %2928
  %2930 = vrot.lane.b32.xlu0 %v2782, 12
  %v2931 = vpop.permute.xlu0 %2930
  %2932 = vrot.lane.b32.xlu0 %v2783, 12
  %v2933 = vpop.permute.xlu0 %2932
  %2934 = vrot.lane.b32.xlu0 %v2784, 12
  %v2935 = vpop.permute.xlu0 %2934
  %2936 = vrot.lane.b32.xlu0 %v2785, 12
  %v2937 = vpop.permute.xlu0 %2936
  %2938 = vrot.lane.b32.xlu0 %v2786, 12
  %v2939 = vpop.permute.xlu0 %2938
  %2940 = vrot.lane.b32.xlu0 %v2787, 12
  %v2941 = vpop.permute.xlu0 %2940
  %2942 = vrot.lane.b32.xlu0 %v2788, 12
  %v2943 = vpop.permute.xlu0 %2942
  %2944 = vrot.lane.b32.xlu0 %v2789, 12
  %v2945 = vpop.permute.xlu0 %2944
  %2946 = vrot.lane.b32.xlu0 %v2790, 12
  %v2947 = vpop.permute.xlu0 %2946
  %2948 = vrot.lane.b32.xlu0 %v2791, 12
  %v2949 = vpop.permute.xlu0 %2948
  %2950 = vrot.lane.b32.xlu0 %v2792, 12
  %v2951 = vpop.permute.xlu0 %2950
  %2952 = vrot.lane.b32.xlu0 %v2793, 12
  %v2953 = vpop.permute.xlu0 %2952
  %2954 = vrot.lane.b32.xlu0 %v2794, 12
  %v2955 = vpop.permute.xlu0 %2954
  %2956 = vrot.lane.b32.xlu0 %v2795, 12
  %v2957 = vpop.permute.xlu0 %2956
  %2958 = vrot.lane.b32.xlu0 %v2796, 12
  %v2959 = vpop.permute.xlu0 %2958
  %2960 = vrot.lane.b32.xlu0 %v2797, 12
  %v2961 = vpop.permute.xlu0 %2960
  %2962 = vrot.lane.b32.xlu0 %v2798, 12
  %v2963 = vpop.permute.xlu0 %2962
  %2964 = vrot.lane.b32.xlu0 %v2799, 12
  %v2965 = vpop.permute.xlu0 %2964
  %2966 = vrot.lane.b32.xlu0 %v2800, 12
  %v2967 = vpop.permute.xlu0 %2966
  %2968 = vrot.lane.b32.xlu0 %v2801, 12
  %v2969 = vpop.permute.xlu0 %2968
  %v3026 = vadd.f32 %v2690, %v2859
  %v3027 = vadd.f32 %v2691, %v2861
  %v3028 = vadd.f32 %v2692, %v2863
  %v3029 = vadd.f32 %v2693, %v2865
  %v3030 = vadd.f32 %v2694, %v2867
  %v3031 = vadd.f32 %v2695, %v2869
  %v3032 = vadd.f32 %v2696, %v2871
  %v3033 = vadd.f32 %v2697, %v2873
  %v3034 = vadd.f32 %v2698, %v2875
  %v3035 = vadd.f32 %v2699, %v2877
  %v3036 = vadd.f32 %v2700, %v2879
  %v3037 = vadd.f32 %v2701, %v2881
  %v3038 = vadd.f32 %v2702, %v2883
  %v3039 = vadd.f32 %v2703, %v2885
  %v3040 = vadd.f32 %v2704, %v2887
  %v3041 = vadd.f32 %v2705, %v2889
  %v3042 = vadd.f32 %v2706, %v2891
  %v3043 = vadd.f32 %v2707, %v2893
  %v3044 = vadd.f32 %v2708, %v2895
  %v3045 = vadd.f32 %v2709, %v2897
  %v3046 = vadd.f32 %v2710, %v2899
  %v3047 = vadd.f32 %v2711, %v2901
  %v3048 = vadd.f32 %v2712, %v2903
  %v3049 = vadd.f32 %v2713, %v2905
  %v3050 = vadd.f32 %v2714, %v2907
  %v3051 = vadd.f32 %v2715, %v2909
  %v3052 = vadd.f32 %v2716, %v2911
  %v3053 = vadd.f32 %v2717, %v2913
  %v3054 = vadd.f32 %v2718, %v2915
  %v3055 = vadd.f32 %v2719, %v2917
  %v3056 = vadd.f32 %v2720, %v2919
  %v3057 = vadd.f32 %v2721, %v2921
  %v3058 = vadd.f32 %v2722, %v2923
  %v3059 = vadd.f32 %v2723, %v2925
  %v3060 = vadd.f32 %v2724, %v2927
  %v3061 = vadd.f32 %v2725, %v2929
  %v3062 = vadd.f32 %v2726, %v2931
  %v3063 = vadd.f32 %v2727, %v2933
  %v3064 = vadd.f32 %v2728, %v2935
  %v3065 = vadd.f32 %v2729, %v2937
  %v3066 = vadd.f32 %v2730, %v2939
  %v3067 = vadd.f32 %v2731, %v2941
  %v3068 = vadd.f32 %v2732, %v2943
  %v3069 = vadd.f32 %v2733, %v2945
  %v3070 = vadd.f32 %v2734, %v2947
  %v3071 = vadd.f32 %v2735, %v2949
  %v3072 = vadd.f32 %v2736, %v2951
  %v3073 = vadd.f32 %v2737, %v2953
  %v3074 = vadd.f32 %v2738, %v2955
  %v3075 = vadd.f32 %v2739, %v2957
  %v3076 = vadd.f32 %v2740, %v2959
  %v3077 = vadd.f32 %v2741, %v2961
  %v3078 = vadd.f32 %v2742, %v2963
  %v3079 = vadd.f32 %v2743, %v2965
  %v3080 = vadd.f32 %v2744, %v2967
  %v3081 = vadd.f32 %v2745, %v2969
  %v3082 = vld [vmem:[#allocation3 + $0x3] sm:$0xff]
  %v3083 = vld [vmem:[#allocation3 + $0xb] sm:$0xff]
  %v3084 = vld [vmem:[#allocation3 + $0x13] sm:$0xff]
  %v3085 = vld [vmem:[#allocation3 + $0x1b] sm:$0xff]
  %v3086 = vld [vmem:[#allocation3 + $0x23] sm:$0xff]
  %v3087 = vld [vmem:[#allocation3 + $0x2b] sm:$0xff]
  %v3088 = vld [vmem:[#allocation3 + $0x33] sm:$0xff]
  %v3089 = vld [vmem:[#allocation3 + $0x3b] sm:$0xff]
  %v3090 = vld [vmem:[#allocation3 + $0x43] sm:$0xff]
  %v3091 = vld [vmem:[#allocation3 + $0x4b] sm:$0xff]
  %v3092 = vld [vmem:[#allocation3 + $0x53] sm:$0xff]
  %v3093 = vld [vmem:[#allocation3 + $0x5b] sm:$0xff]
  %v3094 = vld [vmem:[#allocation3 + $0x63] sm:$0xff]
  %v3095 = vld [vmem:[#allocation3 + $0x6b] sm:$0xff]
  %v3096 = vld [vmem:[#allocation3 + $0x73] sm:$0xff]
  %v3097 = vld [vmem:[#allocation3 + $0x7b] sm:$0xff]
  %v3098 = vld [vmem:[#allocation3 + $0x83] sm:$0xff]
  %v3099 = vld [vmem:[#allocation3 + $0x8b] sm:$0xff]
  %v3100 = vld [vmem:[#allocation3 + $0x93] sm:$0xff]
  %v3101 = vld [vmem:[#allocation3 + $0x9b] sm:$0xff]
  %v3102 = vld [vmem:[#allocation3 + $0xa3] sm:$0xff]
  %v3103 = vld [vmem:[#allocation3 + $0xab] sm:$0xff]
  %v3104 = vld [vmem:[#allocation3 + $0xb3] sm:$0xff]
  %v3105 = vld [vmem:[#allocation3 + $0xbb] sm:$0xff]
  %v3106 = vld [vmem:[#allocation3 + $0xc3] sm:$0xff]
  %v3107 = vld [vmem:[#allocation3 + $0xcb] sm:$0xff]
  %v3108 = vld [vmem:[#allocation3 + $0xd3] sm:$0xff]
  %v3109 = vld [vmem:[#allocation3 + $0xdb] sm:$0xff]
  %v3110 = vld [vmem:[#allocation3 + $0xe3] sm:$0xff]
  %v3111 = vld [vmem:[#allocation3 + $0xeb] sm:$0xff]
  %v3112 = vld [vmem:[#allocation3 + $0xf3] sm:$0xff]
  %v3113 = vld [vmem:[#allocation3 + $0xfb] sm:$0xff]
  %v3114 = vld [vmem:[#allocation3 + $0x103] sm:$0xff]
  %v3115 = vld [vmem:[#allocation3 + $0x10b] sm:$0xff]
  %v3116 = vld [vmem:[#allocation3 + $0x113] sm:$0xff]
  %v3117 = vld [vmem:[#allocation3 + $0x11b] sm:$0xff]
  %v3118 = vld [vmem:[#allocation3 + $0x123] sm:$0xff]
  %v3119 = vld [vmem:[#allocation3 + $0x12b] sm:$0xff]
  %v3120 = vld [vmem:[#allocation3 + $0x133] sm:$0xff]
  %v3121 = vld [vmem:[#allocation3 + $0x13b] sm:$0xff]
  %v3122 = vld [vmem:[#allocation3 + $0x143] sm:$0xff]
  %v3123 = vld [vmem:[#allocation3 + $0x14b] sm:$0xff]
  %v3124 = vld [vmem:[#allocation3 + $0x153] sm:$0xff]
  %v3125 = vld [vmem:[#allocation3 + $0x15b] sm:$0xff]
  %v3126 = vld [vmem:[#allocation3 + $0x163] sm:$0xff]
  %v3127 = vld [vmem:[#allocation3 + $0x16b] sm:$0xff]
  %v3128 = vld [vmem:[#allocation3 + $0x173] sm:$0xff]
  %v3129 = vld [vmem:[#allocation3 + $0x17b] sm:$0xff]
  %v3130 = vld [vmem:[#allocation3 + $0x183] sm:$0xff]
  %v3131 = vld [vmem:[#allocation3 + $0x18b] sm:$0xff]
  %v3132 = vld [vmem:[#allocation3 + $0x193] sm:$0xff]
  %v3133 = vld [vmem:[#allocation3 + $0x19b] sm:$0xff]
  %v3134 = vld [vmem:[#allocation3 + $0x1a3] sm:$0xff]
  %v3135 = vld [vmem:[#allocation3 + $0x1ab] sm:$0xff]
  %v3136 = vld [vmem:[#allocation3 + $0x1b3] sm:$0xff]
  %v3137 = vld [vmem:[#allocation3 + $0x1bb] sm:$0xff]
  %3194 = vrot.lane.b32.xlu0 %v3082, 18
  %v3195 = vpop.permute.xlu0 %3194
  %3196 = vrot.lane.b32.xlu0 %v3083, 18
  %v3197 = vpop.permute.xlu0 %3196
  %3198 = vrot.lane.b32.xlu0 %v3084, 18
  %v3199 = vpop.permute.xlu0 %3198
  %3200 = vrot.lane.b32.xlu0 %v3085, 18
  %v3201 = vpop.permute.xlu0 %3200
  %3202 = vrot.lane.b32.xlu0 %v3086, 18
  %v3203 = vpop.permute.xlu0 %3202
  %3204 = vrot.lane.b32.xlu0 %v3087, 18
  %v3205 = vpop.permute.xlu0 %3204
  %3206 = vrot.lane.b32.xlu0 %v3088, 18
  %v3207 = vpop.permute.xlu0 %3206
  %3208 = vrot.lane.b32.xlu0 %v3089, 18
  %v3209 = vpop.permute.xlu0 %3208
  %3210 = vrot.lane.b32.xlu0 %v3090, 18
  %v3211 = vpop.permute.xlu0 %3210
  %3212 = vrot.lane.b32.xlu0 %v3091, 18
  %v3213 = vpop.permute.xlu0 %3212
  %3214 = vrot.lane.b32.xlu0 %v3092, 18
  %v3215 = vpop.permute.xlu0 %3214
  %3216 = vrot.lane.b32.xlu0 %v3093, 18
  %v3217 = vpop.permute.xlu0 %3216
  %3218 = vrot.lane.b32.xlu0 %v3094, 18
  %v3219 = vpop.permute.xlu0 %3218
  %3220 = vrot.lane.b32.xlu0 %v3095, 18
  %v3221 = vpop.permute.xlu0 %3220
  %3222 = vrot.lane.b32.xlu0 %v3096, 18
  %v3223 = vpop.permute.xlu0 %3222
  %3224 = vrot.lane.b32.xlu0 %v3097, 18
  %v3225 = vpop.permute.xlu0 %3224
  %3226 = vrot.lane.b32.xlu0 %v3098, 18
  %v3227 = vpop.permute.xlu0 %3226
  %3228 = vrot.lane.b32.xlu0 %v3099, 18
  %v3229 = vpop.permute.xlu0 %3228
  %3230 = vrot.lane.b32.xlu0 %v3100, 18
  %v3231 = vpop.permute.xlu0 %3230
  %3232 = vrot.lane.b32.xlu0 %v3101, 18
  %v3233 = vpop.permute.xlu0 %3232
  %3234 = vrot.lane.b32.xlu0 %v3102, 18
  %v3235 = vpop.permute.xlu0 %3234
  %3236 = vrot.lane.b32.xlu0 %v3103, 18
  %v3237 = vpop.permute.xlu0 %3236
  %3238 = vrot.lane.b32.xlu0 %v3104, 18
  %v3239 = vpop.permute.xlu0 %3238
  %3240 = vrot.lane.b32.xlu0 %v3105, 18
  %v3241 = vpop.permute.xlu0 %3240
  %3242 = vrot.lane.b32.xlu0 %v3106, 18
  %v3243 = vpop.permute.xlu0 %3242
  %3244 = vrot.lane.b32.xlu0 %v3107, 18
  %v3245 = vpop.permute.xlu0 %3244
  %3246 = vrot.lane.b32.xlu0 %v3108, 18
  %v3247 = vpop.permute.xlu0 %3246
  %3248 = vrot.lane.b32.xlu0 %v3109, 18
  %v3249 = vpop.permute.xlu0 %3248
  %3250 = vrot.lane.b32.xlu0 %v3110, 18
  %v3251 = vpop.permute.xlu0 %3250
  %3252 = vrot.lane.b32.xlu0 %v3111, 18
  %v3253 = vpop.permute.xlu0 %3252
  %3254 = vrot.lane.b32.xlu0 %v3112, 18
  %v3255 = vpop.permute.xlu0 %3254
  %3256 = vrot.lane.b32.xlu0 %v3113, 18
  %v3257 = vpop.permute.xlu0 %3256
  %3258 = vrot.lane.b32.xlu0 %v3114, 18
  %v3259 = vpop.permute.xlu0 %3258
  %3260 = vrot.lane.b32.xlu0 %v3115, 18
  %v3261 = vpop.permute.xlu0 %3260
  %3262 = vrot.lane.b32.xlu0 %v3116, 18
  %v3263 = vpop.permute.xlu0 %3262
  %3264 = vrot.lane.b32.xlu0 %v3117, 18
  %v3265 = vpop.permute.xlu0 %3264
  %3266 = vrot.lane.b32.xlu0 %v3118, 18
  %v3267 = vpop.permute.xlu0 %3266
  %3268 = vrot.lane.b32.xlu0 %v3119, 18
  %v3269 = vpop.permute.xlu0 %3268
  %3270 = vrot.lane.b32.xlu0 %v3120, 18
  %v3271 = vpop.permute.xlu0 %3270
  %3272 = vrot.lane.b32.xlu0 %v3121, 18
  %v3273 = vpop.permute.xlu0 %3272
  %3274 = vrot.lane.b32.xlu0 %v3122, 18
  %v3275 = vpop.permute.xlu0 %3274
  %3276 = vrot.lane.b32.xlu0 %v3123, 18
  %v3277 = vpop.permute.xlu0 %3276
  %3278 = vrot.lane.b32.xlu0 %v3124, 18
  %v3279 = vpop.permute.xlu0 %3278
  %3280 = vrot.lane.b32.xlu0 %v3125, 18
  %v3281 = vpop.permute.xlu0 %3280
  %3282 = vrot.lane.b32.xlu0 %v3126, 18
  %v3283 = vpop.permute.xlu0 %3282
  %3284 = vrot.lane.b32.xlu0 %v3127, 18
  %v3285 = vpop.permute.xlu0 %3284
  %3286 = vrot.lane.b32.xlu0 %v3128, 18
  %v3287 = vpop.permute.xlu0 %3286
  %3288 = vrot.lane.b32.xlu0 %v3129, 18
  %v3289 = vpop.permute.xlu0 %3288
  %3290 = vrot.lane.b32.xlu0 %v3130, 18
  %v3291 = vpop.permute.xlu0 %3290
  %3292 = vrot.lane.b32.xlu0 %v3131, 18
  %v3293 = vpop.permute.xlu0 %3292
  %3294 = vrot.lane.b32.xlu0 %v3132, 18
  %v3295 = vpop.permute.xlu0 %3294
  %3296 = vrot.lane.b32.xlu0 %v3133, 18
  %v3297 = vpop.permute.xlu0 %3296
  %3298 = vrot.lane.b32.xlu0 %v3134, 18
  %v3299 = vpop.permute.xlu0 %3298
  %3300 = vrot.lane.b32.xlu0 %v3135, 18
  %v3301 = vpop.permute.xlu0 %3300
  %3302 = vrot.lane.b32.xlu0 %v3136, 18
  %v3303 = vpop.permute.xlu0 %3302
  %3304 = vrot.lane.b32.xlu0 %v3137, 18
  %v3305 = vpop.permute.xlu0 %3304
  %v3362 = vadd.f32 %v3026, %v3195
  %v3363 = vadd.f32 %v3027, %v3197
  %v3364 = vadd.f32 %v3028, %v3199
  %v3365 = vadd.f32 %v3029, %v3201
  %v3366 = vadd.f32 %v3030, %v3203
  %v3367 = vadd.f32 %v3031, %v3205
  %v3368 = vadd.f32 %v3032, %v3207
  %v3369 = vadd.f32 %v3033, %v3209
  %v3370 = vadd.f32 %v3034, %v3211
  %v3371 = vadd.f32 %v3035, %v3213
  %v3372 = vadd.f32 %v3036, %v3215
  %v3373 = vadd.f32 %v3037, %v3217
  %v3374 = vadd.f32 %v3038, %v3219
  %v3375 = vadd.f32 %v3039, %v3221
  %v3376 = vadd.f32 %v3040, %v3223
  %v3377 = vadd.f32 %v3041, %v3225
  %v3378 = vadd.f32 %v3042, %v3227
  %v3379 = vadd.f32 %v3043, %v3229
  %v3380 = vadd.f32 %v3044, %v3231
  %v3381 = vadd.f32 %v3045, %v3233
  %v3382 = vadd.f32 %v3046, %v3235
  %v3383 = vadd.f32 %v3047, %v3237
  %v3384 = vadd.f32 %v3048, %v3239
  %v3385 = vadd.f32 %v3049, %v3241
  %v3386 = vadd.f32 %v3050, %v3243
  %v3387 = vadd.f32 %v3051, %v3245
  %v3388 = vadd.f32 %v3052, %v3247
  %v3389 = vadd.f32 %v3053, %v3249
  %v3390 = vadd.f32 %v3054, %v3251
  %v3391 = vadd.f32 %v3055, %v3253
  %v3392 = vadd.f32 %v3056, %v3255
  %v3393 = vadd.f32 %v3057, %v3257
  %v3394 = vadd.f32 %v3058, %v3259
  %v3395 = vadd.f32 %v3059, %v3261
  %v3396 = vadd.f32 %v3060, %v3263
  %v3397 = vadd.f32 %v3061, %v3265
  %v3398 = vadd.f32 %v3062, %v3267
  %v3399 = vadd.f32 %v3063, %v3269
  %v3400 = vadd.f32 %v3064, %v3271
  %v3401 = vadd.f32 %v3065, %v3273
  %v3402 = vadd.f32 %v3066, %v3275
  %v3403 = vadd.f32 %v3067, %v3277
  %v3404 = vadd.f32 %v3068, %v3279
  %v3405 = vadd.f32 %v3069, %v3281
  %v3406 = vadd.f32 %v3070, %v3283
  %v3407 = vadd.f32 %v3071, %v3285
  %v3408 = vadd.f32 %v3072, %v3287
  %v3409 = vadd.f32 %v3073, %v3289
  %v3410 = vadd.f32 %v3074, %v3291
  %v3411 = vadd.f32 %v3075, %v3293
  %v3412 = vadd.f32 %v3076, %v3295
  %v3413 = vadd.f32 %v3077, %v3297
  %v3414 = vadd.f32 %v3078, %v3299
  %v3415 = vadd.f32 %v3079, %v3301
  %v3416 = vadd.f32 %v3080, %v3303
  %v3417 = vadd.f32 %v3081, %v3305
  %v3418 = vld [vmem:[#allocation3 + $0x4] sm:$0xff]
  %v3419 = vld [vmem:[#allocation3 + $0xc] sm:$0xff]
  %v3420 = vld [vmem:[#allocation3 + $0x14] sm:$0xff]
  %v3421 = vld [vmem:[#allocation3 + $0x1c] sm:$0xff]
  %v3422 = vld [vmem:[#allocation3 + $0x24] sm:$0xff]
  %v3423 = vld [vmem:[#allocation3 + $0x2c] sm:$0xff]
  %v3424 = vld [vmem:[#allocation3 + $0x34] sm:$0xff]
  %v3425 = vld [vmem:[#allocation3 + $0x3c] sm:$0xff]
  %v3426 = vld [vmem:[#allocation3 + $0x44] sm:$0xff]
  %v3427 = vld [vmem:[#allocation3 + $0x4c] sm:$0xff]
  %v3428 = vld [vmem:[#allocation3 + $0x54] sm:$0xff]
  %v3429 = vld [vmem:[#allocation3 + $0x5c] sm:$0xff]
  %v3430 = vld [vmem:[#allocation3 + $0x64] sm:$0xff]
  %v3431 = vld [vmem:[#allocation3 + $0x6c] sm:$0xff]
  %v3432 = vld [vmem:[#allocation3 + $0x74] sm:$0xff]
  %v3433 = vld [vmem:[#allocation3 + $0x7c] sm:$0xff]
  %v3434 = vld [vmem:[#allocation3 + $0x84] sm:$0xff]
  %v3435 = vld [vmem:[#allocation3 + $0x8c] sm:$0xff]
  %v3436 = vld [vmem:[#allocation3 + $0x94] sm:$0xff]
  %v3437 = vld [vmem:[#allocation3 + $0x9c] sm:$0xff]
  %v3438 = vld [vmem:[#allocation3 + $0xa4] sm:$0xff]
  %v3439 = vld [vmem:[#allocation3 + $0xac] sm:$0xff]
  %v3440 = vld [vmem:[#allocation3 + $0xb4] sm:$0xff]
  %v3441 = vld [vmem:[#allocation3 + $0xbc] sm:$0xff]
  %v3442 = vld [vmem:[#allocation3 + $0xc4] sm:$0xff]
  %v3443 = vld [vmem:[#allocation3 + $0xcc] sm:$0xff]
  %v3444 = vld [vmem:[#allocation3 + $0xd4] sm:$0xff]
  %v3445 = vld [vmem:[#allocation3 + $0xdc] sm:$0xff]
  %v3446 = vld [vmem:[#allocation3 + $0xe4] sm:$0xff]
  %v3447 = vld [vmem:[#allocation3 + $0xec] sm:$0xff]
  %v3448 = vld [vmem:[#allocation3 + $0xf4] sm:$0xff]
  %v3449 = vld [vmem:[#allocation3 + $0xfc] sm:$0xff]
  %v3450 = vld [vmem:[#allocation3 + $0x104] sm:$0xff]
  %v3451 = vld [vmem:[#allocation3 + $0x10c] sm:$0xff]
  %v3452 = vld [vmem:[#allocation3 + $0x114] sm:$0xff]
  %v3453 = vld [vmem:[#allocation3 + $0x11c] sm:$0xff]
  %v3454 = vld [vmem:[#allocation3 + $0x124] sm:$0xff]
  %v3455 = vld [vmem:[#allocation3 + $0x12c] sm:$0xff]
  %v3456 = vld [vmem:[#allocation3 + $0x134] sm:$0xff]
  %v3457 = vld [vmem:[#allocation3 + $0x13c] sm:$0xff]
  %v3458 = vld [vmem:[#allocation3 + $0x144] sm:$0xff]
  %v3459 = vld [vmem:[#allocation3 + $0x14c] sm:$0xff]
  %v3460 = vld [vmem:[#allocation3 + $0x154] sm:$0xff]
  %v3461 = vld [vmem:[#allocation3 + $0x15c] sm:$0xff]
  %v3462 = vld [vmem:[#allocation3 + $0x164] sm:$0xff]
  %v3463 = vld [vmem:[#allocation3 + $0x16c] sm:$0xff]
  %v3464 = vld [vmem:[#allocation3 + $0x174] sm:$0xff]
  %v3465 = vld [vmem:[#allocation3 + $0x17c] sm:$0xff]
  %v3466 = vld [vmem:[#allocation3 + $0x184] sm:$0xff]
  %v3467 = vld [vmem:[#allocation3 + $0x18c] sm:$0xff]
  %v3468 = vld [vmem:[#allocation3 + $0x194] sm:$0xff]
  %v3469 = vld [vmem:[#allocation3 + $0x19c] sm:$0xff]
  %v3470 = vld [vmem:[#allocation3 + $0x1a4] sm:$0xff]
  %v3471 = vld [vmem:[#allocation3 + $0x1ac] sm:$0xff]
  %v3472 = vld [vmem:[#allocation3 + $0x1b4] sm:$0xff]
  %v3473 = vld [vmem:[#allocation3 + $0x1bc] sm:$0xff]
  %3530 = vrot.lane.b32.xlu0 %v3418, 24
  %v3531 = vpop.permute.xlu0 %3530
  %3532 = vrot.lane.b32.xlu0 %v3419, 24
  %v3533 = vpop.permute.xlu0 %3532
  %3534 = vrot.lane.b32.xlu0 %v3420, 24
  %v3535 = vpop.permute.xlu0 %3534
  %3536 = vrot.lane.b32.xlu0 %v3421, 24
  %v3537 = vpop.permute.xlu0 %3536
  %3538 = vrot.lane.b32.xlu0 %v3422, 24
  %v3539 = vpop.permute.xlu0 %3538
  %3540 = vrot.lane.b32.xlu0 %v3423, 24
  %v3541 = vpop.permute.xlu0 %3540
  %3542 = vrot.lane.b32.xlu0 %v3424, 24
  %v3543 = vpop.permute.xlu0 %3542
  %3544 = vrot.lane.b32.xlu0 %v3425, 24
  %v3545 = vpop.permute.xlu0 %3544
  %3546 = vrot.lane.b32.xlu0 %v3426, 24
  %v3547 = vpop.permute.xlu0 %3546
  %3548 = vrot.lane.b32.xlu0 %v3427, 24
  %v3549 = vpop.permute.xlu0 %3548
  %3550 = vrot.lane.b32.xlu0 %v3428, 24
  %v3551 = vpop.permute.xlu0 %3550
  %3552 = vrot.lane.b32.xlu0 %v3429, 24
  %v3553 = vpop.permute.xlu0 %3552
  %3554 = vrot.lane.b32.xlu0 %v3430, 24
  %v3555 = vpop.permute.xlu0 %3554
  %3556 = vrot.lane.b32.xlu0 %v3431, 24
  %v3557 = vpop.permute.xlu0 %3556
  %3558 = vrot.lane.b32.xlu0 %v3432, 24
  %v3559 = vpop.permute.xlu0 %3558
  %3560 = vrot.lane.b32.xlu0 %v3433, 24
  %v3561 = vpop.permute.xlu0 %3560
  %3562 = vrot.lane.b32.xlu0 %v3434, 24
  %v3563 = vpop.permute.xlu0 %3562
  %3564 = vrot.lane.b32.xlu0 %v3435, 24
  %v3565 = vpop.permute.xlu0 %3564
  %3566 = vrot.lane.b32.xlu0 %v3436, 24
  %v3567 = vpop.permute.xlu0 %3566
  %3568 = vrot.lane.b32.xlu0 %v3437, 24
  %v3569 = vpop.permute.xlu0 %3568
  %3570 = vrot.lane.b32.xlu0 %v3438, 24
  %v3571 = vpop.permute.xlu0 %3570
  %3572 = vrot.lane.b32.xlu0 %v3439, 24
  %v3573 = vpop.permute.xlu0 %3572
  %3574 = vrot.lane.b32.xlu0 %v3440, 24
  %v3575 = vpop.permute.xlu0 %3574
  %3576 = vrot.lane.b32.xlu0 %v3441, 24
  %v3577 = vpop.permute.xlu0 %3576
  %3578 = vrot.lane.b32.xlu0 %v3442, 24
  %v3579 = vpop.permute.xlu0 %3578
  %3580 = vrot.lane.b32.xlu0 %v3443, 24
  %v3581 = vpop.permute.xlu0 %3580
  %3582 = vrot.lane.b32.xlu0 %v3444, 24
  %v3583 = vpop.permute.xlu0 %3582
  %3584 = vrot.lane.b32.xlu0 %v3445, 24
  %v3585 = vpop.permute.xlu0 %3584
  %3586 = vrot.lane.b32.xlu0 %v3446, 24
  %v3587 = vpop.permute.xlu0 %3586
  %3588 = vrot.lane.b32.xlu0 %v3447, 24
  %v3589 = vpop.permute.xlu0 %3588
  %3590 = vrot.lane.b32.xlu0 %v3448, 24
  %v3591 = vpop.permute.xlu0 %3590
  %3592 = vrot.lane.b32.xlu0 %v3449, 24
  %v3593 = vpop.permute.xlu0 %3592
  %3594 = vrot.lane.b32.xlu0 %v3450, 24
  %v3595 = vpop.permute.xlu0 %3594
  %3596 = vrot.lane.b32.xlu0 %v3451, 24
  %v3597 = vpop.permute.xlu0 %3596
  %3598 = vrot.lane.b32.xlu0 %v3452, 24
  %v3599 = vpop.permute.xlu0 %3598
  %3600 = vrot.lane.b32.xlu0 %v3453, 24
  %v3601 = vpop.permute.xlu0 %3600
  %3602 = vrot.lane.b32.xlu0 %v3454, 24
  %v3603 = vpop.permute.xlu0 %3602
  %3604 = vrot.lane.b32.xlu0 %v3455, 24
  %v3605 = vpop.permute.xlu0 %3604
  %3606 = vrot.lane.b32.xlu0 %v3456, 24
  %v3607 = vpop.permute.xlu0 %3606
  %3608 = vrot.lane.b32.xlu0 %v3457, 24
  %v3609 = vpop.permute.xlu0 %3608
  %3610 = vrot.lane.b32.xlu0 %v3458, 24
  %v3611 = vpop.permute.xlu0 %3610
  %3612 = vrot.lane.b32.xlu0 %v3459, 24
  %v3613 = vpop.permute.xlu0 %3612
  %3614 = vrot.lane.b32.xlu0 %v3460, 24
  %v3615 = vpop.permute.xlu0 %3614
  %3616 = vrot.lane.b32.xlu0 %v3461, 24
  %v3617 = vpop.permute.xlu0 %3616
  %3618 = vrot.lane.b32.xlu0 %v3462, 24
  %v3619 = vpop.permute.xlu0 %3618
  %3620 = vrot.lane.b32.xlu0 %v3463, 24
  %v3621 = vpop.permute.xlu0 %3620
  %3622 = vrot.lane.b32.xlu0 %v3464, 24
  %v3623 = vpop.permute.xlu0 %3622
  %3624 = vrot.lane.b32.xlu0 %v3465, 24
  %v3625 = vpop.permute.xlu0 %3624
  %3626 = vrot.lane.b32.xlu0 %v3466, 24
  %v3627 = vpop.permute.xlu0 %3626
  %3628 = vrot.lane.b32.xlu0 %v3467, 24
  %v3629 = vpop.permute.xlu0 %3628
  %3630 = vrot.lane.b32.xlu0 %v3468, 24
  %v3631 = vpop.permute.xlu0 %3630
  %3632 = vrot.lane.b32.xlu0 %v3469, 24
  %v3633 = vpop.permute.xlu0 %3632
  %3634 = vrot.lane.b32.xlu0 %v3470, 24
  %v3635 = vpop.permute.xlu0 %3634
  %3636 = vrot.lane.b32.xlu0 %v3471, 24
  %v3637 = vpop.permute.xlu0 %3636
  %3638 = vrot.lane.b32.xlu0 %v3472, 24
  %v3639 = vpop.permute.xlu0 %3638
  %3640 = vrot.lane.b32.xlu0 %v3473, 24
  %v3641 = vpop.permute.xlu0 %3640
  %v3698 = vadd.f32 %v3362, %v3531
  %v3699 = vadd.f32 %v3363, %v3533
  %v3700 = vadd.f32 %v3364, %v3535
  %v3701 = vadd.f32 %v3365, %v3537
  %v3702 = vadd.f32 %v3366, %v3539
  %v3703 = vadd.f32 %v3367, %v3541
  %v3704 = vadd.f32 %v3368, %v3543
  %v3705 = vadd.f32 %v3369, %v3545
  %v3706 = vadd.f32 %v3370, %v3547
  %v3707 = vadd.f32 %v3371, %v3549
  %v3708 = vadd.f32 %v3372, %v3551
  %v3709 = vadd.f32 %v3373, %v3553
  %v3710 = vadd.f32 %v3374, %v3555
  %v3711 = vadd.f32 %v3375, %v3557
  %v3712 = vadd.f32 %v3376, %v3559
  %v3713 = vadd.f32 %v3377, %v3561
  %v3714 = vadd.f32 %v3378, %v3563
  %v3715 = vadd.f32 %v3379, %v3565
  %v3716 = vadd.f32 %v3380, %v3567
  %v3717 = vadd.f32 %v3381, %v3569
  %v3718 = vadd.f32 %v3382, %v3571
  %v3719 = vadd.f32 %v3383, %v3573
  %v3720 = vadd.f32 %v3384, %v3575
  %v3721 = vadd.f32 %v3385, %v3577
  %v3722 = vadd.f32 %v3386, %v3579
  %v3723 = vadd.f32 %v3387, %v3581
  %v3724 = vadd.f32 %v3388, %v3583
  %v3725 = vadd.f32 %v3389, %v3585
  %v3726 = vadd.f32 %v3390, %v3587
  %v3727 = vadd.f32 %v3391, %v3589
  %v3728 = vadd.f32 %v3392, %v3591
  %v3729 = vadd.f32 %v3393, %v3593
  %v3730 = vadd.f32 %v3394, %v3595
  %v3731 = vadd.f32 %v3395, %v3597
  %v3732 = vadd.f32 %v3396, %v3599
  %v3733 = vadd.f32 %v3397, %v3601
  %v3734 = vadd.f32 %v3398, %v3603
  %v3735 = vadd.f32 %v3399, %v3605
  %v3736 = vadd.f32 %v3400, %v3607
  %v3737 = vadd.f32 %v3401, %v3609
  %v3738 = vadd.f32 %v3402, %v3611
  %v3739 = vadd.f32 %v3403, %v3613
  %v3740 = vadd.f32 %v3404, %v3615
  %v3741 = vadd.f32 %v3405, %v3617
  %v3742 = vadd.f32 %v3406, %v3619
  %v3743 = vadd.f32 %v3407, %v3621
  %v3744 = vadd.f32 %v3408, %v3623
  %v3745 = vadd.f32 %v3409, %v3625
  %v3746 = vadd.f32 %v3410, %v3627
  %v3747 = vadd.f32 %v3411, %v3629
  %v3748 = vadd.f32 %v3412, %v3631
  %v3749 = vadd.f32 %v3413, %v3633
  %v3750 = vadd.f32 %v3414, %v3635
  %v3751 = vadd.f32 %v3415, %v3637
  %v3752 = vadd.f32 %v3416, %v3639
  %v3753 = vadd.f32 %v3417, %v3641
  %3754 = vst [vmem:[#allocation4] sm:$0xff] %v3698
  %3755 = vst [vmem:[#allocation4 + $0x8] sm:$0xff] %v3699
  %3756 = vst [vmem:[#allocation4 + $0x10] sm:$0xff] %v3700
  %3757 = vst [vmem:[#allocation4 + $0x18] sm:$0xff] %v3701
  %3758 = vst [vmem:[#allocation4 + $0x20] sm:$0xff] %v3702
  %3759 = vst [vmem:[#allocation4 + $0x28] sm:$0xff] %v3703
  %3760 = vst [vmem:[#allocation4 + $0x30] sm:$0xff] %v3704
  %3761 = vst [vmem:[#allocation4 + $0x38] sm:$0xff] %v3705
  %3762 = vst [vmem:[#allocation4 + $0x40] sm:$0xff] %v3706
  %3763 = vst [vmem:[#allocation4 + $0x48] sm:$0xff] %v3707
  %3764 = vst [vmem:[#allocation4 + $0x50] sm:$0xff] %v3708
  %3765 = vst [vmem:[#allocation4 + $0x58] sm:$0xff] %v3709
  %3766 = vst [vmem:[#allocation4 + $0x60] sm:$0xff] %v3710
  %3767 = vst [vmem:[#allocation4 + $0x68] sm:$0xff] %v3711
  %3768 = vst [vmem:[#allocation4 + $0x70] sm:$0xff] %v3712
  %3769 = vst [vmem:[#allocation4 + $0x78] sm:$0xff] %v3713
  %3770 = vst [vmem:[#allocation4 + $0x80] sm:$0xff] %v3714
  %3771 = vst [vmem:[#allocation4 + $0x88] sm:$0xff] %v3715
  %3772 = vst [vmem:[#allocation4 + $0x90] sm:$0xff] %v3716
  %3773 = vst [vmem:[#allocation4 + $0x98] sm:$0xff] %v3717
  %3774 = vst [vmem:[#allocation4 + $0xa0] sm:$0xff] %v3718
  %3775 = vst [vmem:[#allocation4 + $0xa8] sm:$0xff] %v3719
  %3776 = vst [vmem:[#allocation4 + $0xb0] sm:$0xff] %v3720
  %3777 = vst [vmem:[#allocation4 + $0xb8] sm:$0xff] %v3721
  %3778 = vst [vmem:[#allocation4 + $0xc0] sm:$0xff] %v3722
  %3779 = vst [vmem:[#allocation4 + $0xc8] sm:$0xff] %v3723
  %3780 = vst [vmem:[#allocation4 + $0xd0] sm:$0xff] %v3724
  %3781 = vst [vmem:[#allocation4 + $0xd8] sm:$0xff] %v3725
  %3782 = vst [vmem:[#allocation4 + $0xe0] sm:$0xff] %v3726
  %3783 = vst [vmem:[#allocation4 + $0xe8] sm:$0xff] %v3727
  %3784 = vst [vmem:[#allocation4 + $0xf0] sm:$0xff] %v3728
  %3785 = vst [vmem:[#allocation4 + $0xf8] sm:$0xff] %v3729
  %3786 = vst [vmem:[#allocation4 + $0x100] sm:$0xff] %v3730
  %3787 = vst [vmem:[#allocation4 + $0x108] sm:$0xff] %v3731
  %3788 = vst [vmem:[#allocation4 + $0x110] sm:$0xff] %v3732
  %3789 = vst [vmem:[#allocation4 + $0x118] sm:$0xff] %v3733
  %3790 = vst [vmem:[#allocation4 + $0x120] sm:$0xff] %v3734
  %3791 = vst [vmem:[#allocation4 + $0x128] sm:$0xff] %v3735
  %3792 = vst [vmem:[#allocation4 + $0x130] sm:$0xff] %v3736
  %3793 = vst [vmem:[#allocation4 + $0x138] sm:$0xff] %v3737
  %3794 = vst [vmem:[#allocation4 + $0x140] sm:$0xff] %v3738
  %3795 = vst [vmem:[#allocation4 + $0x148] sm:$0xff] %v3739
  %3796 = vst [vmem:[#allocation4 + $0x150] sm:$0xff] %v3740
  %3797 = vst [vmem:[#allocation4 + $0x158] sm:$0xff] %v3741
  %3798 = vst [vmem:[#allocation4 + $0x160] sm:$0xff] %v3742
  %3799 = vst [vmem:[#allocation4 + $0x168] sm:$0xff] %v3743
  %3800 = vst [vmem:[#allocation4 + $0x170] sm:$0xff] %v3744
  %3801 = vst [vmem:[#allocation4 + $0x178] sm:$0xff] %v3745
  %3802 = vst [vmem:[#allocation4 + $0x180] sm:$0xff] %v3746
  %3803 = vst [vmem:[#allocation4 + $0x188] sm:$0xff] %v3747
  %3804 = vst [vmem:[#allocation4 + $0x190] sm:$0xff] %v3748
  %3805 = vst [vmem:[#allocation4 + $0x198] sm:$0xff] %v3749
  %3806 = vst [vmem:[#allocation4 + $0x1a0] sm:$0xff] %v3750
  %3807 = vst [vmem:[#allocation4 + $0x1a8] sm:$0xff] %v3751
  %3808 = vst [vmem:[#allocation4 + $0x1b0] sm:$0xff] %v3752
  %3809 = vst [vmem:[#allocation4 + $0x1b8] sm:$0xff] %v3753
  %v3810 = vld [vmem:[#allocation4] sm:$0xff]
  %v3811 = vld [vmem:[#allocation4 + $0x8] sm:$0xff]
  %v3812 = vld [vmem:[#allocation4 + $0x10] sm:$0xff]
  %v3813 = vld [vmem:[#allocation4 + $0x18] sm:$0xff]
  %v3814 = vld [vmem:[#allocation4 + $0x20] sm:$0xff]
  %v3815 = vld [vmem:[#allocation4 + $0x28] sm:$0xff]
  %v3816 = vld [vmem:[#allocation4 + $0x30] sm:$0xff]
  %v3817 = vld [vmem:[#allocation4 + $0x38] sm:$0xff]
  %v3818 = vld [vmem:[#allocation4 + $0x40] sm:$0xff]
  %v3819 = vld [vmem:[#allocation4 + $0x48] sm:$0xff]
  %v3820 = vld [vmem:[#allocation4 + $0x50] sm:$0xff]
  %v3821 = vld [vmem:[#allocation4 + $0x58] sm:$0xff]
  %v3822 = vld [vmem:[#allocation4 + $0x60] sm:$0xff]
  %v3823 = vld [vmem:[#allocation4 + $0x68] sm:$0xff]
  %v3824 = vld [vmem:[#allocation4 + $0x70] sm:$0xff]
  %v3825 = vld [vmem:[#allocation4 + $0x78] sm:$0xff]
  %v3826 = vld [vmem:[#allocation4 + $0x80] sm:$0xff]
  %v3827 = vld [vmem:[#allocation4 + $0x88] sm:$0xff]
  %v3828 = vld [vmem:[#allocation4 + $0x90] sm:$0xff]
  %v3829 = vld [vmem:[#allocation4 + $0x98] sm:$0xff]
  %v3830 = vld [vmem:[#allocation4 + $0xa0] sm:$0xff]
  %v3831 = vld [vmem:[#allocation4 + $0xa8] sm:$0xff]
  %v3832 = vld [vmem:[#allocation4 + $0xb0] sm:$0xff]
  %v3833 = vld [vmem:[#allocation4 + $0xb8] sm:$0xff]
  %v3834 = vld [vmem:[#allocation4 + $0xc0] sm:$0xff]
  %v3835 = vld [vmem:[#allocation4 + $0xc8] sm:$0xff]
  %v3836 = vld [vmem:[#allocation4 + $0xd0] sm:$0xff]
  %v3837 = vld [vmem:[#allocation4 + $0xd8] sm:$0xff]
  %v3838 = vld [vmem:[#allocation4 + $0xe0] sm:$0xff]
  %v3839 = vld [vmem:[#allocation4 + $0xe8] sm:$0xff]
  %v3840 = vld [vmem:[#allocation4 + $0xf0] sm:$0xff]
  %v3841 = vld [vmem:[#allocation4 + $0xf8] sm:$0xff]
  %v3842 = vld [vmem:[#allocation4 + $0x100] sm:$0xff]
  %v3843 = vld [vmem:[#allocation4 + $0x108] sm:$0xff]
  %v3844 = vld [vmem:[#allocation4 + $0x110] sm:$0xff]
  %v3845 = vld [vmem:[#allocation4 + $0x118] sm:$0xff]
  %v3846 = vld [vmem:[#allocation4 + $0x120] sm:$0xff]
  %v3847 = vld [vmem:[#allocation4 + $0x128] sm:$0xff]
  %v3848 = vld [vmem:[#allocation4 + $0x130] sm:$0xff]
  %v3849 = vld [vmem:[#allocation4 + $0x138] sm:$0xff]
  %v3850 = vld [vmem:[#allocation4 + $0x140] sm:$0xff]
  %v3851 = vld [vmem:[#allocation4 + $0x148] sm:$0xff]
  %v3852 = vld [vmem:[#allocation4 + $0x150] sm:$0xff]
  %v3853 = vld [vmem:[#allocation4 + $0x158] sm:$0xff]
  %v3854 = vld [vmem:[#allocation4 + $0x160] sm:$0xff]
  %v3855 = vld [vmem:[#allocation4 + $0x168] sm:$0xff]
  %v3856 = vld [vmem:[#allocation4 + $0x170] sm:$0xff]
  %v3857 = vld [vmem:[#allocation4 + $0x178] sm:$0xff]
  %v3858 = vld [vmem:[%s4] sm:$0xff]
  %v3859 = vld [vmem:[%s4 + $0x8] sm:$0xff]
  %v3860 = vld [vmem:[%s4 + $0x10] sm:$0xff]
  %v3861 = vld [vmem:[%s4 + $0x18] sm:$0xff]
  %v3862 = vld [vmem:[%s4 + $0x20] sm:$0xff]
  %v3863 = vld [vmem:[%s4 + $0x28] sm:$0xff]
  %v3864 = vld [vmem:[%s4 + $0x30] sm:$0xff]
  %v3865 = vld [vmem:[%s4 + $0x38] sm:$0xff]
  %v3866 = vld [vmem:[%s4 + $0x40] sm:$0xff]
  %v3867 = vld [vmem:[%s4 + $0x48] sm:$0xff]
  %v3868 = vld [vmem:[%s4 + $0x50] sm:$0xff]
  %v3869 = vld [vmem:[%s4 + $0x58] sm:$0xff]
  %v3870 = vld [vmem:[%s4 + $0x60] sm:$0xff]
  %v3871 = vld [vmem:[%s4 + $0x68] sm:$0xff]
  %v3872 = vld [vmem:[%s4 + $0x70] sm:$0xff]
  %v3873 = vld [vmem:[%s4 + $0x78] sm:$0xff]
  %v3874 = vld [vmem:[#allocation4 + $0x180] sm:$0xff]
  %v3875 = vld [vmem:[#allocation4 + $0x188] sm:$0xff]
  %s3876 = scalar_lea.vmem %s4, 128
  %v3877 = vld [vmem:[%s3876] sm:$0xff]
  %v3878 = vld [vmem:[%s3876 + $0x8] sm:$0xff]
  %v3879 = vld [vmem:[%s3876 + $0x10] sm:$0xff]
  %v3880 = vld [vmem:[%s3876 + $0x18] sm:$0xff]
  %v3881 = vld [vmem:[%s3876 + $0x20] sm:$0xff]
  %v3882 = vld [vmem:[%s3876 + $0x28] sm:$0xff]
  %v3883 = vld [vmem:[%s3876 + $0x30] sm:$0xff]
  %v3884 = vld [vmem:[%s3876 + $0x38] sm:$0xff]
  %v3885 = vld [vmem:[%s3876 + $0x40] sm:$0xff]
  %v3886 = vld [vmem:[%s3876 + $0x48] sm:$0xff]
  %v3887 = vld [vmem:[%s3876 + $0x50] sm:$0xff]
  %v3888 = vld [vmem:[%s3876 + $0x58] sm:$0xff]
  %v3889 = vld [vmem:[%s3876 + $0x60] sm:$0xff]
  %v3890 = vld [vmem:[%s3876 + $0x68] sm:$0xff]
  %v3891 = vld [vmem:[%s3876 + $0x70] sm:$0xff]
  %v3892 = vld [vmem:[%s3876 + $0x78] sm:$0xff]
  %3893 = vmatpush.msra.mxu0 %v3892
  %3894 = vmatpush.msra.mxu0 %v3891
  %3895 = vmatpush.msra.mxu0 %v3890
  %3896 = vmatpush.msra.mxu0 %v3889
  %3897 = vmatpush.msra.mxu0 %v3888
  %3898 = vmatpush.msra.mxu0 %v3887
  %3899 = vmatpush.msra.mxu0 %v3886
  %3900 = vmatpush.msra.mxu0 %v3885
  %3901 = vmatpush.msra.mxu0 %v3884
  %3902 = vmatpush.msra.mxu0 %v3883
  %3903 = vmatpush.msra.mxu0 %v3882
  %3904 = vmatpush.msra.mxu0 %v3881
  %3905 = vmatpush.msra.mxu0 %v3880
  %3906 = vmatpush.msra.mxu0 %v3879
  %3907 = vmatpush.msra.mxu0 %v3878
  %3908 = vmatpush.msra.mxu0 %v3877
  %3909 = vmatmul.f32.gmra.mxu0 %v3812
  %v3910 = vpop.f32.mrf.mxu0
  %v3911 = vadd.f32 0.0, %v3910
  %3912 = vmatmul.f32.gmra.mxu0 %v3813
  %v3913 = vpop.f32.mrf.mxu0
  %v3914 = vadd.f32 0.0, %v3913
  %3915 = vmatmul.f32.gmra.mxu0 %v3814
  %v3916 = vpop.f32.mrf.mxu0
  %v3917 = vadd.f32 0.0, %v3916
  %3918 = vmatmul.f32.gmra.mxu0 %v3815
  %v3919 = vpop.f32.mrf.mxu0
  %v3920 = vadd.f32 0.0, %v3919
  %3921 = vmatmul.f32.gmra.mxu0 %v3816
  %v3922 = vpop.f32.mrf.mxu0
  %v3923 = vadd.f32 0.0, %v3922
  %3924 = vmatmul.f32.gmra.mxu0 %v3817
  %v3925 = vpop.f32.mrf.mxu0
  %v3926 = vadd.f32 0.0, %v3925
  %3927 = vmatmul.f32.gmra.mxu0 %v3818
  %v3928 = vpop.f32.mrf.mxu0
  %v3929 = vadd.f32 0.0, %v3928
  %3930 = vmatmul.f32.gmra.mxu0 %v3819
  %v3931 = vpop.f32.mrf.mxu0
  %v3932 = vadd.f32 0.0, %v3931
  %3933 = vmatmul.f32.gmra.mxu0 %v3820
  %v3934 = vpop.f32.mrf.mxu0
  %v3935 = vadd.f32 0.0, %v3934
  %3936 = vmatmul.f32.gmra.mxu0 %v3821
  %v3937 = vpop.f32.mrf.mxu0
  %v3938 = vadd.f32 0.0, %v3937
  %3939 = vmatmul.f32.gmra.mxu0 %v3822
  %v3940 = vpop.f32.mrf.mxu0
  %v3941 = vadd.f32 0.0, %v3940
  %3942 = vmatmul.f32.gmra.mxu0 %v3823
  %v3943 = vpop.f32.mrf.mxu0
  %v3944 = vadd.f32 0.0, %v3943
  %3945 = vmatmul.f32.gmra.mxu0 %v3824
  %v3946 = vpop.f32.mrf.mxu0
  %v3947 = vadd.f32 0.0, %v3946
  %3948 = vmatmul.f32.gmra.mxu0 %v3825
  %v3949 = vpop.f32.mrf.mxu0
  %v3950 = vadd.f32 0.0, %v3949
  %3951 = vmatmul.f32.gmra.mxu0 %v3826
  %v3952 = vpop.f32.mrf.mxu0
  %v3953 = vadd.f32 0.0, %v3952
  %3954 = vmatmul.f32.gmra.mxu0 %v3827
  %v3955 = vpop.f32.mrf.mxu0
  %v3956 = vadd.f32 0.0, %v3955
  %3957 = vmatmul.f32.gmra.mxu0 %v3828
  %v3958 = vpop.f32.mrf.mxu0
  %v3959 = vadd.f32 0.0, %v3958
  %3960 = vmatmul.f32.gmra.mxu0 %v3829
  %v3961 = vpop.f32.mrf.mxu0
  %v3962 = vadd.f32 0.0, %v3961
  %3963 = vmatmul.f32.gmra.mxu0 %v3830
  %v3964 = vpop.f32.mrf.mxu0
  %v3965 = vadd.f32 0.0, %v3964
  %3966 = vmatmul.f32.gmra.mxu0 %v3831
  %v3967 = vpop.f32.mrf.mxu0
  %v3968 = vadd.f32 0.0, %v3967
  %3969 = vmatmul.f32.gmra.mxu0 %v3832
  %v3970 = vpop.f32.mrf.mxu0
  %v3971 = vadd.f32 0.0, %v3970
  %3972 = vmatmul.f32.gmra.mxu0 %v3833
  %v3973 = vpop.f32.mrf.mxu0
  %v3974 = vadd.f32 0.0, %v3973
  %3975 = vmatmul.f32.gmra.mxu0 %v3834
  %v3976 = vpop.f32.mrf.mxu0
  %v3977 = vadd.f32 0.0, %v3976
  %3978 = vmatmul.f32.gmra.mxu0 %v3835
  %v3979 = vpop.f32.mrf.mxu0
  %v3980 = vadd.f32 0.0, %v3979
  %3981 = vmatmul.f32.gmra.mxu0 %v3836
  %v3982 = vpop.f32.mrf.mxu0
  %v3983 = vadd.f32 0.0, %v3982
  %3984 = vmatmul.f32.gmra.mxu0 %v3837
  %v3985 = vpop.f32.mrf.mxu0
  %v3986 = vadd.f32 0.0, %v3985
  %3987 = vmatmul.f32.gmra.mxu0 %v3838
  %v3988 = vpop.f32.mrf.mxu0
  %v3989 = vadd.f32 0.0, %v3988
  %3990 = vmatmul.f32.gmra.mxu0 %v3839
  %v3991 = vpop.f32.mrf.mxu0
  %v3992 = vadd.f32 0.0, %v3991
  %3993 = vmatmul.f32.gmra.mxu0 %v3840
  %v3994 = vpop.f32.mrf.mxu0
  %v3995 = vadd.f32 0.0, %v3994
  %3996 = vmatmul.f32.gmra.mxu0 %v3841
  %v3997 = vpop.f32.mrf.mxu0
  %v3998 = vadd.f32 0.0, %v3997
  %3999 = vmatmul.f32.gmra.mxu0 %v3842
  %v4000 = vpop.f32.mrf.mxu0
  %v4001 = vadd.f32 0.0, %v4000
  %4002 = vmatmul.f32.gmra.mxu0 %v3843
  %v4003 = vpop.f32.mrf.mxu0
  %v4004 = vadd.f32 0.0, %v4003
  %4005 = vmatmul.f32.gmra.mxu0 %v3844
  %v4006 = vpop.f32.mrf.mxu0
  %v4007 = vadd.f32 0.0, %v4006
  %4008 = vmatmul.f32.gmra.mxu0 %v3845
  %v4009 = vpop.f32.mrf.mxu0
  %v4010 = vadd.f32 0.0, %v4009
  %4011 = vmatmul.f32.gmra.mxu0 %v3846
  %v4012 = vpop.f32.mrf.mxu0
  %v4013 = vadd.f32 0.0, %v4012
  %4014 = vmatmul.f32.gmra.mxu0 %v3847
  %v4015 = vpop.f32.mrf.mxu0
  %v4016 = vadd.f32 0.0, %v4015
  %4017 = vmatmul.f32.gmra.mxu0 %v3848
  %v4018 = vpop.f32.mrf.mxu0
  %v4019 = vadd.f32 0.0, %v4018
  %4020 = vmatmul.f32.gmra.mxu0 %v3849
  %v4021 = vpop.f32.mrf.mxu0
  %v4022 = vadd.f32 0.0, %v4021
  %4023 = vmatmul.f32.gmra.mxu0 %v3850
  %v4024 = vpop.f32.mrf.mxu0
  %v4025 = vadd.f32 0.0, %v4024
  %4026 = vmatmul.f32.gmra.mxu0 %v3851
  %v4027 = vpop.f32.mrf.mxu0
  %v4028 = vadd.f32 0.0, %v4027
  %4029 = vmatmul.f32.gmra.mxu0 %v3852
  %v4030 = vpop.f32.mrf.mxu0
  %v4031 = vadd.f32 0.0, %v4030
  %4032 = vmatmul.f32.gmra.mxu0 %v3853
  %v4033 = vpop.f32.mrf.mxu0
  %v4034 = vadd.f32 0.0, %v4033
  %4035 = vmatmul.f32.gmra.mxu0 %v3854
  %v4036 = vpop.f32.mrf.mxu0
  %v4037 = vadd.f32 0.0, %v4036
  %4038 = vmatmul.f32.gmra.mxu0 %v3855
  %v4039 = vpop.f32.mrf.mxu0
  %v4040 = vadd.f32 0.0, %v4039
  %4041 = vmatmul.f32.gmra.mxu0 %v3856
  %v4042 = vpop.f32.mrf.mxu0
  %v4043 = vadd.f32 0.0, %v4042
  %4044 = vmatmul.f32.gmra.mxu0 %v3857
  %v4045 = vpop.f32.mrf.mxu0
  %v4046 = vadd.f32 0.0, %v4045
  %4047 = vmatmul.f32.gmra.mxu0 %v3874
  %v4048 = vpop.f32.mrf.mxu0
  %v4049 = vadd.f32 0.0, %v4048
  %4050 = vmatmul.f32.gmra.mxu0 %v3875
  %v4051 = vpop.f32.mrf.mxu0
  %v4052 = vadd.f32 0.0, %v4051
  %4053 = vdwg.mxu0
  %4054 = vmatpush.msra.mxu0 %v3873
  %4055 = vmatpush.msra.mxu0 %v3872
  %4056 = vmatpush.msra.mxu0 %v3871
  %4057 = vmatpush.msra.mxu0 %v3870
  %4058 = vmatpush.msra.mxu0 %v3869
  %4059 = vmatpush.msra.mxu0 %v3868
  %4060 = vmatpush.msra.mxu0 %v3867
  %4061 = vmatpush.msra.mxu0 %v3866
  %4062 = vmatpush.msra.mxu0 %v3865
  %4063 = vmatpush.msra.mxu0 %v3864
  %4064 = vmatpush.msra.mxu0 %v3863
  %4065 = vmatpush.msra.mxu0 %v3862
  %4066 = vmatpush.msra.mxu0 %v3861
  %4067 = vmatpush.msra.mxu0 %v3860
  %4068 = vmatpush.msra.mxu0 %v3859
  %4069 = vmatpush.msra.mxu0 %v3858
  %4070 = vmatmul.f32.gmra.mxu0 %v3810
  %v4071 = vpop.f32.mrf.mxu0
  %v4072 = vadd.f32 %v3911, %v4071
  %4073 = vmatmul.f32.gmra.mxu0 %v3811
  %v4074 = vpop.f32.mrf.mxu0
  %v4075 = vadd.f32 %v3914, %v4074
  %4076 = vmatmul.f32.gmra.mxu0 %v3812
  %v4077 = vpop.f32.mrf.mxu0
  %v4078 = vadd.f32 %v3917, %v4077
  %4079 = vmatmul.f32.gmra.mxu0 %v3813
  %v4080 = vpop.f32.mrf.mxu0
  %v4081 = vadd.f32 %v3920, %v4080
  %4082 = vmatmul.f32.gmra.mxu0 %v3814
  %v4083 = vpop.f32.mrf.mxu0
  %v4084 = vadd.f32 %v3923, %v4083
  %4085 = vmatmul.f32.gmra.mxu0 %v3815
  %v4086 = vpop.f32.mrf.mxu0
  %v4087 = vadd.f32 %v3926, %v4086
  %4088 = vmatmul.f32.gmra.mxu0 %v3816
  %v4089 = vpop.f32.mrf.mxu0
  %v4090 = vadd.f32 %v3929, %v4089
  %4091 = vmatmul.f32.gmra.mxu0 %v3817
  %v4092 = vpop.f32.mrf.mxu0
  %v4093 = vadd.f32 %v3932, %v4092
  %4094 = vmatmul.f32.gmra.mxu0 %v3818
  %v4095 = vpop.f32.mrf.mxu0
  %v4096 = vadd.f32 %v3935, %v4095
  %4097 = vmatmul.f32.gmra.mxu0 %v3819
  %v4098 = vpop.f32.mrf.mxu0
  %v4099 = vadd.f32 %v3938, %v4098
  %4100 = vmatmul.f32.gmra.mxu0 %v3820
  %v4101 = vpop.f32.mrf.mxu0
  %v4102 = vadd.f32 %v3941, %v4101
  %4103 = vmatmul.f32.gmra.mxu0 %v3821
  %v4104 = vpop.f32.mrf.mxu0
  %v4105 = vadd.f32 %v3944, %v4104
  %4106 = vmatmul.f32.gmra.mxu0 %v3822
  %v4107 = vpop.f32.mrf.mxu0
  %v4108 = vadd.f32 %v3947, %v4107
  %4109 = vmatmul.f32.gmra.mxu0 %v3823
  %v4110 = vpop.f32.mrf.mxu0
  %v4111 = vadd.f32 %v3950, %v4110
  %4112 = vmatmul.f32.gmra.mxu0 %v3824
  %v4113 = vpop.f32.mrf.mxu0
  %v4114 = vadd.f32 %v3953, %v4113
  %4115 = vmatmul.f32.gmra.mxu0 %v3825
  %v4116 = vpop.f32.mrf.mxu0
  %v4117 = vadd.f32 %v3956, %v4116
  %4118 = vmatmul.f32.gmra.mxu0 %v3826
  %v4119 = vpop.f32.mrf.mxu0
  %v4120 = vadd.f32 %v3959, %v4119
  %4121 = vmatmul.f32.gmra.mxu0 %v3827
  %v4122 = vpop.f32.mrf.mxu0
  %v4123 = vadd.f32 %v3962, %v4122
  %4124 = vmatmul.f32.gmra.mxu0 %v3828
  %v4125 = vpop.f32.mrf.mxu0
  %v4126 = vadd.f32 %v3965, %v4125
  %4127 = vmatmul.f32.gmra.mxu0 %v3829
  %v4128 = vpop.f32.mrf.mxu0
  %v4129 = vadd.f32 %v3968, %v4128
  %4130 = vmatmul.f32.gmra.mxu0 %v3830
  %v4131 = vpop.f32.mrf.mxu0
  %v4132 = vadd.f32 %v3971, %v4131
  %4133 = vmatmul.f32.gmra.mxu0 %v3831
  %v4134 = vpop.f32.mrf.mxu0
  %v4135 = vadd.f32 %v3974, %v4134
  %4136 = vmatmul.f32.gmra.mxu0 %v3832
  %v4137 = vpop.f32.mrf.mxu0
  %v4138 = vadd.f32 %v3977, %v4137
  %4139 = vmatmul.f32.gmra.mxu0 %v3833
  %v4140 = vpop.f32.mrf.mxu0
  %v4141 = vadd.f32 %v3980, %v4140
  %4142 = vmatmul.f32.gmra.mxu0 %v3834
  %v4143 = vpop.f32.mrf.mxu0
  %v4144 = vadd.f32 %v3983, %v4143
  %4145 = vmatmul.f32.gmra.mxu0 %v3835
  %v4146 = vpop.f32.mrf.mxu0
  %v4147 = vadd.f32 %v3986, %v4146
  %4148 = vmatmul.f32.gmra.mxu0 %v3836
  %v4149 = vpop.f32.mrf.mxu0
  %v4150 = vadd.f32 %v3989, %v4149
  %4151 = vmatmul.f32.gmra.mxu0 %v3837
  %v4152 = vpop.f32.mrf.mxu0
  %v4153 = vadd.f32 %v3992, %v4152
  %4154 = vmatmul.f32.gmra.mxu0 %v3838
  %v4155 = vpop.f32.mrf.mxu0
  %v4156 = vadd.f32 %v3995, %v4155
  %4157 = vmatmul.f32.gmra.mxu0 %v3839
  %v4158 = vpop.f32.mrf.mxu0
  %v4159 = vadd.f32 %v3998, %v4158
  %4160 = vmatmul.f32.gmra.mxu0 %v3840
  %v4161 = vpop.f32.mrf.mxu0
  %v4162 = vadd.f32 %v4001, %v4161
  %4163 = vmatmul.f32.gmra.mxu0 %v3841
  %v4164 = vpop.f32.mrf.mxu0
  %v4165 = vadd.f32 %v4004, %v4164
  %4166 = vmatmul.f32.gmra.mxu0 %v3842
  %v4167 = vpop.f32.mrf.mxu0
  %v4168 = vadd.f32 %v4007, %v4167
  %4169 = vmatmul.f32.gmra.mxu0 %v3843
  %v4170 = vpop.f32.mrf.mxu0
  %v4171 = vadd.f32 %v4010, %v4170
  %4172 = vmatmul.f32.gmra.mxu0 %v3844
  %v4173 = vpop.f32.mrf.mxu0
  %v4174 = vadd.f32 %v4013, %v4173
  %4175 = vmatmul.f32.gmra.mxu0 %v3845
  %v4176 = vpop.f32.mrf.mxu0
  %v4177 = vadd.f32 %v4016, %v4176
  %4178 = vmatmul.f32.gmra.mxu0 %v3846
  %v4179 = vpop.f32.mrf.mxu0
  %v4180 = vadd.f32 %v4019, %v4179
  %4181 = vmatmul.f32.gmra.mxu0 %v3847
  %v4182 = vpop.f32.mrf.mxu0
  %v4183 = vadd.f32 %v4022, %v4182
  %4184 = vmatmul.f32.gmra.mxu0 %v3848
  %v4185 = vpop.f32.mrf.mxu0
  %v4186 = vadd.f32 %v4025, %v4185
  %4187 = vmatmul.f32.gmra.mxu0 %v3849
  %v4188 = vpop.f32.mrf.mxu0
  %v4189 = vadd.f32 %v4028, %v4188
  %4190 = vmatmul.f32.gmra.mxu0 %v3850
  %v4191 = vpop.f32.mrf.mxu0
  %v4192 = vadd.f32 %v4031, %v4191
  %4193 = vmatmul.f32.gmra.mxu0 %v3851
  %v4194 = vpop.f32.mrf.mxu0
  %v4195 = vadd.f32 %v4034, %v4194
  %4196 = vmatmul.f32.gmra.mxu0 %v3852
  %v4197 = vpop.f32.mrf.mxu0
  %v4198 = vadd.f32 %v4037, %v4197
  %4199 = vmatmul.f32.gmra.mxu0 %v3853
  %v4200 = vpop.f32.mrf.mxu0
  %v4201 = vadd.f32 %v4040, %v4200
  %4202 = vmatmul.f32.gmra.mxu0 %v3854
  %v4203 = vpop.f32.mrf.mxu0
  %v4204 = vadd.f32 %v4043, %v4203
  %4205 = vmatmul.f32.gmra.mxu0 %v3855
  %v4206 = vpop.f32.mrf.mxu0
  %v4207 = vadd.f32 %v4046, %v4206
  %4208 = vmatmul.f32.gmra.mxu0 %v3856
  %v4209 = vpop.f32.mrf.mxu0
  %v4210 = vadd.f32 %v4049, %v4209
  %4211 = vmatmul.f32.gmra.mxu0 %v3857
  %v4212 = vpop.f32.mrf.mxu0
  %v4213 = vadd.f32 %v4052, %v4212
  %4214 = vdwg.mxu0
  %v4215 = vld [vmem:[#allocation4 + $0x20] sm:$0xff]
  %v4216 = vld [vmem:[#allocation4 + $0x28] sm:$0xff]
  %v4217 = vld [vmem:[#allocation4 + $0x30] sm:$0xff]
  %v4218 = vld [vmem:[#allocation4 + $0x38] sm:$0xff]
  %v4219 = vld [vmem:[#allocation4 + $0x40] sm:$0xff]
  %v4220 = vld [vmem:[#allocation4 + $0x48] sm:$0xff]
  %v4221 = vld [vmem:[#allocation4 + $0x50] sm:$0xff]
  %v4222 = vld [vmem:[#allocation4 + $0x58] sm:$0xff]
  %v4223 = vld [vmem:[#allocation4 + $0x60] sm:$0xff]
  %v4224 = vld [vmem:[#allocation4 + $0x68] sm:$0xff]
  %v4225 = vld [vmem:[#allocation4 + $0x70] sm:$0xff]
  %v4226 = vld [vmem:[#allocation4 + $0x78] sm:$0xff]
  %v4227 = vld [vmem:[#allocation4 + $0x80] sm:$0xff]
  %v4228 = vld [vmem:[#allocation4 + $0x88] sm:$0xff]
  %v4229 = vld [vmem:[#allocation4 + $0x90] sm:$0xff]
  %v4230 = vld [vmem:[#allocation4 + $0x98] sm:$0xff]
  %v4231 = vld [vmem:[#allocation4 + $0xa0] sm:$0xff]
  %v4232 = vld [vmem:[#allocation4 + $0xa8] sm:$0xff]
  %v4233 = vld [vmem:[#allocation4 + $0xb0] sm:$0xff]
  %v4234 = vld [vmem:[#allocation4 + $0xb8] sm:$0xff]
  %v4235 = vld [vmem:[#allocation4 + $0xc0] sm:$0xff]
  %v4236 = vld [vmem:[#allocation4 + $0xc8] sm:$0xff]
  %v4237 = vld [vmem:[#allocation4 + $0xd0] sm:$0xff]
  %v4238 = vld [vmem:[#allocation4 + $0xd8] sm:$0xff]
  %v4239 = vld [vmem:[#allocation4 + $0xe0] sm:$0xff]
  %v4240 = vld [vmem:[#allocation4 + $0xe8] sm:$0xff]
  %v4241 = vld [vmem:[#allocation4 + $0xf0] sm:$0xff]
  %v4242 = vld [vmem:[#allocation4 + $0xf8] sm:$0xff]
  %v4243 = vld [vmem:[#allocation4 + $0x100] sm:$0xff]
  %v4244 = vld [vmem:[#allocation4 + $0x108] sm:$0xff]
  %v4245 = vld [vmem:[#allocation4 + $0x110] sm:$0xff]
  %v4246 = vld [vmem:[#allocation4 + $0x118] sm:$0xff]
  %v4247 = vld [vmem:[#allocation4 + $0x120] sm:$0xff]
  %v4248 = vld [vmem:[#allocation4 + $0x128] sm:$0xff]
  %v4249 = vld [vmem:[#allocation4 + $0x130] sm:$0xff]
  %v4250 = vld [vmem:[#allocation4 + $0x138] sm:$0xff]
  %v4251 = vld [vmem:[#allocation4 + $0x140] sm:$0xff]
  %v4252 = vld [vmem:[#allocation4 + $0x148] sm:$0xff]
  %v4253 = vld [vmem:[#allocation4 + $0x150] sm:$0xff]
  %v4254 = vld [vmem:[#allocation4 + $0x158] sm:$0xff]
  %v4255 = vld [vmem:[#allocation4 + $0x160] sm:$0xff]
  %v4256 = vld [vmem:[#allocation4 + $0x168] sm:$0xff]
  %v4257 = vld [vmem:[#allocation4 + $0x170] sm:$0xff]
  %v4258 = vld [vmem:[#allocation4 + $0x178] sm:$0xff]
  %v4259 = vld [vmem:[#allocation4 + $0x180] sm:$0xff]
  %v4260 = vld [vmem:[#allocation4 + $0x188] sm:$0xff]
  %v4261 = vld [vmem:[#allocation4 + $0x190] sm:$0xff]
  %v4262 = vld [vmem:[#allocation4 + $0x198] sm:$0xff]
  %s4263 = scalar_lea.vmem %s4, 256
  %v4264 = vld [vmem:[%s4263] sm:$0xff]
  %v4265 = vld [vmem:[%s4263 + $0x8] sm:$0xff]
  %v4266 = vld [vmem:[%s4263 + $0x10] sm:$0xff]
  %v4267 = vld [vmem:[%s4263 + $0x18] sm:$0xff]
  %v4268 = vld [vmem:[%s4263 + $0x20] sm:$0xff]
  %v4269 = vld [vmem:[%s4263 + $0x28] sm:$0xff]
  %v4270 = vld [vmem:[%s4263 + $0x30] sm:$0xff]
  %v4271 = vld [vmem:[%s4263 + $0x38] sm:$0xff]
  %v4272 = vld [vmem:[%s4263 + $0x40] sm:$0xff]
  %v4273 = vld [vmem:[%s4263 + $0x48] sm:$0xff]
  %v4274 = vld [vmem:[%s4263 + $0x50] sm:$0xff]
  %v4275 = vld [vmem:[%s4263 + $0x58] sm:$0xff]
  %v4276 = vld [vmem:[%s4263 + $0x60] sm:$0xff]
  %v4277 = vld [vmem:[%s4263 + $0x68] sm:$0xff]
  %v4278 = vld [vmem:[%s4263 + $0x70] sm:$0xff]
  %v4279 = vld [vmem:[%s4263 + $0x78] sm:$0xff]
  %4280 = vmatpush.msra.mxu0 %v4279
  %4281 = vmatpush.msra.mxu0 %v4278
  %4282 = vmatpush.msra.mxu0 %v4277
  %4283 = vmatpush.msra.mxu0 %v4276
  %4284 = vmatpush.msra.mxu0 %v4275
  %4285 = vmatpush.msra.mxu0 %v4274
  %4286 = vmatpush.msra.mxu0 %v4273
  %4287 = vmatpush.msra.mxu0 %v4272
  %4288 = vmatpush.msra.mxu0 %v4271
  %4289 = vmatpush.msra.mxu0 %v4270
  %4290 = vmatpush.msra.mxu0 %v4269
  %4291 = vmatpush.msra.mxu0 %v4268
  %4292 = vmatpush.msra.mxu0 %v4267
  %4293 = vmatpush.msra.mxu0 %v4266
  %4294 = vmatpush.msra.mxu0 %v4265
  %4295 = vmatpush.msra.mxu0 %v4264
  %4296 = vmatmul.f32.gmra.mxu0 %v4215
  %v4297 = vpop.f32.mrf.mxu0
  %v4298 = vadd.f32 0.0, %v4297
  %4299 = vmatmul.f32.gmra.mxu0 %v4216
  %v4300 = vpop.f32.mrf.mxu0
  %v4301 = vadd.f32 0.0, %v4300
  %4302 = vmatmul.f32.gmra.mxu0 %v4217
  %v4303 = vpop.f32.mrf.mxu0
  %v4304 = vadd.f32 0.0, %v4303
  %4305 = vmatmul.f32.gmra.mxu0 %v4218
  %v4306 = vpop.f32.mrf.mxu0
  %v4307 = vadd.f32 0.0, %v4306
  %4308 = vmatmul.f32.gmra.mxu0 %v4219
  %v4309 = vpop.f32.mrf.mxu0
  %v4310 = vadd.f32 0.0, %v4309
  %4311 = vmatmul.f32.gmra.mxu0 %v4220
  %v4312 = vpop.f32.mrf.mxu0
  %v4313 = vadd.f32 0.0, %v4312
  %4314 = vmatmul.f32.gmra.mxu0 %v4221
  %v4315 = vpop.f32.mrf.mxu0
  %v4316 = vadd.f32 0.0, %v4315
  %4317 = vmatmul.f32.gmra.mxu0 %v4222
  %v4318 = vpop.f32.mrf.mxu0
  %v4319 = vadd.f32 0.0, %v4318
  %4320 = vmatmul.f32.gmra.mxu0 %v4223
  %v4321 = vpop.f32.mrf.mxu0
  %v4322 = vadd.f32 0.0, %v4321
  %4323 = vmatmul.f32.gmra.mxu0 %v4224
  %v4324 = vpop.f32.mrf.mxu0
  %v4325 = vadd.f32 0.0, %v4324
  %4326 = vmatmul.f32.gmra.mxu0 %v4225
  %v4327 = vpop.f32.mrf.mxu0
  %v4328 = vadd.f32 0.0, %v4327
  %4329 = vmatmul.f32.gmra.mxu0 %v4226
  %v4330 = vpop.f32.mrf.mxu0
  %v4331 = vadd.f32 0.0, %v4330
  %4332 = vmatmul.f32.gmra.mxu0 %v4227
  %v4333 = vpop.f32.mrf.mxu0
  %v4334 = vadd.f32 0.0, %v4333
  %4335 = vmatmul.f32.gmra.mxu0 %v4228
  %v4336 = vpop.f32.mrf.mxu0
  %v4337 = vadd.f32 0.0, %v4336
  %4338 = vmatmul.f32.gmra.mxu0 %v4229
  %v4339 = vpop.f32.mrf.mxu0
  %v4340 = vadd.f32 0.0, %v4339
  %4341 = vmatmul.f32.gmra.mxu0 %v4230
  %v4342 = vpop.f32.mrf.mxu0
  %v4343 = vadd.f32 0.0, %v4342
  %4344 = vmatmul.f32.gmra.mxu0 %v4231
  %v4345 = vpop.f32.mrf.mxu0
  %v4346 = vadd.f32 0.0, %v4345
  %4347 = vmatmul.f32.gmra.mxu0 %v4232
  %v4348 = vpop.f32.mrf.mxu0
  %v4349 = vadd.f32 0.0, %v4348
  %4350 = vmatmul.f32.gmra.mxu0 %v4233
  %v4351 = vpop.f32.mrf.mxu0
  %v4352 = vadd.f32 0.0, %v4351
  %4353 = vmatmul.f32.gmra.mxu0 %v4234
  %v4354 = vpop.f32.mrf.mxu0
  %v4355 = vadd.f32 0.0, %v4354
  %4356 = vmatmul.f32.gmra.mxu0 %v4235
  %v4357 = vpop.f32.mrf.mxu0
  %v4358 = vadd.f32 0.0, %v4357
  %4359 = vmatmul.f32.gmra.mxu0 %v4236
  %v4360 = vpop.f32.mrf.mxu0
  %v4361 = vadd.f32 0.0, %v4360
  %4362 = vmatmul.f32.gmra.mxu0 %v4237
  %v4363 = vpop.f32.mrf.mxu0
  %v4364 = vadd.f32 0.0, %v4363
  %4365 = vmatmul.f32.gmra.mxu0 %v4238
  %v4366 = vpop.f32.mrf.mxu0
  %v4367 = vadd.f32 0.0, %v4366
  %4368 = vmatmul.f32.gmra.mxu0 %v4239
  %v4369 = vpop.f32.mrf.mxu0
  %v4370 = vadd.f32 0.0, %v4369
  %4371 = vmatmul.f32.gmra.mxu0 %v4240
  %v4372 = vpop.f32.mrf.mxu0
  %v4373 = vadd.f32 0.0, %v4372
  %4374 = vmatmul.f32.gmra.mxu0 %v4241
  %v4375 = vpop.f32.mrf.mxu0
  %v4376 = vadd.f32 0.0, %v4375
  %4377 = vmatmul.f32.gmra.mxu0 %v4242
  %v4378 = vpop.f32.mrf.mxu0
  %v4379 = vadd.f32 0.0, %v4378
  %4380 = vmatmul.f32.gmra.mxu0 %v4243
  %v4381 = vpop.f32.mrf.mxu0
  %v4382 = vadd.f32 0.0, %v4381
  %4383 = vmatmul.f32.gmra.mxu0 %v4244
  %v4384 = vpop.f32.mrf.mxu0
  %v4385 = vadd.f32 0.0, %v4384
  %4386 = vmatmul.f32.gmra.mxu0 %v4245
  %v4387 = vpop.f32.mrf.mxu0
  %v4388 = vadd.f32 0.0, %v4387
  %4389 = vmatmul.f32.gmra.mxu0 %v4246
  %v4390 = vpop.f32.mrf.mxu0
  %v4391 = vadd.f32 0.0, %v4390
  %4392 = vmatmul.f32.gmra.mxu0 %v4247
  %v4393 = vpop.f32.mrf.mxu0
  %v4394 = vadd.f32 0.0, %v4393
  %4395 = vmatmul.f32.gmra.mxu0 %v4248
  %v4396 = vpop.f32.mrf.mxu0
  %v4397 = vadd.f32 0.0, %v4396
  %4398 = vmatmul.f32.gmra.mxu0 %v4249
  %v4399 = vpop.f32.mrf.mxu0
  %v4400 = vadd.f32 0.0, %v4399
  %4401 = vmatmul.f32.gmra.mxu0 %v4250
  %v4402 = vpop.f32.mrf.mxu0
  %v4403 = vadd.f32 0.0, %v4402
  %4404 = vmatmul.f32.gmra.mxu0 %v4251
  %v4405 = vpop.f32.mrf.mxu0
  %v4406 = vadd.f32 0.0, %v4405
  %4407 = vmatmul.f32.gmra.mxu0 %v4252
  %v4408 = vpop.f32.mrf.mxu0
  %v4409 = vadd.f32 0.0, %v4408
  %4410 = vmatmul.f32.gmra.mxu0 %v4253
  %v4411 = vpop.f32.mrf.mxu0
  %v4412 = vadd.f32 0.0, %v4411
  %4413 = vmatmul.f32.gmra.mxu0 %v4254
  %v4414 = vpop.f32.mrf.mxu0
  %v4415 = vadd.f32 0.0, %v4414
  %4416 = vmatmul.f32.gmra.mxu0 %v4255
  %v4417 = vpop.f32.mrf.mxu0
  %v4418 = vadd.f32 0.0, %v4417
  %4419 = vmatmul.f32.gmra.mxu0 %v4256
  %v4420 = vpop.f32.mrf.mxu0
  %v4421 = vadd.f32 0.0, %v4420
  %4422 = vmatmul.f32.gmra.mxu0 %v4257
  %v4423 = vpop.f32.mrf.mxu0
  %v4424 = vadd.f32 0.0, %v4423
  %4425 = vmatmul.f32.gmra.mxu0 %v4258
  %v4426 = vpop.f32.mrf.mxu0
  %v4427 = vadd.f32 0.0, %v4426
  %4428 = vmatmul.f32.gmra.mxu0 %v4259
  %v4429 = vpop.f32.mrf.mxu0
  %v4430 = vadd.f32 0.0, %v4429
  %4431 = vmatmul.f32.gmra.mxu0 %v4260
  %v4432 = vpop.f32.mrf.mxu0
  %v4433 = vadd.f32 0.0, %v4432
  %4434 = vmatmul.f32.gmra.mxu0 %v4261
  %v4435 = vpop.f32.mrf.mxu0
  %v4436 = vadd.f32 0.0, %v4435
  %4437 = vmatmul.f32.gmra.mxu0 %v4262
  %v4438 = vpop.f32.mrf.mxu0
  %v4439 = vadd.f32 0.0, %v4438
  %4440 = vdwg.mxu0
  %v4441 = vadd.f32 %v4072, %v4298
  %v4442 = vadd.f32 %v4075, %v4301
  %v4443 = vadd.f32 %v4078, %v4304
  %v4444 = vadd.f32 %v4081, %v4307
  %v4445 = vadd.f32 %v4084, %v4310
  %v4446 = vadd.f32 %v4087, %v4313
  %v4447 = vadd.f32 %v4090, %v4316
  %v4448 = vadd.f32 %v4093, %v4319
  %v4449 = vadd.f32 %v4096, %v4322
  %v4450 = vadd.f32 %v4099, %v4325
  %v4451 = vadd.f32 %v4102, %v4328
  %v4452 = vadd.f32 %v4105, %v4331
  %v4453 = vadd.f32 %v4108, %v4334
  %v4454 = vadd.f32 %v4111, %v4337
  %v4455 = vadd.f32 %v4114, %v4340
  %v4456 = vadd.f32 %v4117, %v4343
  %v4457 = vadd.f32 %v4120, %v4346
  %v4458 = vadd.f32 %v4123, %v4349
  %v4459 = vadd.f32 %v4126, %v4352
  %v4460 = vadd.f32 %v4129, %v4355
  %v4461 = vadd.f32 %v4132, %v4358
  %v4462 = vadd.f32 %v4135, %v4361
  %v4463 = vadd.f32 %v4138, %v4364
  %v4464 = vadd.f32 %v4141, %v4367
  %v4465 = vadd.f32 %v4144, %v4370
  %v4466 = vadd.f32 %v4147, %v4373
  %v4467 = vadd.f32 %v4150, %v4376
  %v4468 = vadd.f32 %v4153, %v4379
  %v4469 = vadd.f32 %v4156, %v4382
  %v4470 = vadd.f32 %v4159, %v4385
  %v4471 = vadd.f32 %v4162, %v4388
  %v4472 = vadd.f32 %v4165, %v4391
  %v4473 = vadd.f32 %v4168, %v4394
  %v4474 = vadd.f32 %v4171, %v4397
  %v4475 = vadd.f32 %v4174, %v4400
  %v4476 = vadd.f32 %v4177, %v4403
  %v4477 = vadd.f32 %v4180, %v4406
  %v4478 = vadd.f32 %v4183, %v4409
  %v4479 = vadd.f32 %v4186, %v4412
  %v4480 = vadd.f32 %v4189, %v4415
  %v4481 = vadd.f32 %v4192, %v4418
  %v4482 = vadd.f32 %v4195, %v4421
  %v4483 = vadd.f32 %v4198, %v4424
  %v4484 = vadd.f32 %v4201, %v4427
  %v4485 = vadd.f32 %v4204, %v4430
  %v4486 = vadd.f32 %v4207, %v4433
  %v4487 = vadd.f32 %v4210, %v4436
  %v4488 = vadd.f32 %v4213, %v4439
  %v4489 = vld [vmem:[#allocation4 + $0x30] sm:$0xff]
  %v4490 = vld [vmem:[#allocation4 + $0x38] sm:$0xff]
  %v4491 = vld [vmem:[#allocation4 + $0x40] sm:$0xff]
  %v4492 = vld [vmem:[#allocation4 + $0x48] sm:$0xff]
  %v4493 = vld [vmem:[#allocation4 + $0x50] sm:$0xff]
  %v4494 = vld [vmem:[#allocation4 + $0x58] sm:$0xff]
  %v4495 = vld [vmem:[#allocation4 + $0x60] sm:$0xff]
  %v4496 = vld [vmem:[#allocation4 + $0x68] sm:$0xff]
  %v4497 = vld [vmem:[#allocation4 + $0x70] sm:$0xff]
  %v4498 = vld [vmem:[#allocation4 + $0x78] sm:$0xff]
  %v4499 = vld [vmem:[#allocation4 + $0x80] sm:$0xff]
  %v4500 = vld [vmem:[#allocation4 + $0x88] sm:$0xff]
  %v4501 = vld [vmem:[#allocation4 + $0x90] sm:$0xff]
  %v4502 = vld [vmem:[#allocation4 + $0x98] sm:$0xff]
  %v4503 = vld [vmem:[#allocation4 + $0xa0] sm:$0xff]
  %v4504 = vld [vmem:[#allocation4 + $0xa8] sm:$0xff]
  %v4505 = vld [vmem:[#allocation4 + $0xb0] sm:$0xff]
  %v4506 = vld [vmem:[#allocation4 + $0xb8] sm:$0xff]
  %v4507 = vld [vmem:[#allocation4 + $0xc0] sm:$0xff]
  %v4508 = vld [vmem:[#allocation4 + $0xc8] sm:$0xff]
  %v4509 = vld [vmem:[#allocation4 + $0xd0] sm:$0xff]
  %v4510 = vld [vmem:[#allocation4 + $0xd8] sm:$0xff]
  %v4511 = vld [vmem:[#allocation4 + $0xe0] sm:$0xff]
  %v4512 = vld [vmem:[#allocation4 + $0xe8] sm:$0xff]
  %v4513 = vld [vmem:[#allocation4 + $0xf0] sm:$0xff]
  %v4514 = vld [vmem:[#allocation4 + $0xf8] sm:$0xff]
  %v4515 = vld [vmem:[#allocation4 + $0x100] sm:$0xff]
  %v4516 = vld [vmem:[#allocation4 + $0x108] sm:$0xff]
  %v4517 = vld [vmem:[#allocation4 + $0x110] sm:$0xff]
  %v4518 = vld [vmem:[#allocation4 + $0x118] sm:$0xff]
  %v4519 = vld [vmem:[#allocation4 + $0x120] sm:$0xff]
  %v4520 = vld [vmem:[#allocation4 + $0x128] sm:$0xff]
  %v4521 = vld [vmem:[#allocation4 + $0x130] sm:$0xff]
  %v4522 = vld [vmem:[#allocation4 + $0x138] sm:$0xff]
  %v4523 = vld [vmem:[#allocation4 + $0x140] sm:$0xff]
  %v4524 = vld [vmem:[#allocation4 + $0x148] sm:$0xff]
  %v4525 = vld [vmem:[#allocation4 + $0x150] sm:$0xff]
  %v4526 = vld [vmem:[#allocation4 + $0x158] sm:$0xff]
  %v4527 = vld [vmem:[#allocation4 + $0x160] sm:$0xff]
  %v4528 = vld [vmem:[#allocation4 + $0x168] sm:$0xff]
  %v4529 = vld [vmem:[#allocation4 + $0x170] sm:$0xff]
  %v4530 = vld [vmem:[#allocation4 + $0x178] sm:$0xff]
  %v4531 = vld [vmem:[#allocation4 + $0x180] sm:$0xff]
  %v4532 = vld [vmem:[#allocation4 + $0x188] sm:$0xff]
  %v4533 = vld [vmem:[#allocation4 + $0x190] sm:$0xff]
  %v4534 = vld [vmem:[#allocation4 + $0x198] sm:$0xff]
  %v4535 = vld [vmem:[#allocation4 + $0x1a0] sm:$0xff]
  %v4536 = vld [vmem:[#allocation4 + $0x1a8] sm:$0xff]
  %s4537 = scalar_lea.vmem %s4, 384
  %v4538 = vld [vmem:[%s4537] sm:$0xff]
  %v4539 = vld [vmem:[%s4537 + $0x8] sm:$0xff]
  %v4540 = vld [vmem:[%s4537 + $0x10] sm:$0xff]
  %v4541 = vld [vmem:[%s4537 + $0x18] sm:$0xff]
  %v4542 = vld [vmem:[%s4537 + $0x20] sm:$0xff]
  %v4543 = vld [vmem:[%s4537 + $0x28] sm:$0xff]
  %v4544 = vld [vmem:[%s4537 + $0x30] sm:$0xff]
  %v4545 = vld [vmem:[%s4537 + $0x38] sm:$0xff]
  %v4546 = vld [vmem:[%s4537 + $0x40] sm:$0xff]
  %v4547 = vld [vmem:[%s4537 + $0x48] sm:$0xff]
  %v4548 = vld [vmem:[%s4537 + $0x50] sm:$0xff]
  %v4549 = vld [vmem:[%s4537 + $0x58] sm:$0xff]
  %v4550 = vld [vmem:[%s4537 + $0x60] sm:$0xff]
  %v4551 = vld [vmem:[%s4537 + $0x68] sm:$0xff]
  %v4552 = vld [vmem:[%s4537 + $0x70] sm:$0xff]
  %v4553 = vld [vmem:[%s4537 + $0x78] sm:$0xff]
  %4554 = vmatpush.msra.mxu0 %v4553
  %4555 = vmatpush.msra.mxu0 %v4552
  %4556 = vmatpush.msra.mxu0 %v4551
  %4557 = vmatpush.msra.mxu0 %v4550
  %4558 = vmatpush.msra.mxu0 %v4549
  %4559 = vmatpush.msra.mxu0 %v4548
  %4560 = vmatpush.msra.mxu0 %v4547
  %4561 = vmatpush.msra.mxu0 %v4546
  %4562 = vmatpush.msra.mxu0 %v4545
  %4563 = vmatpush.msra.mxu0 %v4544
  %4564 = vmatpush.msra.mxu0 %v4543
  %4565 = vmatpush.msra.mxu0 %v4542
  %4566 = vmatpush.msra.mxu0 %v4541
  %4567 = vmatpush.msra.mxu0 %v4540
  %4568 = vmatpush.msra.mxu0 %v4539
  %4569 = vmatpush.msra.mxu0 %v4538
  %4570 = vmatmul.f32.gmra.mxu0 %v4489
  %v4571 = vpop.f32.mrf.mxu0
  %v4572 = vadd.f32 0.0, %v4571
  %4573 = vmatmul.f32.gmra.mxu0 %v4490
  %v4574 = vpop.f32.mrf.mxu0
  %v4575 = vadd.f32 0.0, %v4574
  %4576 = vmatmul.f32.gmra.mxu0 %v4491
  %v4577 = vpop.f32.mrf.mxu0
  %v4578 = vadd.f32 0.0, %v4577
  %4579 = vmatmul.f32.gmra.mxu0 %v4492
  %v4580 = vpop.f32.mrf.mxu0
  %v4581 = vadd.f32 0.0, %v4580
  %4582 = vmatmul.f32.gmra.mxu0 %v4493
  %v4583 = vpop.f32.mrf.mxu0
  %v4584 = vadd.f32 0.0, %v4583
  %4585 = vmatmul.f32.gmra.mxu0 %v4494
  %v4586 = vpop.f32.mrf.mxu0
  %v4587 = vadd.f32 0.0, %v4586
  %4588 = vmatmul.f32.gmra.mxu0 %v4495
  %v4589 = vpop.f32.mrf.mxu0
  %v4590 = vadd.f32 0.0, %v4589
  %4591 = vmatmul.f32.gmra.mxu0 %v4496
  %v4592 = vpop.f32.mrf.mxu0
  %v4593 = vadd.f32 0.0, %v4592
  %4594 = vmatmul.f32.gmra.mxu0 %v4497
  %v4595 = vpop.f32.mrf.mxu0
  %v4596 = vadd.f32 0.0, %v4595
  %4597 = vmatmul.f32.gmra.mxu0 %v4498
  %v4598 = vpop.f32.mrf.mxu0
  %v4599 = vadd.f32 0.0, %v4598
  %4600 = vmatmul.f32.gmra.mxu0 %v4499
  %v4601 = vpop.f32.mrf.mxu0
  %v4602 = vadd.f32 0.0, %v4601
  %4603 = vmatmul.f32.gmra.mxu0 %v4500
  %v4604 = vpop.f32.mrf.mxu0
  %v4605 = vadd.f32 0.0, %v4604
  %4606 = vmatmul.f32.gmra.mxu0 %v4501
  %v4607 = vpop.f32.mrf.mxu0
  %v4608 = vadd.f32 0.0, %v4607
  %4609 = vmatmul.f32.gmra.mxu0 %v4502
  %v4610 = vpop.f32.mrf.mxu0
  %v4611 = vadd.f32 0.0, %v4610
  %4612 = vmatmul.f32.gmra.mxu0 %v4503
  %v4613 = vpop.f32.mrf.mxu0
  %v4614 = vadd.f32 0.0, %v4613
  %4615 = vmatmul.f32.gmra.mxu0 %v4504
  %v4616 = vpop.f32.mrf.mxu0
  %v4617 = vadd.f32 0.0, %v4616
  %4618 = vmatmul.f32.gmra.mxu0 %v4505
  %v4619 = vpop.f32.mrf.mxu0
  %v4620 = vadd.f32 0.0, %v4619
  %4621 = vmatmul.f32.gmra.mxu0 %v4506
  %v4622 = vpop.f32.mrf.mxu0
  %v4623 = vadd.f32 0.0, %v4622
  %4624 = vmatmul.f32.gmra.mxu0 %v4507
  %v4625 = vpop.f32.mrf.mxu0
  %v4626 = vadd.f32 0.0, %v4625
  %4627 = vmatmul.f32.gmra.mxu0 %v4508
  %v4628 = vpop.f32.mrf.mxu0
  %v4629 = vadd.f32 0.0, %v4628
  %4630 = vmatmul.f32.gmra.mxu0 %v4509
  %v4631 = vpop.f32.mrf.mxu0
  %v4632 = vadd.f32 0.0, %v4631
  %4633 = vmatmul.f32.gmra.mxu0 %v4510
  %v4634 = vpop.f32.mrf.mxu0
  %v4635 = vadd.f32 0.0, %v4634
  %4636 = vmatmul.f32.gmra.mxu0 %v4511
  %v4637 = vpop.f32.mrf.mxu0
  %v4638 = vadd.f32 0.0, %v4637
  %4639 = vmatmul.f32.gmra.mxu0 %v4512
  %v4640 = vpop.f32.mrf.mxu0
  %v4641 = vadd.f32 0.0, %v4640
  %4642 = vmatmul.f32.gmra.mxu0 %v4513
  %v4643 = vpop.f32.mrf.mxu0
  %v4644 = vadd.f32 0.0, %v4643
  %4645 = vmatmul.f32.gmra.mxu0 %v4514
  %v4646 = vpop.f32.mrf.mxu0
  %v4647 = vadd.f32 0.0, %v4646
  %4648 = vmatmul.f32.gmra.mxu0 %v4515
  %v4649 = vpop.f32.mrf.mxu0
  %v4650 = vadd.f32 0.0, %v4649
  %4651 = vmatmul.f32.gmra.mxu0 %v4516
  %v4652 = vpop.f32.mrf.mxu0
  %v4653 = vadd.f32 0.0, %v4652
  %4654 = vmatmul.f32.gmra.mxu0 %v4517
  %v4655 = vpop.f32.mrf.mxu0
  %v4656 = vadd.f32 0.0, %v4655
  %4657 = vmatmul.f32.gmra.mxu0 %v4518
  %v4658 = vpop.f32.mrf.mxu0
  %v4659 = vadd.f32 0.0, %v4658
  %4660 = vmatmul.f32.gmra.mxu0 %v4519
  %v4661 = vpop.f32.mrf.mxu0
  %v4662 = vadd.f32 0.0, %v4661
  %4663 = vmatmul.f32.gmra.mxu0 %v4520
  %v4664 = vpop.f32.mrf.mxu0
  %v4665 = vadd.f32 0.0, %v4664
  %4666 = vmatmul.f32.gmra.mxu0 %v4521
  %v4667 = vpop.f32.mrf.mxu0
  %v4668 = vadd.f32 0.0, %v4667
  %4669 = vmatmul.f32.gmra.mxu0 %v4522
  %v4670 = vpop.f32.mrf.mxu0
  %v4671 = vadd.f32 0.0, %v4670
  %4672 = vmatmul.f32.gmra.mxu0 %v4523
  %v4673 = vpop.f32.mrf.mxu0
  %v4674 = vadd.f32 0.0, %v4673
  %4675 = vmatmul.f32.gmra.mxu0 %v4524
  %v4676 = vpop.f32.mrf.mxu0
  %v4677 = vadd.f32 0.0, %v4676
  %4678 = vmatmul.f32.gmra.mxu0 %v4525
  %v4679 = vpop.f32.mrf.mxu0
  %v4680 = vadd.f32 0.0, %v4679
  %4681 = vmatmul.f32.gmra.mxu0 %v4526
  %v4682 = vpop.f32.mrf.mxu0
  %v4683 = vadd.f32 0.0, %v4682
  %4684 = vmatmul.f32.gmra.mxu0 %v4527
  %v4685 = vpop.f32.mrf.mxu0
  %v4686 = vadd.f32 0.0, %v4685
  %4687 = vmatmul.f32.gmra.mxu0 %v4528
  %v4688 = vpop.f32.mrf.mxu0
  %v4689 = vadd.f32 0.0, %v4688
  %4690 = vmatmul.f32.gmra.mxu0 %v4529
  %v4691 = vpop.f32.mrf.mxu0
  %v4692 = vadd.f32 0.0, %v4691
  %4693 = vmatmul.f32.gmra.mxu0 %v4530
  %v4694 = vpop.f32.mrf.mxu0
  %v4695 = vadd.f32 0.0, %v4694
  %4696 = vmatmul.f32.gmra.mxu0 %v4531
  %v4697 = vpop.f32.mrf.mxu0
  %v4698 = vadd.f32 0.0, %v4697
  %4699 = vmatmul.f32.gmra.mxu0 %v4532
  %v4700 = vpop.f32.mrf.mxu0
  %v4701 = vadd.f32 0.0, %v4700
  %4702 = vmatmul.f32.gmra.mxu0 %v4533
  %v4703 = vpop.f32.mrf.mxu0
  %v4704 = vadd.f32 0.0, %v4703
  %4705 = vmatmul.f32.gmra.mxu0 %v4534
  %v4706 = vpop.f32.mrf.mxu0
  %v4707 = vadd.f32 0.0, %v4706
  %4708 = vmatmul.f32.gmra.mxu0 %v4535
  %v4709 = vpop.f32.mrf.mxu0
  %v4710 = vadd.f32 0.0, %v4709
  %4711 = vmatmul.f32.gmra.mxu0 %v4536
  %v4712 = vpop.f32.mrf.mxu0
  %v4713 = vadd.f32 0.0, %v4712
  %4714 = vdwg.mxu0
  %v4715 = vadd.f32 %v4441, %v4572
  %v4716 = vadd.f32 %v4442, %v4575
  %v4717 = vadd.f32 %v4443, %v4578
  %v4718 = vadd.f32 %v4444, %v4581
  %v4719 = vadd.f32 %v4445, %v4584
  %v4720 = vadd.f32 %v4446, %v4587
  %v4721 = vadd.f32 %v4447, %v4590
  %v4722 = vadd.f32 %v4448, %v4593
  %v4723 = vadd.f32 %v4449, %v4596
  %v4724 = vadd.f32 %v4450, %v4599
  %v4725 = vadd.f32 %v4451, %v4602
  %v4726 = vadd.f32 %v4452, %v4605
  %v4727 = vadd.f32 %v4453, %v4608
  %v4728 = vadd.f32 %v4454, %v4611
  %v4729 = vadd.f32 %v4455, %v4614
  %v4730 = vadd.f32 %v4456, %v4617
  %v4731 = vadd.f32 %v4457, %v4620
  %v4732 = vadd.f32 %v4458, %v4623
  %v4733 = vadd.f32 %v4459, %v4626
  %v4734 = vadd.f32 %v4460, %v4629
  %v4735 = vadd.f32 %v4461, %v4632
  %v4736 = vadd.f32 %v4462, %v4635
  %v4737 = vadd.f32 %v4463, %v4638
  %v4738 = vadd.f32 %v4464, %v4641
  %v4739 = vadd.f32 %v4465, %v4644
  %v4740 = vadd.f32 %v4466, %v4647
  %v4741 = vadd.f32 %v4467, %v4650
  %v4742 = vadd.f32 %v4468, %v4653
  %v4743 = vadd.f32 %v4469, %v4656
  %v4744 = vadd.f32 %v4470, %v4659
  %v4745 = vadd.f32 %v4471, %v4662
  %v4746 = vadd.f32 %v4472, %v4665
  %v4747 = vadd.f32 %v4473, %v4668
  %v4748 = vadd.f32 %v4474, %v4671
  %v4749 = vadd.f32 %v4475, %v4674
  %v4750 = vadd.f32 %v4476, %v4677
  %v4751 = vadd.f32 %v4477, %v4680
  %v4752 = vadd.f32 %v4478, %v4683
  %v4753 = vadd.f32 %v4479, %v4686
  %v4754 = vadd.f32 %v4480, %v4689
  %v4755 = vadd.f32 %v4481, %v4692
  %v4756 = vadd.f32 %v4482, %v4695
  %v4757 = vadd.f32 %v4483, %v4698
  %v4758 = vadd.f32 %v4484, %v4701
  %v4759 = vadd.f32 %v4485, %v4704
  %v4760 = vadd.f32 %v4486, %v4707
  %v4761 = vadd.f32 %v4487, %v4710
  %v4762 = vadd.f32 %v4488, %v4713
  %v4763 = vld [vmem:[#allocation4 + $0x40] sm:$0xff]
  %v4764 = vld [vmem:[#allocation4 + $0x48] sm:$0xff]
  %v4765 = vld [vmem:[#allocation4 + $0x50] sm:$0xff]
  %v4766 = vld [vmem:[#allocation4 + $0x58] sm:$0xff]
  %v4767 = vld [vmem:[#allocation4 + $0x60] sm:$0xff]
  %v4768 = vld [vmem:[#allocation4 + $0x68] sm:$0xff]
  %v4769 = vld [vmem:[#allocation4 + $0x70] sm:$0xff]
  %v4770 = vld [vmem:[#allocation4 + $0x78] sm:$0xff]
  %v4771 = vld [vmem:[#allocation4 + $0x80] sm:$0xff]
  %v4772 = vld [vmem:[#allocation4 + $0x88] sm:$0xff]
  %v4773 = vld [vmem:[#allocation4 + $0x90] sm:$0xff]
  %v4774 = vld [vmem:[#allocation4 + $0x98] sm:$0xff]
  %v4775 = vld [vmem:[#allocation4 + $0xa0] sm:$0xff]
  %v4776 = vld [vmem:[#allocation4 + $0xa8] sm:$0xff]
  %v4777 = vld [vmem:[#allocation4 + $0xb0] sm:$0xff]
  %v4778 = vld [vmem:[#allocation4 + $0xb8] sm:$0xff]
  %v4779 = vld [vmem:[#allocation4 + $0xc0] sm:$0xff]
  %v4780 = vld [vmem:[#allocation4 + $0xc8] sm:$0xff]
  %v4781 = vld [vmem:[#allocation4 + $0xd0] sm:$0xff]
  %v4782 = vld [vmem:[#allocation4 + $0xd8] sm:$0xff]
  %v4783 = vld [vmem:[#allocation4 + $0xe0] sm:$0xff]
  %v4784 = vld [vmem:[#allocation4 + $0xe8] sm:$0xff]
  %v4785 = vld [vmem:[#allocation4 + $0xf0] sm:$0xff]
  %v4786 = vld [vmem:[#allocation4 + $0xf8] sm:$0xff]
  %v4787 = vld [vmem:[#allocation4 + $0x100] sm:$0xff]
  %v4788 = vld [vmem:[#allocation4 + $0x108] sm:$0xff]
  %v4789 = vld [vmem:[#allocation4 + $0x110] sm:$0xff]
  %v4790 = vld [vmem:[#allocation4 + $0x118] sm:$0xff]
  %v4791 = vld [vmem:[#allocation4 + $0x120] sm:$0xff]
  %v4792 = vld [vmem:[#allocation4 + $0x128] sm:$0xff]
  %v4793 = vld [vmem:[#allocation4 + $0x130] sm:$0xff]
  %v4794 = vld [vmem:[#allocation4 + $0x138] sm:$0xff]
  %v4795 = vld [vmem:[#allocation4 + $0x140] sm:$0xff]
  %v4796 = vld [vmem:[#allocation4 + $0x148] sm:$0xff]
  %v4797 = vld [vmem:[#allocation4 + $0x150] sm:$0xff]
  %v4798 = vld [vmem:[#allocation4 + $0x158] sm:$0xff]
  %v4799 = vld [vmem:[#allocation4 + $0x160] sm:$0xff]
  %v4800 = vld [vmem:[#allocation4 + $0x168] sm:$0xff]
  %v4801 = vld [vmem:[#allocation4 + $0x170] sm:$0xff]
  %v4802 = vld [vmem:[#allocation4 + $0x178] sm:$0xff]
  %v4803 = vld [vmem:[#allocation4 + $0x180] sm:$0xff]
  %v4804 = vld [vmem:[#allocation4 + $0x188] sm:$0xff]
  %v4805 = vld [vmem:[#allocation4 + $0x190] sm:$0xff]
  %v4806 = vld [vmem:[#allocation4 + $0x198] sm:$0xff]
  %v4807 = vld [vmem:[#allocation4 + $0x1a0] sm:$0xff]
  %v4808 = vld [vmem:[#allocation4 + $0x1a8] sm:$0xff]
  %v4809 = vld [vmem:[#allocation4 + $0x1b0] sm:$0xff]
  %v4810 = vld [vmem:[#allocation4 + $0x1b8] sm:$0xff]
  %s4811 = scalar_lea.vmem %s4, 512
  %v4812 = vld [vmem:[%s4811] sm:$0xff]
  %v4813 = vld [vmem:[%s4811 + $0x8] sm:$0xff]
  %v4814 = vld [vmem:[%s4811 + $0x10] sm:$0xff]
  %v4815 = vld [vmem:[%s4811 + $0x18] sm:$0xff]
  %v4816 = vld [vmem:[%s4811 + $0x20] sm:$0xff]
  %v4817 = vld [vmem:[%s4811 + $0x28] sm:$0xff]
  %v4818 = vld [vmem:[%s4811 + $0x30] sm:$0xff]
  %v4819 = vld [vmem:[%s4811 + $0x38] sm:$0xff]
  %v4820 = vld [vmem:[%s4811 + $0x40] sm:$0xff]
  %v4821 = vld [vmem:[%s4811 + $0x48] sm:$0xff]
  %v4822 = vld [vmem:[%s4811 + $0x50] sm:$0xff]
  %v4823 = vld [vmem:[%s4811 + $0x58] sm:$0xff]
  %v4824 = vld [vmem:[%s4811 + $0x60] sm:$0xff]
  %v4825 = vld [vmem:[%s4811 + $0x68] sm:$0xff]
  %v4826 = vld [vmem:[%s4811 + $0x70] sm:$0xff]
  %v4827 = vld [vmem:[%s4811 + $0x78] sm:$0xff]
  %4828 = vmatpush.msra.mxu0 %v4827
  %4829 = vmatpush.msra.mxu0 %v4826
  %4830 = vmatpush.msra.mxu0 %v4825
  %4831 = vmatpush.msra.mxu0 %v4824
  %4832 = vmatpush.msra.mxu0 %v4823
  %4833 = vmatpush.msra.mxu0 %v4822
  %4834 = vmatpush.msra.mxu0 %v4821
  %4835 = vmatpush.msra.mxu0 %v4820
  %4836 = vmatpush.msra.mxu0 %v4819
  %4837 = vmatpush.msra.mxu0 %v4818
  %4838 = vmatpush.msra.mxu0 %v4817
  %4839 = vmatpush.msra.mxu0 %v4816
  %4840 = vmatpush.msra.mxu0 %v4815
  %4841 = vmatpush.msra.mxu0 %v4814
  %4842 = vmatpush.msra.mxu0 %v4813
  %4843 = vmatpush.msra.mxu0 %v4812
  %4844 = vmatmul.f32.gmra.mxu0 %v4763
  %v4845 = vpop.f32.mrf.mxu0
  %v4846 = vadd.f32 0.0, %v4845
  %4847 = vmatmul.f32.gmra.mxu0 %v4764
  %v4848 = vpop.f32.mrf.mxu0
  %v4849 = vadd.f32 0.0, %v4848
  %4850 = vmatmul.f32.gmra.mxu0 %v4765
  %v4851 = vpop.f32.mrf.mxu0
  %v4852 = vadd.f32 0.0, %v4851
  %4853 = vmatmul.f32.gmra.mxu0 %v4766
  %v4854 = vpop.f32.mrf.mxu0
  %v4855 = vadd.f32 0.0, %v4854
  %4856 = vmatmul.f32.gmra.mxu0 %v4767
  %v4857 = vpop.f32.mrf.mxu0
  %v4858 = vadd.f32 0.0, %v4857
  %4859 = vmatmul.f32.gmra.mxu0 %v4768
  %v4860 = vpop.f32.mrf.mxu0
  %v4861 = vadd.f32 0.0, %v4860
  %4862 = vmatmul.f32.gmra.mxu0 %v4769
  %v4863 = vpop.f32.mrf.mxu0
  %v4864 = vadd.f32 0.0, %v4863
  %4865 = vmatmul.f32.gmra.mxu0 %v4770
  %v4866 = vpop.f32.mrf.mxu0
  %v4867 = vadd.f32 0.0, %v4866
  %4868 = vmatmul.f32.gmra.mxu0 %v4771
  %v4869 = vpop.f32.mrf.mxu0
  %v4870 = vadd.f32 0.0, %v4869
  %4871 = vmatmul.f32.gmra.mxu0 %v4772
  %v4872 = vpop.f32.mrf.mxu0
  %v4873 = vadd.f32 0.0, %v4872
  %4874 = vmatmul.f32.gmra.mxu0 %v4773
  %v4875 = vpop.f32.mrf.mxu0
  %v4876 = vadd.f32 0.0, %v4875
  %4877 = vmatmul.f32.gmra.mxu0 %v4774
  %v4878 = vpop.f32.mrf.mxu0
  %v4879 = vadd.f32 0.0, %v4878
  %4880 = vmatmul.f32.gmra.mxu0 %v4775
  %v4881 = vpop.f32.mrf.mxu0
  %v4882 = vadd.f32 0.0, %v4881
  %4883 = vmatmul.f32.gmra.mxu0 %v4776
  %v4884 = vpop.f32.mrf.mxu0
  %v4885 = vadd.f32 0.0, %v4884
  %4886 = vmatmul.f32.gmra.mxu0 %v4777
  %v4887 = vpop.f32.mrf.mxu0
  %v4888 = vadd.f32 0.0, %v4887
  %4889 = vmatmul.f32.gmra.mxu0 %v4778
  %v4890 = vpop.f32.mrf.mxu0
  %v4891 = vadd.f32 0.0, %v4890
  %4892 = vmatmul.f32.gmra.mxu0 %v4779
  %v4893 = vpop.f32.mrf.mxu0
  %v4894 = vadd.f32 0.0, %v4893
  %4895 = vmatmul.f32.gmra.mxu0 %v4780
  %v4896 = vpop.f32.mrf.mxu0
  %v4897 = vadd.f32 0.0, %v4896
  %4898 = vmatmul.f32.gmra.mxu0 %v4781
  %v4899 = vpop.f32.mrf.mxu0
  %v4900 = vadd.f32 0.0, %v4899
  %4901 = vmatmul.f32.gmra.mxu0 %v4782
  %v4902 = vpop.f32.mrf.mxu0
  %v4903 = vadd.f32 0.0, %v4902
  %4904 = vmatmul.f32.gmra.mxu0 %v4783
  %v4905 = vpop.f32.mrf.mxu0
  %v4906 = vadd.f32 0.0, %v4905
  %4907 = vmatmul.f32.gmra.mxu0 %v4784
  %v4908 = vpop.f32.mrf.mxu0
  %v4909 = vadd.f32 0.0, %v4908
  %4910 = vmatmul.f32.gmra.mxu0 %v4785
  %v4911 = vpop.f32.mrf.mxu0
  %v4912 = vadd.f32 0.0, %v4911
  %4913 = vmatmul.f32.gmra.mxu0 %v4786
  %v4914 = vpop.f32.mrf.mxu0
  %v4915 = vadd.f32 0.0, %v4914
  %4916 = vmatmul.f32.gmra.mxu0 %v4787
  %v4917 = vpop.f32.mrf.mxu0
  %v4918 = vadd.f32 0.0, %v4917
  %4919 = vmatmul.f32.gmra.mxu0 %v4788
  %v4920 = vpop.f32.mrf.mxu0
  %v4921 = vadd.f32 0.0, %v4920
  %4922 = vmatmul.f32.gmra.mxu0 %v4789
  %v4923 = vpop.f32.mrf.mxu0
  %v4924 = vadd.f32 0.0, %v4923
  %4925 = vmatmul.f32.gmra.mxu0 %v4790
  %v4926 = vpop.f32.mrf.mxu0
  %v4927 = vadd.f32 0.0, %v4926
  %4928 = vmatmul.f32.gmra.mxu0 %v4791
  %v4929 = vpop.f32.mrf.mxu0
  %v4930 = vadd.f32 0.0, %v4929
  %4931 = vmatmul.f32.gmra.mxu0 %v4792
  %v4932 = vpop.f32.mrf.mxu0
  %v4933 = vadd.f32 0.0, %v4932
  %4934 = vmatmul.f32.gmra.mxu0 %v4793
  %v4935 = vpop.f32.mrf.mxu0
  %v4936 = vadd.f32 0.0, %v4935
  %4937 = vmatmul.f32.gmra.mxu0 %v4794
  %v4938 = vpop.f32.mrf.mxu0
  %v4939 = vadd.f32 0.0, %v4938
  %4940 = vmatmul.f32.gmra.mxu0 %v4795
  %v4941 = vpop.f32.mrf.mxu0
  %v4942 = vadd.f32 0.0, %v4941
  %4943 = vmatmul.f32.gmra.mxu0 %v4796
  %v4944 = vpop.f32.mrf.mxu0
  %v4945 = vadd.f32 0.0, %v4944
  %4946 = vmatmul.f32.gmra.mxu0 %v4797
  %v4947 = vpop.f32.mrf.mxu0
  %v4948 = vadd.f32 0.0, %v4947
  %4949 = vmatmul.f32.gmra.mxu0 %v4798
  %v4950 = vpop.f32.mrf.mxu0
  %v4951 = vadd.f32 0.0, %v4950
  %4952 = vmatmul.f32.gmra.mxu0 %v4799
  %v4953 = vpop.f32.mrf.mxu0
  %v4954 = vadd.f32 0.0, %v4953
  %4955 = vmatmul.f32.gmra.mxu0 %v4800
  %v4956 = vpop.f32.mrf.mxu0
  %v4957 = vadd.f32 0.0, %v4956
  %4958 = vmatmul.f32.gmra.mxu0 %v4801
  %v4959 = vpop.f32.mrf.mxu0
  %v4960 = vadd.f32 0.0, %v4959
  %4961 = vmatmul.f32.gmra.mxu0 %v4802
  %v4962 = vpop.f32.mrf.mxu0
  %v4963 = vadd.f32 0.0, %v4962
  %4964 = vmatmul.f32.gmra.mxu0 %v4803
  %v4965 = vpop.f32.mrf.mxu0
  %v4966 = vadd.f32 0.0, %v4965
  %4967 = vmatmul.f32.gmra.mxu0 %v4804
  %v4968 = vpop.f32.mrf.mxu0
  %v4969 = vadd.f32 0.0, %v4968
  %4970 = vmatmul.f32.gmra.mxu0 %v4805
  %v4971 = vpop.f32.mrf.mxu0
  %v4972 = vadd.f32 0.0, %v4971
  %4973 = vmatmul.f32.gmra.mxu0 %v4806
  %v4974 = vpop.f32.mrf.mxu0
  %v4975 = vadd.f32 0.0, %v4974
  %4976 = vmatmul.f32.gmra.mxu0 %v4807
  %v4977 = vpop.f32.mrf.mxu0
  %v4978 = vadd.f32 0.0, %v4977
  %4979 = vmatmul.f32.gmra.mxu0 %v4808
  %v4980 = vpop.f32.mrf.mxu0
  %v4981 = vadd.f32 0.0, %v4980
  %4982 = vmatmul.f32.gmra.mxu0 %v4809
  %v4983 = vpop.f32.mrf.mxu0
  %v4984 = vadd.f32 0.0, %v4983
  %4985 = vmatmul.f32.gmra.mxu0 %v4810
  %v4986 = vpop.f32.mrf.mxu0
  %v4987 = vadd.f32 0.0, %v4986
  %4988 = vdwg.mxu0
  %v4989 = vadd.f32 %v4715, %v4846
  %v4990 = vadd.f32 %v4716, %v4849
  %v4991 = vadd.f32 %v4717, %v4852
  %v4992 = vadd.f32 %v4718, %v4855
  %v4993 = vadd.f32 %v4719, %v4858
  %v4994 = vadd.f32 %v4720, %v4861
  %v4995 = vadd.f32 %v4721, %v4864
  %v4996 = vadd.f32 %v4722, %v4867
  %v4997 = vadd.f32 %v4723, %v4870
  %v4998 = vadd.f32 %v4724, %v4873
  %v4999 = vadd.f32 %v4725, %v4876
  %v5000 = vadd.f32 %v4726, %v4879
  %v5001 = vadd.f32 %v4727, %v4882
  %v5002 = vadd.f32 %v4728, %v4885
  %v5003 = vadd.f32 %v4729, %v4888
  %v5004 = vadd.f32 %v4730, %v4891
  %v5005 = vadd.f32 %v4731, %v4894
  %v5006 = vadd.f32 %v4732, %v4897
  %v5007 = vadd.f32 %v4733, %v4900
  %v5008 = vadd.f32 %v4734, %v4903
  %v5009 = vadd.f32 %v4735, %v4906
  %v5010 = vadd.f32 %v4736, %v4909
  %v5011 = vadd.f32 %v4737, %v4912
  %v5012 = vadd.f32 %v4738, %v4915
  %v5013 = vadd.f32 %v4739, %v4918
  %v5014 = vadd.f32 %v4740, %v4921
  %v5015 = vadd.f32 %v4741, %v4924
  %v5016 = vadd.f32 %v4742, %v4927
  %v5017 = vadd.f32 %v4743, %v4930
  %v5018 = vadd.f32 %v4744, %v4933
  %v5019 = vadd.f32 %v4745, %v4936
  %v5020 = vadd.f32 %v4746, %v4939
  %v5021 = vadd.f32 %v4747, %v4942
  %v5022 = vadd.f32 %v4748, %v4945
  %v5023 = vadd.f32 %v4749, %v4948
  %v5024 = vadd.f32 %v4750, %v4951
  %v5025 = vadd.f32 %v4751, %v4954
  %v5026 = vadd.f32 %v4752, %v4957
  %v5027 = vadd.f32 %v4753, %v4960
  %v5028 = vadd.f32 %v4754, %v4963
  %v5029 = vadd.f32 %v4755, %v4966
  %v5030 = vadd.f32 %v4756, %v4969
  %v5031 = vadd.f32 %v4757, %v4972
  %v5032 = vadd.f32 %v4758, %v4975
  %v5033 = vadd.f32 %v4759, %v4978
  %v5034 = vadd.f32 %v4760, %v4981
  %v5035 = vadd.f32 %v4761, %v4984
  %v5036 = vadd.f32 %v4762, %v4987
  %v5037 = vld [vmem:[%s5] sm:$0x1]
  %v5039 = vperm.slane %v5037, 0
  %v5041 = vadd.f32 %v4989, %v5039
  %v5042 = vadd.f32 %v4990, %v5039
  %v5043 = vadd.f32 %v4991, %v5039
  %v5044 = vadd.f32 %v4992, %v5039
  %v5045 = vadd.f32 %v4993, %v5039
  %v5046 = vadd.f32 %v4994, %v5039
  %v5047 = vadd.f32 %v4995, %v5039
  %v5048 = vadd.f32 %v4996, %v5039
  %v5049 = vadd.f32 %v4997, %v5039
  %v5050 = vadd.f32 %v4998, %v5039
  %v5051 = vadd.f32 %v4999, %v5039
  %v5052 = vadd.f32 %v5000, %v5039
  %v5053 = vadd.f32 %v5001, %v5039
  %v5054 = vadd.f32 %v5002, %v5039
  %v5055 = vadd.f32 %v5003, %v5039
  %v5056 = vadd.f32 %v5004, %v5039
  %v5057 = vadd.f32 %v5005, %v5039
  %v5058 = vadd.f32 %v5006, %v5039
  %v5059 = vadd.f32 %v5007, %v5039
  %v5060 = vadd.f32 %v5008, %v5039
  %v5061 = vadd.f32 %v5009, %v5039
  %v5062 = vadd.f32 %v5010, %v5039
  %v5063 = vadd.f32 %v5011, %v5039
  %v5064 = vadd.f32 %v5012, %v5039
  %v5065 = vadd.f32 %v5013, %v5039
  %v5066 = vadd.f32 %v5014, %v5039
  %v5067 = vadd.f32 %v5015, %v5039
  %v5068 = vadd.f32 %v5016, %v5039
  %v5069 = vadd.f32 %v5017, %v5039
  %v5070 = vadd.f32 %v5018, %v5039
  %v5071 = vadd.f32 %v5019, %v5039
  %v5072 = vadd.f32 %v5020, %v5039
  %v5073 = vadd.f32 %v5021, %v5039
  %v5074 = vadd.f32 %v5022, %v5039
  %v5075 = vadd.f32 %v5023, %v5039
  %v5076 = vadd.f32 %v5024, %v5039
  %v5077 = vadd.f32 %v5025, %v5039
  %v5078 = vadd.f32 %v5026, %v5039
  %v5079 = vadd.f32 %v5027, %v5039
  %v5080 = vadd.f32 %v5028, %v5039
  %v5081 = vadd.f32 %v5029, %v5039
  %v5082 = vadd.f32 %v5030, %v5039
  %v5083 = vadd.f32 %v5031, %v5039
  %v5084 = vadd.f32 %v5032, %v5039
  %v5085 = vadd.f32 %v5033, %v5039
  %v5086 = vadd.f32 %v5034, %v5039
  %v5087 = vadd.f32 %v5035, %v5039
  %v5088 = vadd.f32 %v5036, %v5039
  %v5089 = vmax.f32 %v5041, 0.0
  %v5090 = vmax.f32 %v5042, 0.0
  %v5091 = vmax.f32 %v5043, 0.0
  %v5092 = vmax.f32 %v5044, 0.0
  %v5093 = vmax.f32 %v5045, 0.0
  %v5094 = vmax.f32 %v5046, 0.0
  %v5095 = vmax.f32 %v5047, 0.0
  %v5096 = vmax.f32 %v5048, 0.0
  %v5097 = vmax.f32 %v5049, 0.0
  %v5098 = vmax.f32 %v5050, 0.0
  %v5099 = vmax.f32 %v5051, 0.0
  %v5100 = vmax.f32 %v5052, 0.0
  %v5101 = vmax.f32 %v5053, 0.0
  %v5102 = vmax.f32 %v5054, 0.0
  %v5103 = vmax.f32 %v5055, 0.0
  %v5104 = vmax.f32 %v5056, 0.0
  %v5105 = vmax.f32 %v5057, 0.0
  %v5106 = vmax.f32 %v5058, 0.0
  %v5107 = vmax.f32 %v5059, 0.0
  %v5108 = vmax.f32 %v5060, 0.0
  %v5109 = vmax.f32 %v5061, 0.0
  %v5110 = vmax.f32 %v5062, 0.0
  %v5111 = vmax.f32 %v5063, 0.0
  %v5112 = vmax.f32 %v5064, 0.0
  %v5113 = vmax.f32 %v5065, 0.0
  %v5114 = vmax.f32 %v5066, 0.0
  %v5115 = vmax.f32 %v5067, 0.0
  %v5116 = vmax.f32 %v5068, 0.0
  %v5117 = vmax.f32 %v5069, 0.0
  %v5118 = vmax.f32 %v5070, 0.0
  %v5119 = vmax.f32 %v5071, 0.0
  %v5120 = vmax.f32 %v5072, 0.0
  %v5121 = vmax.f32 %v5073, 0.0
  %v5122 = vmax.f32 %v5074, 0.0
  %v5123 = vmax.f32 %v5075, 0.0
  %v5124 = vmax.f32 %v5076, 0.0
  %v5125 = vmax.f32 %v5077, 0.0
  %v5126 = vmax.f32 %v5078, 0.0
  %v5127 = vmax.f32 %v5079, 0.0
  %v5128 = vmax.f32 %v5080, 0.0
  %v5129 = vmax.f32 %v5081, 0.0
  %v5130 = vmax.f32 %v5082, 0.0
  %v5131 = vmax.f32 %v5083, 0.0
  %v5132 = vmax.f32 %v5084, 0.0
  %v5133 = vmax.f32 %v5085, 0.0
  %v5134 = vmax.f32 %v5086, 0.0
  %v5135 = vmax.f32 %v5087, 0.0
  %v5136 = vmax.f32 %v5088, 0.0
  %5137 = vst [vmem:[#allocation5] sm:$0xff] %v5089
  %5138 = vst [vmem:[#allocation5 + $0x8] sm:$0xff] %v5090
  %5139 = vst [vmem:[#allocation5 + $0x10] sm:$0xff] %v5091
  %5140 = vst [vmem:[#allocation5 + $0x18] sm:$0xff] %v5092
  %5141 = vst [vmem:[#allocation5 + $0x20] sm:$0xff] %v5093
  %5142 = vst [vmem:[#allocation5 + $0x28] sm:$0xff] %v5094
  %5143 = vst [vmem:[#allocation5 + $0x30] sm:$0xff] %v5095
  %5144 = vst [vmem:[#allocation5 + $0x38] sm:$0xff] %v5096
  %5145 = vst [vmem:[#allocation5 + $0x40] sm:$0xff] %v5097
  %5146 = vst [vmem:[#allocation5 + $0x48] sm:$0xff] %v5098
  %5147 = vst [vmem:[#allocation5 + $0x50] sm:$0xff] %v5099
  %5148 = vst [vmem:[#allocation5 + $0x58] sm:$0xff] %v5100
  %5149 = vst [vmem:[#allocation5 + $0x60] sm:$0xff] %v5101
  %5150 = vst [vmem:[#allocation5 + $0x68] sm:$0xff] %v5102
  %5151 = vst [vmem:[#allocation5 + $0x70] sm:$0xff] %v5103
  %5152 = vst [vmem:[#allocation5 + $0x78] sm:$0xff] %v5104
  %5153 = vst [vmem:[#allocation5 + $0x80] sm:$0xff] %v5105
  %5154 = vst [vmem:[#allocation5 + $0x88] sm:$0xff] %v5106
  %5155 = vst [vmem:[#allocation5 + $0x90] sm:$0xff] %v5107
  %5156 = vst [vmem:[#allocation5 + $0x98] sm:$0xff] %v5108
  %5157 = vst [vmem:[#allocation5 + $0xa0] sm:$0xff] %v5109
  %5158 = vst [vmem:[#allocation5 + $0xa8] sm:$0xff] %v5110
  %5159 = vst [vmem:[#allocation5 + $0xb0] sm:$0xff] %v5111
  %5160 = vst [vmem:[#allocation5 + $0xb8] sm:$0xff] %v5112
  %5161 = vst [vmem:[#allocation5 + $0xc0] sm:$0xff] %v5113
  %5162 = vst [vmem:[#allocation5 + $0xc8] sm:$0xff] %v5114
  %5163 = vst [vmem:[#allocation5 + $0xd0] sm:$0xff] %v5115
  %5164 = vst [vmem:[#allocation5 + $0xd8] sm:$0xff] %v5116
  %5165 = vst [vmem:[#allocation5 + $0xe0] sm:$0xff] %v5117
  %5166 = vst [vmem:[#allocation5 + $0xe8] sm:$0xff] %v5118
  %5167 = vst [vmem:[#allocation5 + $0xf0] sm:$0xff] %v5119
  %5168 = vst [vmem:[#allocation5 + $0xf8] sm:$0xff] %v5120
  %5169 = vst [vmem:[#allocation5 + $0x100] sm:$0xff] %v5121
  %5170 = vst [vmem:[#allocation5 + $0x108] sm:$0xff] %v5122
  %5171 = vst [vmem:[#allocation5 + $0x110] sm:$0xff] %v5123
  %5172 = vst [vmem:[#allocation5 + $0x118] sm:$0xff] %v5124
  %5173 = vst [vmem:[#allocation5 + $0x120] sm:$0xff] %v5125
  %5174 = vst [vmem:[#allocation5 + $0x128] sm:$0xff] %v5126
  %5175 = vst [vmem:[#allocation5 + $0x130] sm:$0xff] %v5127
  %5176 = vst [vmem:[#allocation5 + $0x138] sm:$0xff] %v5128
  %5177 = vst [vmem:[#allocation5 + $0x140] sm:$0xff] %v5129
  %5178 = vst [vmem:[#allocation5 + $0x148] sm:$0xff] %v5130
  %5179 = vst [vmem:[#allocation5 + $0x150] sm:$0xff] %v5131
  %5180 = vst [vmem:[#allocation5 + $0x158] sm:$0xff] %v5132
  %5181 = vst [vmem:[#allocation5 + $0x160] sm:$0xff] %v5133
  %5182 = vst [vmem:[#allocation5 + $0x168] sm:$0xff] %v5134
  %5183 = vst [vmem:[#allocation5 + $0x170] sm:$0xff] %v5135
  %5184 = vst [vmem:[#allocation5 + $0x178] sm:$0xff] %v5136
  %s5185 = sld [smem:[#allocation8]]
  %v5186 = vlaneseq
  %v5187 = vshrl.u32 %v5186, 7
  %v5188 = vlaneseq
  %v5189 = vand.u32 %v5188, 127
  %v5190 = vld [vmem:[#allocation5] ss:$2 sm:$0x1f]
  %s5191 = scalar_lea.vmem [#allocation5], 1
  %v5192 = vld [vmem:[%s5191] ss:$2 sm:$0x1f]
  %v5193 = vmax.f32 %v5190, %v5192
  %s5194 = scalar_lea.vmem [#allocation5], 16
  %v5195 = vld [vmem:[%s5194] ss:$2 sm:$0x1f]
  %s5196 = scalar_lea.vmem [#allocation5], 17
  %v5197 = vld [vmem:[%s5196] ss:$2 sm:$0x1f]
  %v5198 = vmax.f32 %v5195, %v5197
  %v5199 = vmax.f32 %v5193, %v5198
  %v5200 = vmul.u32 %v5189, 25
  %v5201 = vadd.s32 %v5200, %v5187
  %p5202 = scmp.gt.s32.totalorder %s5185, 0
  %vm5203 = vcmp.lt.s32.totalorder %v5189, 16
  %s5204 = scalar_select %p5202, 1, 0
  %v5205 = vstv %s5204
  %vm5206 = vcmp.eq.s32.totalorder %v5205, 1
  %vm5207 = vmand %vm5206, %vm5203
  %v5208 = vstv %s5185
  %vm5209 = vcmp.eq.s32.totalorder %v5201, %v5208
  %vm5210 = vmand %vm5207, %vm5209
  %v5211 = vsel %vm5210, 0.0, %v5199
  %5212 = vst [vmem:[#allocation6] sm:$0x1f] %v5211
  %s5213 = scalar_lea.vmem [#allocation5], 32
  %v5214 = vld [vmem:[%s5213] ss:$2 sm:$0x1f]
  %s5215 = scalar_lea.vmem [#allocation5], 33
  %v5216 = vld [vmem:[%s5215] ss:$2 sm:$0x1f]
  %v5217 = vmax.f32 %v5214, %v5216
  %s5218 = scalar_lea.vmem [#allocation5], 48
  %v5219 = vld [vmem:[%s5218] ss:$2 sm:$0x1f]
  %s5220 = scalar_lea.vmem [#allocation5], 49
  %v5221 = vld [vmem:[%s5220] ss:$2 sm:$0x1f]
  %v5222 = vmax.f32 %v5219, %v5221
  %v5223 = vmax.f32 %v5217, %v5222
  %v5224 = vadd.s32 %v5200, 5
  %v5225 = vadd.s32 %v5224, %v5187
  %vm5226 = vcmp.eq.s32.totalorder %v5225, %v5208
  %vm5227 = vmand %vm5207, %vm5226
  %v5228 = vsel %vm5227, 0.0, %v5223
  %5229 = vst [vmem:[#allocation6 + $0x8] sm:$0x1f] %v5228
  %s5230 = scalar_lea.vmem [#allocation5], 64
  %v5231 = vld [vmem:[%s5230] ss:$2 sm:$0x1f]
  %s5232 = scalar_lea.vmem [#allocation5], 65
  %v5233 = vld [vmem:[%s5232] ss:$2 sm:$0x1f]
  %v5234 = vmax.f32 %v5231, %v5233
  %s5235 = scalar_lea.vmem [#allocation5], 80
  %v5236 = vld [vmem:[%s5235] ss:$2 sm:$0x1f]
  %s5237 = scalar_lea.vmem [#allocation5], 81
  %v5238 = vld [vmem:[%s5237] ss:$2 sm:$0x1f]
  %v5239 = vmax.f32 %v5236, %v5238
  %v5240 = vmax.f32 %v5234, %v5239
  %v5241 = vadd.s32 %v5200, 10
  %v5242 = vadd.s32 %v5241, %v5187
  %vm5243 = vcmp.eq.s32.totalorder %v5242, %v5208
  %vm5244 = vmand %vm5207, %vm5243
  %v5245 = vsel %vm5244, 0.0, %v5240
  %5246 = vst [vmem:[#allocation6 + $0x10] sm:$0x1f] %v5245
  %s5247 = scalar_lea.vmem [#allocation5], 96
  %v5248 = vld [vmem:[%s5247] ss:$2 sm:$0x1f]
  %s5249 = scalar_lea.vmem [#allocation5], 97
  %v5250 = vld [vmem:[%s5249] ss:$2 sm:$0x1f]
  %v5251 = vmax.f32 %v5248, %v5250
  %s5252 = scalar_lea.vmem [#allocation5], 112
  %v5253 = vld [vmem:[%s5252] ss:$2 sm:$0x1f]
  %s5254 = scalar_lea.vmem [#allocation5], 113
  %v5255 = vld [vmem:[%s5254] ss:$2 sm:$0x1f]
  %v5256 = vmax.f32 %v5253, %v5255
  %v5257 = vmax.f32 %v5251, %v5256
  %v5258 = vadd.s32 %v5200, 15
  %v5259 = vadd.s32 %v5258, %v5187
  %vm5260 = vcmp.eq.s32.totalorder %v5259, %v5208
  %vm5261 = vmand %vm5207, %vm5260
  %v5262 = vsel %vm5261, 0.0, %v5257
  %5263 = vst [vmem:[#allocation6 + $0x18] sm:$0x1f] %v5262
  %s5264 = scalar_lea.vmem [#allocation5], 128
  %v5265 = vld [vmem:[%s5264] ss:$2 sm:$0x1f]
  %s5266 = scalar_lea.vmem [#allocation5], 129
  %v5267 = vld [vmem:[%s5266] ss:$2 sm:$0x1f]
  %v5268 = vmax.f32 %v5265, %v5267
  %s5269 = scalar_lea.vmem [#allocation5], 144
  %v5270 = vld [vmem:[%s5269] ss:$2 sm:$0x1f]
  %s5271 = scalar_lea.vmem [#allocation5], 145
  %v5272 = vld [vmem:[%s5271] ss:$2 sm:$0x1f]
  %v5273 = vmax.f32 %v5270, %v5272
  %v5274 = vmax.f32 %v5268, %v5273
  %v5275 = vadd.s32 %v5200, 20
  %v5276 = vadd.s32 %v5275, %v5187
  %vm5277 = vcmp.eq.s32.totalorder %v5276, %v5208
  %vm5278 = vmand %vm5207, %vm5277
  %v5279 = vsel %vm5278, 0.0, %v5274
  %5280 = vst [vmem:[#allocation6 + $0x20] sm:$0x1f] %v5279
  %s5281 = scalar_lea.vmem [#allocation5], 224
  %v5282 = vld [vmem:[%s5281] ss:$2 sm:$0x1f]
  %s5283 = scalar_lea.vmem [#allocation5], 225
  %v5284 = vld [vmem:[%s5283] ss:$2 sm:$0x1f]
  %v5285 = vmax.f32 %v5282, %v5284
  %s5286 = scalar_lea.vmem [#allocation5], 240
  %v5287 = vld [vmem:[%s5286] ss:$2 sm:$0x1f]
  %s5288 = scalar_lea.vmem [#allocation5], 241
  %v5289 = vld [vmem:[%s5288] ss:$2 sm:$0x1f]
  %v5290 = vmax.f32 %v5287, %v5289
  %v5291 = vmax.f32 %v5285, %v5290
  %v5292 = vsel %vm5210, 0.0, %v5291
  %5293 = vst [vmem:[#allocation6 + $0x28] sm:$0x1f] %v5292
  %s5294 = scalar_lea.vmem [#allocation5], 256
  %v5295 = vld [vmem:[%s5294] ss:$2 sm:$0x1f]
  %s5296 = scalar_lea.vmem [#allocation5], 257
  %v5297 = vld [vmem:[%s5296] ss:$2 sm:$0x1f]
  %v5298 = vmax.f32 %v5295, %v5297
  %s5299 = scalar_lea.vmem [#allocation5], 272
  %v5300 = vld [vmem:[%s5299] ss:$2 sm:$0x1f]
  %s5301 = scalar_lea.vmem [#allocation5], 273
  %v5302 = vld [vmem:[%s5301] ss:$2 sm:$0x1f]
  %v5303 = vmax.f32 %v5300, %v5302
  %v5304 = vmax.f32 %v5298, %v5303
  %v5305 = vsel %vm5227, 0.0, %v5304
  %5306 = vst [vmem:[#allocation6 + $0x30] sm:$0x1f] %v5305
  %s5307 = scalar_lea.vmem [#allocation5], 288
  %v5308 = vld [vmem:[%s5307] ss:$2 sm:$0x1f]
  %s5309 = scalar_lea.vmem [#allocation5], 289
  %v5310 = vld [vmem:[%s5309] ss:$2 sm:$0x1f]
  %v5311 = vmax.f32 %v5308, %v5310
  %s5312 = scalar_lea.vmem [#allocation5], 304
  %v5313 = vld [vmem:[%s5312] ss:$2 sm:$0x1f]
  %s5314 = scalar_lea.vmem [#allocation5], 305
  %v5315 = vld [vmem:[%s5314] ss:$2 sm:$0x1f]
  %v5316 = vmax.f32 %v5313, %v5315
  %v5317 = vmax.f32 %v5311, %v5316
  %v5318 = vsel %vm5244, 0.0, %v5317
  %5319 = vst [vmem:[#allocation6 + $0x38] sm:$0x1f] %v5318
  %s5320 = scalar_lea.vmem [#allocation5], 320
  %v5321 = vld [vmem:[%s5320] ss:$2 sm:$0x1f]
  %s5322 = scalar_lea.vmem [#allocation5], 321
  %v5323 = vld [vmem:[%s5322] ss:$2 sm:$0x1f]
  %v5324 = vmax.f32 %v5321, %v5323
  %s5325 = scalar_lea.vmem [#allocation5], 336
  %v5326 = vld [vmem:[%s5325] ss:$2 sm:$0x1f]
  %s5327 = scalar_lea.vmem [#allocation5], 337
  %v5328 = vld [vmem:[%s5327] ss:$2 sm:$0x1f]
  %v5329 = vmax.f32 %v5326, %v5328
  %v5330 = vmax.f32 %v5324, %v5329
  %v5331 = vsel %vm5261, 0.0, %v5330
  %5332 = vst [vmem:[#allocation6 + $0x40] sm:$0x1f] %v5331
  %s5333 = scalar_lea.vmem [#allocation5], 352
  %v5334 = vld [vmem:[%s5333] ss:$2 sm:$0x1f]
  %s5335 = scalar_lea.vmem [#allocation5], 353
  %v5336 = vld [vmem:[%s5335] ss:$2 sm:$0x1f]
  %v5337 = vmax.f32 %v5334, %v5336
  %s5338 = scalar_lea.vmem [#allocation5], 368
  %v5339 = vld [vmem:[%s5338] ss:$2 sm:$0x1f]
  %s5340 = scalar_lea.vmem [#allocation5], 369
  %v5341 = vld [vmem:[%s5340] ss:$2 sm:$0x1f]
  %v5342 = vmax.f32 %v5339, %v5341
  %v5343 = vmax.f32 %v5337, %v5342
  %v5344 = vsel %vm5278, 0.0, %v5343
  %5345 = vst [vmem:[#allocation6 + $0x48] sm:$0x1f] %v5344
  %v5346 = vld [vmem:[#allocation6] sm:$0xff]
  %v5347 = vld [vmem:[#allocation6 + $0x8] sm:$0xff]
  %v5348 = vld [vmem:[#allocation6 + $0x10] sm:$0xff]
  %v5349 = vld [vmem:[#allocation6 + $0x18] sm:$0xff]
  %v5350 = vld [vmem:[#allocation6 + $0x20] sm:$0xff]
  %v5351 = vld [vmem:[#allocation6 + $0x28] sm:$0xff]
  %v5352 = vld [vmem:[#allocation6 + $0x30] sm:$0xff]
  %v5353 = vld [vmem:[#allocation6 + $0x38] sm:$0xff]
  %v5354 = vld [vmem:[#allocation6 + $0x40] sm:$0xff]
  %v5355 = vld [vmem:[#allocation6 + $0x48] sm:$0xff]
  %v5356 = vld [vmem:[#allocation6 + $0x1] sm:$0xff]
  %v5357 = vld [vmem:[#allocation6 + $0x9] sm:$0xff]
  %v5358 = vld [vmem:[#allocation6 + $0x11] sm:$0xff]
  %v5359 = vld [vmem:[#allocation6 + $0x19] sm:$0xff]
  %v5360 = vld [vmem:[#allocation6 + $0x21] sm:$0xff]
  %v5361 = vld [vmem:[#allocation6 + $0x29] sm:$0xff]
  %v5362 = vld [vmem:[#allocation6 + $0x31] sm:$0xff]
  %v5363 = vld [vmem:[#allocation6 + $0x39] sm:$0xff]
  %v5364 = vld [vmem:[#allocation6 + $0x41] sm:$0xff]
  %v5365 = vld [vmem:[#allocation6 + $0x49] sm:$0xff]
  %5376 = vrot.lane.b32.xlu0 %v5356, 16
  %v5377 = vpop.permute.xlu0 %5376
  %5378 = vrot.lane.b32.xlu0 %v5357, 16
  %v5379 = vpop.permute.xlu0 %5378
  %5380 = vrot.lane.b32.xlu0 %v5358, 16
  %v5381 = vpop.permute.xlu0 %5380
  %5382 = vrot.lane.b32.xlu0 %v5359, 16
  %v5383 = vpop.permute.xlu0 %5382
  %5384 = vrot.lane.b32.xlu0 %v5360, 16
  %v5385 = vpop.permute.xlu0 %5384
  %5386 = vrot.lane.b32.xlu0 %v5361, 16
  %v5387 = vpop.permute.xlu0 %5386
  %5388 = vrot.lane.b32.xlu0 %v5362, 16
  %v5389 = vpop.permute.xlu0 %5388
  %5390 = vrot.lane.b32.xlu0 %v5363, 16
  %v5391 = vpop.permute.xlu0 %5390
  %5392 = vrot.lane.b32.xlu0 %v5364, 16
  %v5393 = vpop.permute.xlu0 %5392
  %5394 = vrot.lane.b32.xlu0 %v5365, 16
  %v5395 = vpop.permute.xlu0 %5394
  %v5406 = vadd.f32 %v5346, %v5377
  %v5407 = vadd.f32 %v5347, %v5379
  %v5408 = vadd.f32 %v5348, %v5381
  %v5409 = vadd.f32 %v5349, %v5383
  %v5410 = vadd.f32 %v5350, %v5385
  %v5411 = vadd.f32 %v5351, %v5387
  %v5412 = vadd.f32 %v5352, %v5389
  %v5413 = vadd.f32 %v5353, %v5391
  %v5414 = vadd.f32 %v5354, %v5393
  %v5415 = vadd.f32 %v5355, %v5395
  %v5416 = vld [vmem:[#allocation6 + $0x2] sm:$0xff]
  %v5417 = vld [vmem:[#allocation6 + $0xa] sm:$0xff]
  %v5418 = vld [vmem:[#allocation6 + $0x12] sm:$0xff]
  %v5419 = vld [vmem:[#allocation6 + $0x1a] sm:$0xff]
  %v5420 = vld [vmem:[#allocation6 + $0x22] sm:$0xff]
  %v5421 = vld [vmem:[#allocation6 + $0x2a] sm:$0xff]
  %v5422 = vld [vmem:[#allocation6 + $0x32] sm:$0xff]
  %v5423 = vld [vmem:[#allocation6 + $0x3a] sm:$0xff]
  %v5424 = vld [vmem:[#allocation6 + $0x42] sm:$0xff]
  %v5425 = vld [vmem:[#allocation6 + $0x4a] sm:$0xff]
  %5436 = vrot.lane.b32.xlu0 %v5416, 32
  %v5437 = vpop.permute.xlu0 %5436
  %5438 = vrot.lane.b32.xlu0 %v5417, 32
  %v5439 = vpop.permute.xlu0 %5438
  %5440 = vrot.lane.b32.xlu0 %v5418, 32
  %v5441 = vpop.permute.xlu0 %5440
  %5442 = vrot.lane.b32.xlu0 %v5419, 32
  %v5443 = vpop.permute.xlu0 %5442
  %5444 = vrot.lane.b32.xlu0 %v5420, 32
  %v5445 = vpop.permute.xlu0 %5444
  %5446 = vrot.lane.b32.xlu0 %v5421, 32
  %v5447 = vpop.permute.xlu0 %5446
  %5448 = vrot.lane.b32.xlu0 %v5422, 32
  %v5449 = vpop.permute.xlu0 %5448
  %5450 = vrot.lane.b32.xlu0 %v5423, 32
  %v5451 = vpop.permute.xlu0 %5450
  %5452 = vrot.lane.b32.xlu0 %v5424, 32
  %v5453 = vpop.permute.xlu0 %5452
  %5454 = vrot.lane.b32.xlu0 %v5425, 32
  %v5455 = vpop.permute.xlu0 %5454
  %v5466 = vadd.f32 %v5406, %v5437
  %v5467 = vadd.f32 %v5407, %v5439
  %v5468 = vadd.f32 %v5408, %v5441
  %v5469 = vadd.f32 %v5409, %v5443
  %v5470 = vadd.f32 %v5410, %v5445
  %v5471 = vadd.f32 %v5411, %v5447
  %v5472 = vadd.f32 %v5412, %v5449
  %v5473 = vadd.f32 %v5413, %v5451
  %v5474 = vadd.f32 %v5414, %v5453
  %v5475 = vadd.f32 %v5415, %v5455
  %v5476 = vld [vmem:[#allocation6 + $0x3] sm:$0xff]
  %v5477 = vld [vmem:[#allocation6 + $0xb] sm:$0xff]
  %v5478 = vld [vmem:[#allocation6 + $0x13] sm:$0xff]
  %v5479 = vld [vmem:[#allocation6 + $0x1b] sm:$0xff]
  %v5480 = vld [vmem:[#allocation6 + $0x23] sm:$0xff]
  %v5481 = vld [vmem:[#allocation6 + $0x2b] sm:$0xff]
  %v5482 = vld [vmem:[#allocation6 + $0x33] sm:$0xff]
  %v5483 = vld [vmem:[#allocation6 + $0x3b] sm:$0xff]
  %v5484 = vld [vmem:[#allocation6 + $0x43] sm:$0xff]
  %v5485 = vld [vmem:[#allocation6 + $0x4b] sm:$0xff]
  %5496 = vrot.lane.b32.xlu0 %v5476, 48
  %v5497 = vpop.permute.xlu0 %5496
  %5498 = vrot.lane.b32.xlu0 %v5477, 48
  %v5499 = vpop.permute.xlu0 %5498
  %5500 = vrot.lane.b32.xlu0 %v5478, 48
  %v5501 = vpop.permute.xlu0 %5500
  %5502 = vrot.lane.b32.xlu0 %v5479, 48
  %v5503 = vpop.permute.xlu0 %5502
  %5504 = vrot.lane.b32.xlu0 %v5480, 48
  %v5505 = vpop.permute.xlu0 %5504
  %5506 = vrot.lane.b32.xlu0 %v5481, 48
  %v5507 = vpop.permute.xlu0 %5506
  %5508 = vrot.lane.b32.xlu0 %v5482, 48
  %v5509 = vpop.permute.xlu0 %5508
  %5510 = vrot.lane.b32.xlu0 %v5483, 48
  %v5511 = vpop.permute.xlu0 %5510
  %5512 = vrot.lane.b32.xlu0 %v5484, 48
  %v5513 = vpop.permute.xlu0 %5512
  %5514 = vrot.lane.b32.xlu0 %v5485, 48
  %v5515 = vpop.permute.xlu0 %5514
  %v5526 = vadd.f32 %v5466, %v5497
  %v5527 = vadd.f32 %v5467, %v5499
  %v5528 = vadd.f32 %v5468, %v5501
  %v5529 = vadd.f32 %v5469, %v5503
  %v5530 = vadd.f32 %v5470, %v5505
  %v5531 = vadd.f32 %v5471, %v5507
  %v5532 = vadd.f32 %v5472, %v5509
  %v5533 = vadd.f32 %v5473, %v5511
  %v5534 = vadd.f32 %v5474, %v5513
  %v5535 = vadd.f32 %v5475, %v5515
  %v5536 = vld [vmem:[#allocation6 + $0x4] sm:$0xff]
  %v5537 = vld [vmem:[#allocation6 + $0xc] sm:$0xff]
  %v5538 = vld [vmem:[#allocation6 + $0x14] sm:$0xff]
  %v5539 = vld [vmem:[#allocation6 + $0x1c] sm:$0xff]
  %v5540 = vld [vmem:[#allocation6 + $0x24] sm:$0xff]
  %v5541 = vld [vmem:[#allocation6 + $0x2c] sm:$0xff]
  %v5542 = vld [vmem:[#allocation6 + $0x34] sm:$0xff]
  %v5543 = vld [vmem:[#allocation6 + $0x3c] sm:$0xff]
  %v5544 = vld [vmem:[#allocation6 + $0x44] sm:$0xff]
  %v5545 = vld [vmem:[#allocation6 + $0x4c] sm:$0xff]
  %5556 = vrot.lane.b32.xlu0 %v5536, 64
  %v5557 = vpop.permute.xlu0 %5556
  %5558 = vrot.lane.b32.xlu0 %v5537, 64
  %v5559 = vpop.permute.xlu0 %5558
  %5560 = vrot.lane.b32.xlu0 %v5538, 64
  %v5561 = vpop.permute.xlu0 %5560
  %5562 = vrot.lane.b32.xlu0 %v5539, 64
  %v5563 = vpop.permute.xlu0 %5562
  %5564 = vrot.lane.b32.xlu0 %v5540, 64
  %v5565 = vpop.permute.xlu0 %5564
  %5566 = vrot.lane.b32.xlu0 %v5541, 64
  %v5567 = vpop.permute.xlu0 %5566
  %5568 = vrot.lane.b32.xlu0 %v5542, 64
  %v5569 = vpop.permute.xlu0 %5568
  %5570 = vrot.lane.b32.xlu0 %v5543, 64
  %v5571 = vpop.permute.xlu0 %5570
  %5572 = vrot.lane.b32.xlu0 %v5544, 64
  %v5573 = vpop.permute.xlu0 %5572
  %5574 = vrot.lane.b32.xlu0 %v5545, 64
  %v5575 = vpop.permute.xlu0 %5574
  %v5586 = vadd.f32 %v5526, %v5557
  %v5587 = vadd.f32 %v5527, %v5559
  %v5588 = vadd.f32 %v5528, %v5561
  %v5589 = vadd.f32 %v5529, %v5563
  %v5590 = vadd.f32 %v5530, %v5565
  %v5591 = vadd.f32 %v5531, %v5567
  %v5592 = vadd.f32 %v5532, %v5569
  %v5593 = vadd.f32 %v5533, %v5571
  %v5594 = vadd.f32 %v5534, %v5573
  %v5595 = vadd.f32 %v5535, %v5575
  %5596 = vst [vmem:[#allocation7] sm:$0xff] %v5586
  %5597 = vst [vmem:[#allocation7 + $0x8] sm:$0xff] %v5587
  %5598 = vst [vmem:[#allocation7 + $0x10] sm:$0xff] %v5588
  %5599 = vst [vmem:[#allocation7 + $0x18] sm:$0xff] %v5589
  %5600 = vst [vmem:[#allocation7 + $0x20] sm:$0xff] %v5590
  %5601 = vst [vmem:[#allocation7 + $0x28] sm:$0xff] %v5591
  %5602 = vst [vmem:[#allocation7 + $0x30] sm:$0xff] %v5592
  %5603 = vst [vmem:[#allocation7 + $0x38] sm:$0xff] %v5593
  %5604 = vst [vmem:[#allocation7 + $0x40] sm:$0xff] %v5594
  %5605 = vst [vmem:[#allocation7 + $0x48] sm:$0xff] %v5595
  %v5606 = vld [vmem:[#allocation7] ss:$40 sm:$0x3]
  %v5607 = vld [vmem:[%s6] sm:$0xff]
  %v5608 = vld [vmem:[%s6 + $0x8] sm:$0xff]
  %v5609 = vld [vmem:[%s6 + $0x10] sm:$0xff]
  %v5610 = vld [vmem:[%s6 + $0x18] sm:$0xff]
  %v5611 = vld [vmem:[%s6 + $0x20] sm:$0xff]
  %v5612 = vld [vmem:[%s6 + $0x28] sm:$0xff]
  %v5613 = vld [vmem:[%s6 + $0x30] sm:$0xff]
  %v5614 = vld [vmem:[%s6 + $0x38] sm:$0xff]
  %v5615 = vld [vmem:[%s6 + $0x40] sm:$0xff]
  %v5616 = vld [vmem:[%s6 + $0x48] sm:$0xff]
  %v5617 = vld [vmem:[%s6 + $0x50] sm:$0xff]
  %v5618 = vld [vmem:[%s6 + $0x58] sm:$0xff]
  %v5619 = vld [vmem:[%s6 + $0x60] sm:$0xff]
  %v5620 = vld [vmem:[%s6 + $0x68] sm:$0xff]
  %v5621 = vld [vmem:[%s6 + $0x70] sm:$0xff]
  %v5622 = vld [vmem:[%s6 + $0x78] sm:$0xff]
  %s5623 = scalar_lea.vmem [#allocation7], 8
  %v5624 = vld [vmem:[%s5623] ss:$40 sm:$0x3]
  %s5625 = scalar_lea.vmem %s6, 128
  %v5626 = vld [vmem:[%s5625] sm:$0xff]
  %v5627 = vld [vmem:[%s5625 + $0x8] sm:$0xff]
  %v5628 = vld [vmem:[%s5625 + $0x10] sm:$0xff]
  %v5629 = vld [vmem:[%s5625 + $0x18] sm:$0xff]
  %v5630 = vld [vmem:[%s5625 + $0x20] sm:$0xff]
  %v5631 = vld [vmem:[%s5625 + $0x28] sm:$0xff]
  %v5632 = vld [vmem:[%s5625 + $0x30] sm:$0xff]
  %v5633 = vld [vmem:[%s5625 + $0x38] sm:$0xff]
  %v5634 = vld [vmem:[%s5625 + $0x40] sm:$0xff]
  %v5635 = vld [vmem:[%s5625 + $0x48] sm:$0xff]
  %v5636 = vld [vmem:[%s5625 + $0x50] sm:$0xff]
  %v5637 = vld [vmem:[%s5625 + $0x58] sm:$0xff]
  %v5638 = vld [vmem:[%s5625 + $0x60] sm:$0xff]
  %v5639 = vld [vmem:[%s5625 + $0x68] sm:$0xff]
  %v5640 = vld [vmem:[%s5625 + $0x70] sm:$0xff]
  %v5641 = vld [vmem:[%s5625 + $0x78] sm:$0xff]
  %5642 = vmatpush.msra.mxu0 %v5641
  %5643 = vmatpush.msra.mxu0 %v5640
  %5644 = vmatpush.msra.mxu0 %v5639
  %5645 = vmatpush.msra.mxu0 %v5638
  %5646 = vmatpush.msra.mxu0 %v5637
  %5647 = vmatpush.msra.mxu0 %v5636
  %5648 = vmatpush.msra.mxu0 %v5635
  %5649 = vmatpush.msra.mxu0 %v5634
  %5650 = vmatpush.msra.mxu0 %v5633
  %5651 = vmatpush.msra.mxu0 %v5632
  %5652 = vmatpush.msra.mxu0 %v5631
  %5653 = vmatpush.msra.mxu0 %v5630
  %5654 = vmatpush.msra.mxu0 %v5629
  %5655 = vmatpush.msra.mxu0 %v5628
  %5656 = vmatpush.msra.mxu0 %v5627
  %5657 = vmatpush.msra.mxu0 %v5626
  %5658 = vmatmul.f32.gmra.mxu0 %v5624
  %v5659 = vpop.f32.mrf.mxu0
  %v5660 = vadd.f32 0.0, %v5659
  %5661 = vdwg.mxu0
  %5662 = vmatpush.msra.mxu0 %v5622
  %5663 = vmatpush.msra.mxu0 %v5621
  %5664 = vmatpush.msra.mxu0 %v5620
  %5665 = vmatpush.msra.mxu0 %v5619
  %5666 = vmatpush.msra.mxu0 %v5618
  %5667 = vmatpush.msra.mxu0 %v5617
  %5668 = vmatpush.msra.mxu0 %v5616
  %5669 = vmatpush.msra.mxu0 %v5615
  %5670 = vmatpush.msra.mxu0 %v5614
  %5671 = vmatpush.msra.mxu0 %v5613
  %5672 = vmatpush.msra.mxu0 %v5612
  %5673 = vmatpush.msra.mxu0 %v5611
  %5674 = vmatpush.msra.mxu0 %v5610
  %5675 = vmatpush.msra.mxu0 %v5609
  %5676 = vmatpush.msra.mxu0 %v5608
  %5677 = vmatpush.msra.mxu0 %v5607
  %5678 = vmatmul.f32.gmra.mxu0 %v5606
  %v5679 = vpop.f32.mrf.mxu0
  %v5680 = vadd.f32 %v5660, %v5679
  %5681 = vdwg.mxu0
  %s5682 = scalar_lea.vmem [#allocation7], 16
  %v5683 = vld [vmem:[%s5682] ss:$40 sm:$0x3]
  %s5684 = scalar_lea.vmem %s6, 256
  %v5685 = vld [vmem:[%s5684] sm:$0xff]
  %v5686 = vld [vmem:[%s5684 + $0x8] sm:$0xff]
  %v5687 = vld [vmem:[%s5684 + $0x10] sm:$0xff]
  %v5688 = vld [vmem:[%s5684 + $0x18] sm:$0xff]
  %v5689 = vld [vmem:[%s5684 + $0x20] sm:$0xff]
  %v5690 = vld [vmem:[%s5684 + $0x28] sm:$0xff]
  %v5691 = vld [vmem:[%s5684 + $0x30] sm:$0xff]
  %v5692 = vld [vmem:[%s5684 + $0x38] sm:$0xff]
  %v5693 = vld [vmem:[%s5684 + $0x40] sm:$0xff]
  %v5694 = vld [vmem:[%s5684 + $0x48] sm:$0xff]
  %v5695 = vld [vmem:[%s5684 + $0x50] sm:$0xff]
  %v5696 = vld [vmem:[%s5684 + $0x58] sm:$0xff]
  %v5697 = vld [vmem:[%s5684 + $0x60] sm:$0xff]
  %v5698 = vld [vmem:[%s5684 + $0x68] sm:$0xff]
  %v5699 = vld [vmem:[%s5684 + $0x70] sm:$0xff]
  %v5700 = vld [vmem:[%s5684 + $0x78] sm:$0xff]
  %5701 = vmatpush.msra.mxu0 %v5700
  %5702 = vmatpush.msra.mxu0 %v5699
  %5703 = vmatpush.msra.mxu0 %v5698
  %5704 = vmatpush.msra.mxu0 %v5697
  %5705 = vmatpush.msra.mxu0 %v5696
  %5706 = vmatpush.msra.mxu0 %v5695
  %5707 = vmatpush.msra.mxu0 %v5694
  %5708 = vmatpush.msra.mxu0 %v5693
  %5709 = vmatpush.msra.mxu0 %v5692
  %5710 = vmatpush.msra.mxu0 %v5691
  %5711 = vmatpush.msra.mxu0 %v5690
  %5712 = vmatpush.msra.mxu0 %v5689
  %5713 = vmatpush.msra.mxu0 %v5688
  %5714 = vmatpush.msra.mxu0 %v5687
  %5715 = vmatpush.msra.mxu0 %v5686
  %5716 = vmatpush.msra.mxu0 %v5685
  %5717 = vmatmul.f32.gmra.mxu0 %v5683
  %v5718 = vpop.f32.mrf.mxu0
  %v5719 = vadd.f32 0.0, %v5718
  %5720 = vdwg.mxu0
  %v5721 = vadd.f32 %v5680, %v5719
  %s5722 = scalar_lea.vmem [#allocation7], 24
  %v5723 = vld [vmem:[%s5722] ss:$40 sm:$0x3]
  %s5724 = scalar_lea.vmem %s6, 384
  %v5725 = vld [vmem:[%s5724] sm:$0xff]
  %v5726 = vld [vmem:[%s5724 + $0x8] sm:$0xff]
  %v5727 = vld [vmem:[%s5724 + $0x10] sm:$0xff]
  %v5728 = vld [vmem:[%s5724 + $0x18] sm:$0xff]
  %v5729 = vld [vmem:[%s5724 + $0x20] sm:$0xff]
  %v5730 = vld [vmem:[%s5724 + $0x28] sm:$0xff]
  %v5731 = vld [vmem:[%s5724 + $0x30] sm:$0xff]
  %v5732 = vld [vmem:[%s5724 + $0x38] sm:$0xff]
  %v5733 = vld [vmem:[%s5724 + $0x40] sm:$0xff]
  %v5734 = vld [vmem:[%s5724 + $0x48] sm:$0xff]
  %v5735 = vld [vmem:[%s5724 + $0x50] sm:$0xff]
  %v5736 = vld [vmem:[%s5724 + $0x58] sm:$0xff]
  %v5737 = vld [vmem:[%s5724 + $0x60] sm:$0xff]
  %v5738 = vld [vmem:[%s5724 + $0x68] sm:$0xff]
  %v5739 = vld [vmem:[%s5724 + $0x70] sm:$0xff]
  %v5740 = vld [vmem:[%s5724 + $0x78] sm:$0xff]
  %5741 = vmatpush.msra.mxu0 %v5740
  %5742 = vmatpush.msra.mxu0 %v5739
  %5743 = vmatpush.msra.mxu0 %v5738
  %5744 = vmatpush.msra.mxu0 %v5737
  %5745 = vmatpush.msra.mxu0 %v5736
  %5746 = vmatpush.msra.mxu0 %v5735
  %5747 = vmatpush.msra.mxu0 %v5734
  %5748 = vmatpush.msra.mxu0 %v5733
  %5749 = vmatpush.msra.mxu0 %v5732
  %5750 = vmatpush.msra.mxu0 %v5731
  %5751 = vmatpush.msra.mxu0 %v5730
  %5752 = vmatpush.msra.mxu0 %v5729
  %5753 = vmatpush.msra.mxu0 %v5728
  %5754 = vmatpush.msra.mxu0 %v5727
  %5755 = vmatpush.msra.mxu0 %v5726
  %5756 = vmatpush.msra.mxu0 %v5725
  %5757 = vmatmul.f32.gmra.mxu0 %v5723
  %v5758 = vpop.f32.mrf.mxu0
  %v5759 = vadd.f32 0.0, %v5758
  %5760 = vdwg.mxu0
  %v5761 = vadd.f32 %v5721, %v5759
  %s5762 = scalar_lea.vmem [#allocation7], 32
  %v5763 = vld [vmem:[%s5762] ss:$40 sm:$0x3]
  %s5764 = scalar_lea.vmem %s6, 512
  %v5765 = vld [vmem:[%s5764] sm:$0xff]
  %v5766 = vld [vmem:[%s5764 + $0x8] sm:$0xff]
  %v5767 = vld [vmem:[%s5764 + $0x10] sm:$0xff]
  %v5768 = vld [vmem:[%s5764 + $0x18] sm:$0xff]
  %v5769 = vld [vmem:[%s5764 + $0x20] sm:$0xff]
  %v5770 = vld [vmem:[%s5764 + $0x28] sm:$0xff]
  %v5771 = vld [vmem:[%s5764 + $0x30] sm:$0xff]
  %v5772 = vld [vmem:[%s5764 + $0x38] sm:$0xff]
  %v5773 = vld [vmem:[%s5764 + $0x40] sm:$0xff]
  %v5774 = vld [vmem:[%s5764 + $0x48] sm:$0xff]
  %v5775 = vld [vmem:[%s5764 + $0x50] sm:$0xff]
  %v5776 = vld [vmem:[%s5764 + $0x58] sm:$0xff]
  %v5777 = vld [vmem:[%s5764 + $0x60] sm:$0xff]
  %v5778 = vld [vmem:[%s5764 + $0x68] sm:$0xff]
  %v5779 = vld [vmem:[%s5764 + $0x70] sm:$0xff]
  %v5780 = vld [vmem:[%s5764 + $0x78] sm:$0xff]
  %5781 = vmatpush.msra.mxu0 %v5780
  %5782 = vmatpush.msra.mxu0 %v5779
  %5783 = vmatpush.msra.mxu0 %v5778
  %5784 = vmatpush.msra.mxu0 %v5777
  %5785 = vmatpush.msra.mxu0 %v5776
  %5786 = vmatpush.msra.mxu0 %v5775
  %5787 = vmatpush.msra.mxu0 %v5774
  %5788 = vmatpush.msra.mxu0 %v5773
  %5789 = vmatpush.msra.mxu0 %v5772
  %5790 = vmatpush.msra.mxu0 %v5771
  %5791 = vmatpush.msra.mxu0 %v5770
  %5792 = vmatpush.msra.mxu0 %v5769
  %5793 = vmatpush.msra.mxu0 %v5768
  %5794 = vmatpush.msra.mxu0 %v5767
  %5795 = vmatpush.msra.mxu0 %v5766
  %5796 = vmatpush.msra.mxu0 %v5765
  %5797 = vmatmul.f32.gmra.mxu0 %v5763
  %v5798 = vpop.f32.mrf.mxu0
  %v5799 = vadd.f32 0.0, %v5798
  %5800 = vdwg.mxu0
  %v5801 = vadd.f32 %v5761, %v5799
  %v5802 = vld [vmem:[%s7] sm:$0x1]
  %v5804 = vperm.slane %v5802, 0
  %v5806 = vadd.f32 %v5801, %v5804
  %v5807 = vmax.f32 %v5806, 0.0
  %v5808 = vld [vmem:[%s8] sm:$0xff]
  %v5809 = vld [vmem:[%s8 + $0x8] sm:$0xff]
  %v5810 = vld [vmem:[%s8 + $0x10] sm:$0xff]
  %v5811 = vld [vmem:[%s8 + $0x18] sm:$0xff]
  %v5812 = vld [vmem:[%s8 + $0x20] sm:$0xff]
  %v5813 = vld [vmem:[%s8 + $0x28] sm:$0xff]
  %v5814 = vld [vmem:[%s8 + $0x30] sm:$0xff]
  %v5815 = vld [vmem:[%s8 + $0x38] sm:$0xff]
  %v5816 = vld [vmem:[%s8 + $0x40] sm:$0xff]
  %v5817 = vld [vmem:[%s8 + $0x48] sm:$0xff]
  %v5818 = vld [vmem:[%s8 + $0x50] sm:$0xff]
  %v5819 = vld [vmem:[%s8 + $0x58] sm:$0xff]
  %v5820 = vld [vmem:[%s8 + $0x60] sm:$0xff]
  %v5821 = vld [vmem:[%s8 + $0x68] sm:$0xff]
  %v5822 = vld [vmem:[%s8 + $0x70] sm:$0xff]
  %v5823 = vld [vmem:[%s8 + $0x78] sm:$0xff]
  %v5824 = vld [vmem:[%s9] sm:$0x1]
  %v5826 = vperm.slane %v5824, 0
  %5828 = vmatpush.msra.mxu0 %v5823
  %5829 = vmatpush.msra.mxu0 %v5822
  %5830 = vmatpush.msra.mxu0 %v5821
  %5831 = vmatpush.msra.mxu0 %v5820
  %5832 = vmatpush.msra.mxu0 %v5819
  %5833 = vmatpush.msra.mxu0 %v5818
  %5834 = vmatpush.msra.mxu0 %v5817
  %5835 = vmatpush.msra.mxu0 %v5816
  %5836 = vmatpush.msra.mxu0 %v5815
  %5837 = vmatpush.msra.mxu0 %v5814
  %5838 = vmatpush.msra.mxu0 %v5813
  %5839 = vmatpush.msra.mxu0 %v5812
  %5840 = vmatpush.msra.mxu0 %v5811
  %5841 = vmatpush.msra.mxu0 %v5810
  %5842 = vmatpush.msra.mxu0 %v5809
  %5843 = vmatpush.msra.mxu0 %v5808
  %5844 = vmatmul.f32.gmra.mxu0 %v5807
  %v5845 = vpop.f32.mrf.mxu0
  %v5846 = vadd.f32 %v5826, %v5845
  %5847 = vdwg.mxu0
  %v5848 = vmax.f32 %v5846, 0.0
  %v5849 = vld [vmem:[%s10] sm:$0xff]
  %v5850 = vld [vmem:[%s10 + $0x8] sm:$0xff]
  %v5851 = vld [vmem:[%s10 + $0x10] sm:$0xff]
  %v5852 = vld [vmem:[%s10 + $0x18] sm:$0xff]
  %v5853 = vld [vmem:[%s10 + $0x20] sm:$0xff]
  %v5854 = vld [vmem:[%s10 + $0x28] sm:$0xff]
  %v5855 = vld [vmem:[%s10 + $0x30] sm:$0xff]
  %v5856 = vld [vmem:[%s10 + $0x38] sm:$0xff]
  %v5857 = vld [vmem:[%s10 + $0x40] sm:$0xff]
  %v5858 = vld [vmem:[%s10 + $0x48] sm:$0xff]
  %v5859 = vld [vmem:[%s10 + $0x50] sm:$0xff]
  %v5860 = vld [vmem:[%s10 + $0x58] sm:$0xff]
  %v5861 = vld [vmem:[%s10 + $0x60] sm:$0xff]
  %v5862 = vld [vmem:[%s10 + $0x68] sm:$0xff]
  %v5863 = vld [vmem:[%s10 + $0x70] sm:$0xff]
  %v5864 = vld [vmem:[%s10 + $0x78] sm:$0xff]
  %v5865 = vld [vmem:[%s11] sm:$0x1]
  %v5867 = vperm.slane %v5865, 0
  %5869 = vmatpush.msra.mxu0 %v5864
  %5870 = vmatpush.msra.mxu0 %v5863
  %5871 = vmatpush.msra.mxu0 %v5862
  %5872 = vmatpush.msra.mxu0 %v5861
  %5873 = vmatpush.msra.mxu0 %v5860
  %5874 = vmatpush.msra.mxu0 %v5859
  %5875 = vmatpush.msra.mxu0 %v5858
  %5876 = vmatpush.msra.mxu0 %v5857
  %5877 = vmatpush.msra.mxu0 %v5856
  %5878 = vmatpush.msra.mxu0 %v5855
  %5879 = vmatpush.msra.mxu0 %v5854
  %5880 = vmatpush.msra.mxu0 %v5853
  %5881 = vmatpush.msra.mxu0 %v5852
  %5882 = vmatpush.msra.mxu0 %v5851
  %5883 = vmatpush.msra.mxu0 %v5850
  %5884 = vmatpush.msra.mxu0 %v5849
  %5885 = vmatmul.f32.gmra.mxu0 %v5848
  %v5886 = vpop.f32.mrf.mxu0
  %v5887 = vadd.f32 %v5867, %v5886
  %5888 = vdwg.mxu0
  %5889 = vst [vmem:[%s12] sm:$0xff] 0.0
  %5890 = vst [vmem:[%s12] sm:$0x3] %v5887
  // Predicated region
  $region50: #{net_forward.1} parent=0 // pred_check
    _
  $region51: #{net_forward.1} parent=0 // pred_check_branch
    %5892 = sbr.rel (0) target = $region53
  $region52: #{net_forward.1} parent=0 // pred_region
    _
  $region53: #{net_forward.1} parent=0 // pred_fallthru
    _
  // Predicated region
  $region54: #{net_forward.1} parent=0 // pred_check
    _
  $region55: #{net_forward.1} parent=0 // pred_check_branch
    %5894 = sbr.rel (0) target = $region57
  $region56: #{net_forward.1} parent=0 // pred_region
    _
  $region57: #{net_forward.1} parent=0 // pred_fallthru
    _

</llo_original>
